<compile_context>
chip_gen: v5e
topology: v5e:2x2
jax: 0.10.0
libtpu: 0.0.40
codegen_flags: <defaults>
</compile_context>

<pallas_src>
import math
from functools import partial

import jax
import jax.numpy as jnp
import numpy as np
from jax import lax
from jax.experimental import pallas as pl
from jax.experimental.pallas import tpu as pltpu


def _gelu_exact(z):
    # matches torch.nn.GELU() (erf form)
    return 0.5 * z * (1.0 + lax.erf(z * (1.0 / math.sqrt(2.0))))


def _layernorm(z, w, b, eps):
    # two-pass mean/variance (matches the reference; avoids E[x^2]-E[x]^2 cancellation)
    mu = jnp.mean(z, axis=-1, keepdims=True)
    zc = z - mu
    var = jnp.mean(zc * zc, axis=-1, keepdims=True)
    return zc * lax.rsqrt(var + eps) * w + b


def _cab_kernel(x_ref,
                seg_ref, segt_ref,
                n1w_ref, n1b_ref,
                wq_ref, wk_ref, wv_ref,
                projw_ref, projb_ref,
                n2w_ref, n2b_ref,
                f1w_ref, f1b_ref, f2w_ref, f2b_ref,
                g1_ref, g2_ref,
                o_ref,
                *, tokens_norm, eps, n_valid, n_batch):
    Bt, Np, C = x_ref.shape
    H = seg_ref.shape[1]
    R = Bt * Np
    f32, bf16 = jnp.float32, jnp.bfloat16

    # ---- load block in its native dtype, compute in f32 ---------------------
    x2d = x_ref[...].astype(f32).reshape(R, C)               # (R, C)

    # Row-selector matrices built from 2D iotas (static shapes, built in VMEM,
    # exact one-hots).  d[r, b] = token offset of flat row r inside sample b.
    r_col = lax.broadcasted_iota(jnp.int32, (R, Bt), 0)
    b_col = lax.broadcasted_iota(jnp.int32, (R, Bt), 1)
    d = r_col - b_col * Np                                    # (R, Bt)
    b_row = lax.broadcasted_iota(jnp.int32, (Bt, R), 0)
    r_row = lax.broadcasted_iota(jnp.int32, (Bt, R), 1)
    dT = r_row - b_row * Np                                   # (Bt, R)

    sel_is_cls = (d == 0).astype(f32)                         # row r == cls row of sample b
    sel_bcast = ((d >= 0) & (d < Np)).astype(f32)             # row r belongs to sample b
    selT_cls = (dT == 0).astype(f32)
    selT_sum = ((dT >= 0) & (dT < Np)).astype(f32)

    pad_tokens = Np != n_valid
    pad_batch = (n_batch % Bt) != 0
    if pad_tokens or pad_batch:
        # Token-/batch-padding rows carry unspecified data (partial block); zero
        # them so they stay finite (0 * inf/NaN would poison the one-hot matmuls).
        valid_b = n_batch - pl.program_id(0) * Bt
        ok = (d >= 0) & (d < n_valid) & (b_col < valid_b)
        row_ok = jnp.sum(ok.astype(f32), axis=1, keepdims=True) > 0.5
        x2d = jnp.where(row_ok, x2d, 0.0)

    # ---- LayerNorm1 (f32, VPU) -----------------------------------------------
    n1w = n1w_ref[...]
    n1b = n1b_ref[...]
    xn2d = _layernorm(x2d, n1w, n1b, eps)                     # (R, C)
    xn_b = xn2d.astype(bf16)

    # ---- k, v for every token; q only for the Bt cls rows (bf16 MXU) ---------
    k2d = jnp.dot(xn_b, wk_ref[...], preferred_element_type=f32)    # (R, C)
    v2d = jnp.dot(xn_b, wv_ref[...], preferred_element_type=f32)    # (R, C)

    cls_x = jnp.dot(selT_cls, x2d, preferred_element_type=f32)      # (Bt, C) exact gather
    cls_xn = _layernorm(cls_x, n1w, n1b, eps)                       # recompute LN on Bt rows
    q_cls = jnp.dot(cls_xn.astype(bf16), wq_ref[...],
                    preferred_element_type=f32)                     # (Bt, C), scale folded in

    # ---- fused multi-head class attention ------------------------------------
    qb2d = jnp.dot(sel_bcast, q_cls, preferred_element_type=f32)    # q of own sample per row
    logits2d = jnp.dot((qb2d * k2d).astype(bf16), seg_ref[...],
                       preferred_element_type=f32)                  # (R, H) per-head logits

    if pad_tokens:
        tok_ok = lax.broadcasted_iota(jnp.int32, (Np, H), 0) < n_valid

    attn_rows = []
    for b in range(Bt):                      # only tiny (Np, H) tiles live per iteration
        lg = logits2d[b * Np:(b + 1) * Np, :]
        if pad_tokens:
            lg = jnp.where(tok_ok, lg, -1e30)
        m = jnp.max(lg, axis=0, keepdims=True)
        e = jnp.exp(lg - m)
        s = jnp.sum(e, axis=0, keepdims=True)
        attn_rows.append(e * pl.reciprocal(s, approx=True))         # EUP reciprocal
    attn2d = jnp.concatenate(attn_rows, axis=0)                     # (R, H)

    attn_c2d = jnp.dot(attn2d.astype(bf16), segt_ref[...],
                       preferred_element_type=f32)                  # (R, C) per-channel weight
    cls_tkn = jnp.dot(selT_sum, attn_c2d * v2d,
                      preferred_element_type=f32)                   # (Bt, C) segmented reduce

    cls_proj = jnp.dot(cls_tkn.astype(bf16), projw_ref[...],
                       preferred_element_type=f32) + projb_ref[...]  # (Bt, C)

    # ---- residual 1 ------------------------------------------------------------
    g1 = g1_ref[...]
    x1_bulk = x2d + g1 * xn2d               # non-cls rows (cls rows handled separately)
    x1_cls = cls_x + g1 * cls_proj          # (Bt, C)

    # ---- norm2 (full or cls-token-only) ----------------------------------------
    n2w = n2w_ref[...]
    n2b = n2b_ref[...]
    x2_bulk = _layernorm(x1_bulk, n2w, n2b, eps) if tokens_norm else x1_bulk
    x2_cls = _layernorm(x1_cls, n2w, n2b, eps)   # cls row is normed in both modes

    # ---- MLP on the Bt cls tokens (batched, M = Bt) ----------------------------
    h = jnp.dot(x2_cls.astype(bf16), f1w_ref[...],
                preferred_element_type=f32) + f1b_ref[...]
    h = _gelu_exact(h)
    mlp = jnp.dot(h.astype(bf16), f2w_ref[...],
                  preferred_element_type=f32) + f2b_ref[...]
    out_cls = x2_cls + g2_ref[...] * mlp                             # (Bt, C)

    # ---- merge + single full-tile, lane-dense store ----------------------------
    # non-cls rows are x2 + x2  (matches the module's `x = x_res + x` quirk).
    placed = jnp.dot(sel_is_cls, out_cls, preferred_element_type=f32)
    is_cls = jnp.sum(sel_is_cls, axis=1, keepdims=True) > 0.5        # (R, 1)
    out2d = jnp.where(is_cls, placed, 2.0 * x2_bulk)
    o_ref[...] = out2d.reshape(Bt, Np, C).astype(o_ref.dtype)


def class_attention_block(x, params, *, num_heads, tokens_norm=False, eps=1e-5,
                          block_b=8):
    B, N, C = x.shape
    assert C % num_heads == 0
    Dh = C // num_heads
    scale = Dh ** -0.5

    f32, bf16 = jnp.float32, jnp.bfloat16
    row = lambda v: jnp.asarray(v, f32).reshape(1, -1)

    qkv_t = jnp.asarray(params["qkv_w"], f32).T                      # (C, 3C)
    wq = (qkv_t[:, :C] * scale).astype(bf16)                         # scale folded into Wq
    wk = qkv_t[:, C:2 * C].astype(bf16)
    wv = qkv_t[:, 2 * C:].astype(bf16)

    head_of_c = jnp.arange(C) // Dh
    seg = (head_of_c[:, None] == jnp.arange(num_heads)[None, :]).astype(bf16)  # (C, H)
    segt = jnp.transpose(seg)                                                   # (H, C)

    weights = [
        seg, segt,
        row(params["norm1_w"]), row(params["norm1_b"]),
        wq, wk, wv,
        jnp.asarray(params["proj_w"], f32).T.astype(bf16), row(params["proj_b"]),
        row(params["norm2_w"]), row(params["norm2_b"]),
        jnp.asarray(params["fc1_w"], f32).T.astype(bf16), row(params["fc1_b"]),
        jnp.asarray(params["fc2_w"], f32).T.astype(bf16), row(params["fc2_b"]),
        row(params["gamma1"]), row(params["gamma2"]),
    ]
    w_bytes = sum(int(np.prod(w.shape)) * w.dtype.itemsize for w in weights)

    # Block geometry: token dim rounded up to a sublane multiple *inside* the
    # BlockSpec (no wrapper pad / output slice HBM passes); batch dim is a cdiv
    # grid with a partial last block.
    Np = ((N + 7) // 8) * 8
    Bt = max(1, min(block_b, B))
    if B > 1:
        Bt = min(Bt, -(-B // 2))        # keep the ("parallel",) grid >= 2 (v7x: 2 TCs)

    in_itemsize = jnp.dtype(x.dtype).itemsize
    try:
        vmem_cap = int(pltpu.get_tpu_info().vmem_capacity_bytes)
    except Exception:
        vmem_cap = 64 << 20
    vmem_cap = (vmem_cap * 7) // 8      # headroom for compiler-internal scratch

    def _vmem_need(bt, w_mult):
        r = bt * Np
        return (w_mult * w_bytes                      # resident bf16 weights
                + 4 * bt * Np * C * in_itemsize       # double-buffered x/out blocks
                + 12 * r * C * 4 + 4 * r * bt * 4     # f32 intermediates + selectors
                + (2 << 20))

    while Bt > 1 and _vmem_need(Bt, 2) > vmem_cap:
        Bt //= 2
    Gb = pl.cdiv(B, Bt)

    kernel = partial(_cab_kernel, tokens_norm=tokens_norm, eps=eps,
                     n_valid=N, n_batch=B)

    def _attempt(pad_io, single_buffer_weights):
        if pad_io:
            # conservative fallback path (extra HBM passes) - only used if this
            # jax/mosaic version rejects block-level token/batch padding.
            Bp = Gb * Bt
            x_in = jnp.pad(x, ((0, Bp - B), (0, Np - N), (0, 0)))
            out_dims = (Bp, Np, C)
        else:
            x_in = x
            out_dims = (B, N, C)

        def _wspec(w):
            if single_buffer_weights:
                # constant index_map -> a second buffer buys nothing
                return pl.BlockSpec(w.shape, lambda i: (0, 0),
                                    pipeline_mode=pl.Buffered(1))
            return pl.BlockSpec(w.shape, lambda i: (0, 0))

        w_mult = 1 if single_buffer_weights else 2
        vmem_limit = int(min(max(_vmem_need(Bt, w_mult), 32 << 20), vmem_cap))

        out = pl.pallas_call(
            kernel,
            out_shape=jax.ShapeDtypeStruct(out_dims, x.dtype),
            grid=(Gb,),
            in_specs=[pl.BlockSpec((Bt, Np, C), lambda i: (i, 0, 0))]
                     + [_wspec(w) for w in weights],
            out_specs=pl.BlockSpec((Bt, Np, C), lambda i: (i, 0, 0)),
            compiler_params=pltpu.CompilerParams(
                dimension_semantics=("parallel",),
                vmem_limit_bytes=vmem_limit),
        )(x_in, *weights)
        if pad_io:
            out = out[:B, :N]
        return out

    # Preferred config first; fall back if this jax version rejects
    # single-buffered weight specs or block-level padding.
    for cfg in ((False, True), (False, False)):
        try:
            return _attempt(*cfg)
        except Exception:
            continue
    return _attempt(True, False)


def init_params(key, dim, num_heads, mlp_ratio=4.0):
    hidden = int(dim * mlp_ratio)
    ks = jax.random.split(key, 8)
    std = 0.02
    return dict(
        norm1_w=jnp.ones((dim,), jnp.float32),
        norm1_b=jnp.zeros((dim,), jnp.float32),
        qkv_w=std * jax.random.normal(ks[0], (3 * dim, dim), jnp.float32),  # qkv_bias=False
        proj_w=std * jax.random.normal(ks[1], (dim, dim), jnp.float32),
        proj_b=std * jax.random.normal(ks[2], (dim,), jnp.float32),
        norm2_w=jnp.ones((dim,), jnp.float32),
        norm2_b=jnp.zeros((dim,), jnp.float32),
        fc1_w=std * jax.random.normal(ks[3], (hidden, dim), jnp.float32),
        fc1_b=std * jax.random.normal(ks[4], (hidden,), jnp.float32),
        fc2_w=std * jax.random.normal(ks[5], (dim, hidden), jnp.float32),
        fc2_b=std * jax.random.normal(ks[6], (dim,), jnp.float32),
        gamma1=jnp.ones((dim,), jnp.float32),   # eta=None -> gamma1 = 1.0
        gamma2=jnp.ones((dim,), jnp.float32),   # eta=None -> gamma2 = 1.0
    )


def reference(x, p, *, num_heads, tokens_norm=False, eps=1e-5):
    """Pure-JAX mirror of the PyTorch forward (for verification)."""
    B, N, C = x.shape
    Dh = C // num_heads
    scale = Dh ** -0.5

    def ln(z, w, b):
        mu = z.mean(-1, keepdims=True)
        var = ((z - mu) ** 2).mean(-1, keepdims=True)
        return (z - mu) / jnp.sqrt(var + eps) * w + b

    xn = ln(x, p["norm1_w"], p["norm1_b"])
    qkv = (xn @ p["qkv_w"].T).reshape(B, N, 3, num_heads, Dh).transpose(2, 0, 3, 1, 4)
    q, k, v = qkv[0], qkv[1], qkv[2]                      # (B, H, N, Dh)
    qc = q[:, :, 0:1]
    attn = jax.nn.softmax((qc * k).sum(-1) * scale, axis=-1)   # (B, H, N)
    cls = (attn[:, :, None, :] @ v).transpose(0, 2, 1, 3).reshape(B, 1, C)
    cls = cls @ p["proj_w"].T + p["proj_b"]
    x1 = x + p["gamma1"] * jnp.concatenate([cls, xn[:, 1:]], axis=1)
    if tokens_norm:
        x2 = ln(x1, p["norm2_w"], p["norm2_b"])
    else:
        x2 = x1.at[:, 0:1].set(ln(x1[:, 0:1], p["norm2_w"], p["norm2_b"]))
    cls_t = x2[:, 0:1]
    h = cls_t @ p["fc1_w"].T + p["fc1_b"]
    h = 0.5 * h * (1.0 + lax.erf(h / jnp.sqrt(2.0)))
    mlp = h @ p["fc2_w"].T + p["fc2_b"]
    return x2 + jnp.concatenate([p["gamma2"] * mlp, x2[:, 1:]], axis=1)


if __name__ == "__main__":
    # batch=3, tokens=10 (cls + 9 patches), dim=32, heads=4.
    # block_b=2 exercises both the partial-batch grid block and the token-padding mask.
    B, N, C, H = 3, 10, 32, 4
    key = jax.random.PRNGKey(0)
    kx, kp = jax.random.split(key)
    x = jax.random.normal(kx, (B, N, C), jnp.float32)
    params = init_params(kp, C, H, mlp_ratio=4.0)

    for tn in (False, True):
        out = class_attention_block(x, params, num_heads=H, tokens_norm=tn, block_b=2)
        out = jax.block_until_ready(out)
        ref = reference(x, params, num_heads=H, tokens_norm=tn)
        np.testing.assert_allclose(np.asarray(out), np.asarray(ref),
                                   rtol=2e-2, atol=2e-2)

    # native-dtype (bf16) HBM I/O path: halves in/out bytes on the mem-bound kernel.
    out_bf = class_attention_block(x.astype(jnp.bfloat16), params, num_heads=H,
                                   tokens_norm=False, block_b=2)
    out_bf = jax.block_until_ready(out_bf)
    ref = reference(x, params, num_heads=H, tokens_norm=False)
    np.testing.assert_allclose(np.asarray(out_bf.astype(jnp.float32)), np.asarray(ref),
                               rtol=1e-1, atol=1e-1)

    print("KERNEL_OK")
</pallas_src>

<mosaic_0001>
module attributes {stable_mosaic.version = 11 : i64} {
  func.func @_cab_kernel(%arg0: i32, %arg1: memref<2x16x32xf32, #tpu.memory_space<vmem>>, %arg2: memref<32x4xbf16, #tpu.memory_space<vmem>>, %arg3: memref<4x32xbf16, #tpu.memory_space<vmem>>, %arg4: memref<1x32xf32, #tpu.memory_space<vmem>>, %arg5: memref<1x32xf32, #tpu.memory_space<vmem>>, %arg6: memref<32x32xbf16, #tpu.memory_space<vmem>>, %arg7: memref<32x32xbf16, #tpu.memory_space<vmem>>, %arg8: memref<32x32xbf16, #tpu.memory_space<vmem>>, %arg9: memref<32x32xbf16, #tpu.memory_space<vmem>>, %arg10: memref<1x32xf32, #tpu.memory_space<vmem>>, %arg11: memref<1x32xf32, #tpu.memory_space<vmem>>, %arg12: memref<1x32xf32, #tpu.memory_space<vmem>>, %arg13: memref<32x128xbf16, #tpu.memory_space<vmem>>, %arg14: memref<1x128xf32, #tpu.memory_space<vmem>>, %arg15: memref<128x32xbf16, #tpu.memory_space<vmem>>, %arg16: memref<1x32xf32, #tpu.memory_space<vmem>>, %arg17: memref<1x32xf32, #tpu.memory_space<vmem>>, %arg18: memref<1x32xf32, #tpu.memory_space<vmem>>, %arg19: memref<2x16x32xf32, #tpu.memory_space<vmem>>) attributes {dimension_semantics = [#tpu.dimension_semantics<parallel>], iteration_bounds = array<i64: 2>, scalar_prefetch = 0 : i64, scratch_operands = 0 : i64, tpu.core_type = #tpu.core_type<tc>, window_params = [{transform_indices = @transform_0, window_bounds = array<i64: 2, 16, 32>}, {pipeline_mode = #tpu.pipeline_mode<synchronous>, transform_indices = @transform_1, window_bounds = array<i64: 32, 4>}, {pipeline_mode = #tpu.pipeline_mode<synchronous>, transform_indices = @transform_2, window_bounds = array<i64: 4, 32>}, {pipeline_mode = #tpu.pipeline_mode<synchronous>, transform_indices = @transform_3, window_bounds = array<i64: 1, 32>}, {pipeline_mode = #tpu.pipeline_mode<synchronous>, transform_indices = @transform_4, window_bounds = array<i64: 1, 32>}, {pipeline_mode = #tpu.pipeline_mode<synchronous>, transform_indices = @transform_5, window_bounds = array<i64: 32, 32>}, {pipeline_mode = #tpu.pipeline_mode<synchronous>, transform_indices = @transform_6, window_bounds = array<i64: 32, 32>}, {pipeline_mode = #tpu.pipeline_mode<synchronous>, transform_indices = @transform_7, window_bounds = array<i64: 32, 32>}, {pipeline_mode = #tpu.pipeline_mode<synchronous>, transform_indices = @transform_8, window_bounds = array<i64: 32, 32>}, {pipeline_mode = #tpu.pipeline_mode<synchronous>, transform_indices = @transform_9, window_bounds = array<i64: 1, 32>}, {pipeline_mode = #tpu.pipeline_mode<synchronous>, transform_indices = @transform_10, window_bounds = array<i64: 1, 32>}, {pipeline_mode = #tpu.pipeline_mode<synchronous>, transform_indices = @transform_11, window_bounds = array<i64: 1, 32>}, {pipeline_mode = #tpu.pipeline_mode<synchronous>, transform_indices = @transform_12, window_bounds = array<i64: 32, 128>}, {pipeline_mode = #tpu.pipeline_mode<synchronous>, transform_indices = @transform_13, window_bounds = array<i64: 1, 128>}, {pipeline_mode = #tpu.pipeline_mode<synchronous>, transform_indices = @transform_14, window_bounds = array<i64: 128, 32>}, {pipeline_mode = #tpu.pipeline_mode<synchronous>, transform_indices = @transform_15, window_bounds = array<i64: 1, 32>}, {pipeline_mode = #tpu.pipeline_mode<synchronous>, transform_indices = @transform_16, window_bounds = array<i64: 1, 32>}, {pipeline_mode = #tpu.pipeline_mode<synchronous>, transform_indices = @transform_17, window_bounds = array<i64: 1, 32>}, {transform_indices = @transform_18, window_bounds = array<i64: 2, 16, 32>}]} {
    %c0 = arith.constant 0 : index
    %c0_0 = arith.constant 0 : index
    %c0_1 = arith.constant 0 : index
    %0 = vector.load %arg1[%c0, %c0_0, %c0_1] : memref<2x16x32xf32, #tpu.memory_space<vmem>>, vector<2x16x32xf32>
    %1 = vector.shape_cast %0 : vector<2x16x32xf32> to vector<32x32xf32>
    %2 = tpu.iota {dimensions = array<i32: 0>} : vector<32x2xi32>
    %3 = tpu.iota {dimensions = array<i32: 1>} : vector<32x2xi32>
    %c16_i32 = arith.constant 16 : i32
    %4 = vector.broadcast %c16_i32 : i32 to vector<32x2xi32>
    %5 = arith.muli %3, %4 : vector<32x2xi32>
    %6 = arith.subi %2, %5 : vector<32x2xi32>
    %7 = tpu.iota {dimensions = array<i32: 0>} : vector<2x32xi32>
    %8 = tpu.iota {dimensions = array<i32: 1>} : vector<2x32xi32>
    %c16_i32_2 = arith.constant 16 : i32
    %9 = vector.broadcast %c16_i32_2 : i32 to vector<2x32xi32>
    %10 = arith.muli %7, %9 : vector<2x32xi32>
    %11 = arith.subi %8, %10 : vector<2x32xi32>
    %c0_i32 = arith.constant 0 : i32
    %12 = vector.broadcast %c0_i32 : i32 to vector<32x2xi32>
    %13 = arith.cmpi eq, %6, %12 : vector<32x2xi32>
    %14 = arith.extui %13 : vector<32x2xi1> to vector<32x2xi32>
    %15 = arith.sitofp %14 : vector<32x2xi32> to vector<32x2xf32>
    %c0_i32_3 = arith.constant 0 : i32
    %16 = vector.broadcast %c0_i32_3 : i32 to vector<32x2xi32>
    %17 = arith.cmpi sge, %6, %16 : vector<32x2xi32>
    %c16_i32_4 = arith.constant 16 : i32
    %18 = vector.broadcast %c16_i32_4 : i32 to vector<32x2xi32>
    %19 = arith.cmpi slt, %6, %18 : vector<32x2xi32>
    %20 = arith.andi %17, %19 : vector<32x2xi1>
    %21 = arith.extui %20 : vector<32x2xi1> to vector<32x2xi32>
    %22 = arith.sitofp %21 : vector<32x2xi32> to vector<32x2xf32>
    %c0_i32_5 = arith.constant 0 : i32
    %23 = vector.broadcast %c0_i32_5 : i32 to vector<2x32xi32>
    %24 = arith.cmpi eq, %11, %23 : vector<2x32xi32>
    %25 = arith.extui %24 : vector<2x32xi1> to vector<2x32xi32>
    %26 = arith.sitofp %25 : vector<2x32xi32> to vector<2x32xf32>
    %c0_i32_6 = arith.constant 0 : i32
    %27 = vector.broadcast %c0_i32_6 : i32 to vector<2x32xi32>
    %28 = arith.cmpi sge, %11, %27 : vector<2x32xi32>
    %c16_i32_7 = arith.constant 16 : i32
    %29 = vector.broadcast %c16_i32_7 : i32 to vector<2x32xi32>
    %30 = arith.cmpi slt, %11, %29 : vector<2x32xi32>
    %31 = arith.andi %28, %30 : vector<2x32xi1>
    %32 = arith.extui %31 : vector<2x32xi1> to vector<2x32xi32>
    %33 = arith.sitofp %32 : vector<2x32xi32> to vector<2x32xf32>
    %c2_i32 = arith.constant 2 : i32
    %34 = arith.muli %arg0, %c2_i32 : i32
    %c3_i32 = arith.constant 3 : i32
    %35 = arith.subi %c3_i32, %34 : i32
    %c0_i32_8 = arith.constant 0 : i32
    %36 = vector.broadcast %c0_i32_8 : i32 to vector<32x2xi32>
    %37 = arith.cmpi sge, %6, %36 : vector<32x2xi32>
    %c10_i32 = arith.constant 10 : i32
    %38 = vector.broadcast %c10_i32 : i32 to vector<32x2xi32>
    %39 = arith.cmpi slt, %6, %38 : vector<32x2xi32>
    %40 = arith.andi %37, %39 : vector<32x2xi1>
    %41 = vector.broadcast %35 : i32 to vector<32x2xi32>
    %42 = arith.cmpi slt, %3, %41 : vector<32x2xi32>
    %43 = arith.andi %40, %42 : vector<32x2xi1>
    %44 = arith.extui %43 : vector<32x2xi1> to vector<32x2xi32>
    %45 = arith.sitofp %44 : vector<32x2xi32> to vector<32x2xf32>
    %cst = arith.constant dense<0.000000e+00> : vector<32xf32>
    %46 = vector.multi_reduction <add>, %45, %cst [1] : vector<32x2xf32> to vector<32xf32>
    %47 = vector.shape_cast %46 : vector<32xf32> to vector<32x1xf32>
    %cst_9 = arith.constant 5.000000e-01 : f32
    %48 = vector.broadcast %cst_9 : f32 to vector<32x1xf32>
    %49 = arith.cmpf ogt, %47, %48 : vector<32x1xf32>
    %cst_10 = arith.constant 0.000000e+00 : f32
    %50 = vector.shape_cast %49 : vector<32x1xi1> to vector<32x1xi1>
    %51 = vector.broadcast %50 : vector<32x1xi1> to vector<32x32xi1>
    %52 = vector.broadcast %cst_10 : f32 to vector<32x32xf32>
    %53 = arith.select %51, %1, %52 : vector<32x32xi1>, vector<32x32xf32>
    %c0_11 = arith.constant 0 : index
    %c0_12 = arith.constant 0 : index
    %54 = vector.load %arg4[%c0_11, %c0_12] : memref<1x32xf32, #tpu.memory_space<vmem>>, vector<1x32xf32>
    %c0_13 = arith.constant 0 : index
    %c0_14 = arith.constant 0 : index
    %55 = vector.load %arg5[%c0_13, %c0_14] : memref<1x32xf32, #tpu.memory_space<vmem>>, vector<1x32xf32>
    %cst_15 = arith.constant dense<0.000000e+00> : vector<32xf32>
    %56 = vector.multi_reduction <add>, %53, %cst_15 [1] : vector<32x32xf32> to vector<32xf32>
    %57 = vector.shape_cast %56 : vector<32xf32> to vector<32x1xf32>
    %cst_16 = arith.constant 3.200000e+01 : f32
    %58 = vector.broadcast %cst_16 : f32 to vector<32x1xf32>
    %59 = arith.divf %57, %58 : vector<32x1xf32>
    %60 = vector.broadcast %59 : vector<32x1xf32> to vector<32x32xf32>
    %61 = arith.subf %53, %60 : vector<32x32xf32>
    %62 = arith.mulf %61, %61 : vector<32x32xf32>
    %cst_17 = arith.constant dense<0.000000e+00> : vector<32xf32>
    %63 = vector.multi_reduction <add>, %62, %cst_17 [1] : vector<32x32xf32> to vector<32xf32>
    %64 = vector.shape_cast %63 : vector<32xf32> to vector<32x1xf32>
    %cst_18 = arith.constant 3.200000e+01 : f32
    %65 = vector.broadcast %cst_18 : f32 to vector<32x1xf32>
    %66 = arith.divf %64, %65 : vector<32x1xf32>
    %cst_19 = arith.constant 9.99999974E-6 : f32
    %67 = vector.broadcast %cst_19 : f32 to vector<32x1xf32>
    %68 = arith.addf %66, %67 : vector<32x1xf32>
    %69 = math.rsqrt %68 : vector<32x1xf32>
    %70 = vector.broadcast %69 : vector<32x1xf32> to vector<32x32xf32>
    %71 = arith.mulf %61, %70 : vector<32x32xf32>
    %72 = vector.broadcast %54 : vector<1x32xf32> to vector<32x32xf32>
    %73 = arith.mulf %71, %72 : vector<32x32xf32>
    %74 = vector.broadcast %55 : vector<1x32xf32> to vector<32x32xf32>
    %75 = arith.addf %73, %74 : vector<32x32xf32>
    %76 = arith.truncf %75 : vector<32x32xf32> to vector<32x32xbf16>
    %c0_20 = arith.constant 0 : index
    %c0_21 = arith.constant 0 : index
    %77 = vector.load %arg7[%c0_20, %c0_21] : memref<32x32xbf16, #tpu.memory_space<vmem>>, vector<32x32xbf16>
    %cst_22 = arith.constant dense<0.000000e+00> : vector<32x32xf32>
    %78 = tpu.matmul %76, %77, %cst_22 {dimension_numbers = #tpu.dot_dimension_numbers<[1], [0], [0], [1], [0, 0, 1, 1], [], []>} : vector<32x32xbf16>, vector<32x32xbf16>, vector<32x32xf32> -> vector<32x32xf32>
    %c0_23 = arith.constant 0 : index
    %c0_24 = arith.constant 0 : index
    %79 = vector.load %arg8[%c0_23, %c0_24] : memref<32x32xbf16, #tpu.memory_space<vmem>>, vector<32x32xbf16>
    %cst_25 = arith.constant dense<0.000000e+00> : vector<32x32xf32>
    %80 = tpu.matmul %76, %79, %cst_25 {dimension_numbers = #tpu.dot_dimension_numbers<[1], [0], [0], [1], [0, 0, 1, 1], [], []>} : vector<32x32xbf16>, vector<32x32xbf16>, vector<32x32xf32> -> vector<32x32xf32>
    %cst_26 = arith.constant dense<0.000000e+00> : vector<2x32xf32>
    %81 = tpu.matmul %26, %53, %cst_26 {dimension_numbers = #tpu.dot_dimension_numbers<[1], [0], [0], [1], [0, 0, 1, 1], [], []>} : vector<2x32xf32>, vector<32x32xf32>, vector<2x32xf32> -> vector<2x32xf32>
    %cst_27 = arith.constant dense<0.000000e+00> : vector<2xf32>
    %82 = vector.multi_reduction <add>, %81, %cst_27 [1] : vector<2x32xf32> to vector<2xf32>
    %83 = vector.shape_cast %82 : vector<2xf32> to vector<2x1xf32>
    %cst_28 = arith.constant 3.200000e+01 : f32
    %84 = vector.broadcast %cst_28 : f32 to vector<2x1xf32>
    %85 = arith.divf %83, %84 : vector<2x1xf32>
    %86 = vector.broadcast %85 : vector<2x1xf32> to vector<2x32xf32>
    %87 = arith.subf %81, %86 : vector<2x32xf32>
    %88 = arith.mulf %87, %87 : vector<2x32xf32>
    %cst_29 = arith.constant dense<0.000000e+00> : vector<2xf32>
    %89 = vector.multi_reduction <add>, %88, %cst_29 [1] : vector<2x32xf32> to vector<2xf32>
    %90 = vector.shape_cast %89 : vector<2xf32> to vector<2x1xf32>
    %cst_30 = arith.constant 3.200000e+01 : f32
    %91 = vector.broadcast %cst_30 : f32 to vector<2x1xf32>
    %92 = arith.divf %90, %91 : vector<2x1xf32>
    %cst_31 = arith.constant 9.99999974E-6 : f32
    %93 = vector.broadcast %cst_31 : f32 to vector<2x1xf32>
    %94 = arith.addf %92, %93 : vector<2x1xf32>
    %95 = math.rsqrt %94 : vector<2x1xf32>
    %96 = vector.broadcast %95 : vector<2x1xf32> to vector<2x32xf32>
    %97 = arith.mulf %87, %96 : vector<2x32xf32>
    %98 = vector.broadcast %54 : vector<1x32xf32> to vector<2x32xf32>
    %99 = arith.mulf %97, %98 : vector<2x32xf32>
    %100 = vector.broadcast %55 : vector<1x32xf32> to vector<2x32xf32>
    %101 = arith.addf %99, %100 : vector<2x32xf32>
    %102 = arith.truncf %101 : vector<2x32xf32> to vector<2x32xbf16>
    %c0_32 = arith.constant 0 : index
    %c0_33 = arith.constant 0 : index
    %103 = vector.load %arg6[%c0_32, %c0_33] : memref<32x32xbf16, #tpu.memory_space<vmem>>, vector<32x32xbf16>
    %cst_34 = arith.constant dense<0.000000e+00> : vector<2x32xf32>
    %104 = tpu.matmul %102, %103, %cst_34 {dimension_numbers = #tpu.dot_dimension_numbers<[1], [0], [0], [1], [0, 0, 1, 1], [], []>} : vector<2x32xbf16>, vector<32x32xbf16>, vector<2x32xf32> -> vector<2x32xf32>
    %cst_35 = arith.constant dense<0.000000e+00> : vector<32x32xf32>
    %105 = tpu.matmul %22, %104, %cst_35 {dimension_numbers = #tpu.dot_dimension_numbers<[1], [0], [0], [1], [0, 0, 1, 1], [], []>} : vector<32x2xf32>, vector<2x32xf32>, vector<32x32xf32> -> vector<32x32xf32>
    %106 = arith.mulf %105, %78 : vector<32x32xf32>
    %107 = arith.truncf %106 : vector<32x32xf32> to vector<32x32xbf16>
    %c0_36 = arith.constant 0 : index
    %c0_37 = arith.constant 0 : index
    %108 = vector.load %arg2[%c0_36, %c0_37] : memref<32x4xbf16, #tpu.memory_space<vmem>>, vector<32x4xbf16>
    %cst_38 = arith.constant dense<0.000000e+00> : vector<32x4xf32>
    %109 = tpu.matmul %107, %108, %cst_38 {dimension_numbers = #tpu.dot_dimension_numbers<[1], [0], [0], [1], [0, 0, 1, 1], [], []>} : vector<32x32xbf16>, vector<32x4xbf16>, vector<32x4xf32> -> vector<32x4xf32>
    %110 = tpu.iota {dimensions = array<i32: 0>} : vector<16x4xi32>
    %c10_i32_39 = arith.constant 10 : i32
    %111 = vector.broadcast %c10_i32_39 : i32 to vector<16x4xi32>
    %112 = arith.cmpi slt, %110, %111 : vector<16x4xi32>
    %113 = vector.extract_strided_slice %109 {offsets = [0, 0], sizes = [16, 4], strides = [1, 1]} : vector<32x4xf32> to vector<16x4xf32>
    %cst_40 = arith.constant -1.000000e+30 : f32
    %114 = vector.broadcast %cst_40 : f32 to vector<16x4xf32>
    %115 = arith.select %112, %113, %114 : vector<16x4xi1>, vector<16x4xf32>
    %cst_41 = arith.constant dense<0xFF800000> : vector<4xf32>
    %116 = vector.multi_reduction <maximumf>, %115, %cst_41 [0] : vector<16x4xf32> to vector<4xf32>
    %117 = vector.shape_cast %116 : vector<4xf32> to vector<1x4xf32>
    %118 = vector.broadcast %117 : vector<1x4xf32> to vector<16x4xf32>
    %119 = arith.subf %115, %118 : vector<16x4xf32>
    %120 = math.exp %119 : vector<16x4xf32>
    %cst_42 = arith.constant dense<0.000000e+00> : vector<4xf32>
    %121 = vector.multi_reduction <add>, %120, %cst_42 [0] : vector<16x4xf32> to vector<4xf32>
    %122 = vector.shape_cast %121 : vector<4xf32> to vector<1x4xf32>
    %123 = tpu.reciprocal %122 {approx = true} : vector<1x4xf32> -> vector<1x4xf32>
    %124 = vector.broadcast %123 : vector<1x4xf32> to vector<16x4xf32>
    %125 = arith.mulf %120, %124 : vector<16x4xf32>
    %126 = vector.extract_strided_slice %109 {offsets = [16, 0], sizes = [16, 4], strides = [1, 1]} : vector<32x4xf32> to vector<16x4xf32>
    %cst_43 = arith.constant -1.000000e+30 : f32
    %127 = vector.broadcast %cst_43 : f32 to vector<16x4xf32>
    %128 = arith.select %112, %126, %127 : vector<16x4xi1>, vector<16x4xf32>
    %cst_44 = arith.constant dense<0xFF800000> : vector<4xf32>
    %129 = vector.multi_reduction <maximumf>, %128, %cst_44 [0] : vector<16x4xf32> to vector<4xf32>
    %130 = vector.shape_cast %129 : vector<4xf32> to vector<1x4xf32>
    %131 = vector.broadcast %130 : vector<1x4xf32> to vector<16x4xf32>
    %132 = arith.subf %128, %131 : vector<16x4xf32>
    %133 = math.exp %132 : vector<16x4xf32>
    %cst_45 = arith.constant dense<0.000000e+00> : vector<4xf32>
    %134 = vector.multi_reduction <add>, %133, %cst_45 [0] : vector<16x4xf32> to vector<4xf32>
    %135 = vector.shape_cast %134 : vector<4xf32> to vector<1x4xf32>
    %136 = tpu.reciprocal %135 {approx = true} : vector<1x4xf32> -> vector<1x4xf32>
    %137 = vector.broadcast %136 : vector<1x4xf32> to vector<16x4xf32>
    %138 = arith.mulf %133, %137 : vector<16x4xf32>
    %139 = tpu.concatenate %125, %138 in 0 : vector<16x4xf32>, vector<16x4xf32> -> vector<32x4xf32>
    %140 = arith.truncf %139 : vector<32x4xf32> to vector<32x4xbf16>
    %c0_46 = arith.constant 0 : index
    %c0_47 = arith.constant 0 : index
    %141 = vector.load %arg3[%c0_46, %c0_47] : memref<4x32xbf16, #tpu.memory_space<vmem>>, vector<4x32xbf16>
    %cst_48 = arith.constant dense<0.000000e+00> : vector<32x32xf32>
    %142 = tpu.matmul %140, %141, %cst_48 {dimension_numbers = #tpu.dot_dimension_numbers<[1], [0], [0], [1], [0, 0, 1, 1], [], []>} : vector<32x4xbf16>, vector<4x32xbf16>, vector<32x32xf32> -> vector<32x32xf32>
    %143 = arith.mulf %142, %80 : vector<32x32xf32>
    %cst_49 = arith.constant dense<0.000000e+00> : vector<2x32xf32>
    %144 = tpu.matmul %33, %143, %cst_49 {dimension_numbers = #tpu.dot_dimension_numbers<[1], [0], [0], [1], [0, 0, 1, 1], [], []>} : vector<2x32xf32>, vector<32x32xf32>, vector<2x32xf32> -> vector<2x32xf32>
    %145 = arith.truncf %144 : vector<2x32xf32> to vector<2x32xbf16>
    %c0_50 = arith.constant 0 : index
    %c0_51 = arith.constant 0 : index
    %146 = vector.load %arg9[%c0_50, %c0_51] : memref<32x32xbf16, #tpu.memory_space<vmem>>, vector<32x32xbf16>
    %cst_52 = arith.constant dense<0.000000e+00> : vector<2x32xf32>
    %147 = tpu.matmul %145, %146, %cst_52 {dimension_numbers = #tpu.dot_dimension_numbers<[1], [0], [0], [1], [0, 0, 1, 1], [], []>} : vector<2x32xbf16>, vector<32x32xbf16>, vector<2x32xf32> -> vector<2x32xf32>
    %c0_53 = arith.constant 0 : index
    %c0_54 = arith.constant 0 : index
    %148 = vector.load %arg10[%c0_53, %c0_54] : memref<1x32xf32, #tpu.memory_space<vmem>>, vector<1x32xf32>
    %149 = vector.broadcast %148 : vector<1x32xf32> to vector<2x32xf32>
    %150 = arith.addf %147, %149 : vector<2x32xf32>
    %c0_55 = arith.constant 0 : index
    %c0_56 = arith.constant 0 : index
    %151 = vector.load %arg17[%c0_55, %c0_56] : memref<1x32xf32, #tpu.memory_space<vmem>>, vector<1x32xf32>
    %152 = vector.broadcast %151 : vector<1x32xf32> to vector<32x32xf32>
    %153 = arith.mulf %152, %75 : vector<32x32xf32>
    %154 = arith.addf %53, %153 : vector<32x32xf32>
    %155 = vector.broadcast %151 : vector<1x32xf32> to vector<2x32xf32>
    %156 = arith.mulf %155, %150 : vector<2x32xf32>
    %157 = arith.addf %81, %156 : vector<2x32xf32>
    %c0_57 = arith.constant 0 : index
    %c0_58 = arith.constant 0 : index
    %158 = vector.load %arg11[%c0_57, %c0_58] : memref<1x32xf32, #tpu.memory_space<vmem>>, vector<1x32xf32>
    %c0_59 = arith.constant 0 : index
    %c0_60 = arith.constant 0 : index
    %159 = vector.load %arg12[%c0_59, %c0_60] : memref<1x32xf32, #tpu.memory_space<vmem>>, vector<1x32xf32>
    %cst_61 = arith.constant dense<0.000000e+00> : vector<2xf32>
    %160 = vector.multi_reduction <add>, %157, %cst_61 [1] : vector<2x32xf32> to vector<2xf32>
    %161 = vector.shape_cast %160 : vector<2xf32> to vector<2x1xf32>
    %cst_62 = arith.constant 3.200000e+01 : f32
    %162 = vector.broadcast %cst_62 : f32 to vector<2x1xf32>
    %163 = arith.divf %161, %162 : vector<2x1xf32>
    %164 = vector.broadcast %163 : vector<2x1xf32> to vector<2x32xf32>
    %165 = arith.subf %157, %164 : vector<2x32xf32>
    %166 = arith.mulf %165, %165 : vector<2x32xf32>
    %cst_63 = arith.constant dense<0.000000e+00> : vector<2xf32>
    %167 = vector.multi_reduction <add>, %166, %cst_63 [1] : vector<2x32xf32> to vector<2xf32>
    %168 = vector.shape_cast %167 : vector<2xf32> to vector<2x1xf32>
    %cst_64 = arith.constant 3.200000e+01 : f32
    %169 = vector.broadcast %cst_64 : f32 to vector<2x1xf32>
    %170 = arith.divf %168, %169 : vector<2x1xf32>
    %cst_65 = arith.constant 9.99999974E-6 : f32
    %171 = vector.broadcast %cst_65 : f32 to vector<2x1xf32>
    %172 = arith.addf %170, %171 : vector<2x1xf32>
    %173 = math.rsqrt %172 : vector<2x1xf32>
    %174 = vector.broadcast %173 : vector<2x1xf32> to vector<2x32xf32>
    %175 = arith.mulf %165, %174 : vector<2x32xf32>
    %176 = vector.broadcast %158 : vector<1x32xf32> to vector<2x32xf32>
    %177 = arith.mulf %175, %176 : vector<2x32xf32>
    %178 = vector.broadcast %159 : vector<1x32xf32> to vector<2x32xf32>
    %179 = arith.addf %177, %178 : vector<2x32xf32>
    %180 = arith.truncf %179 : vector<2x32xf32> to vector<2x32xbf16>
    %c0_66 = arith.constant 0 : index
    %c0_67 = arith.constant 0 : index
    %181 = vector.load %arg13[%c0_66, %c0_67] : memref<32x128xbf16, #tpu.memory_space<vmem>>, vector<32x128xbf16>
    %cst_68 = arith.constant dense<0.000000e+00> : vector<2x128xf32>
    %182 = tpu.matmul %180, %181, %cst_68 {dimension_numbers = #tpu.dot_dimension_numbers<[1], [0], [0], [1], [0, 0, 1, 1], [], []>} : vector<2x32xbf16>, vector<32x128xbf16>, vector<2x128xf32> -> vector<2x128xf32>
    %c0_69 = arith.constant 0 : index
    %c0_70 = arith.constant 0 : index
    %183 = vector.load %arg14[%c0_69, %c0_70] : memref<1x128xf32, #tpu.memory_space<vmem>>, vector<1x128xf32>
    %184 = vector.broadcast %183 : vector<1x128xf32> to vector<2x128xf32>
    %185 = arith.addf %182, %184 : vector<2x128xf32>
    %cst_71 = arith.constant 5.000000e-01 : f32
    %186 = vector.broadcast %cst_71 : f32 to vector<2x128xf32>
    %187 = arith.mulf %186, %185 : vector<2x128xf32>
    %cst_72 = arith.constant 0.707106769 : f32
    %188 = vector.broadcast %cst_72 : f32 to vector<2x128xf32>
    %189 = arith.mulf %185, %188 : vector<2x128xf32>
    %190 = math.erf %189 : vector<2x128xf32>
    %cst_73 = arith.constant 1.000000e+00 : f32
    %191 = vector.broadcast %cst_73 : f32 to vector<2x128xf32>
    %192 = arith.addf %191, %190 : vector<2x128xf32>
    %193 = arith.mulf %187, %192 : vector<2x128xf32>
    %194 = arith.truncf %193 : vector<2x128xf32> to vector<2x128xbf16>
    %c0_74 = arith.constant 0 : index
    %c0_75 = arith.constant 0 : index
    %195 = vector.load %arg15[%c0_74, %c0_75] : memref<128x32xbf16, #tpu.memory_space<vmem>>, vector<128x32xbf16>
    %cst_76 = arith.constant dense<0.000000e+00> : vector<2x32xf32>
    %196 = tpu.matmul %194, %195, %cst_76 {dimension_numbers = #tpu.dot_dimension_numbers<[1], [0], [0], [1], [0, 0, 1, 1], [], []>} : vector<2x128xbf16>, vector<128x32xbf16>, vector<2x32xf32> -> vector<2x32xf32>
    %c0_77 = arith.constant 0 : index
    %c0_78 = arith.constant 0 : index
    %197 = vector.load %arg16[%c0_77, %c0_78] : memref<1x32xf32, #tpu.memory_space<vmem>>, vector<1x32xf32>
    %198 = vector.broadcast %197 : vector<1x32xf32> to vector<2x32xf32>
    %199 = arith.addf %196, %198 : vector<2x32xf32>
    %c0_79 = arith.constant 0 : index
    %c0_80 = arith.constant 0 : index
    %200 = vector.load %arg18[%c0_79, %c0_80] : memref<1x32xf32, #tpu.memory_space<vmem>>, vector<1x32xf32>
    %201 = vector.broadcast %200 : vector<1x32xf32> to vector<2x32xf32>
    %202 = arith.mulf %201, %199 : vector<2x32xf32>
    %203 = arith.addf %179, %202 : vector<2x32xf32>
    %cst_81 = arith.constant dense<0.000000e+00> : vector<32x32xf32>
    %204 = tpu.matmul %15, %203, %cst_81 {dimension_numbers = #tpu.dot_dimension_numbers<[1], [0], [0], [1], [0, 0, 1, 1], [], []>} : vector<32x2xf32>, vector<2x32xf32>, vector<32x32xf32> -> vector<32x32xf32>
    %cst_82 = arith.constant dense<0.000000e+00> : vector<32xf32>
    %205 = vector.multi_reduction <add>, %15, %cst_82 [1] : vector<32x2xf32> to vector<32xf32>
    %206 = vector.shape_cast %205 : vector<32xf32> to vector<32x1xf32>
    %cst_83 = arith.constant 5.000000e-01 : f32
    %207 = vector.broadcast %cst_83 : f32 to vector<32x1xf32>
    %208 = arith.cmpf ogt, %206, %207 : vector<32x1xf32>
    %cst_84 = arith.constant 2.000000e+00 : f32
    %209 = vector.broadcast %cst_84 : f32 to vector<32x32xf32>
    %210 = arith.mulf %209, %154 : vector<32x32xf32>
    %211 = vector.shape_cast %208 : vector<32x1xi1> to vector<32x1xi1>
    %212 = vector.broadcast %211 : vector<32x1xi1> to vector<32x32xi1>
    %213 = arith.select %212, %204, %210 : vector<32x32xi1>, vector<32x32xf32>
    %214 = vector.shape_cast %213 : vector<32x32xf32> to vector<2x16x32xf32>
    %c0_85 = arith.constant 0 : index
    %c0_86 = arith.constant 0 : index
    %c0_87 = arith.constant 0 : index
    %215 = vector.load %arg19[%c0_85, %c0_86, %c0_87] : memref<2x16x32xf32, #tpu.memory_space<vmem>>, vector<2x16x32xf32>
    tpu.vector_store %arg19[%c0_85, %c0_86, %c0_87], %214 {strides = array<i32>} : memref<2x16x32xf32, #tpu.memory_space<vmem>>, vector<2x16x32xf32>,
    return
  }
  func.func @transform_0(%arg0: i32) -> (i32, i32, i32) {
    %c0_i32 = arith.constant 0 : i32
    %c0_i32_0 = arith.constant 0 : i32
    %c0_i32_1 = arith.constant 0 : i32
    return %arg0, %c0_i32, %c0_i32_0 : i32, i32, i32
  }
  func.func @transform_1(%arg0: i32) -> (i32, i32) {
    %c0_i32 = arith.constant 0 : i32
    %c0_i32_0 = arith.constant 0 : i32
    %c0_i32_1 = arith.constant 0 : i32
    return %c0_i32, %c0_i32_0 : i32, i32
  }
  func.func @transform_2(%arg0: i32) -> (i32, i32) {
    %c0_i32 = arith.constant 0 : i32
    %c0_i32_0 = arith.constant 0 : i32
    %c0_i32_1 = arith.constant 0 : i32
    return %c0_i32, %c0_i32_0 : i32, i32
  }
  func.func @transform_3(%arg0: i32) -> (i32, i32) {
    %c0_i32 = arith.constant 0 : i32
    %c0_i32_0 = arith.constant 0 : i32
    %c0_i32_1 = arith.constant 0 : i32
    return %c0_i32, %c0_i32_0 : i32, i32
  }
  func.func @transform_4(%arg0: i32) -> (i32, i32) {
    %c0_i32 = arith.constant 0 : i32
    %c0_i32_0 = arith.constant 0 : i32
    %c0_i32_1 = arith.constant 0 : i32
    return %c0_i32, %c0_i32_0 : i32, i32
  }
  func.func @transform_5(%arg0: i32) -> (i32, i32) {
    %c0_i32 = arith.constant 0 : i32
    %c0_i32_0 = arith.constant 0 : i32
    %c0_i32_1 = arith.constant 0 : i32
    return %c0_i32, %c0_i32_0 : i32, i32
  }
  func.func @transform_6(%arg0: i32) -> (i32, i32) {
    %c0_i32 = arith.constant 0 : i32
    %c0_i32_0 = arith.constant 0 : i32
    %c0_i32_1 = arith.constant 0 : i32
    return %c0_i32, %c0_i32_0 : i32, i32
  }
  func.func @transform_7(%arg0: i32) -> (i32, i32) {
    %c0_i32 = arith.constant 0 : i32
    %c0_i32_0 = arith.constant 0 : i32
    %c0_i32_1 = arith.constant 0 : i32
    return %c0_i32, %c0_i32_0 : i32, i32
  }
  func.func @transform_8(%arg0: i32) -> (i32, i32) {
    %c0_i32 = arith.constant 0 : i32
    %c0_i32_0 = arith.constant 0 : i32
    %c0_i32_1 = arith.constant 0 : i32
    return %c0_i32, %c0_i32_0 : i32, i32
  }
  func.func @transform_9(%arg0: i32) -> (i32, i32) {
    %c0_i32 = arith.constant 0 : i32
    %c0_i32_0 = arith.constant 0 : i32
    %c0_i32_1 = arith.constant 0 : i32
    return %c0_i32, %c0_i32_0 : i32, i32
  }
  func.func @transform_10(%arg0: i32) -> (i32, i32) {
    %c0_i32 = arith.constant 0 : i32
    %c0_i32_0 = arith.constant 0 : i32
    %c0_i32_1 = arith.constant 0 : i32
    return %c0_i32, %c0_i32_0 : i32, i32
  }
  func.func @transform_11(%arg0: i32) -> (i32, i32) {
    %c0_i32 = arith.constant 0 : i32
    %c0_i32_0 = arith.constant 0 : i32
    %c0_i32_1 = arith.constant 0 : i32
    return %c0_i32, %c0_i32_0 : i32, i32
  }
  func.func @transform_12(%arg0: i32) -> (i32, i32) {
    %c0_i32 = arith.constant 0 : i32
    %c0_i32_0 = arith.constant 0 : i32
    %c0_i32_1 = arith.constant 0 : i32
    return %c0_i32, %c0_i32_0 : i32, i32
  }
  func.func @transform_13(%arg0: i32) -> (i32, i32) {
    %c0_i32 = arith.constant 0 : i32
    %c0_i32_0 = arith.constant 0 : i32
    %c0_i32_1 = arith.constant 0 : i32
    return %c0_i32, %c0_i32_0 : i32, i32
  }
  func.func @transform_14(%arg0: i32) -> (i32, i32) {
    %c0_i32 = arith.constant 0 : i32
    %c0_i32_0 = arith.constant 0 : i32
    %c0_i32_1 = arith.constant 0 : i32
    return %c0_i32, %c0_i32_0 : i32, i32
  }
  func.func @transform_15(%arg0: i32) -> (i32, i32) {
    %c0_i32 = arith.constant 0 : i32
    %c0_i32_0 = arith.constant 0 : i32
    %c0_i32_1 = arith.constant 0 : i32
    return %c0_i32, %c0_i32_0 : i32, i32
  }
  func.func @transform_16(%arg0: i32) -> (i32, i32) {
    %c0_i32 = arith.constant 0 : i32
    %c0_i32_0 = arith.constant 0 : i32
    %c0_i32_1 = arith.constant 0 : i32
    return %c0_i32, %c0_i32_0 : i32, i32
  }
  func.func @transform_17(%arg0: i32) -> (i32, i32) {
    %c0_i32 = arith.constant 0 : i32
    %c0_i32_0 = arith.constant 0 : i32
    %c0_i32_1 = arith.constant 0 : i32
    return %c0_i32, %c0_i32_0 : i32, i32
  }
  func.func @transform_18(%arg0: i32) -> (i32, i32, i32) {
    %c0_i32 = arith.constant 0 : i32
    %c0_i32_0 = arith.constant 0 : i32
    %c0_i32_1 = arith.constant 0 : i32
    return %arg0, %c0_i32, %c0_i32_0 : i32, i32, i32
  }
}

module attributes {stable_mosaic.version = 11 : i64} {
  func.func @_cab_kernel(%arg0: i32, %arg1: memref<2x16x32xf32, #tpu.memory_space<vmem>>, %arg2: memref<32x4xbf16, #tpu.memory_space<vmem>>, %arg3: memref<4x32xbf16, #tpu.memory_space<vmem>>, %arg4: memref<1x32xf32, #tpu.memory_space<vmem>>, %arg5: memref<1x32xf32, #tpu.memory_space<vmem>>, %arg6: memref<32x32xbf16, #tpu.memory_space<vmem>>, %arg7: memref<32x32xbf16, #tpu.memory_space<vmem>>, %arg8: memref<32x32xbf16, #tpu.memory_space<vmem>>, %arg9: memref<32x32xbf16, #tpu.memory_space<vmem>>, %arg10: memref<1x32xf32, #tpu.memory_space<vmem>>, %arg11: memref<1x32xf32, #tpu.memory_space<vmem>>, %arg12: memref<1x32xf32, #tpu.memory_space<vmem>>, %arg13: memref<32x128xbf16, #tpu.memory_space<vmem>>, %arg14: memref<1x128xf32, #tpu.memory_space<vmem>>, %arg15: memref<128x32xbf16, #tpu.memory_space<vmem>>, %arg16: memref<1x32xf32, #tpu.memory_space<vmem>>, %arg17: memref<1x32xf32, #tpu.memory_space<vmem>>, %arg18: memref<1x32xf32, #tpu.memory_space<vmem>>, %arg19: memref<2x16x32xf32, #tpu.memory_space<vmem>>) attributes {dimension_semantics = [#tpu.dimension_semantics<parallel>], iteration_bounds = array<i64: 2>, scalar_prefetch = 0 : i64, scratch_operands = 0 : i64, tpu.core_type = #tpu.core_type<tc>, window_params = [{transform_indices = @transform_0, window_bounds = array<i64: 2, 16, 32>}, {pipeline_mode = #tpu.pipeline_mode<synchronous>, transform_indices = @transform_1, window_bounds = array<i64: 32, 4>}, {pipeline_mode = #tpu.pipeline_mode<synchronous>, transform_indices = @transform_2, window_bounds = array<i64: 4, 32>}, {pipeline_mode = #tpu.pipeline_mode<synchronous>, transform_indices = @transform_3, window_bounds = array<i64: 1, 32>}, {pipeline_mode = #tpu.pipeline_mode<synchronous>, transform_indices = @transform_4, window_bounds = array<i64: 1, 32>}, {pipeline_mode = #tpu.pipeline_mode<synchronous>, transform_indices = @transform_5, window_bounds = array<i64: 32, 32>}, {pipeline_mode = #tpu.pipeline_mode<synchronous>, transform_indices = @transform_6, window_bounds = array<i64: 32, 32>}, {pipeline_mode = #tpu.pipeline_mode<synchronous>, transform_indices = @transform_7, window_bounds = array<i64: 32, 32>}, {pipeline_mode = #tpu.pipeline_mode<synchronous>, transform_indices = @transform_8, window_bounds = array<i64: 32, 32>}, {pipeline_mode = #tpu.pipeline_mode<synchronous>, transform_indices = @transform_9, window_bounds = array<i64: 1, 32>}, {pipeline_mode = #tpu.pipeline_mode<synchronous>, transform_indices = @transform_10, window_bounds = array<i64: 1, 32>}, {pipeline_mode = #tpu.pipeline_mode<synchronous>, transform_indices = @transform_11, window_bounds = array<i64: 1, 32>}, {pipeline_mode = #tpu.pipeline_mode<synchronous>, transform_indices = @transform_12, window_bounds = array<i64: 32, 128>}, {pipeline_mode = #tpu.pipeline_mode<synchronous>, transform_indices = @transform_13, window_bounds = array<i64: 1, 128>}, {pipeline_mode = #tpu.pipeline_mode<synchronous>, transform_indices = @transform_14, window_bounds = array<i64: 128, 32>}, {pipeline_mode = #tpu.pipeline_mode<synchronous>, transform_indices = @transform_15, window_bounds = array<i64: 1, 32>}, {pipeline_mode = #tpu.pipeline_mode<synchronous>, transform_indices = @transform_16, window_bounds = array<i64: 1, 32>}, {pipeline_mode = #tpu.pipeline_mode<synchronous>, transform_indices = @transform_17, window_bounds = array<i64: 1, 32>}, {transform_indices = @transform_18, window_bounds = array<i64: 2, 16, 32>}]} {
    %c0 = arith.constant 0 : index
    %c0_0 = arith.constant 0 : index
    %c0_1 = arith.constant 0 : index
    %0 = vector.load %arg1[%c0, %c0_0, %c0_1] : memref<2x16x32xf32, #tpu.memory_space<vmem>>, vector<2x16x32xf32>
    %1 = vector.shape_cast %0 : vector<2x16x32xf32> to vector<32x32xf32>
    %2 = tpu.iota {dimensions = array<i32: 0>} : vector<32x2xi32>
    %3 = tpu.iota {dimensions = array<i32: 1>} : vector<32x2xi32>
    %c16_i32 = arith.constant 16 : i32
    %4 = vector.broadcast %c16_i32 : i32 to vector<32x2xi32>
    %5 = arith.muli %3, %4 : vector<32x2xi32>
    %6 = arith.subi %2, %5 : vector<32x2xi32>
    %7 = tpu.iota {dimensions = array<i32: 0>} : vector<2x32xi32>
    %8 = tpu.iota {dimensions = array<i32: 1>} : vector<2x32xi32>
    %c16_i32_2 = arith.constant 16 : i32
    %9 = vector.broadcast %c16_i32_2 : i32 to vector<2x32xi32>
    %10 = arith.muli %7, %9 : vector<2x32xi32>
    %11 = arith.subi %8, %10 : vector<2x32xi32>
    %c0_i32 = arith.constant 0 : i32
    %12 = vector.broadcast %c0_i32 : i32 to vector<32x2xi32>
    %13 = arith.cmpi eq, %6, %12 : vector<32x2xi32>
    %14 = arith.extui %13 : vector<32x2xi1> to vector<32x2xi32>
    %15 = arith.sitofp %14 : vector<32x2xi32> to vector<32x2xf32>
    %c0_i32_3 = arith.constant 0 : i32
    %16 = vector.broadcast %c0_i32_3 : i32 to vector<32x2xi32>
    %17 = arith.cmpi sge, %6, %16 : vector<32x2xi32>
    %c16_i32_4 = arith.constant 16 : i32
    %18 = vector.broadcast %c16_i32_4 : i32 to vector<32x2xi32>
    %19 = arith.cmpi slt, %6, %18 : vector<32x2xi32>
    %20 = arith.andi %17, %19 : vector<32x2xi1>
    %21 = arith.extui %20 : vector<32x2xi1> to vector<32x2xi32>
    %22 = arith.sitofp %21 : vector<32x2xi32> to vector<32x2xf32>
    %c0_i32_5 = arith.constant 0 : i32
    %23 = vector.broadcast %c0_i32_5 : i32 to vector<2x32xi32>
    %24 = arith.cmpi eq, %11, %23 : vector<2x32xi32>
    %25 = arith.extui %24 : vector<2x32xi1> to vector<2x32xi32>
    %26 = arith.sitofp %25 : vector<2x32xi32> to vector<2x32xf32>
    %c0_i32_6 = arith.constant 0 : i32
    %27 = vector.broadcast %c0_i32_6 : i32 to vector<2x32xi32>
    %28 = arith.cmpi sge, %11, %27 : vector<2x32xi32>
    %c16_i32_7 = arith.constant 16 : i32
    %29 = vector.broadcast %c16_i32_7 : i32 to vector<2x32xi32>
    %30 = arith.cmpi slt, %11, %29 : vector<2x32xi32>
    %31 = arith.andi %28, %30 : vector<2x32xi1>
    %32 = arith.extui %31 : vector<2x32xi1> to vector<2x32xi32>
    %33 = arith.sitofp %32 : vector<2x32xi32> to vector<2x32xf32>
    %c2_i32 = arith.constant 2 : i32
    %34 = arith.muli %arg0, %c2_i32 : i32
    %c3_i32 = arith.constant 3 : i32
    %35 = arith.subi %c3_i32, %34 : i32
    %c0_i32_8 = arith.constant 0 : i32
    %36 = vector.broadcast %c0_i32_8 : i32 to vector<32x2xi32>
    %37 = arith.cmpi sge, %6, %36 : vector<32x2xi32>
    %c10_i32 = arith.constant 10 : i32
    %38 = vector.broadcast %c10_i32 : i32 to vector<32x2xi32>
    %39 = arith.cmpi slt, %6, %38 : vector<32x2xi32>
    %40 = arith.andi %37, %39 : vector<32x2xi1>
    %41 = vector.broadcast %35 : i32 to vector<32x2xi32>
    %42 = arith.cmpi slt, %3, %41 : vector<32x2xi32>
    %43 = arith.andi %40, %42 : vector<32x2xi1>
    %44 = arith.extui %43 : vector<32x2xi1> to vector<32x2xi32>
    %45 = arith.sitofp %44 : vector<32x2xi32> to vector<32x2xf32>
    %cst = arith.constant dense<0.000000e+00> : vector<32xf32>
    %46 = vector.multi_reduction <add>, %45, %cst [1] : vector<32x2xf32> to vector<32xf32>
    %47 = vector.shape_cast %46 : vector<32xf32> to vector<32x1xf32>
    %cst_9 = arith.constant 5.000000e-01 : f32
    %48 = vector.broadcast %cst_9 : f32 to vector<32x1xf32>
    %49 = arith.cmpf ogt, %47, %48 : vector<32x1xf32>
    %cst_10 = arith.constant 0.000000e+00 : f32
    %50 = vector.shape_cast %49 : vector<32x1xi1> to vector<32x1xi1>
    %51 = vector.broadcast %50 : vector<32x1xi1> to vector<32x32xi1>
    %52 = vector.broadcast %cst_10 : f32 to vector<32x32xf32>
    %53 = arith.select %51, %1, %52 : vector<32x32xi1>, vector<32x32xf32>
    %c0_11 = arith.constant 0 : index
    %c0_12 = arith.constant 0 : index
    %54 = vector.load %arg4[%c0_11, %c0_12] : memref<1x32xf32, #tpu.memory_space<vmem>>, vector<1x32xf32>
    %c0_13 = arith.constant 0 : index
    %c0_14 = arith.constant 0 : index
    %55 = vector.load %arg5[%c0_13, %c0_14] : memref<1x32xf32, #tpu.memory_space<vmem>>, vector<1x32xf32>
    %cst_15 = arith.constant dense<0.000000e+00> : vector<32xf32>
    %56 = vector.multi_reduction <add>, %53, %cst_15 [1] : vector<32x32xf32> to vector<32xf32>
    %57 = vector.shape_cast %56 : vector<32xf32> to vector<32x1xf32>
    %cst_16 = arith.constant 3.200000e+01 : f32
    %58 = vector.broadcast %cst_16 : f32 to vector<32x1xf32>
    %59 = arith.divf %57, %58 : vector<32x1xf32>
    %60 = vector.broadcast %59 : vector<32x1xf32> to vector<32x32xf32>
    %61 = arith.subf %53, %60 : vector<32x32xf32>
    %62 = arith.mulf %61, %61 : vector<32x32xf32>
    %cst_17 = arith.constant dense<0.000000e+00> : vector<32xf32>
    %63 = vector.multi_reduction <add>, %62, %cst_17 [1] : vector<32x32xf32> to vector<32xf32>
    %64 = vector.shape_cast %63 : vector<32xf32> to vector<32x1xf32>
    %cst_18 = arith.constant 3.200000e+01 : f32
    %65 = vector.broadcast %cst_18 : f32 to vector<32x1xf32>
    %66 = arith.divf %64, %65 : vector<32x1xf32>
    %cst_19 = arith.constant 9.99999974E-6 : f32
    %67 = vector.broadcast %cst_19 : f32 to vector<32x1xf32>
    %68 = arith.addf %66, %67 : vector<32x1xf32>
    %69 = math.rsqrt %68 : vector<32x1xf32>
    %70 = vector.broadcast %69 : vector<32x1xf32> to vector<32x32xf32>
    %71 = arith.mulf %61, %70 : vector<32x32xf32>
    %72 = vector.broadcast %54 : vector<1x32xf32> to vector<32x32xf32>
    %73 = arith.mulf %71, %72 : vector<32x32xf32>
    %74 = vector.broadcast %55 : vector<1x32xf32> to vector<32x32xf32>
    %75 = arith.addf %73, %74 : vector<32x32xf32>
    %76 = arith.truncf %75 : vector<32x32xf32> to vector<32x32xbf16>
    %c0_20 = arith.constant 0 : index
    %c0_21 = arith.constant 0 : index
    %77 = vector.load %arg7[%c0_20, %c0_21] : memref<32x32xbf16, #tpu.memory_space<vmem>>, vector<32x32xbf16>
    %cst_22 = arith.constant dense<0.000000e+00> : vector<32x32xf32>
    %78 = tpu.matmul %76, %77, %cst_22 {dimension_numbers = #tpu.dot_dimension_numbers<[1], [0], [0], [1], [0, 0, 1, 1], [], []>} : vector<32x32xbf16>, vector<32x32xbf16>, vector<32x32xf32> -> vector<32x32xf32>
    %c0_23 = arith.constant 0 : index
    %c0_24 = arith.constant 0 : index
    %79 = vector.load %arg8[%c0_23, %c0_24] : memref<32x32xbf16, #tpu.memory_space<vmem>>, vector<32x32xbf16>
    %cst_25 = arith.constant dense<0.000000e+00> : vector<32x32xf32>
    %80 = tpu.matmul %76, %79, %cst_25 {dimension_numbers = #tpu.dot_dimension_numbers<[1], [0], [0], [1], [0, 0, 1, 1], [], []>} : vector<32x32xbf16>, vector<32x32xbf16>, vector<32x32xf32> -> vector<32x32xf32>
    %cst_26 = arith.constant dense<0.000000e+00> : vector<2x32xf32>
    %81 = tpu.matmul %26, %53, %cst_26 {dimension_numbers = #tpu.dot_dimension_numbers<[1], [0], [0], [1], [0, 0, 1, 1], [], []>} : vector<2x32xf32>, vector<32x32xf32>, vector<2x32xf32> -> vector<2x32xf32>
    %cst_27 = arith.constant dense<0.000000e+00> : vector<2xf32>
    %82 = vector.multi_reduction <add>, %81, %cst_27 [1] : vector<2x32xf32> to vector<2xf32>
    %83 = vector.shape_cast %82 : vector<2xf32> to vector<2x1xf32>
    %cst_28 = arith.constant 3.200000e+01 : f32
    %84 = vector.broadcast %cst_28 : f32 to vector<2x1xf32>
    %85 = arith.divf %83, %84 : vector<2x1xf32>
    %86 = vector.broadcast %85 : vector<2x1xf32> to vector<2x32xf32>
    %87 = arith.subf %81, %86 : vector<2x32xf32>
    %88 = arith.mulf %87, %87 : vector<2x32xf32>
    %cst_29 = arith.constant dense<0.000000e+00> : vector<2xf32>
    %89 = vector.multi_reduction <add>, %88, %cst_29 [1] : vector<2x32xf32> to vector<2xf32>
    %90 = vector.shape_cast %89 : vector<2xf32> to vector<2x1xf32>
    %cst_30 = arith.constant 3.200000e+01 : f32
    %91 = vector.broadcast %cst_30 : f32 to vector<2x1xf32>
    %92 = arith.divf %90, %91 : vector<2x1xf32>
    %cst_31 = arith.constant 9.99999974E-6 : f32
    %93 = vector.broadcast %cst_31 : f32 to vector<2x1xf32>
    %94 = arith.addf %92, %93 : vector<2x1xf32>
    %95 = math.rsqrt %94 : vector<2x1xf32>
    %96 = vector.broadcast %95 : vector<2x1xf32> to vector<2x32xf32>
    %97 = arith.mulf %87, %96 : vector<2x32xf32>
    %98 = vector.broadcast %54 : vector<1x32xf32> to vector<2x32xf32>
    %99 = arith.mulf %97, %98 : vector<2x32xf32>
    %100 = vector.broadcast %55 : vector<1x32xf32> to vector<2x32xf32>
    %101 = arith.addf %99, %100 : vector<2x32xf32>
    %102 = arith.truncf %101 : vector<2x32xf32> to vector<2x32xbf16>
    %c0_32 = arith.constant 0 : index
    %c0_33 = arith.constant 0 : index
    %103 = vector.load %arg6[%c0_32, %c0_33] : memref<32x32xbf16, #tpu.memory_space<vmem>>, vector<32x32xbf16>
    %cst_34 = arith.constant dense<0.000000e+00> : vector<2x32xf32>
    %104 = tpu.matmul %102, %103, %cst_34 {dimension_numbers = #tpu.dot_dimension_numbers<[1], [0], [0], [1], [0, 0, 1, 1], [], []>} : vector<2x32xbf16>, vector<32x32xbf16>, vector<2x32xf32> -> vector<2x32xf32>
    %cst_35 = arith.constant dense<0.000000e+00> : vector<32x32xf32>
    %105 = tpu.matmul %22, %104, %cst_35 {dimension_numbers = #tpu.dot_dimension_numbers<[1], [0], [0], [1], [0, 0, 1, 1], [], []>} : vector<32x2xf32>, vector<2x32xf32>, vector<32x32xf32> -> vector<32x32xf32>
    %106 = arith.mulf %105, %78 : vector<32x32xf32>
    %107 = arith.truncf %106 : vector<32x32xf32> to vector<32x32xbf16>
    %c0_36 = arith.constant 0 : index
    %c0_37 = arith.constant 0 : index
    %108 = vector.load %arg2[%c0_36, %c0_37] : memref<32x4xbf16, #tpu.memory_space<vmem>>, vector<32x4xbf16>
    %cst_38 = arith.constant dense<0.000000e+00> : vector<32x4xf32>
    %109 = tpu.matmul %107, %108, %cst_38 {dimension_numbers = #tpu.dot_dimension_numbers<[1], [0], [0], [1], [0, 0, 1, 1], [], []>} : vector<32x32xbf16>, vector<32x4xbf16>, vector<32x4xf32> -> vector<32x4xf32>
    %110 = tpu.iota {dimensions = array<i32: 0>} : vector<16x4xi32>
    %c10_i32_39 = arith.constant 10 : i32
    %111 = vector.broadcast %c10_i32_39 : i32 to vector<16x4xi32>
    %112 = arith.cmpi slt, %110, %111 : vector<16x4xi32>
    %113 = vector.extract_strided_slice %109 {offsets = [0, 0], sizes = [16, 4], strides = [1, 1]} : vector<32x4xf32> to vector<16x4xf32>
    %cst_40 = arith.constant -1.000000e+30 : f32
    %114 = vector.broadcast %cst_40 : f32 to vector<16x4xf32>
    %115 = arith.select %112, %113, %114 : vector<16x4xi1>, vector<16x4xf32>
    %cst_41 = arith.constant dense<0xFF800000> : vector<4xf32>
    %116 = vector.multi_reduction <maximumf>, %115, %cst_41 [0] : vector<16x4xf32> to vector<4xf32>
    %117 = vector.shape_cast %116 : vector<4xf32> to vector<1x4xf32>
    %118 = vector.broadcast %117 : vector<1x4xf32> to vector<16x4xf32>
    %119 = arith.subf %115, %118 : vector<16x4xf32>
    %120 = math.exp %119 : vector<16x4xf32>
    %cst_42 = arith.constant dense<0.000000e+00> : vector<4xf32>
    %121 = vector.multi_reduction <add>, %120, %cst_42 [0] : vector<16x4xf32> to vector<4xf32>
    %122 = vector.shape_cast %121 : vector<4xf32> to vector<1x4xf32>
    %123 = tpu.reciprocal %122 {approx = true} : vector<1x4xf32> -> vector<1x4xf32>
    %124 = vector.broadcast %123 : vector<1x4xf32> to vector<16x4xf32>
    %125 = arith.mulf %120, %124 : vector<16x4xf32>
    %126 = vector.extract_strided_slice %109 {offsets = [16, 0], sizes = [16, 4], strides = [1, 1]} : vector<32x4xf32> to vector<16x4xf32>
    %cst_43 = arith.constant -1.000000e+30 : f32
    %127 = vector.broadcast %cst_43 : f32 to vector<16x4xf32>
    %128 = arith.select %112, %126, %127 : vector<16x4xi1>, vector<16x4xf32>
    %cst_44 = arith.constant dense<0xFF800000> : vector<4xf32>
    %129 = vector.multi_reduction <maximumf>, %128, %cst_44 [0] : vector<16x4xf32> to vector<4xf32>
    %130 = vector.shape_cast %129 : vector<4xf32> to vector<1x4xf32>
    %131 = vector.broadcast %130 : vector<1x4xf32> to vector<16x4xf32>
    %132 = arith.subf %128, %131 : vector<16x4xf32>
    %133 = math.exp %132 : vector<16x4xf32>
    %cst_45 = arith.constant dense<0.000000e+00> : vector<4xf32>
    %134 = vector.multi_reduction <add>, %133, %cst_45 [0] : vector<16x4xf32> to vector<4xf32>
    %135 = vector.shape_cast %134 : vector<4xf32> to vector<1x4xf32>
    %136 = tpu.reciprocal %135 {approx = true} : vector<1x4xf32> -> vector<1x4xf32>
    %137 = vector.broadcast %136 : vector<1x4xf32> to vector<16x4xf32>
    %138 = arith.mulf %133, %137 : vector<16x4xf32>
    %139 = tpu.concatenate %125, %138 in 0 : vector<16x4xf32>, vector<16x4xf32> -> vector<32x4xf32>
    %140 = arith.truncf %139 : vector<32x4xf32> to vector<32x4xbf16>
    %c0_46 = arith.constant 0 : index
    %c0_47 = arith.constant 0 : index
    %141 = vector.load %arg3[%c0_46, %c0_47] : memref<4x32xbf16, #tpu.memory_space<vmem>>, vector<4x32xbf16>
    %cst_48 = arith.constant dense<0.000000e+00> : vector<32x32xf32>
    %142 = tpu.matmul %140, %141, %cst_48 {dimension_numbers = #tpu.dot_dimension_numbers<[1], [0], [0], [1], [0, 0, 1, 1], [], []>} : vector<32x4xbf16>, vector<4x32xbf16>, vector<32x32xf32> -> vector<32x32xf32>
    %143 = arith.mulf %142, %80 : vector<32x32xf32>
    %cst_49 = arith.constant dense<0.000000e+00> : vector<2x32xf32>
    %144 = tpu.matmul %33, %143, %cst_49 {dimension_numbers = #tpu.dot_dimension_numbers<[1], [0], [0], [1], [0, 0, 1, 1], [], []>} : vector<2x32xf32>, vector<32x32xf32>, vector<2x32xf32> -> vector<2x32xf32>
    %145 = arith.truncf %144 : vector<2x32xf32> to vector<2x32xbf16>
    %c0_50 = arith.constant 0 : index
    %c0_51 = arith.constant 0 : index
    %146 = vector.load %arg9[%c0_50, %c0_51] : memref<32x32xbf16, #tpu.memory_space<vmem>>, vector<32x32xbf16>
    %cst_52 = arith.constant dense<0.000000e+00> : vector<2x32xf32>
    %147 = tpu.matmul %145, %146, %cst_52 {dimension_numbers = #tpu.dot_dimension_numbers<[1], [0], [0], [1], [0, 0, 1, 1], [], []>} : vector<2x32xbf16>, vector<32x32xbf16>, vector<2x32xf32> -> vector<2x32xf32>
    %c0_53 = arith.constant 0 : index
    %c0_54 = arith.constant 0 : index
    %148 = vector.load %arg10[%c0_53, %c0_54] : memref<1x32xf32, #tpu.memory_space<vmem>>, vector<1x32xf32>
    %149 = vector.broadcast %148 : vector<1x32xf32> to vector<2x32xf32>
    %150 = arith.addf %147, %149 : vector<2x32xf32>
    %c0_55 = arith.constant 0 : index
    %c0_56 = arith.constant 0 : index
    %151 = vector.load %arg17[%c0_55, %c0_56] : memref<1x32xf32, #tpu.memory_space<vmem>>, vector<1x32xf32>
    %152 = vector.broadcast %151 : vector<1x32xf32> to vector<32x32xf32>
    %153 = arith.mulf %152, %75 : vector<32x32xf32>
    %154 = arith.addf %53, %153 : vector<32x32xf32>
    %155 = vector.broadcast %151 : vector<1x32xf32> to vector<2x32xf32>
    %156 = arith.mulf %155, %150 : vector<2x32xf32>
    %157 = arith.addf %81, %156 : vector<2x32xf32>
    %c0_57 = arith.constant 0 : index
    %c0_58 = arith.constant 0 : index
    %158 = vector.load %arg11[%c0_57, %c0_58] : memref<1x32xf32, #tpu.memory_space<vmem>>, vector<1x32xf32>
    %c0_59 = arith.constant 0 : index
    %c0_60 = arith.constant 0 : index
    %159 = vector.load %arg12[%c0_59, %c0_60] : memref<1x32xf32, #tpu.memory_space<vmem>>, vector<1x32xf32>
    %cst_61 = arith.constant dense<0.000000e+00> : vector<2xf32>
    %160 = vector.multi_reduction <add>, %157, %cst_61 [1] : vector<2x32xf32> to vector<2xf32>
    %161 = vector.shape_cast %160 : vector<2xf32> to vector<2x1xf32>
    %cst_62 = arith.constant 3.200000e+01 : f32
    %162 = vector.broadcast %cst_62 : f32 to vector<2x1xf32>
    %163 = arith.divf %161, %162 : vector<2x1xf32>
    %164 = vector.broadcast %163 : vector<2x1xf32> to vector<2x32xf32>
    %165 = arith.subf %157, %164 : vector<2x32xf32>
    %166 = arith.mulf %165, %165 : vector<2x32xf32>
    %cst_63 = arith.constant dense<0.000000e+00> : vector<2xf32>
    %167 = vector.multi_reduction <add>, %166, %cst_63 [1] : vector<2x32xf32> to vector<2xf32>
    %168 = vector.shape_cast %167 : vector<2xf32> to vector<2x1xf32>
    %cst_64 = arith.constant 3.200000e+01 : f32
    %169 = vector.broadcast %cst_64 : f32 to vector<2x1xf32>
    %170 = arith.divf %168, %169 : vector<2x1xf32>
    %cst_65 = arith.constant 9.99999974E-6 : f32
    %171 = vector.broadcast %cst_65 : f32 to vector<2x1xf32>
    %172 = arith.addf %170, %171 : vector<2x1xf32>
    %173 = math.rsqrt %172 : vector<2x1xf32>
    %174 = vector.broadcast %173 : vector<2x1xf32> to vector<2x32xf32>
    %175 = arith.mulf %165, %174 : vector<2x32xf32>
    %176 = vector.broadcast %158 : vector<1x32xf32> to vector<2x32xf32>
    %177 = arith.mulf %175, %176 : vector<2x32xf32>
    %178 = vector.broadcast %159 : vector<1x32xf32> to vector<2x32xf32>
    %179 = arith.addf %177, %178 : vector<2x32xf32>
    %180 = arith.truncf %179 : vector<2x32xf32> to vector<2x32xbf16>
    %c0_66 = arith.constant 0 : index
    %c0_67 = arith.constant 0 : index
    %181 = vector.load %arg13[%c0_66, %c0_67] : memref<32x128xbf16, #tpu.memory_space<vmem>>, vector<32x128xbf16>
    %cst_68 = arith.constant dense<0.000000e+00> : vector<2x128xf32>
    %182 = tpu.matmul %180, %181, %cst_68 {dimension_numbers = #tpu.dot_dimension_numbers<[1], [0], [0], [1], [0, 0, 1, 1], [], []>} : vector<2x32xbf16>, vector<32x128xbf16>, vector<2x128xf32> -> vector<2x128xf32>
    %c0_69 = arith.constant 0 : index
    %c0_70 = arith.constant 0 : index
    %183 = vector.load %arg14[%c0_69, %c0_70] : memref<1x128xf32, #tpu.memory_space<vmem>>, vector<1x128xf32>
    %184 = vector.broadcast %183 : vector<1x128xf32> to vector<2x128xf32>
    %185 = arith.addf %182, %184 : vector<2x128xf32>
    %cst_71 = arith.constant 5.000000e-01 : f32
    %186 = vector.broadcast %cst_71 : f32 to vector<2x128xf32>
    %187 = arith.mulf %186, %185 : vector<2x128xf32>
    %cst_72 = arith.constant 0.707106769 : f32
    %188 = vector.broadcast %cst_72 : f32 to vector<2x128xf32>
    %189 = arith.mulf %185, %188 : vector<2x128xf32>
    %190 = math.erf %189 : vector<2x128xf32>
    %cst_73 = arith.constant 1.000000e+00 : f32
    %191 = vector.broadcast %cst_73 : f32 to vector<2x128xf32>
    %192 = arith.addf %191, %190 : vector<2x128xf32>
    %193 = arith.mulf %187, %192 : vector<2x128xf32>
    %194 = arith.truncf %193 : vector<2x128xf32> to vector<2x128xbf16>
    %c0_74 = arith.constant 0 : index
    %c0_75 = arith.constant 0 : index
    %195 = vector.load %arg15[%c0_74, %c0_75] : memref<128x32xbf16, #tpu.memory_space<vmem>>, vector<128x32xbf16>
    %cst_76 = arith.constant dense<0.000000e+00> : vector<2x32xf32>
    %196 = tpu.matmul %194, %195, %cst_76 {dimension_numbers = #tpu.dot_dimension_numbers<[1], [0], [0], [1], [0, 0, 1, 1], [], []>} : vector<2x128xbf16>, vector<128x32xbf16>, vector<2x32xf32> -> vector<2x32xf32>
    %c0_77 = arith.constant 0 : index
    %c0_78 = arith.constant 0 : index
    %197 = vector.load %arg16[%c0_77, %c0_78] : memref<1x32xf32, #tpu.memory_space<vmem>>, vector<1x32xf32>
    %198 = vector.broadcast %197 : vector<1x32xf32> to vector<2x32xf32>
    %199 = arith.addf %196, %198 : vector<2x32xf32>
    %c0_79 = arith.constant 0 : index
    %c0_80 = arith.constant 0 : index
    %200 = vector.load %arg18[%c0_79, %c0_80] : memref<1x32xf32, #tpu.memory_space<vmem>>, vector<1x32xf32>
    %201 = vector.broadcast %200 : vector<1x32xf32> to vector<2x32xf32>
    %202 = arith.mulf %201, %199 : vector<2x32xf32>
    %203 = arith.addf %179, %202 : vector<2x32xf32>
    %cst_81 = arith.constant dense<0.000000e+00> : vector<32x32xf32>
    %204 = tpu.matmul %15, %203, %cst_81 {dimension_numbers = #tpu.dot_dimension_numbers<[1], [0], [0], [1], [0, 0, 1, 1], [], []>} : vector<32x2xf32>, vector<2x32xf32>, vector<32x32xf32> -> vector<32x32xf32>
    %cst_82 = arith.constant dense<0.000000e+00> : vector<32xf32>
    %205 = vector.multi_reduction <add>, %15, %cst_82 [1] : vector<32x2xf32> to vector<32xf32>
    %206 = vector.shape_cast %205 : vector<32xf32> to vector<32x1xf32>
    %cst_83 = arith.constant 5.000000e-01 : f32
    %207 = vector.broadcast %cst_83 : f32 to vector<32x1xf32>
    %208 = arith.cmpf ogt, %206, %207 : vector<32x1xf32>
    %cst_84 = arith.constant 2.000000e+00 : f32
    %209 = vector.broadcast %cst_84 : f32 to vector<32x32xf32>
    %210 = arith.mulf %209, %154 : vector<32x32xf32>
    %211 = vector.shape_cast %208 : vector<32x1xi1> to vector<32x1xi1>
    %212 = vector.broadcast %211 : vector<32x1xi1> to vector<32x32xi1>
    %213 = arith.select %212, %204, %210 : vector<32x32xi1>, vector<32x32xf32>
    %214 = vector.shape_cast %213 : vector<32x32xf32> to vector<2x16x32xf32>
    %c0_85 = arith.constant 0 : index
    %c0_86 = arith.constant 0 : index
    %c0_87 = arith.constant 0 : index
    %215 = vector.load %arg19[%c0_85, %c0_86, %c0_87] : memref<2x16x32xf32, #tpu.memory_space<vmem>>, vector<2x16x32xf32>
    tpu.vector_store %arg19[%c0_85, %c0_86, %c0_87], %214 {strides = array<i32>} : memref<2x16x32xf32, #tpu.memory_space<vmem>>, vector<2x16x32xf32>,
    return
  }
  func.func @transform_0(%arg0: i32) -> (i32, i32, i32) {
    %c0_i32 = arith.constant 0 : i32
    %c0_i32_0 = arith.constant 0 : i32
    %c0_i32_1 = arith.constant 0 : i32
    return %arg0, %c0_i32, %c0_i32_0 : i32, i32, i32
  }
  func.func @transform_1(%arg0: i32) -> (i32, i32) {
    %c0_i32 = arith.constant 0 : i32
    %c0_i32_0 = arith.constant 0 : i32
    %c0_i32_1 = arith.constant 0 : i32
    return %c0_i32, %c0_i32_0 : i32, i32
  }
  func.func @transform_2(%arg0: i32) -> (i32, i32) {
    %c0_i32 = arith.constant 0 : i32
    %c0_i32_0 = arith.constant 0 : i32
    %c0_i32_1 = arith.constant 0 : i32
    return %c0_i32, %c0_i32_0 : i32, i32
  }
  func.func @transform_3(%arg0: i32) -> (i32, i32) {
    %c0_i32 = arith.constant 0 : i32
    %c0_i32_0 = arith.constant 0 : i32
    %c0_i32_1 = arith.constant 0 : i32
    return %c0_i32, %c0_i32_0 : i32, i32
  }
  func.func @transform_4(%arg0: i32) -> (i32, i32) {
    %c0_i32 = arith.constant 0 : i32
    %c0_i32_0 = arith.constant 0 : i32
    %c0_i32_1 = arith.constant 0 : i32
    return %c0_i32, %c0_i32_0 : i32, i32
  }
  func.func @transform_5(%arg0: i32) -> (i32, i32) {
    %c0_i32 = arith.constant 0 : i32
    %c0_i32_0 = arith.constant 0 : i32
    %c0_i32_1 = arith.constant 0 : i32
    return %c0_i32, %c0_i32_0 : i32, i32
  }
  func.func @transform_6(%arg0: i32) -> (i32, i32) {
    %c0_i32 = arith.constant 0 : i32
    %c0_i32_0 = arith.constant 0 : i32
    %c0_i32_1 = arith.constant 0 : i32
    return %c0_i32, %c0_i32_0 : i32, i32
  }
  func.func @transform_7(%arg0: i32) -> (i32, i32) {
    %c0_i32 = arith.constant 0 : i32
    %c0_i32_0 = arith.constant 0 : i32
    %c0_i32_1 = arith.constant 0 : i32
    return %c0_i32, %c0_i32_0 : i32, i32
  }
  func.func @transform_8(%arg0: i32) -> (i32, i32) {
    %c0_i32 = arith.constant 0 : i32
    %c0_i32_0 = arith.constant 0 : i32
    %c0_i32_1 = arith.constant 0 : i32
    return %c0_i32, %c0_i32_0 : i32, i32
  }
  func.func @transform_9(%arg0: i32) -> (i32, i32) {
    %c0_i32 = arith.constant 0 : i32
    %c0_i32_0 = arith.constant 0 : i32
    %c0_i32_1 = arith.constant 0 : i32
    return %c0_i32, %c0_i32_0 : i32, i32
  }
  func.func @transform_10(%arg0: i32) -> (i32, i32) {
    %c0_i32 = arith.constant 0 : i32
    %c0_i32_0 = arith.constant 0 : i32
    %c0_i32_1 = arith.constant 0 : i32
    return %c0_i32, %c0_i32_0 : i32, i32
  }
  func.func @transform_11(%arg0: i32) -> (i32, i32) {
    %c0_i32 = arith.constant 0 : i32
    %c0_i32_0 = arith.constant 0 : i32
    %c0_i32_1 = arith.constant 0 : i32
    return %c0_i32, %c0_i32_0 : i32, i32
  }
  func.func @transform_12(%arg0: i32) -> (i32, i32) {
    %c0_i32 = arith.constant 0 : i32
    %c0_i32_0 = arith.constant 0 : i32
    %c0_i32_1 = arith.constant 0 : i32
    return %c0_i32, %c0_i32_0 : i32, i32
  }
  func.func @transform_13(%arg0: i32) -> (i32, i32) {
    %c0_i32 = arith.constant 0 : i32
    %c0_i32_0 = arith.constant 0 : i32
    %c0_i32_1 = arith.constant 0 : i32
    return %c0_i32, %c0_i32_0 : i32, i32
  }
  func.func @transform_14(%arg0: i32) -> (i32, i32) {
    %c0_i32 = arith.constant 0 : i32
    %c0_i32_0 = arith.constant 0 : i32
    %c0_i32_1 = arith.constant 0 : i32
    return %c0_i32, %c0_i32_0 : i32, i32
  }
  func.func @transform_15(%arg0: i32) -> (i32, i32) {
    %c0_i32 = arith.constant 0 : i32
    %c0_i32_0 = arith.constant 0 : i32
    %c0_i32_1 = arith.constant 0 : i32
    return %c0_i32, %c0_i32_0 : i32, i32
  }
  func.func @transform_16(%arg0: i32) -> (i32, i32) {
    %c0_i32 = arith.constant 0 : i32
    %c0_i32_0 = arith.constant 0 : i32
    %c0_i32_1 = arith.constant 0 : i32
    return %c0_i32, %c0_i32_0 : i32, i32
  }
  func.func @transform_17(%arg0: i32) -> (i32, i32) {
    %c0_i32 = arith.constant 0 : i32
    %c0_i32_0 = arith.constant 0 : i32
    %c0_i32_1 = arith.constant 0 : i32
    return %c0_i32, %c0_i32_0 : i32, i32
  }
  func.func @transform_18(%arg0: i32) -> (i32, i32, i32) {
    %c0_i32 = arith.constant 0 : i32
    %c0_i32_0 = arith.constant 0 : i32
    %c0_i32_1 = arith.constant 0 : i32
    return %arg0, %c0_i32, %c0_i32_0 : i32, i32, i32
  }
}

module attributes {stable_mosaic.version = 11 : i64} {
  func.func @_cab_kernel(%arg0: i32, %arg1: memref<2x16x32xf32, #tpu.memory_space<vmem>>, %arg2: memref<32x4xbf16, #tpu.memory_space<vmem>>, %arg3: memref<4x32xbf16, #tpu.memory_space<vmem>>, %arg4: memref<1x32xf32, #tpu.memory_space<vmem>>, %arg5: memref<1x32xf32, #tpu.memory_space<vmem>>, %arg6: memref<32x32xbf16, #tpu.memory_space<vmem>>, %arg7: memref<32x32xbf16, #tpu.memory_space<vmem>>, %arg8: memref<32x32xbf16, #tpu.memory_space<vmem>>, %arg9: memref<32x32xbf16, #tpu.memory_space<vmem>>, %arg10: memref<1x32xf32, #tpu.memory_space<vmem>>, %arg11: memref<1x32xf32, #tpu.memory_space<vmem>>, %arg12: memref<1x32xf32, #tpu.memory_space<vmem>>, %arg13: memref<32x128xbf16, #tpu.memory_space<vmem>>, %arg14: memref<1x128xf32, #tpu.memory_space<vmem>>, %arg15: memref<128x32xbf16, #tpu.memory_space<vmem>>, %arg16: memref<1x32xf32, #tpu.memory_space<vmem>>, %arg17: memref<1x32xf32, #tpu.memory_space<vmem>>, %arg18: memref<1x32xf32, #tpu.memory_space<vmem>>, %arg19: memref<2x16x32xf32, #tpu.memory_space<vmem>>) attributes {dimension_semantics = [#tpu.dimension_semantics<parallel>], iteration_bounds = array<i64: 2>, scalar_prefetch = 0 : i64, scratch_operands = 0 : i64, tpu.core_type = #tpu.core_type<tc>, window_params = [{transform_indices = @transform_0, window_bounds = array<i64: 2, 16, 32>}, {pipeline_mode = #tpu.pipeline_mode<synchronous>, transform_indices = @transform_1, window_bounds = array<i64: 32, 4>}, {pipeline_mode = #tpu.pipeline_mode<synchronous>, transform_indices = @transform_2, window_bounds = array<i64: 4, 32>}, {pipeline_mode = #tpu.pipeline_mode<synchronous>, transform_indices = @transform_3, window_bounds = array<i64: 1, 32>}, {pipeline_mode = #tpu.pipeline_mode<synchronous>, transform_indices = @transform_4, window_bounds = array<i64: 1, 32>}, {pipeline_mode = #tpu.pipeline_mode<synchronous>, transform_indices = @transform_5, window_bounds = array<i64: 32, 32>}, {pipeline_mode = #tpu.pipeline_mode<synchronous>, transform_indices = @transform_6, window_bounds = array<i64: 32, 32>}, {pipeline_mode = #tpu.pipeline_mode<synchronous>, transform_indices = @transform_7, window_bounds = array<i64: 32, 32>}, {pipeline_mode = #tpu.pipeline_mode<synchronous>, transform_indices = @transform_8, window_bounds = array<i64: 32, 32>}, {pipeline_mode = #tpu.pipeline_mode<synchronous>, transform_indices = @transform_9, window_bounds = array<i64: 1, 32>}, {pipeline_mode = #tpu.pipeline_mode<synchronous>, transform_indices = @transform_10, window_bounds = array<i64: 1, 32>}, {pipeline_mode = #tpu.pipeline_mode<synchronous>, transform_indices = @transform_11, window_bounds = array<i64: 1, 32>}, {pipeline_mode = #tpu.pipeline_mode<synchronous>, transform_indices = @transform_12, window_bounds = array<i64: 32, 128>}, {pipeline_mode = #tpu.pipeline_mode<synchronous>, transform_indices = @transform_13, window_bounds = array<i64: 1, 128>}, {pipeline_mode = #tpu.pipeline_mode<synchronous>, transform_indices = @transform_14, window_bounds = array<i64: 128, 32>}, {pipeline_mode = #tpu.pipeline_mode<synchronous>, transform_indices = @transform_15, window_bounds = array<i64: 1, 32>}, {pipeline_mode = #tpu.pipeline_mode<synchronous>, transform_indices = @transform_16, window_bounds = array<i64: 1, 32>}, {pipeline_mode = #tpu.pipeline_mode<synchronous>, transform_indices = @transform_17, window_bounds = array<i64: 1, 32>}, {transform_indices = @transform_18, window_bounds = array<i64: 2, 16, 32>}]} {
    %c0 = arith.constant 0 : index
    %c0_0 = arith.constant 0 : index
    %c0_1 = arith.constant 0 : index
    %0 = vector.load %arg1[%c0, %c0_0, %c0_1] : memref<2x16x32xf32, #tpu.memory_space<vmem>>, vector<2x16x32xf32>
    %1 = vector.shape_cast %0 : vector<2x16x32xf32> to vector<32x32xf32>
    %2 = tpu.iota {dimensions = array<i32: 0>} : vector<32x2xi32>
    %3 = tpu.iota {dimensions = array<i32: 1>} : vector<32x2xi32>
    %c16_i32 = arith.constant 16 : i32
    %4 = vector.broadcast %c16_i32 : i32 to vector<32x2xi32>
    %5 = arith.muli %3, %4 : vector<32x2xi32>
    %6 = arith.subi %2, %5 : vector<32x2xi32>
    %7 = tpu.iota {dimensions = array<i32: 0>} : vector<2x32xi32>
    %8 = tpu.iota {dimensions = array<i32: 1>} : vector<2x32xi32>
    %c16_i32_2 = arith.constant 16 : i32
    %9 = vector.broadcast %c16_i32_2 : i32 to vector<2x32xi32>
    %10 = arith.muli %7, %9 : vector<2x32xi32>
    %11 = arith.subi %8, %10 : vector<2x32xi32>
    %c0_i32 = arith.constant 0 : i32
    %12 = vector.broadcast %c0_i32 : i32 to vector<32x2xi32>
    %13 = arith.cmpi eq, %6, %12 : vector<32x2xi32>
    %14 = arith.extui %13 : vector<32x2xi1> to vector<32x2xi32>
    %15 = arith.sitofp %14 : vector<32x2xi32> to vector<32x2xf32>
    %c0_i32_3 = arith.constant 0 : i32
    %16 = vector.broadcast %c0_i32_3 : i32 to vector<32x2xi32>
    %17 = arith.cmpi sge, %6, %16 : vector<32x2xi32>
    %c16_i32_4 = arith.constant 16 : i32
    %18 = vector.broadcast %c16_i32_4 : i32 to vector<32x2xi32>
    %19 = arith.cmpi slt, %6, %18 : vector<32x2xi32>
    %20 = arith.andi %17, %19 : vector<32x2xi1>
    %21 = arith.extui %20 : vector<32x2xi1> to vector<32x2xi32>
    %22 = arith.sitofp %21 : vector<32x2xi32> to vector<32x2xf32>
    %c0_i32_5 = arith.constant 0 : i32
    %23 = vector.broadcast %c0_i32_5 : i32 to vector<2x32xi32>
    %24 = arith.cmpi eq, %11, %23 : vector<2x32xi32>
    %25 = arith.extui %24 : vector<2x32xi1> to vector<2x32xi32>
    %26 = arith.sitofp %25 : vector<2x32xi32> to vector<2x32xf32>
    %c0_i32_6 = arith.constant 0 : i32
    %27 = vector.broadcast %c0_i32_6 : i32 to vector<2x32xi32>
    %28 = arith.cmpi sge, %11, %27 : vector<2x32xi32>
    %c16_i32_7 = arith.constant 16 : i32
    %29 = vector.broadcast %c16_i32_7 : i32 to vector<2x32xi32>
    %30 = arith.cmpi slt, %11, %29 : vector<2x32xi32>
    %31 = arith.andi %28, %30 : vector<2x32xi1>
    %32 = arith.extui %31 : vector<2x32xi1> to vector<2x32xi32>
    %33 = arith.sitofp %32 : vector<2x32xi32> to vector<2x32xf32>
    %c2_i32 = arith.constant 2 : i32
    %34 = arith.muli %arg0, %c2_i32 : i32
    %c3_i32 = arith.constant 3 : i32
    %35 = arith.subi %c3_i32, %34 : i32
    %c0_i32_8 = arith.constant 0 : i32
    %36 = vector.broadcast %c0_i32_8 : i32 to vector<32x2xi32>
    %37 = arith.cmpi sge, %6, %36 : vector<32x2xi32>
    %c10_i32 = arith.constant 10 : i32
    %38 = vector.broadcast %c10_i32 : i32 to vector<32x2xi32>
    %39 = arith.cmpi slt, %6, %38 : vector<32x2xi32>
    %40 = arith.andi %37, %39 : vector<32x2xi1>
    %41 = vector.broadcast %35 : i32 to vector<32x2xi32>
    %42 = arith.cmpi slt, %3, %41 : vector<32x2xi32>
    %43 = arith.andi %40, %42 : vector<32x2xi1>
    %44 = arith.extui %43 : vector<32x2xi1> to vector<32x2xi32>
    %45 = arith.sitofp %44 : vector<32x2xi32> to vector<32x2xf32>
    %cst = arith.constant dense<0.000000e+00> : vector<32xf32>
    %46 = vector.multi_reduction <add>, %45, %cst [1] : vector<32x2xf32> to vector<32xf32>
    %47 = vector.shape_cast %46 : vector<32xf32> to vector<32x1xf32>
    %cst_9 = arith.constant 5.000000e-01 : f32
    %48 = vector.broadcast %cst_9 : f32 to vector<32x1xf32>
    %49 = arith.cmpf ogt, %47, %48 : vector<32x1xf32>
    %cst_10 = arith.constant 0.000000e+00 : f32
    %50 = vector.shape_cast %49 : vector<32x1xi1> to vector<32x1xi1>
    %51 = vector.broadcast %50 : vector<32x1xi1> to vector<32x32xi1>
    %52 = vector.broadcast %cst_10 : f32 to vector<32x32xf32>
    %53 = arith.select %51, %1, %52 : vector<32x32xi1>, vector<32x32xf32>
    %c0_11 = arith.constant 0 : index
    %c0_12 = arith.constant 0 : index
    %54 = vector.load %arg4[%c0_11, %c0_12] : memref<1x32xf32, #tpu.memory_space<vmem>>, vector<1x32xf32>
    %c0_13 = arith.constant 0 : index
    %c0_14 = arith.constant 0 : index
    %55 = vector.load %arg5[%c0_13, %c0_14] : memref<1x32xf32, #tpu.memory_space<vmem>>, vector<1x32xf32>
    %cst_15 = arith.constant dense<0.000000e+00> : vector<32xf32>
    %56 = vector.multi_reduction <add>, %53, %cst_15 [1] : vector<32x32xf32> to vector<32xf32>
    %57 = vector.shape_cast %56 : vector<32xf32> to vector<32x1xf32>
    %cst_16 = arith.constant 3.200000e+01 : f32
    %58 = vector.broadcast %cst_16 : f32 to vector<32x1xf32>
    %59 = arith.divf %57, %58 : vector<32x1xf32>
    %60 = vector.broadcast %59 : vector<32x1xf32> to vector<32x32xf32>
    %61 = arith.subf %53, %60 : vector<32x32xf32>
    %62 = arith.mulf %61, %61 : vector<32x32xf32>
    %cst_17 = arith.constant dense<0.000000e+00> : vector<32xf32>
    %63 = vector.multi_reduction <add>, %62, %cst_17 [1] : vector<32x32xf32> to vector<32xf32>
    %64 = vector.shape_cast %63 : vector<32xf32> to vector<32x1xf32>
    %cst_18 = arith.constant 3.200000e+01 : f32
    %65 = vector.broadcast %cst_18 : f32 to vector<32x1xf32>
    %66 = arith.divf %64, %65 : vector<32x1xf32>
    %cst_19 = arith.constant 9.99999974E-6 : f32
    %67 = vector.broadcast %cst_19 : f32 to vector<32x1xf32>
    %68 = arith.addf %66, %67 : vector<32x1xf32>
    %69 = math.rsqrt %68 : vector<32x1xf32>
    %70 = vector.broadcast %69 : vector<32x1xf32> to vector<32x32xf32>
    %71 = arith.mulf %61, %70 : vector<32x32xf32>
    %72 = vector.broadcast %54 : vector<1x32xf32> to vector<32x32xf32>
    %73 = arith.mulf %71, %72 : vector<32x32xf32>
    %74 = vector.broadcast %55 : vector<1x32xf32> to vector<32x32xf32>
    %75 = arith.addf %73, %74 : vector<32x32xf32>
    %76 = arith.truncf %75 : vector<32x32xf32> to vector<32x32xbf16>
    %c0_20 = arith.constant 0 : index
    %c0_21 = arith.constant 0 : index
    %77 = vector.load %arg7[%c0_20, %c0_21] : memref<32x32xbf16, #tpu.memory_space<vmem>>, vector<32x32xbf16>
    %cst_22 = arith.constant dense<0.000000e+00> : vector<32x32xf32>
    %78 = tpu.matmul %76, %77, %cst_22 {dimension_numbers = #tpu.dot_dimension_numbers<[1], [0], [0], [1], [0, 0, 1, 1], [], []>} : vector<32x32xbf16>, vector<32x32xbf16>, vector<32x32xf32> -> vector<32x32xf32>
    %c0_23 = arith.constant 0 : index
    %c0_24 = arith.constant 0 : index
    %79 = vector.load %arg8[%c0_23, %c0_24] : memref<32x32xbf16, #tpu.memory_space<vmem>>, vector<32x32xbf16>
    %cst_25 = arith.constant dense<0.000000e+00> : vector<32x32xf32>
    %80 = tpu.matmul %76, %79, %cst_25 {dimension_numbers = #tpu.dot_dimension_numbers<[1], [0], [0], [1], [0, 0, 1, 1], [], []>} : vector<32x32xbf16>, vector<32x32xbf16>, vector<32x32xf32> -> vector<32x32xf32>
    %cst_26 = arith.constant dense<0.000000e+00> : vector<2x32xf32>
    %81 = tpu.matmul %26, %53, %cst_26 {dimension_numbers = #tpu.dot_dimension_numbers<[1], [0], [0], [1], [0, 0, 1, 1], [], []>} : vector<2x32xf32>, vector<32x32xf32>, vector<2x32xf32> -> vector<2x32xf32>
    %cst_27 = arith.constant dense<0.000000e+00> : vector<2xf32>
    %82 = vector.multi_reduction <add>, %81, %cst_27 [1] : vector<2x32xf32> to vector<2xf32>
    %83 = vector.shape_cast %82 : vector<2xf32> to vector<2x1xf32>
    %cst_28 = arith.constant 3.200000e+01 : f32
    %84 = vector.broadcast %cst_28 : f32 to vector<2x1xf32>
    %85 = arith.divf %83, %84 : vector<2x1xf32>
    %86 = vector.broadcast %85 : vector<2x1xf32> to vector<2x32xf32>
    %87 = arith.subf %81, %86 : vector<2x32xf32>
    %88 = arith.mulf %87, %87 : vector<2x32xf32>
    %cst_29 = arith.constant dense<0.000000e+00> : vector<2xf32>
    %89 = vector.multi_reduction <add>, %88, %cst_29 [1] : vector<2x32xf32> to vector<2xf32>
    %90 = vector.shape_cast %89 : vector<2xf32> to vector<2x1xf32>
    %cst_30 = arith.constant 3.200000e+01 : f32
    %91 = vector.broadcast %cst_30 : f32 to vector<2x1xf32>
    %92 = arith.divf %90, %91 : vector<2x1xf32>
    %cst_31 = arith.constant 9.99999974E-6 : f32
    %93 = vector.broadcast %cst_31 : f32 to vector<2x1xf32>
    %94 = arith.addf %92, %93 : vector<2x1xf32>
    %95 = math.rsqrt %94 : vector<2x1xf32>
    %96 = vector.broadcast %95 : vector<2x1xf32> to vector<2x32xf32>
    %97 = arith.mulf %87, %96 : vector<2x32xf32>
    %98 = vector.broadcast %54 : vector<1x32xf32> to vector<2x32xf32>
    %99 = arith.mulf %97, %98 : vector<2x32xf32>
    %100 = vector.broadcast %55 : vector<1x32xf32> to vector<2x32xf32>
    %101 = arith.addf %99, %100 : vector<2x32xf32>
    %102 = arith.truncf %101 : vector<2x32xf32> to vector<2x32xbf16>
    %c0_32 = arith.constant 0 : index
    %c0_33 = arith.constant 0 : index
    %103 = vector.load %arg6[%c0_32, %c0_33] : memref<32x32xbf16, #tpu.memory_space<vmem>>, vector<32x32xbf16>
    %cst_34 = arith.constant dense<0.000000e+00> : vector<2x32xf32>
    %104 = tpu.matmul %102, %103, %cst_34 {dimension_numbers = #tpu.dot_dimension_numbers<[1], [0], [0], [1], [0, 0, 1, 1], [], []>} : vector<2x32xbf16>, vector<32x32xbf16>, vector<2x32xf32> -> vector<2x32xf32>
    %cst_35 = arith.constant dense<0.000000e+00> : vector<32x32xf32>
    %105 = tpu.matmul %22, %104, %cst_35 {dimension_numbers = #tpu.dot_dimension_numbers<[1], [0], [0], [1], [0, 0, 1, 1], [], []>} : vector<32x2xf32>, vector<2x32xf32>, vector<32x32xf32> -> vector<32x32xf32>
    %106 = arith.mulf %105, %78 : vector<32x32xf32>
    %107 = arith.truncf %106 : vector<32x32xf32> to vector<32x32xbf16>
    %c0_36 = arith.constant 0 : index
    %c0_37 = arith.constant 0 : index
    %108 = vector.load %arg2[%c0_36, %c0_37] : memref<32x4xbf16, #tpu.memory_space<vmem>>, vector<32x4xbf16>
    %cst_38 = arith.constant dense<0.000000e+00> : vector<32x4xf32>
    %109 = tpu.matmul %107, %108, %cst_38 {dimension_numbers = #tpu.dot_dimension_numbers<[1], [0], [0], [1], [0, 0, 1, 1], [], []>} : vector<32x32xbf16>, vector<32x4xbf16>, vector<32x4xf32> -> vector<32x4xf32>
    %110 = tpu.iota {dimensions = array<i32: 0>} : vector<16x4xi32>
    %c10_i32_39 = arith.constant 10 : i32
    %111 = vector.broadcast %c10_i32_39 : i32 to vector<16x4xi32>
    %112 = arith.cmpi slt, %110, %111 : vector<16x4xi32>
    %113 = vector.extract_strided_slice %109 {offsets = [0, 0], sizes = [16, 4], strides = [1, 1]} : vector<32x4xf32> to vector<16x4xf32>
    %cst_40 = arith.constant -1.000000e+30 : f32
    %114 = vector.broadcast %cst_40 : f32 to vector<16x4xf32>
    %115 = arith.select %112, %113, %114 : vector<16x4xi1>, vector<16x4xf32>
    %cst_41 = arith.constant dense<0xFF800000> : vector<4xf32>
    %116 = vector.multi_reduction <maximumf>, %115, %cst_41 [0] : vector<16x4xf32> to vector<4xf32>
    %117 = vector.shape_cast %116 : vector<4xf32> to vector<1x4xf32>
    %118 = vector.broadcast %117 : vector<1x4xf32> to vector<16x4xf32>
    %119 = arith.subf %115, %118 : vector<16x4xf32>
    %120 = math.exp %119 : vector<16x4xf32>
    %cst_42 = arith.constant dense<0.000000e+00> : vector<4xf32>
    %121 = vector.multi_reduction <add>, %120, %cst_42 [0] : vector<16x4xf32> to vector<4xf32>
    %122 = vector.shape_cast %121 : vector<4xf32> to vector<1x4xf32>
    %123 = tpu.reciprocal %122 {approx = true} : vector<1x4xf32> -> vector<1x4xf32>
    %124 = vector.broadcast %123 : vector<1x4xf32> to vector<16x4xf32>
    %125 = arith.mulf %120, %124 : vector<16x4xf32>
    %126 = vector.extract_strided_slice %109 {offsets = [16, 0], sizes = [16, 4], strides = [1, 1]} : vector<32x4xf32> to vector<16x4xf32>
    %cst_43 = arith.constant -1.000000e+30 : f32
    %127 = vector.broadcast %cst_43 : f32 to vector<16x4xf32>
    %128 = arith.select %112, %126, %127 : vector<16x4xi1>, vector<16x4xf32>
    %cst_44 = arith.constant dense<0xFF800000> : vector<4xf32>
    %129 = vector.multi_reduction <maximumf>, %128, %cst_44 [0] : vector<16x4xf32> to vector<4xf32>
    %130 = vector.shape_cast %129 : vector<4xf32> to vector<1x4xf32>
    %131 = vector.broadcast %130 : vector<1x4xf32> to vector<16x4xf32>
    %132 = arith.subf %128, %131 : vector<16x4xf32>
    %133 = math.exp %132 : vector<16x4xf32>
    %cst_45 = arith.constant dense<0.000000e+00> : vector<4xf32>
    %134 = vector.multi_reduction <add>, %133, %cst_45 [0] : vector<16x4xf32> to vector<4xf32>
    %135 = vector.shape_cast %134 : vector<4xf32> to vector<1x4xf32>
    %136 = tpu.reciprocal %135 {approx = true} : vector<1x4xf32> -> vector<1x4xf32>
    %137 = vector.broadcast %136 : vector<1x4xf32> to vector<16x4xf32>
    %138 = arith.mulf %133, %137 : vector<16x4xf32>
    %139 = tpu.concatenate %125, %138 in 0 : vector<16x4xf32>, vector<16x4xf32> -> vector<32x4xf32>
    %140 = arith.truncf %139 : vector<32x4xf32> to vector<32x4xbf16>
    %c0_46 = arith.constant 0 : index
    %c0_47 = arith.constant 0 : index
    %141 = vector.load %arg3[%c0_46, %c0_47] : memref<4x32xbf16, #tpu.memory_space<vmem>>, vector<4x32xbf16>
    %cst_48 = arith.constant dense<0.000000e+00> : vector<32x32xf32>
    %142 = tpu.matmul %140, %141, %cst_48 {dimension_numbers = #tpu.dot_dimension_numbers<[1], [0], [0], [1], [0, 0, 1, 1], [], []>} : vector<32x4xbf16>, vector<4x32xbf16>, vector<32x32xf32> -> vector<32x32xf32>
    %143 = arith.mulf %142, %80 : vector<32x32xf32>
    %cst_49 = arith.constant dense<0.000000e+00> : vector<2x32xf32>
    %144 = tpu.matmul %33, %143, %cst_49 {dimension_numbers = #tpu.dot_dimension_numbers<[1], [0], [0], [1], [0, 0, 1, 1], [], []>} : vector<2x32xf32>, vector<32x32xf32>, vector<2x32xf32> -> vector<2x32xf32>
    %145 = arith.truncf %144 : vector<2x32xf32> to vector<2x32xbf16>
    %c0_50 = arith.constant 0 : index
    %c0_51 = arith.constant 0 : index
    %146 = vector.load %arg9[%c0_50, %c0_51] : memref<32x32xbf16, #tpu.memory_space<vmem>>, vector<32x32xbf16>
    %cst_52 = arith.constant dense<0.000000e+00> : vector<2x32xf32>
    %147 = tpu.matmul %145, %146, %cst_52 {dimension_numbers = #tpu.dot_dimension_numbers<[1], [0], [0], [1], [0, 0, 1, 1], [], []>} : vector<2x32xbf16>, vector<32x32xbf16>, vector<2x32xf32> -> vector<2x32xf32>
    %c0_53 = arith.constant 0 : index
    %c0_54 = arith.constant 0 : index
    %148 = vector.load %arg10[%c0_53, %c0_54] : memref<1x32xf32, #tpu.memory_space<vmem>>, vector<1x32xf32>
    %149 = vector.broadcast %148 : vector<1x32xf32> to vector<2x32xf32>
    %150 = arith.addf %147, %149 : vector<2x32xf32>
    %c0_55 = arith.constant 0 : index
    %c0_56 = arith.constant 0 : index
    %151 = vector.load %arg17[%c0_55, %c0_56] : memref<1x32xf32, #tpu.memory_space<vmem>>, vector<1x32xf32>
    %152 = vector.broadcast %151 : vector<1x32xf32> to vector<32x32xf32>
    %153 = arith.mulf %152, %75 : vector<32x32xf32>
    %154 = arith.addf %53, %153 : vector<32x32xf32>
    %155 = vector.broadcast %151 : vector<1x32xf32> to vector<2x32xf32>
    %156 = arith.mulf %155, %150 : vector<2x32xf32>
    %157 = arith.addf %81, %156 : vector<2x32xf32>
    %c0_57 = arith.constant 0 : index
    %c0_58 = arith.constant 0 : index
    %158 = vector.load %arg11[%c0_57, %c0_58] : memref<1x32xf32, #tpu.memory_space<vmem>>, vector<1x32xf32>
    %c0_59 = arith.constant 0 : index
    %c0_60 = arith.constant 0 : index
    %159 = vector.load %arg12[%c0_59, %c0_60] : memref<1x32xf32, #tpu.memory_space<vmem>>, vector<1x32xf32>
    %cst_61 = arith.constant dense<0.000000e+00> : vector<2xf32>
    %160 = vector.multi_reduction <add>, %157, %cst_61 [1] : vector<2x32xf32> to vector<2xf32>
    %161 = vector.shape_cast %160 : vector<2xf32> to vector<2x1xf32>
    %cst_62 = arith.constant 3.200000e+01 : f32
    %162 = vector.broadcast %cst_62 : f32 to vector<2x1xf32>
    %163 = arith.divf %161, %162 : vector<2x1xf32>
    %164 = vector.broadcast %163 : vector<2x1xf32> to vector<2x32xf32>
    %165 = arith.subf %157, %164 : vector<2x32xf32>
    %166 = arith.mulf %165, %165 : vector<2x32xf32>
    %cst_63 = arith.constant dense<0.000000e+00> : vector<2xf32>
    %167 = vector.multi_reduction <add>, %166, %cst_63 [1] : vector<2x32xf32> to vector<2xf32>
    %168 = vector.shape_cast %167 : vector<2xf32> to vector<2x1xf32>
    %cst_64 = arith.constant 3.200000e+01 : f32
    %169 = vector.broadcast %cst_64 : f32 to vector<2x1xf32>
    %170 = arith.divf %168, %169 : vector<2x1xf32>
    %cst_65 = arith.constant 9.99999974E-6 : f32
    %171 = vector.broadcast %cst_65 : f32 to vector<2x1xf32>
    %172 = arith.addf %170, %171 : vector<2x1xf32>
    %173 = math.rsqrt %172 : vector<2x1xf32>
    %174 = vector.broadcast %173 : vector<2x1xf32> to vector<2x32xf32>
    %175 = arith.mulf %165, %174 : vector<2x32xf32>
    %176 = vector.broadcast %158 : vector<1x32xf32> to vector<2x32xf32>
    %177 = arith.mulf %175, %176 : vector<2x32xf32>
    %178 = vector.broadcast %159 : vector<1x32xf32> to vector<2x32xf32>
    %179 = arith.addf %177, %178 : vector<2x32xf32>
    %180 = arith.truncf %179 : vector<2x32xf32> to vector<2x32xbf16>
    %c0_66 = arith.constant 0 : index
    %c0_67 = arith.constant 0 : index
    %181 = vector.load %arg13[%c0_66, %c0_67] : memref<32x128xbf16, #tpu.memory_space<vmem>>, vector<32x128xbf16>
    %cst_68 = arith.constant dense<0.000000e+00> : vector<2x128xf32>
    %182 = tpu.matmul %180, %181, %cst_68 {dimension_numbers = #tpu.dot_dimension_numbers<[1], [0], [0], [1], [0, 0, 1, 1], [], []>} : vector<2x32xbf16>, vector<32x128xbf16>, vector<2x128xf32> -> vector<2x128xf32>
    %c0_69 = arith.constant 0 : index
    %c0_70 = arith.constant 0 : index
    %183 = vector.load %arg14[%c0_69, %c0_70] : memref<1x128xf32, #tpu.memory_space<vmem>>, vector<1x128xf32>
    %184 = vector.broadcast %183 : vector<1x128xf32> to vector<2x128xf32>
    %185 = arith.addf %182, %184 : vector<2x128xf32>
    %cst_71 = arith.constant 5.000000e-01 : f32
    %186 = vector.broadcast %cst_71 : f32 to vector<2x128xf32>
    %187 = arith.mulf %186, %185 : vector<2x128xf32>
    %cst_72 = arith.constant 0.707106769 : f32
    %188 = vector.broadcast %cst_72 : f32 to vector<2x128xf32>
    %189 = arith.mulf %185, %188 : vector<2x128xf32>
    %190 = math.erf %189 : vector<2x128xf32>
    %cst_73 = arith.constant 1.000000e+00 : f32
    %191 = vector.broadcast %cst_73 : f32 to vector<2x128xf32>
    %192 = arith.addf %191, %190 : vector<2x128xf32>
    %193 = arith.mulf %187, %192 : vector<2x128xf32>
    %194 = arith.truncf %193 : vector<2x128xf32> to vector<2x128xbf16>
    %c0_74 = arith.constant 0 : index
    %c0_75 = arith.constant 0 : index
    %195 = vector.load %arg15[%c0_74, %c0_75] : memref<128x32xbf16, #tpu.memory_space<vmem>>, vector<128x32xbf16>
    %cst_76 = arith.constant dense<0.000000e+00> : vector<2x32xf32>
    %196 = tpu.matmul %194, %195, %cst_76 {dimension_numbers = #tpu.dot_dimension_numbers<[1], [0], [0], [1], [0, 0, 1, 1], [], []>} : vector<2x128xbf16>, vector<128x32xbf16>, vector<2x32xf32> -> vector<2x32xf32>
    %c0_77 = arith.constant 0 : index
    %c0_78 = arith.constant 0 : index
    %197 = vector.load %arg16[%c0_77, %c0_78] : memref<1x32xf32, #tpu.memory_space<vmem>>, vector<1x32xf32>
    %198 = vector.broadcast %197 : vector<1x32xf32> to vector<2x32xf32>
    %199 = arith.addf %196, %198 : vector<2x32xf32>
    %c0_79 = arith.constant 0 : index
    %c0_80 = arith.constant 0 : index
    %200 = vector.load %arg18[%c0_79, %c0_80] : memref<1x32xf32, #tpu.memory_space<vmem>>, vector<1x32xf32>
    %201 = vector.broadcast %200 : vector<1x32xf32> to vector<2x32xf32>
    %202 = arith.mulf %201, %199 : vector<2x32xf32>
    %203 = arith.addf %179, %202 : vector<2x32xf32>
    %cst_81 = arith.constant dense<0.000000e+00> : vector<32x32xf32>
    %204 = tpu.matmul %15, %203, %cst_81 {dimension_numbers = #tpu.dot_dimension_numbers<[1], [0], [0], [1], [0, 0, 1, 1], [], []>} : vector<32x2xf32>, vector<2x32xf32>, vector<32x32xf32> -> vector<32x32xf32>
    %cst_82 = arith.constant dense<0.000000e+00> : vector<32xf32>
    %205 = vector.multi_reduction <add>, %15, %cst_82 [1] : vector<32x2xf32> to vector<32xf32>
    %206 = vector.shape_cast %205 : vector<32xf32> to vector<32x1xf32>
    %cst_83 = arith.constant 5.000000e-01 : f32
    %207 = vector.broadcast %cst_83 : f32 to vector<32x1xf32>
    %208 = arith.cmpf ogt, %206, %207 : vector<32x1xf32>
    %cst_84 = arith.constant 2.000000e+00 : f32
    %209 = vector.broadcast %cst_84 : f32 to vector<32x32xf32>
    %210 = arith.mulf %209, %154 : vector<32x32xf32>
    %211 = vector.shape_cast %208 : vector<32x1xi1> to vector<32x1xi1>
    %212 = vector.broadcast %211 : vector<32x1xi1> to vector<32x32xi1>
    %213 = arith.select %212, %204, %210 : vector<32x32xi1>, vector<32x32xf32>
    %214 = vector.shape_cast %213 : vector<32x32xf32> to vector<2x16x32xf32>
    %c0_85 = arith.constant 0 : index
    %c0_86 = arith.constant 0 : index
    %c0_87 = arith.constant 0 : index
    %215 = vector.load %arg19[%c0_85, %c0_86, %c0_87] : memref<2x16x32xf32, #tpu.memory_space<vmem>>, vector<2x16x32xf32>
    tpu.vector_store %arg19[%c0_85, %c0_86, %c0_87], %214 {strides = array<i32>} : memref<2x16x32xf32, #tpu.memory_space<vmem>>, vector<2x16x32xf32>,
    return
  }
  func.func @transform_0(%arg0: i32) -> (i32, i32, i32) {
    %c0_i32 = arith.constant 0 : i32
    %c0_i32_0 = arith.constant 0 : i32
    %c0_i32_1 = arith.constant 0 : i32
    return %arg0, %c0_i32, %c0_i32_0 : i32, i32, i32
  }
  func.func @transform_1(%arg0: i32) -> (i32, i32) {
    %c0_i32 = arith.constant 0 : i32
    %c0_i32_0 = arith.constant 0 : i32
    %c0_i32_1 = arith.constant 0 : i32
    return %c0_i32, %c0_i32_0 : i32, i32
  }
  func.func @transform_2(%arg0: i32) -> (i32, i32) {
    %c0_i32 = arith.constant 0 : i32
    %c0_i32_0 = arith.constant 0 : i32
    %c0_i32_1 = arith.constant 0 : i32
    return %c0_i32, %c0_i32_0 : i32, i32
  }
  func.func @transform_3(%arg0: i32) -> (i32, i32) {
    %c0_i32 = arith.constant 0 : i32
    %c0_i32_0 = arith.constant 0 : i32
    %c0_i32_1 = arith.constant 0 : i32
    return %c0_i32, %c0_i32_0 : i32, i32
  }
  func.func @transform_4(%arg0: i32) -> (i32, i32) {
    %c0_i32 = arith.constant 0 : i32
    %c0_i32_0 = arith.constant 0 : i32
    %c0_i32_1 = arith.constant 0 : i32
    return %c0_i32, %c0_i32_0 : i32, i32
  }
  func.func @transform_5(%arg0: i32) -> (i32, i32) {
    %c0_i32 = arith.constant 0 : i32
    %c0_i32_0 = arith.constant 0 : i32
    %c0_i32_1 = arith.constant 0 : i32
    return %c0_i32, %c0_i32_0 : i32, i32
  }
  func.func @transform_6(%arg0: i32) -> (i32, i32) {
    %c0_i32 = arith.constant 0 : i32
    %c0_i32_0 = arith.constant 0 : i32
    %c0_i32_1 = arith.constant 0 : i32
    return %c0_i32, %c0_i32_0 : i32, i32
  }
  func.func @transform_7(%arg0: i32) -> (i32, i32) {
    %c0_i32 = arith.constant 0 : i32
    %c0_i32_0 = arith.constant 0 : i32
    %c0_i32_1 = arith.constant 0 : i32
    return %c0_i32, %c0_i32_0 : i32, i32
  }
  func.func @transform_8(%arg0: i32) -> (i32, i32) {
    %c0_i32 = arith.constant 0 : i32
    %c0_i32_0 = arith.constant 0 : i32
    %c0_i32_1 = arith.constant 0 : i32
    return %c0_i32, %c0_i32_0 : i32, i32
  }
  func.func @transform_9(%arg0: i32) -> (i32, i32) {
    %c0_i32 = arith.constant 0 : i32
    %c0_i32_0 = arith.constant 0 : i32
    %c0_i32_1 = arith.constant 0 : i32
    return %c0_i32, %c0_i32_0 : i32, i32
  }
  func.func @transform_10(%arg0: i32) -> (i32, i32) {
    %c0_i32 = arith.constant 0 : i32
    %c0_i32_0 = arith.constant 0 : i32
    %c0_i32_1 = arith.constant 0 : i32
    return %c0_i32, %c0_i32_0 : i32, i32
  }
  func.func @transform_11(%arg0: i32) -> (i32, i32) {
    %c0_i32 = arith.constant 0 : i32
    %c0_i32_0 = arith.constant 0 : i32
    %c0_i32_1 = arith.constant 0 : i32
    return %c0_i32, %c0_i32_0 : i32, i32
  }
  func.func @transform_12(%arg0: i32) -> (i32, i32) {
    %c0_i32 = arith.constant 0 : i32
    %c0_i32_0 = arith.constant 0 : i32
    %c0_i32_1 = arith.constant 0 : i32
    return %c0_i32, %c0_i32_0 : i32, i32
  }
  func.func @transform_13(%arg0: i32) -> (i32, i32) {
    %c0_i32 = arith.constant 0 : i32
    %c0_i32_0 = arith.constant 0 : i32
    %c0_i32_1 = arith.constant 0 : i32
    return %c0_i32, %c0_i32_0 : i32, i32
  }
  func.func @transform_14(%arg0: i32) -> (i32, i32) {
    %c0_i32 = arith.constant 0 : i32
    %c0_i32_0 = arith.constant 0 : i32
    %c0_i32_1 = arith.constant 0 : i32
    return %c0_i32, %c0_i32_0 : i32, i32
  }
  func.func @transform_15(%arg0: i32) -> (i32, i32) {
    %c0_i32 = arith.constant 0 : i32
    %c0_i32_0 = arith.constant 0 : i32
    %c0_i32_1 = arith.constant 0 : i32
    return %c0_i32, %c0_i32_0 : i32, i32
  }
  func.func @transform_16(%arg0: i32) -> (i32, i32) {
    %c0_i32 = arith.constant 0 : i32
    %c0_i32_0 = arith.constant 0 : i32
    %c0_i32_1 = arith.constant 0 : i32
    return %c0_i32, %c0_i32_0 : i32, i32
  }
  func.func @transform_17(%arg0: i32) -> (i32, i32) {
    %c0_i32 = arith.constant 0 : i32
    %c0_i32_0 = arith.constant 0 : i32
    %c0_i32_1 = arith.constant 0 : i32
    return %c0_i32, %c0_i32_0 : i32, i32
  }
  func.func @transform_18(%arg0: i32) -> (i32, i32, i32) {
    %c0_i32 = arith.constant 0 : i32
    %c0_i32_0 = arith.constant 0 : i32
    %c0_i32_1 = arith.constant 0 : i32
    return %arg0, %c0_i32, %c0_i32_0 : i32, i32, i32
  }
}

</mosaic_0001>

<llo_original>
// kernel: tpu_custom_call.1
$region0: #{tpu_custom_call.1}
  #allocation0 [shape = 'u32[]', space=smem, size = 0x4, offset = 0x4, fixed_abs, tag = 'smem constant byte address 0x4 - core index']
  #allocation1 [shape = 'u32[72,128]{1,0:T(1,128)}', space=vmem, size = 0x9000, scoped, tag = 'internal scratch']
  %s0 = inlined_call_operand.vmem [shape: f32[3,10,32], index: 0, kind: input, shape index: {}]
  %s1 = inlined_call_operand.vmem [shape: bf16[32,4], index: 1, kind: input, shape index: {}]
  %s2 = inlined_call_operand.vmem [shape: bf16[4,32], index: 2, kind: input, shape index: {}]
  %s3 = inlined_call_operand.vmem [shape: f32[1,32], index: 3, kind: input, shape index: {}]
  %s4 = inlined_call_operand.vmem [shape: f32[1,32], index: 4, kind: input, shape index: {}]
  %s5 = inlined_call_operand.vmem [shape: bf16[32,32], index: 5, kind: input, shape index: {}]
  %s6 = inlined_call_operand.vmem [shape: bf16[32,32], index: 6, kind: input, shape index: {}]
  %s7 = inlined_call_operand.vmem [shape: bf16[32,32], index: 7, kind: input, shape index: {}]
  %s8 = inlined_call_operand.vmem [shape: bf16[32,32], index: 8, kind: input, shape index: {}]
  %s9 = inlined_call_operand.vmem [shape: f32[1,32], index: 9, kind: input, shape index: {}]
  %s10 = inlined_call_operand.vmem [shape: f32[1,32], index: 10, kind: input, shape index: {}]
  %s11 = inlined_call_operand.vmem [shape: f32[1,32], index: 11, kind: input, shape index: {}]
  %s12 = inlined_call_operand.vmem [shape: bf16[32,128], index: 12, kind: input, shape index: {}]
  %s13 = inlined_call_operand.vmem [shape: f32[1,128], index: 13, kind: input, shape index: {}]
  %s14 = inlined_call_operand.vmem [shape: bf16[128,32], index: 14, kind: input, shape index: {}]
  %s15 = inlined_call_operand.vmem [shape: f32[1,32], index: 15, kind: input, shape index: {}]
  %s16 = inlined_call_operand.vmem [shape: f32[1,32], index: 16, kind: input, shape index: {}]
  %s17 = inlined_call_operand.vmem [shape: f32[1,32], index: 17, kind: input, shape index: {}]
  %s18 = inlined_call_operand.vmem [shape: f32[3,10,32], index: 18, kind: output, shape index: {}]
  %s19 = sld [smem:[#allocation0]]
  $region153: #{tpu_custom_call.1} parent=0
    _
  %s21 = ssub.s32 1, %s19
  %s22 = scalar_select 0, %s21, %s19
  $region1: #{tpu_custom_call.1} parent=0
    #allocation2 [shape = 'u8[32768]{0}', space=vmem, size = 0x8000, scoped, tag = 'output window, operand 0']
    loop: start=0, step=1, limit=4
    $region2: #{tpu_custom_call.1} parent=1 // loop_pre_header
      _
    $region3: #{tpu_custom_call.1} parent=1 // loop_header
      %s24 = sphi 0, %s28
      %p25 = scmp.ge.s32.totalorder %s24, 4
      %s34 = sphi 0, %s36
      %s37 = sphi 0, %s34
      %s38 = sphi 0, %s37
      %s54 = sphi 0, %s38
      %s58 = sphi 0, %s58
      %s60 = sphi 0, %s58
      %s61 = sphi 0, %s60
      %s75 = sphi 0, %s61
      %s79 = sphi 0, %s79
      %s81 = sphi 0, %s79
      %s82 = sphi 0, %s81
      %s96 = sphi 0, %s82
      %s100 = sphi 0, %s100
      %s102 = sphi 0, %s100
      %s103 = sphi 0, %s102
      %s117 = sphi 0, %s103
      %s121 = sphi 0, %s121
      %s123 = sphi 0, %s121
      %s124 = sphi 0, %s123
      %s138 = sphi 0, %s124
      %s142 = sphi 0, %s142
      %s144 = sphi 0, %s142
      %s145 = sphi 0, %s144
      %s159 = sphi 0, %s145
      %s163 = sphi 0, %s163
      %s165 = sphi 0, %s163
      %s166 = sphi 0, %s165
      %s180 = sphi 0, %s166
      %s184 = sphi 0, %s184
      %s186 = sphi 0, %s184
      %s187 = sphi 0, %s186
      %s201 = sphi 0, %s187
      %s205 = sphi 0, %s205
      %s207 = sphi 0, %s205
      %s208 = sphi 0, %s207
      %s222 = sphi 0, %s208
      %s226 = sphi 0, %s226
      %s228 = sphi 0, %s226
      %s229 = sphi 0, %s228
      %s243 = sphi 0, %s229
      %s247 = sphi 0, %s247
      %s249 = sphi 0, %s247
      %s250 = sphi 0, %s249
      %s264 = sphi 0, %s250
      %s268 = sphi 0, %s268
      %s270 = sphi 0, %s268
      %s271 = sphi 0, %s270
      %s285 = sphi 0, %s271
      %s289 = sphi 0, %s289
      %s291 = sphi 0, %s289
      %s292 = sphi 0, %s291
      %s306 = sphi 0, %s292
      %s310 = sphi 0, %s310
      %s312 = sphi 0, %s310
      %s313 = sphi 0, %s312
      %s327 = sphi 0, %s313
      %s331 = sphi 0, %s331
      %s333 = sphi 0, %s331
      %s334 = sphi 0, %s333
      %s348 = sphi 0, %s334
      %s352 = sphi 0, %s352
      %s354 = sphi 0, %s352
      %s355 = sphi 0, %s354
      %s369 = sphi 0, %s355
      %s373 = sphi 0, %s373
      %s375 = sphi 0, %s373
      %s376 = sphi 0, %s375
      %s390 = sphi 0, %s376
      %s394 = sphi 0, %s394
      %s396 = sphi 0, %s394
      %s397 = sphi 0, %s396
      %s411 = sphi 0, %s397
      %s417 = sphi 0, %s419
      %s420 = sphi 0, %s417
      %s421 = sphi 0, %s420
      %s437 = sphi 0, %s421
    $region4: #{tpu_custom_call.1} parent=1 // loop_header_branch
      %27 = sbr.rel (%p25) target = $region8
    $region5: #{tpu_custom_call.1} parent=1 // loop_body
      %s29 = ssub.s32 %s24, 1
      %s30 = ssub.s32 %s24, 2
      %s31 = sadd.s32 %s24, 1
      %s32 = ssub.s32 %s24, %s31
      %p33 = scmp.eq.s32.totalorder %s32, 0
      %s35 = sadd.s32 %s34, 1
      %s36 = scalar_select %p33, %s34, %s35
      %p39 = pneg %p33
      %p40 = scmp.eq.s32.totalorder %s24, 1
      %p41 = por %p39, %p40
      %p42 = scmp.ne.s32.totalorder %s34, %s37
      %p43 = scmp.eq.s32.totalorder %s24, 0
      %p44 = por %p42, %p43
      %p45 = scmp.ne.s32.totalorder %s34, %s37
      %p46 = scmp.eq.s32.totalorder %s29, 1
      %p47 = por %p45, %p46
      %p48 = scmp.ne.s32.totalorder %s37, %s38
      %p49 = scmp.eq.s32.totalorder %s29, 0
      %p50 = por %p48, %p49
      %p51 = scmp.ne.s32.totalorder %s37, %s38
      %p52 = scmp.eq.s32.totalorder %s30, 1
      %p53 = por %p51, %p52
      %p55 = scmp.ne.s32.totalorder %s38, %s54
      %p56 = scmp.eq.s32.totalorder %s30, 0
      %p57 = por %p55, %p56
      %s59 = sadd.s32 %s58, 1
      %p62 = scmp.eq.s32.totalorder %s24, 1
      %p63 = scmp.ne.s32.totalorder %s58, %s60
      %p64 = scmp.eq.s32.totalorder %s24, 0
      %p65 = por %p63, %p64
      %p66 = scmp.ne.s32.totalorder %s58, %s60
      %p67 = scmp.eq.s32.totalorder %s29, 1
      %p68 = por %p66, %p67
      %p69 = scmp.ne.s32.totalorder %s60, %s61
      %p70 = scmp.eq.s32.totalorder %s29, 0
      %p71 = por %p69, %p70
      %p72 = scmp.ne.s32.totalorder %s60, %s61
      %p73 = scmp.eq.s32.totalorder %s30, 1
      %p74 = por %p72, %p73
      %p76 = scmp.ne.s32.totalorder %s61, %s75
      %p77 = scmp.eq.s32.totalorder %s30, 0
      %p78 = por %p76, %p77
      %s80 = sadd.s32 %s79, 1
      %p83 = scmp.eq.s32.totalorder %s24, 1
      %p84 = scmp.ne.s32.totalorder %s79, %s81
      %p85 = scmp.eq.s32.totalorder %s24, 0
      %p86 = por %p84, %p85
      %p87 = scmp.ne.s32.totalorder %s79, %s81
      %p88 = scmp.eq.s32.totalorder %s29, 1
      %p89 = por %p87, %p88
      %p90 = scmp.ne.s32.totalorder %s81, %s82
      %p91 = scmp.eq.s32.totalorder %s29, 0
      %p92 = por %p90, %p91
      %p93 = scmp.ne.s32.totalorder %s81, %s82
      %p94 = scmp.eq.s32.totalorder %s30, 1
      %p95 = por %p93, %p94
      %p97 = scmp.ne.s32.totalorder %s82, %s96
      %p98 = scmp.eq.s32.totalorder %s30, 0
      %p99 = por %p97, %p98
      %s101 = sadd.s32 %s100, 1
      %p104 = scmp.eq.s32.totalorder %s24, 1
      %p105 = scmp.ne.s32.totalorder %s100, %s102
      %p106 = scmp.eq.s32.totalorder %s24, 0
      %p107 = por %p105, %p106
      %p108 = scmp.ne.s32.totalorder %s100, %s102
      %p109 = scmp.eq.s32.totalorder %s29, 1
      %p110 = por %p108, %p109
      %p111 = scmp.ne.s32.totalorder %s102, %s103
      %p112 = scmp.eq.s32.totalorder %s29, 0
      %p113 = por %p111, %p112
      %p114 = scmp.ne.s32.totalorder %s102, %s103
      %p115 = scmp.eq.s32.totalorder %s30, 1
      %p116 = por %p114, %p115
      %p118 = scmp.ne.s32.totalorder %s103, %s117
      %p119 = scmp.eq.s32.totalorder %s30, 0
      %p120 = por %p118, %p119
      %s122 = sadd.s32 %s121, 1
      %p125 = scmp.eq.s32.totalorder %s24, 1
      %p126 = scmp.ne.s32.totalorder %s121, %s123
      %p127 = scmp.eq.s32.totalorder %s24, 0
      %p128 = por %p126, %p127
      %p129 = scmp.ne.s32.totalorder %s121, %s123
      %p130 = scmp.eq.s32.totalorder %s29, 1
      %p131 = por %p129, %p130
      %p132 = scmp.ne.s32.totalorder %s123, %s124
      %p133 = scmp.eq.s32.totalorder %s29, 0
      %p134 = por %p132, %p133
      %p135 = scmp.ne.s32.totalorder %s123, %s124
      %p136 = scmp.eq.s32.totalorder %s30, 1
      %p137 = por %p135, %p136
      %p139 = scmp.ne.s32.totalorder %s124, %s138
      %p140 = scmp.eq.s32.totalorder %s30, 0
      %p141 = por %p139, %p140
      %s143 = sadd.s32 %s142, 1
      %p146 = scmp.eq.s32.totalorder %s24, 1
      %p147 = scmp.ne.s32.totalorder %s142, %s144
      %p148 = scmp.eq.s32.totalorder %s24, 0
      %p149 = por %p147, %p148
      %p150 = scmp.ne.s32.totalorder %s142, %s144
      %p151 = scmp.eq.s32.totalorder %s29, 1
      %p152 = por %p150, %p151
      %p153 = scmp.ne.s32.totalorder %s144, %s145
      %p154 = scmp.eq.s32.totalorder %s29, 0
      %p155 = por %p153, %p154
      %p156 = scmp.ne.s32.totalorder %s144, %s145
      %p157 = scmp.eq.s32.totalorder %s30, 1
      %p158 = por %p156, %p157
      %p160 = scmp.ne.s32.totalorder %s145, %s159
      %p161 = scmp.eq.s32.totalorder %s30, 0
      %p162 = por %p160, %p161
      %s164 = sadd.s32 %s163, 1
      %p167 = scmp.eq.s32.totalorder %s24, 1
      %p168 = scmp.ne.s32.totalorder %s163, %s165
      %p169 = scmp.eq.s32.totalorder %s24, 0
      %p170 = por %p168, %p169
      %p171 = scmp.ne.s32.totalorder %s163, %s165
      %p172 = scmp.eq.s32.totalorder %s29, 1
      %p173 = por %p171, %p172
      %p174 = scmp.ne.s32.totalorder %s165, %s166
      %p175 = scmp.eq.s32.totalorder %s29, 0
      %p176 = por %p174, %p175
      %p177 = scmp.ne.s32.totalorder %s165, %s166
      %p178 = scmp.eq.s32.totalorder %s30, 1
      %p179 = por %p177, %p178
      %p181 = scmp.ne.s32.totalorder %s166, %s180
      %p182 = scmp.eq.s32.totalorder %s30, 0
      %p183 = por %p181, %p182
      %s185 = sadd.s32 %s184, 1
      %p188 = scmp.eq.s32.totalorder %s24, 1
      %p189 = scmp.ne.s32.totalorder %s184, %s186
      %p190 = scmp.eq.s32.totalorder %s24, 0
      %p191 = por %p189, %p190
      %p192 = scmp.ne.s32.totalorder %s184, %s186
      %p193 = scmp.eq.s32.totalorder %s29, 1
      %p194 = por %p192, %p193
      %p195 = scmp.ne.s32.totalorder %s186, %s187
      %p196 = scmp.eq.s32.totalorder %s29, 0
      %p197 = por %p195, %p196
      %p198 = scmp.ne.s32.totalorder %s186, %s187
      %p199 = scmp.eq.s32.totalorder %s30, 1
      %p200 = por %p198, %p199
      %p202 = scmp.ne.s32.totalorder %s187, %s201
      %p203 = scmp.eq.s32.totalorder %s30, 0
      %p204 = por %p202, %p203
      %s206 = sadd.s32 %s205, 1
      %p209 = scmp.eq.s32.totalorder %s24, 1
      %p210 = scmp.ne.s32.totalorder %s205, %s207
      %p211 = scmp.eq.s32.totalorder %s24, 0
      %p212 = por %p210, %p211
      %p213 = scmp.ne.s32.totalorder %s205, %s207
      %p214 = scmp.eq.s32.totalorder %s29, 1
      %p215 = por %p213, %p214
      %p216 = scmp.ne.s32.totalorder %s207, %s208
      %p217 = scmp.eq.s32.totalorder %s29, 0
      %p218 = por %p216, %p217
      %p219 = scmp.ne.s32.totalorder %s207, %s208
      %p220 = scmp.eq.s32.totalorder %s30, 1
      %p221 = por %p219, %p220
      %p223 = scmp.ne.s32.totalorder %s208, %s222
      %p224 = scmp.eq.s32.totalorder %s30, 0
      %p225 = por %p223, %p224
      %s227 = sadd.s32 %s226, 1
      %p230 = scmp.eq.s32.totalorder %s24, 1
      %p231 = scmp.ne.s32.totalorder %s226, %s228
      %p232 = scmp.eq.s32.totalorder %s24, 0
      %p233 = por %p231, %p232
      %p234 = scmp.ne.s32.totalorder %s226, %s228
      %p235 = scmp.eq.s32.totalorder %s29, 1
      %p236 = por %p234, %p235
      %p237 = scmp.ne.s32.totalorder %s228, %s229
      %p238 = scmp.eq.s32.totalorder %s29, 0
      %p239 = por %p237, %p238
      %p240 = scmp.ne.s32.totalorder %s228, %s229
      %p241 = scmp.eq.s32.totalorder %s30, 1
      %p242 = por %p240, %p241
      %p244 = scmp.ne.s32.totalorder %s229, %s243
      %p245 = scmp.eq.s32.totalorder %s30, 0
      %p246 = por %p244, %p245
      %s248 = sadd.s32 %s247, 1
      %p251 = scmp.eq.s32.totalorder %s24, 1
      %p252 = scmp.ne.s32.totalorder %s247, %s249
      %p253 = scmp.eq.s32.totalorder %s24, 0
      %p254 = por %p252, %p253
      %p255 = scmp.ne.s32.totalorder %s247, %s249
      %p256 = scmp.eq.s32.totalorder %s29, 1
      %p257 = por %p255, %p256
      %p258 = scmp.ne.s32.totalorder %s249, %s250
      %p259 = scmp.eq.s32.totalorder %s29, 0
      %p260 = por %p258, %p259
      %p261 = scmp.ne.s32.totalorder %s249, %s250
      %p262 = scmp.eq.s32.totalorder %s30, 1
      %p263 = por %p261, %p262
      %p265 = scmp.ne.s32.totalorder %s250, %s264
      %p266 = scmp.eq.s32.totalorder %s30, 0
      %p267 = por %p265, %p266
      %s269 = sadd.s32 %s268, 1
      %p272 = scmp.eq.s32.totalorder %s24, 1
      %p273 = scmp.ne.s32.totalorder %s268, %s270
      %p274 = scmp.eq.s32.totalorder %s24, 0
      %p275 = por %p273, %p274
      %p276 = scmp.ne.s32.totalorder %s268, %s270
      %p277 = scmp.eq.s32.totalorder %s29, 1
      %p278 = por %p276, %p277
      %p279 = scmp.ne.s32.totalorder %s270, %s271
      %p280 = scmp.eq.s32.totalorder %s29, 0
      %p281 = por %p279, %p280
      %p282 = scmp.ne.s32.totalorder %s270, %s271
      %p283 = scmp.eq.s32.totalorder %s30, 1
      %p284 = por %p282, %p283
      %p286 = scmp.ne.s32.totalorder %s271, %s285
      %p287 = scmp.eq.s32.totalorder %s30, 0
      %p288 = por %p286, %p287
      %s290 = sadd.s32 %s289, 1
      %p293 = scmp.eq.s32.totalorder %s24, 1
      %p294 = scmp.ne.s32.totalorder %s289, %s291
      %p295 = scmp.eq.s32.totalorder %s24, 0
      %p296 = por %p294, %p295
      %p297 = scmp.ne.s32.totalorder %s289, %s291
      %p298 = scmp.eq.s32.totalorder %s29, 1
      %p299 = por %p297, %p298
      %p300 = scmp.ne.s32.totalorder %s291, %s292
      %p301 = scmp.eq.s32.totalorder %s29, 0
      %p302 = por %p300, %p301
      %p303 = scmp.ne.s32.totalorder %s291, %s292
      %p304 = scmp.eq.s32.totalorder %s30, 1
      %p305 = por %p303, %p304
      %p307 = scmp.ne.s32.totalorder %s292, %s306
      %p308 = scmp.eq.s32.totalorder %s30, 0
      %p309 = por %p307, %p308
      %s311 = sadd.s32 %s310, 1
      %p314 = scmp.eq.s32.totalorder %s24, 1
      %p315 = scmp.ne.s32.totalorder %s310, %s312
      %p316 = scmp.eq.s32.totalorder %s24, 0
      %p317 = por %p315, %p316
      %p318 = scmp.ne.s32.totalorder %s310, %s312
      %p319 = scmp.eq.s32.totalorder %s29, 1
      %p320 = por %p318, %p319
      %p321 = scmp.ne.s32.totalorder %s312, %s313
      %p322 = scmp.eq.s32.totalorder %s29, 0
      %p323 = por %p321, %p322
      %p324 = scmp.ne.s32.totalorder %s312, %s313
      %p325 = scmp.eq.s32.totalorder %s30, 1
      %p326 = por %p324, %p325
      %p328 = scmp.ne.s32.totalorder %s313, %s327
      %p329 = scmp.eq.s32.totalorder %s30, 0
      %p330 = por %p328, %p329
      %s332 = sadd.s32 %s331, 1
      %p335 = scmp.eq.s32.totalorder %s24, 1
      %p336 = scmp.ne.s32.totalorder %s331, %s333
      %p337 = scmp.eq.s32.totalorder %s24, 0
      %p338 = por %p336, %p337
      %p339 = scmp.ne.s32.totalorder %s331, %s333
      %p340 = scmp.eq.s32.totalorder %s29, 1
      %p341 = por %p339, %p340
      %p342 = scmp.ne.s32.totalorder %s333, %s334
      %p343 = scmp.eq.s32.totalorder %s29, 0
      %p344 = por %p342, %p343
      %p345 = scmp.ne.s32.totalorder %s333, %s334
      %p346 = scmp.eq.s32.totalorder %s30, 1
      %p347 = por %p345, %p346
      %p349 = scmp.ne.s32.totalorder %s334, %s348
      %p350 = scmp.eq.s32.totalorder %s30, 0
      %p351 = por %p349, %p350
      %s353 = sadd.s32 %s352, 1
      %p356 = scmp.eq.s32.totalorder %s24, 1
      %p357 = scmp.ne.s32.totalorder %s352, %s354
      %p358 = scmp.eq.s32.totalorder %s24, 0
      %p359 = por %p357, %p358
      %p360 = scmp.ne.s32.totalorder %s352, %s354
      %p361 = scmp.eq.s32.totalorder %s29, 1
      %p362 = por %p360, %p361
      %p363 = scmp.ne.s32.totalorder %s354, %s355
      %p364 = scmp.eq.s32.totalorder %s29, 0
      %p365 = por %p363, %p364
      %p366 = scmp.ne.s32.totalorder %s354, %s355
      %p367 = scmp.eq.s32.totalorder %s30, 1
      %p368 = por %p366, %p367
      %p370 = scmp.ne.s32.totalorder %s355, %s369
      %p371 = scmp.eq.s32.totalorder %s30, 0
      %p372 = por %p370, %p371
      %s374 = sadd.s32 %s373, 1
      %p377 = scmp.eq.s32.totalorder %s24, 1
      %p378 = scmp.ne.s32.totalorder %s373, %s375
      %p379 = scmp.eq.s32.totalorder %s24, 0
      %p380 = por %p378, %p379
      %p381 = scmp.ne.s32.totalorder %s373, %s375
      %p382 = scmp.eq.s32.totalorder %s29, 1
      %p383 = por %p381, %p382
      %p384 = scmp.ne.s32.totalorder %s375, %s376
      %p385 = scmp.eq.s32.totalorder %s29, 0
      %p386 = por %p384, %p385
      %p387 = scmp.ne.s32.totalorder %s375, %s376
      %p388 = scmp.eq.s32.totalorder %s30, 1
      %p389 = por %p387, %p388
      %p391 = scmp.ne.s32.totalorder %s376, %s390
      %p392 = scmp.eq.s32.totalorder %s30, 0
      %p393 = por %p391, %p392
      %s395 = sadd.s32 %s394, 1
      %p398 = scmp.eq.s32.totalorder %s24, 1
      %p399 = scmp.ne.s32.totalorder %s394, %s396
      %p400 = scmp.eq.s32.totalorder %s24, 0
      %p401 = por %p399, %p400
      %p402 = scmp.ne.s32.totalorder %s394, %s396
      %p403 = scmp.eq.s32.totalorder %s29, 1
      %p404 = por %p402, %p403
      %p405 = scmp.ne.s32.totalorder %s396, %s397
      %p406 = scmp.eq.s32.totalorder %s29, 0
      %p407 = por %p405, %p406
      %p408 = scmp.ne.s32.totalorder %s396, %s397
      %p409 = scmp.eq.s32.totalorder %s30, 1
      %p410 = por %p408, %p409
      %p412 = scmp.ne.s32.totalorder %s397, %s411
      %p413 = scmp.eq.s32.totalorder %s30, 0
      %p414 = por %p412, %p413
      %s415 = ssub.s32 %s24, %s31
      %p416 = scmp.eq.s32.totalorder %s415, 0
      %s418 = sadd.s32 %s417, 1
      %s419 = scalar_select %p416, %s417, %s418
      %p422 = pneg %p416
      %p423 = scmp.eq.s32.totalorder %s24, 1
      %p424 = por %p422, %p423
      %p425 = scmp.ne.s32.totalorder %s417, %s420
      %p426 = scmp.eq.s32.totalorder %s24, 0
      %p427 = por %p425, %p426
      %p428 = scmp.ne.s32.totalorder %s417, %s420
      %p429 = scmp.eq.s32.totalorder %s29, 1
      %p430 = por %p428, %p429
      %p431 = scmp.ne.s32.totalorder %s420, %s421
      %p432 = scmp.eq.s32.totalorder %s29, 0
      %p433 = por %p431, %p432
      %p434 = scmp.ne.s32.totalorder %s420, %s421
      %p435 = scmp.eq.s32.totalorder %s30, 1
      %p436 = por %p434, %p435
      %p438 = scmp.ne.s32.totalorder %s421, %s437
      %p439 = scmp.eq.s32.totalorder %s30, 0
      %p440 = por %p438, %p439
      %p441 = scmp.le.s32.totalorder 1, %s24
      %p442 = scmp.lt.s32.totalorder %s24, 3
      %p443 = pnand %p441, %p442
      %p444 = pneg %p443
      // Predicated region
      $region9: #{tpu_custom_call.1} parent=5 // pred_check
        _
      $region10: #{tpu_custom_call.1} parent=5 // pred_check_branch
        %446 = sbr.rel (%p443) target = $region12
      $region11: #{tpu_custom_call.1} parent=5 // pred_region
        %s447 = ssub.s32 %s24, 1
        // Predicated region
        $region13: #{tpu_custom_call.1} parent=11 // pred_check
          %p448 = pneg %p71
        $region14: #{tpu_custom_call.1} parent=11 // pred_check_branch
          %450 = sbr.rel (%p448) target = $region16
        $region15: #{tpu_custom_call.1} parent=11 // pred_region
          _
        $region16: #{tpu_custom_call.1} parent=11 // pred_fallthru
          _
        // Predicated region
        $region17: #{tpu_custom_call.1} parent=11 // pred_check
          %p451 = pneg %p92
        $region18: #{tpu_custom_call.1} parent=11 // pred_check_branch
          %453 = sbr.rel (%p451) target = $region20
        $region19: #{tpu_custom_call.1} parent=11 // pred_region
          _
        $region20: #{tpu_custom_call.1} parent=11 // pred_fallthru
          _
        // Predicated region
        $region21: #{tpu_custom_call.1} parent=11 // pred_check
          %p454 = pneg %p113
        $region22: #{tpu_custom_call.1} parent=11 // pred_check_branch
          %456 = sbr.rel (%p454) target = $region24
        $region23: #{tpu_custom_call.1} parent=11 // pred_region
          _
        $region24: #{tpu_custom_call.1} parent=11 // pred_fallthru
          _
        // Predicated region
        $region25: #{tpu_custom_call.1} parent=11 // pred_check
          %p457 = pneg %p134
        $region26: #{tpu_custom_call.1} parent=11 // pred_check_branch
          %459 = sbr.rel (%p457) target = $region28
        $region27: #{tpu_custom_call.1} parent=11 // pred_region
          _
        $region28: #{tpu_custom_call.1} parent=11 // pred_fallthru
          _
        // Predicated region
        $region29: #{tpu_custom_call.1} parent=11 // pred_check
          %p460 = pneg %p155
        $region30: #{tpu_custom_call.1} parent=11 // pred_check_branch
          %462 = sbr.rel (%p460) target = $region32
        $region31: #{tpu_custom_call.1} parent=11 // pred_region
          _
        $region32: #{tpu_custom_call.1} parent=11 // pred_fallthru
          _
        // Predicated region
        $region33: #{tpu_custom_call.1} parent=11 // pred_check
          %p463 = pneg %p176
        $region34: #{tpu_custom_call.1} parent=11 // pred_check_branch
          %465 = sbr.rel (%p463) target = $region36
        $region35: #{tpu_custom_call.1} parent=11 // pred_region
          _
        $region36: #{tpu_custom_call.1} parent=11 // pred_fallthru
          _
        // Predicated region
        $region37: #{tpu_custom_call.1} parent=11 // pred_check
          %p466 = pneg %p197
        $region38: #{tpu_custom_call.1} parent=11 // pred_check_branch
          %468 = sbr.rel (%p466) target = $region40
        $region39: #{tpu_custom_call.1} parent=11 // pred_region
          _
        $region40: #{tpu_custom_call.1} parent=11 // pred_fallthru
          _
        // Predicated region
        $region41: #{tpu_custom_call.1} parent=11 // pred_check
          %p469 = pneg %p218
        $region42: #{tpu_custom_call.1} parent=11 // pred_check_branch
          %471 = sbr.rel (%p469) target = $region44
        $region43: #{tpu_custom_call.1} parent=11 // pred_region
          _
        $region44: #{tpu_custom_call.1} parent=11 // pred_fallthru
          _
        // Predicated region
        $region45: #{tpu_custom_call.1} parent=11 // pred_check
          %p472 = pneg %p239
        $region46: #{tpu_custom_call.1} parent=11 // pred_check_branch
          %474 = sbr.rel (%p472) target = $region48
        $region47: #{tpu_custom_call.1} parent=11 // pred_region
          _
        $region48: #{tpu_custom_call.1} parent=11 // pred_fallthru
          _
        // Predicated region
        $region49: #{tpu_custom_call.1} parent=11 // pred_check
          %p475 = pneg %p260
        $region50: #{tpu_custom_call.1} parent=11 // pred_check_branch
          %477 = sbr.rel (%p475) target = $region52
        $region51: #{tpu_custom_call.1} parent=11 // pred_region
          _
        $region52: #{tpu_custom_call.1} parent=11 // pred_fallthru
          _
        // Predicated region
        $region53: #{tpu_custom_call.1} parent=11 // pred_check
          %p478 = pneg %p281
        $region54: #{tpu_custom_call.1} parent=11 // pred_check_branch
          %480 = sbr.rel (%p478) target = $region56
        $region55: #{tpu_custom_call.1} parent=11 // pred_region
          _
        $region56: #{tpu_custom_call.1} parent=11 // pred_fallthru
          _
        // Predicated region
        $region57: #{tpu_custom_call.1} parent=11 // pred_check
          %p481 = pneg %p302
        $region58: #{tpu_custom_call.1} parent=11 // pred_check_branch
          %483 = sbr.rel (%p481) target = $region60
        $region59: #{tpu_custom_call.1} parent=11 // pred_region
          _
        $region60: #{tpu_custom_call.1} parent=11 // pred_fallthru
          _
        // Predicated region
        $region61: #{tpu_custom_call.1} parent=11 // pred_check
          %p484 = pneg %p323
        $region62: #{tpu_custom_call.1} parent=11 // pred_check_branch
          %486 = sbr.rel (%p484) target = $region64
        $region63: #{tpu_custom_call.1} parent=11 // pred_region
          _
        $region64: #{tpu_custom_call.1} parent=11 // pred_fallthru
          _
        // Predicated region
        $region65: #{tpu_custom_call.1} parent=11 // pred_check
          %p487 = pneg %p344
        $region66: #{tpu_custom_call.1} parent=11 // pred_check_branch
          %489 = sbr.rel (%p487) target = $region68
        $region67: #{tpu_custom_call.1} parent=11 // pred_region
          _
        $region68: #{tpu_custom_call.1} parent=11 // pred_fallthru
          _
        // Predicated region
        $region69: #{tpu_custom_call.1} parent=11 // pred_check
          %p490 = pneg %p365
        $region70: #{tpu_custom_call.1} parent=11 // pred_check_branch
          %492 = sbr.rel (%p490) target = $region72
        $region71: #{tpu_custom_call.1} parent=11 // pred_region
          _
        $region72: #{tpu_custom_call.1} parent=11 // pred_fallthru
          _
        // Predicated region
        $region73: #{tpu_custom_call.1} parent=11 // pred_check
          %p493 = pneg %p386
        $region74: #{tpu_custom_call.1} parent=11 // pred_check_branch
          %495 = sbr.rel (%p493) target = $region76
        $region75: #{tpu_custom_call.1} parent=11 // pred_region
          _
        $region76: #{tpu_custom_call.1} parent=11 // pred_fallthru
          _
        // Predicated region
        $region77: #{tpu_custom_call.1} parent=11 // pred_check
          %p496 = pneg %p407
        $region78: #{tpu_custom_call.1} parent=11 // pred_check_branch
          %498 = sbr.rel (%p496) target = $region80
        $region79: #{tpu_custom_call.1} parent=11 // pred_region
          _
        $region80: #{tpu_custom_call.1} parent=11 // pred_fallthru
          _
      $region12: #{tpu_custom_call.1} parent=5 // pred_fallthru
        _
      %p499 = scmp.lt.s32.totalorder %s24, 2
      // Predicated region
      $region81: #{tpu_custom_call.1} parent=5 // pred_check
        %p500 = pneg %p499
      $region82: #{tpu_custom_call.1} parent=5 // pred_check_branch
        %502 = sbr.rel (%p500) target = $region84
      $region83: #{tpu_custom_call.1} parent=5 // pred_region
        // Predicated region
        $region85: #{tpu_custom_call.1} parent=83 // pred_check
          %p503 = pneg %p44
        $region86: #{tpu_custom_call.1} parent=83 // pred_check_branch
          %505 = sbr.rel (%p503) target = $region88
        $region87: #{tpu_custom_call.1} parent=83 // pred_region
          %s506 = smul.u32 2, %s24
          %s507 = ssub.s32 3, %s506
          %p508 = scmp.lt.s32.totalorder %s507, 2
          %s509 = scalar_select %p508, %s507, 2
          %s510 = smul.u32 8, %s509
          %s511 = smul.u32 %s510, 2
          %p512 = scmp.lt.s32.totalorder %s506, 2
          %s513 = scalar_select %p512, %s506, 2
          %s514 = smul.addr %s513, 2
          %s515 = smul.addr %s514, 8
          %s516 = scalar_lea.vmem %s0, %s515
          %s517 = smul.u32 2, %s24
          %s518 = ssub.s32 3, %s517
          %p519 = scmp.lt.s32.totalorder %s518, 2
          %s520 = scalar_select %p519, %s518, 2
          %s521 = smul.u32 8, %s520
          %s522 = smul.u32 %s521, 2
        $region88: #{tpu_custom_call.1} parent=83 // pred_fallthru
          _
      $region84: #{tpu_custom_call.1} parent=5 // pred_fallthru
        _
      %p523 = scmp.le.s32.totalorder 1, %s24
      %p524 = scmp.lt.s32.totalorder %s24, 3
      %p525 = pnand %p523, %p524
      %p526 = pneg %p525
      // Predicated region
      $region89: #{tpu_custom_call.1} parent=5 // pred_check
        _
      $region90: #{tpu_custom_call.1} parent=5 // pred_check_branch
        %528 = sbr.rel (%p525) target = $region92
      $region91: #{tpu_custom_call.1} parent=5 // pred_region
        %s529 = ssub.s32 %s24, 1
        %s530 = smul.u32 2, %s29
        %s531 = ssub.s32 3, %s530
        %p532 = scmp.lt.s32.totalorder %s531, 2
        %s533 = scalar_select %p532, %s531, 2
        %s534 = smul.u32 8, %s533
        %s535 = smul.u32 %s534, 2
        %p536 = scmp.lt.s32.totalorder %s530, 2
        %s537 = scalar_select %p536, %s530, 2
        %s538 = smul.addr %s537, 2
        %s539 = smul.addr %s538, 8
        %s540 = scalar_lea.vmem %s0, %s539
        %p541 = pneg %p50
        %p542 = pneg %p47
        %p543 = pneg %p71
        %p544 = pneg %p68
        %p545 = pneg %p92
        %p546 = pneg %p89
        %p547 = pneg %p113
        %p548 = pneg %p110
        %p549 = pneg %p134
        %p550 = pneg %p131
        %p551 = pneg %p155
        %p552 = pneg %p152
        %p553 = pneg %p176
        %p554 = pneg %p173
        %p555 = pneg %p197
        %p556 = pneg %p194
        %p557 = pneg %p218
        %p558 = pneg %p215
        %p559 = pneg %p239
        %p560 = pneg %p236
        %p561 = pneg %p260
        %p562 = pneg %p257
        %p563 = pneg %p281
        %p564 = pneg %p278
        %p565 = pneg %p302
        %p566 = pneg %p299
        %p567 = pneg %p323
        %p568 = pneg %p320
        %p569 = pneg %p344
        %p570 = pneg %p341
        %p571 = pneg %p365
        %p572 = pneg %p362
        %p573 = pneg %p386
        %p574 = pneg %p383
        %p575 = pneg %p407
        %p576 = pneg %p404
        %p577 = pneg %p433
        %p578 = pneg %p430
        %s579 = sand.u32 %s420, 1
        %s580 = sand.u32 %s420, 1
        %s581 = smul.addr %s580, 32
        %s582 = scalar_lea.vmem [#allocation2], %s581
        %s583 = smul.u32 2, %s29
        %s584 = ssub.s32 3, %s583
        %p585 = scmp.lt.s32.totalorder %s584, 2
        %s586 = scalar_select %p585, %s584, 2
        %s587 = smul.u32 8, %s586
        %s588 = smul.u32 %s587, 2
        %p589 = scmp.lt.s32.totalorder %s583, 2
        %s590 = scalar_select %p589, %s583, 2
        %s591 = smul.addr %s590, 2
        %s592 = smul.addr %s591, 8
        %s593 = scalar_lea.vmem %s0, %s592
        %s594 = smul.u32 2, %s29
        %s595 = ssub.s32 3, %s594
        %p596 = scmp.lt.s32.totalorder %s595, 2
        %s597 = scalar_select %p596, %s595, 2
        %s598 = smul.u32 8, %s597
        %s599 = smul.u32 %s598, 2
        %s600 = smul.u32 2, %s29
        %s601 = ssub.s32 3, %s600
        %p602 = scmp.lt.s32.totalorder %s601, 2
        %s603 = scalar_select %p602, %s601, 2
        %s604 = smul.u32 8, %s603
        %s605 = smul.u32 %s604, 2
        %v607 = vld [vmem:[%s593] sm:$0xff]
        %v608 = vld [vmem:[%s593 + $0x8] sm:$0xff]
        %v609 = vld [vmem:[%s593 + $0x10] sm:$0xff]
        %v610 = vld [vmem:[%s593 + $0x18] sm:$0xff]
        %v611 = vlaneseq
        %v612 = vshrl.u32 %v611, 7
        %v613 = vadd.s32 %v612, 8
        %v614 = vadd.s32 %v612, 16
        %v615 = vadd.s32 %v612, 24
        %v616 = vlaneseq
        %v617 = vand.u32 %v616, 127
        %v618 = vmul.u32 %v617, 16
        %v619 = vsub.s32 %v612, %v618
        %v620 = vsub.s32 %v613, %v618
        %v621 = vsub.s32 %v614, %v618
        %v622 = vsub.s32 %v615, %v618
        %v623 = vmul.u32 %v612, 16
        %v624 = vsub.s32 %v617, %v623
        %vm625 = vcmp.eq.s32.totalorder %v619, 0
        %vm626 = vcmp.eq.s32.totalorder %v620, 0
        %vm627 = vcmp.eq.s32.totalorder %v621, 0
        %vm628 = vcmp.eq.s32.totalorder %v622, 0
        %v629 = vsel %vm625, 1, 0
        %v630 = vsel %vm626, 1, 0
        %v631 = vsel %vm627, 1, 0
        %v632 = vsel %vm628, 1, 0
        %v633 = vcvt.s32.f32 %v629
        %v634 = vcvt.s32.f32 %v630
        %v635 = vcvt.s32.f32 %v631
        %v636 = vcvt.s32.f32 %v632
        %vm637 = vcmp.ge.s32.totalorder %v619, 0
        %vm638 = vcmp.ge.s32.totalorder %v620, 0
        %vm639 = vcmp.ge.s32.totalorder %v621, 0
        %vm640 = vcmp.ge.s32.totalorder %v622, 0
        %vm641 = vcmp.lt.s32.totalorder %v619, 16
        %vm642 = vcmp.lt.s32.totalorder %v620, 16
        %vm643 = vcmp.lt.s32.totalorder %v621, 16
        %vm644 = vcmp.lt.s32.totalorder %v622, 16
        %vm645 = vmand %vm637, %vm641
        %vm646 = vmand %vm638, %vm642
        %vm647 = vmand %vm639, %vm643
        %vm648 = vmand %vm640, %vm644
        %v649 = vsel %vm645, 1, 0
        %v650 = vsel %vm646, 1, 0
        %v651 = vsel %vm647, 1, 0
        %v652 = vsel %vm648, 1, 0
        %v653 = vcvt.s32.f32 %v649
        %v654 = vcvt.s32.f32 %v650
        %v655 = vcvt.s32.f32 %v651
        %v656 = vcvt.s32.f32 %v652
        %vm657 = vcmp.eq.s32.totalorder %v624, 0
        %v658 = vsel %vm657, 1, 0
        %v659 = vcvt.s32.f32 %v658
        %vm660 = vcmp.ge.s32.totalorder %v624, 0
        %vm661 = vcmp.lt.s32.totalorder %v624, 16
        %vm662 = vmand %vm660, %vm661
        %v663 = vsel %vm662, 1, 0
        %v664 = vcvt.s32.f32 %v663
        %s665 = smul.u32 %s29, 2
        %s666 = ssub.s32 3, %s665
        %vm667 = vcmp.lt.s32.totalorder %v619, 10
        %vm668 = vcmp.lt.s32.totalorder %v620, 10
        %vm669 = vcmp.lt.s32.totalorder %v621, 10
        %vm670 = vcmp.lt.s32.totalorder %v622, 10
        %vm671 = vmand %vm637, %vm667
        %vm672 = vmand %vm638, %vm668
        %vm673 = vmand %vm639, %vm669
        %vm674 = vmand %vm640, %vm670
        %v675 = vstv %s666
        %vm676 = vcmp.lt.s32.totalorder %v617, %v675
        %vm677 = vmand %vm671, %vm676
        %vm678 = vmand %vm672, %vm676
        %vm679 = vmand %vm673, %vm676
        %vm680 = vmand %vm674, %vm676
        %v681 = vsel %vm677, 1, 0
        %v682 = vsel %vm678, 1, 0
        %v683 = vsel %vm679, 1, 0
        %v684 = vsel %vm680, 1, 0
        %v685 = vcvt.s32.f32 %v681
        %v686 = vcvt.s32.f32 %v682
        %v687 = vcvt.s32.f32 %v683
        %v688 = vcvt.s32.f32 %v684
        %vm689 = vcmask 15360
        %v690 = vsel %vm689, %v685, 0.0
        %691 = vadd.xlane.f32.xlu0 %v690
        %v692 = vpop.xlane.xlu0 %691
        %v693 = vsel %vm689, %v686, 0.0
        %694 = vadd.xlane.f32.xlu0 %v693
        %v695 = vpop.xlane.xlu0 %694
        %v696 = vsel %vm689, %v687, 0.0
        %697 = vadd.xlane.f32.xlu0 %v696
        %v698 = vpop.xlane.xlu0 %697
        %v699 = vsel %vm689, %v688, 0.0
        %700 = vadd.xlane.f32.xlu0 %v699
        %v701 = vpop.xlane.xlu0 %700
        %vm702 = vcmp.gt.f32.partialorder %v692, 0.5
        %vm703 = vcmp.gt.f32.partialorder %v695, 0.5
        %vm704 = vcmp.gt.f32.partialorder %v698, 0.5
        %vm705 = vcmp.gt.f32.partialorder %v701, 0.5
        %v706 = vsel %vm702, 1, 0
        %v707 = vsel %vm703, 1, 0
        %v708 = vsel %vm704, 1, 0
        %v709 = vsel %vm705, 1, 0
        %vm710 = vcmp.eq.s32.totalorder %v706, 1
        %vm711 = vcmp.eq.s32.totalorder %v707, 1
        %vm712 = vcmp.eq.s32.totalorder %v708, 1
        %vm713 = vcmp.eq.s32.totalorder %v709, 1
        %v714 = vsel %vm710, %v607, 0.0
        %v715 = vsel %vm711, %v608, 0.0
        %v716 = vsel %vm712, %v609, 0.0
        %v717 = vsel %vm713, %v610, 0.0
        %v718 = vld [vmem:[%s3] sm:$0x1]
        %v719 = vld [vmem:[%s4] sm:$0x1]
        %vm720 = vcmask 261120
        %v721 = vsel %vm720, %v714, 0.0
        %722 = vadd.xlane.f32.xlu0 %v721
        %v723 = vpop.xlane.xlu0 %722
        %v724 = vsel %vm720, %v715, 0.0
        %725 = vadd.xlane.f32.xlu0 %v724
        %v726 = vpop.xlane.xlu0 %725
        %v727 = vsel %vm720, %v716, 0.0
        %728 = vadd.xlane.f32.xlu0 %v727
        %v729 = vpop.xlane.xlu0 %728
        %v730 = vsel %vm720, %v717, 0.0
        %731 = vadd.xlane.f32.xlu0 %v730
        %v732 = vpop.xlane.xlu0 %731
        %v733 = vrcp.pop 32.0
        %v734 = vmul.f32 32.0, %v733
        %v735 = vsub.f32 1.0, %v734
        %v736 = vmul.f32 %v733, %v735
        %v737 = vadd.f32 %v733, %v736
        %vm738 = vweird.f32 %v733
        %v739 = vsel %vm738, %v733, %v737
        %v740 = vmul.f32 %v723, %v739
        %v741 = vmul.f32 %v726, %v739
        %v742 = vmul.f32 %v729, %v739
        %v743 = vmul.f32 %v732, %v739
        %v744 = vsub.f32 %v714, %v740
        %v745 = vsub.f32 %v715, %v741
        %v746 = vsub.f32 %v716, %v742
        %v747 = vsub.f32 %v717, %v743
        %v748 = vmul.f32 %v744, %v744
        %v749 = vmul.f32 %v745, %v745
        %v750 = vmul.f32 %v746, %v746
        %v751 = vmul.f32 %v747, %v747
        %v752 = vsel %vm720, %v748, 0.0
        %753 = vadd.xlane.f32.xlu0 %v752
        %v754 = vpop.xlane.xlu0 %753
        %v755 = vsel %vm720, %v749, 0.0
        %756 = vadd.xlane.f32.xlu0 %v755
        %v757 = vpop.xlane.xlu0 %756
        %v758 = vsel %vm720, %v750, 0.0
        %759 = vadd.xlane.f32.xlu0 %v758
        %v760 = vpop.xlane.xlu0 %759
        %v761 = vsel %vm720, %v751, 0.0
        %762 = vadd.xlane.f32.xlu0 %v761
        %v763 = vpop.xlane.xlu0 %762
        %v764 = vmul.f32 %v754, %v739
        %v765 = vmul.f32 %v757, %v739
        %v766 = vmul.f32 %v760, %v739
        %v767 = vmul.f32 %v763, %v739
        %v768 = vadd.f32 %v764, 1e-05
        %v769 = vadd.f32 %v765, 1e-05
        %v770 = vadd.f32 %v766, 1e-05
        %v771 = vadd.f32 %v767, 1e-05
        %v772 = vrsqrt.pop %v768
        %v773 = vmul.f32 %v772, %v768
        %v774 = vmul.f32 %v773, %v772
        %v775 = vmul.f32 0.5, %v774
        %v776 = vsub.f32 1.5, %v775
        %v777 = vmul.f32 %v772, %v776
        %vm778 = vweird.f32 %v768
        %vm779 = vweird.f32 %v772
        %vm780 = vmor %vm778, %vm779
        %v781 = vsel %vm780, %v772, %v777
        %v782 = vrsqrt.pop %v769
        %v783 = vmul.f32 %v782, %v769
        %v784 = vmul.f32 %v783, %v782
        %v785 = vmul.f32 0.5, %v784
        %v786 = vsub.f32 1.5, %v785
        %v787 = vmul.f32 %v782, %v786
        %vm788 = vweird.f32 %v769
        %vm789 = vweird.f32 %v782
        %vm790 = vmor %vm788, %vm789
        %v791 = vsel %vm790, %v782, %v787
        %v792 = vrsqrt.pop %v770
        %v793 = vmul.f32 %v792, %v770
        %v794 = vmul.f32 %v793, %v792
        %v795 = vmul.f32 0.5, %v794
        %v796 = vsub.f32 1.5, %v795
        %v797 = vmul.f32 %v792, %v796
        %vm798 = vweird.f32 %v770
        %vm799 = vweird.f32 %v792
        %vm800 = vmor %vm798, %vm799
        %v801 = vsel %vm800, %v792, %v797
        %v802 = vrsqrt.pop %v771
        %v803 = vmul.f32 %v802, %v771
        %v804 = vmul.f32 %v803, %v802
        %v805 = vmul.f32 0.5, %v804
        %v806 = vsub.f32 1.5, %v805
        %v807 = vmul.f32 %v802, %v806
        %vm808 = vweird.f32 %v771
        %vm809 = vweird.f32 %v802
        %vm810 = vmor %vm808, %vm809
        %v811 = vsel %vm810, %v802, %v807
        %v812 = vmul.f32 %v744, %v781
        %v813 = vmul.f32 %v745, %v791
        %v814 = vmul.f32 %v746, %v801
        %v815 = vmul.f32 %v747, %v811
        %v817 = vperm.slane %v718, 0
        %v819 = vmul.f32 %v812, %v817
        %v820 = vmul.f32 %v813, %v817
        %v821 = vmul.f32 %v814, %v817
        %v822 = vmul.f32 %v815, %v817
        %v824 = vperm.slane %v719, 0
        %v826 = vadd.f32 %v819, %v824
        %v827 = vadd.f32 %v820, %v824
        %v828 = vadd.f32 %v821, %v824
        %v829 = vadd.f32 %v822, %v824
        %v830 = vpack.c.bf16 %v827, %v826
        %v831 = vpack.c.bf16 %v829, %v828
        %v832 = vld [vmem:[%s6] sm:$0xf]
        %v833 = vld [vmem:[%s6 + $0x4] sm:$0xf]
        %v834 = vld [vmem:[%s6 + $0x8] sm:$0xf]
        %v835 = vld [vmem:[%s6 + $0xc] sm:$0xf]
        %v840 = vunpack.c.l.b16 %v832
        %v841 = vunpack.c.l.b16 %v833
        %v842 = vunpack.c.l.b16 %v834
        %v843 = vunpack.c.l.b16 %v835
        %v844 = vpack.c.b16 %v841, %v840
        %v845 = vpack.c.b16 %v843, %v842
        %v849 = vsel %vm720, %v830, 0
        %v852 = vsel %vm720, %v831, 0
        %854 = vmatpush.bf16.msra.mxu0 0
        %855 = vmatpush.bf16.msra.mxu0 0
        %856 = vmatpush.bf16.msra.mxu0 0
        %857 = vmatpush.bf16.msra.mxu0 0
        %858 = vmatpush.bf16.msra.mxu0 0
        %859 = vmatpush.bf16.msra.mxu0 0
        %860 = vmatpush.bf16.msra.mxu0 %v845
        %861 = vmatpush.bf16.msra.mxu0 %v844
        %862 = vmatmul.bf16.gmra.mxu0 %v849
        %v863 = vpop.f32.mrf.mxu0
        %v864 = vadd.f32 0.0, %v863
        %v865 = vpop.f32.mrf.mxu0
        %v866 = vadd.f32 0.0, %v865
        %867 = vmatmul.bf16.gmra.mxu0 %v852
        %v868 = vpop.f32.mrf.mxu0
        %v869 = vadd.f32 0.0, %v868
        %v870 = vpop.f32.mrf.mxu0
        %v871 = vadd.f32 0.0, %v870
        %872 = vdwg.mxu0
        %v873 = vld [vmem:[%s7] sm:$0xf]
        %v874 = vld [vmem:[%s7 + $0x4] sm:$0xf]
        %v875 = vld [vmem:[%s7 + $0x8] sm:$0xf]
        %v876 = vld [vmem:[%s7 + $0xc] sm:$0xf]
        %v881 = vunpack.c.l.b16 %v873
        %v882 = vunpack.c.l.b16 %v874
        %v883 = vunpack.c.l.b16 %v875
        %v884 = vunpack.c.l.b16 %v876
        %v885 = vpack.c.b16 %v882, %v881
        %v886 = vpack.c.b16 %v884, %v883
        %889 = vmatpush.bf16.msra.mxu0 0
        %890 = vmatpush.bf16.msra.mxu0 0
        %891 = vmatpush.bf16.msra.mxu0 0
        %892 = vmatpush.bf16.msra.mxu0 0
        %893 = vmatpush.bf16.msra.mxu0 0
        %894 = vmatpush.bf16.msra.mxu0 0
        %895 = vmatpush.bf16.msra.mxu0 %v886
        %896 = vmatpush.bf16.msra.mxu0 %v885
        %897 = vmatmul.bf16.gmra.mxu0 %v849
        %v898 = vpop.f32.mrf.mxu0
        %v899 = vadd.f32 0.0, %v898
        %v900 = vpop.f32.mrf.mxu0
        %v901 = vadd.f32 0.0, %v900
        %902 = vmatmul.bf16.gmra.mxu0 %v852
        %v903 = vpop.f32.mrf.mxu0
        %v904 = vadd.f32 0.0, %v903
        %v905 = vpop.f32.mrf.mxu0
        %v906 = vadd.f32 0.0, %v905
        %907 = vdwg.mxu0
        %v909 = vsel %vm720, %v659, 0
        %911 = vmatpush.msra.mxu0 0.0
        %912 = vmatpush.msra.mxu0 0.0
        %913 = vmatpush.msra.mxu0 0.0
        %914 = vmatpush.msra.mxu0 0.0
        %915 = vmatpush.msra.mxu0 0.0
        %916 = vmatpush.msra.mxu0 0.0
        %917 = vmatpush.msra.mxu0 0.0
        %918 = vmatpush.msra.mxu0 0.0
        %919 = vmatpush.msra.mxu0 0.0
        %920 = vmatpush.msra.mxu0 0.0
        %921 = vmatpush.msra.mxu0 0.0
        %922 = vmatpush.msra.mxu0 0.0
        %923 = vmatpush.msra.mxu0 %v717
        %924 = vmatpush.msra.mxu0 %v716
        %925 = vmatpush.msra.mxu0 %v715
        %926 = vmatpush.msra.mxu0 %v714
        %927 = vmatmul.f32.gmra.mxu0 %v909
        %v928 = vpop.f32.mrf.mxu0
        %v929 = vadd.f32 0.0, %v928
        %930 = vdwg.mxu0
        %vm931 = vcmask 254976
        %v932 = vsel %vm931, %v929, 0.0
        %933 = vadd.xlane.f32.xlu0 %v932
        %v934 = vpop.xlane.xlu0 %933
        %v935 = vmul.f32 %v934, %v739
        %v936 = vsub.f32 %v929, %v935
        %v937 = vmul.f32 %v936, %v936
        %v938 = vsel %vm931, %v937, 0.0
        %939 = vadd.xlane.f32.xlu0 %v938
        %v940 = vpop.xlane.xlu0 %939
        %v941 = vmul.f32 %v940, %v739
        %v942 = vadd.f32 %v941, 1e-05
        %v943 = vrsqrt.pop %v942
        %v944 = vmul.f32 %v943, %v942
        %v945 = vmul.f32 %v944, %v943
        %v946 = vmul.f32 0.5, %v945
        %v947 = vsub.f32 1.5, %v946
        %v948 = vmul.f32 %v943, %v947
        %vm949 = vweird.f32 %v942
        %vm950 = vweird.f32 %v943
        %vm951 = vmor %vm949, %vm950
        %v952 = vsel %vm951, %v943, %v948
        %v953 = vmul.f32 %v936, %v952
        %v954 = vmul.f32 %v953, %v817
        %v955 = vadd.f32 %v954, %v824
        %v956 = vpack.c.bf16 %v955, %v955
        %v957 = vld [vmem:[%s5] sm:$0xf]
        %v958 = vld [vmem:[%s5 + $0x4] sm:$0xf]
        %v959 = vld [vmem:[%s5 + $0x8] sm:$0xf]
        %v960 = vld [vmem:[%s5 + $0xc] sm:$0xf]
        %v965 = vunpack.c.l.b16 %v957
        %v966 = vunpack.c.l.b16 %v958
        %v967 = vunpack.c.l.b16 %v959
        %v968 = vunpack.c.l.b16 %v960
        %v969 = vpack.c.b16 %v966, %v965
        %v970 = vpack.c.b16 %v968, %v967
        %v974 = vsel %vm720, %v956, 0
        %976 = vmatpush.bf16.msra.mxu0 0
        %977 = vmatpush.bf16.msra.mxu0 0
        %978 = vmatpush.bf16.msra.mxu0 0
        %979 = vmatpush.bf16.msra.mxu0 0
        %980 = vmatpush.bf16.msra.mxu0 0
        %981 = vmatpush.bf16.msra.mxu0 0
        %982 = vmatpush.bf16.msra.mxu0 %v970
        %983 = vmatpush.bf16.msra.mxu0 %v969
        %984 = vmatmul.bf16.gmra.mxu0 %v974
        %v985 = vpop.f32.mrf.mxu0
        %v986 = vadd.f32 0.0, %v985
        %v987 = vpop.f32.mrf.mxu0
        %988 = vdwg.mxu0
        %v990 = vsel %vm689, %v653, 0
        %v993 = vsel %vm689, %v654, 0
        %v996 = vsel %vm689, %v655, 0
        %v999 = vsel %vm689, %v656, 0
        %vm1001 = vcmask 1041408
        %v1003 = vsel %vm1001, %v986, 0
        %1005 = vmatpush.msra.mxu0 0.0
        %1006 = vmatpush.msra.mxu0 0.0
        %1007 = vmatpush.msra.mxu0 0.0
        %1008 = vmatpush.msra.mxu0 0.0
        %1009 = vmatpush.msra.mxu0 0.0
        %1010 = vmatpush.msra.mxu0 0.0
        %1011 = vmatpush.msra.mxu0 0.0
        %1012 = vmatpush.msra.mxu0 0.0
        %1013 = vmatpush.msra.mxu0 0.0
        %1014 = vmatpush.msra.mxu0 0.0
        %1015 = vmatpush.msra.mxu0 0.0
        %1016 = vmatpush.msra.mxu0 0.0
        %1017 = vmatpush.msra.mxu0 0.0
        %1018 = vmatpush.msra.mxu0 0.0
        %1019 = vmatpush.msra.mxu0 0.0
        %1020 = vmatpush.msra.mxu0 %v1003
        %1021 = vmatmul.f32.gmra.mxu0 %v990
        %v1022 = vpop.f32.mrf.mxu0
        %v1023 = vadd.f32 0.0, %v1022
        %1024 = vmatmul.f32.gmra.mxu0 %v993
        %v1025 = vpop.f32.mrf.mxu0
        %v1026 = vadd.f32 0.0, %v1025
        %1027 = vmatmul.f32.gmra.mxu0 %v996
        %v1028 = vpop.f32.mrf.mxu0
        %v1029 = vadd.f32 0.0, %v1028
        %1030 = vmatmul.f32.gmra.mxu0 %v999
        %v1031 = vpop.f32.mrf.mxu0
        %v1032 = vadd.f32 0.0, %v1031
        %1033 = vdwg.mxu0
        %v1034 = vmul.f32 %v1023, %v864
        %v1035 = vmul.f32 %v1026, %v866
        %v1036 = vmul.f32 %v1029, %v869
        %v1037 = vmul.f32 %v1032, %v871
        %v1038 = vpack.c.bf16 %v1035, %v1034
        %v1039 = vpack.c.bf16 %v1037, %v1036
        %v1040 = vld [vmem:[%s1] sm:$0xf]
        %v1041 = vld [vmem:[%s1 + $0x4] sm:$0xf]
        %v1042 = vld [vmem:[%s1 + $0x8] sm:$0xf]
        %v1043 = vld [vmem:[%s1 + $0xc] sm:$0xf]
        %v1048 = vunpack.c.l.b16 %v1040
        %v1049 = vunpack.c.l.b16 %v1041
        %v1050 = vunpack.c.l.b16 %v1042
        %v1051 = vunpack.c.l.b16 %v1043
        %v1052 = vpack.c.b16 %v1049, %v1048
        %v1053 = vpack.c.b16 %v1051, %v1050
        %v1057 = vsel %vm720, %v1038, 0
        %v1060 = vsel %vm720, %v1039, 0
        %1062 = vmatpush.bf16.msra.mxu0 0
        %1063 = vmatpush.bf16.msra.mxu0 0
        %1064 = vmatpush.bf16.msra.mxu0 0
        %1065 = vmatpush.bf16.msra.mxu0 0
        %1066 = vmatpush.bf16.msra.mxu0 0
        %1067 = vmatpush.bf16.msra.mxu0 0
        %1068 = vmatpush.bf16.msra.mxu0 %v1053
        %1069 = vmatpush.bf16.msra.mxu0 %v1052
        %1070 = vmatmul.bf16.gmra.mxu0 %v1057
        %v1071 = vpop.f32.mrf.mxu0
        %v1072 = vadd.f32 0.0, %v1071
        %v1073 = vpop.f32.mrf.mxu0
        %v1074 = vadd.f32 0.0, %v1073
        %1075 = vmatmul.bf16.gmra.mxu0 %v1060
        %v1076 = vpop.f32.mrf.mxu0
        %v1077 = vadd.f32 0.0, %v1076
        %v1078 = vpop.f32.mrf.mxu0
        %v1079 = vadd.f32 0.0, %v1078
        %1080 = vdwg.mxu0
        %vm1081 = vcmp.lt.s32.totalorder %v612, 10
        %vm1082 = vcmp.lt.s32.totalorder %v613, 10
        %v1083 = vsel %vm1081, %v1072, -1e+30
        %v1084 = vsel %vm1082, %v1074, -1e+30
        %vm1085 = vcmask 31744
        %v1086 = vsel %vm1085, %v1083, -inf
        %v1087 = vsel %vm1085, %v1084, -inf
        %v1088 = vmax.f32 %v1086, %v1087
        %v1089 = vrot.slane %v1088, 4
        %v1090 = vmax.f32 %v1088, %v1089
        %v1091 = vrot.slane %v1090, 2
        %v1092 = vmax.f32 %v1090, %v1091
        %v1093 = vrot.slane %v1092, 1
        %v1094 = vmax.f32 %v1092, %v1093
        %v1095 = vsub.f32 %v1083, %v1094
        %v1096 = vsub.f32 %v1084, %v1094
        %v1097 = vmul.f32 %v1095, 1.442695
        %v1098 = vpow.pop %v1097
        %v1099 = vmul.f32 %v1096, 1.442695
        %v1100 = vpow.pop %v1099
        %v1101 = vsel %vm1085, %v1098, 0.0
        %v1102 = vsel %vm1085, %v1100, 0.0
        %v1103 = vadd.f32 %v1101, %v1102
        %v1104 = vrot.slane %v1103, 4
        %v1105 = vadd.f32 %v1103, %v1104
        %v1106 = vrot.slane %v1105, 2
        %v1107 = vadd.f32 %v1105, %v1106
        %v1108 = vrot.slane %v1107, 1
        %v1109 = vadd.f32 %v1107, %v1108
        %v1110 = vrcp.pop %v1109
        %v1111 = vmul.f32 %v1098, %v1110
        %v1112 = vmul.f32 %v1100, %v1110
        %v1113 = vsel %vm1081, %v1077, -1e+30
        %v1114 = vsel %vm1082, %v1079, -1e+30
        %v1115 = vsel %vm1085, %v1113, -inf
        %v1116 = vsel %vm1085, %v1114, -inf
        %v1117 = vmax.f32 %v1115, %v1116
        %v1118 = vrot.slane %v1117, 4
        %v1119 = vmax.f32 %v1117, %v1118
        %v1120 = vrot.slane %v1119, 2
        %v1121 = vmax.f32 %v1119, %v1120
        %v1122 = vrot.slane %v1121, 1
        %v1123 = vmax.f32 %v1121, %v1122
        %v1124 = vsub.f32 %v1113, %v1123
        %v1125 = vsub.f32 %v1114, %v1123
        %v1126 = vmul.f32 %v1124, 1.442695
        %v1127 = vpow.pop %v1126
        %v1128 = vmul.f32 %v1125, 1.442695
        %v1129 = vpow.pop %v1128
        %v1130 = vsel %vm1085, %v1127, 0.0
        %v1131 = vsel %vm1085, %v1129, 0.0
        %v1132 = vadd.f32 %v1130, %v1131
        %v1133 = vrot.slane %v1132, 4
        %v1134 = vadd.f32 %v1132, %v1133
        %v1135 = vrot.slane %v1134, 2
        %v1136 = vadd.f32 %v1134, %v1135
        %v1137 = vrot.slane %v1136, 1
        %v1138 = vadd.f32 %v1136, %v1137
        %v1139 = vrcp.pop %v1138
        %v1140 = vmul.f32 %v1127, %v1139
        %v1141 = vmul.f32 %v1129, %v1139
        %v1142 = vpack.c.bf16 %v1112, %v1111
        %v1143 = vpack.c.bf16 %v1141, %v1140
        %v1144 = vld [vmem:[%s2] sm:$0x3]
        %v1146 = vsel %vm1085, %v1142, 0
        %v1149 = vsel %vm1085, %v1143, 0
        %v1152 = vsel %vm1001, %v1144, 0
        %1154 = vmatpush.bf16.msra.mxu0 0
        %1155 = vmatpush.bf16.msra.mxu0 0
        %1156 = vmatpush.bf16.msra.mxu0 0
        %1157 = vmatpush.bf16.msra.mxu0 0
        %1158 = vmatpush.bf16.msra.mxu0 0
        %1159 = vmatpush.bf16.msra.mxu0 0
        %1160 = vmatpush.bf16.msra.mxu0 0
        %1161 = vmatpush.bf16.msra.mxu0 %v1152
        %1162 = vmatmul.bf16.gmra.mxu0 %v1146
        %v1163 = vpop.f32.mrf.mxu0
        %v1164 = vadd.f32 0.0, %v1163
        %v1165 = vpop.f32.mrf.mxu0
        %v1166 = vadd.f32 0.0, %v1165
        %1167 = vmatmul.bf16.gmra.mxu0 %v1149
        %v1168 = vpop.f32.mrf.mxu0
        %v1169 = vadd.f32 0.0, %v1168
        %v1170 = vpop.f32.mrf.mxu0
        %v1171 = vadd.f32 0.0, %v1170
        %1172 = vdwg.mxu0
        %v1173 = vmul.f32 %v1164, %v899
        %v1174 = vmul.f32 %v1166, %v901
        %v1175 = vmul.f32 %v1169, %v904
        %v1176 = vmul.f32 %v1171, %v906
        %v1178 = vsel %vm720, %v664, 0
        %1180 = vmatpush.msra.mxu0 0.0
        %1181 = vmatpush.msra.mxu0 0.0
        %1182 = vmatpush.msra.mxu0 0.0
        %1183 = vmatpush.msra.mxu0 0.0
        %1184 = vmatpush.msra.mxu0 0.0
        %1185 = vmatpush.msra.mxu0 0.0
        %1186 = vmatpush.msra.mxu0 0.0
        %1187 = vmatpush.msra.mxu0 0.0
        %1188 = vmatpush.msra.mxu0 0.0
        %1189 = vmatpush.msra.mxu0 0.0
        %1190 = vmatpush.msra.mxu0 0.0
        %1191 = vmatpush.msra.mxu0 0.0
        %1192 = vmatpush.msra.mxu0 %v1176
        %1193 = vmatpush.msra.mxu0 %v1175
        %1194 = vmatpush.msra.mxu0 %v1174
        %1195 = vmatpush.msra.mxu0 %v1173
        %1196 = vmatmul.f32.gmra.mxu0 %v1178
        %v1197 = vpop.f32.mrf.mxu0
        %v1198 = vadd.f32 0.0, %v1197
        %1199 = vdwg.mxu0
        %v1200 = vpack.c.bf16 %v1198, %v1198
        %v1201 = vld [vmem:[%s8] sm:$0xf]
        %v1202 = vld [vmem:[%s8 + $0x4] sm:$0xf]
        %v1203 = vld [vmem:[%s8 + $0x8] sm:$0xf]
        %v1204 = vld [vmem:[%s8 + $0xc] sm:$0xf]
        %v1205 = vld [vmem:[%s9] sm:$0x1]
        %v1207 = vperm.slane %v1205, 0
        %v1213 = vunpack.c.l.b16 %v1201
        %v1214 = vunpack.c.l.b16 %v1202
        %v1215 = vunpack.c.l.b16 %v1203
        %v1216 = vunpack.c.l.b16 %v1204
        %v1217 = vpack.c.b16 %v1214, %v1213
        %v1218 = vpack.c.b16 %v1216, %v1215
        %v1222 = vsel %vm720, %v1200, 0
        %1224 = vmatpush.bf16.msra.mxu0 0
        %1225 = vmatpush.bf16.msra.mxu0 0
        %1226 = vmatpush.bf16.msra.mxu0 0
        %1227 = vmatpush.bf16.msra.mxu0 0
        %1228 = vmatpush.bf16.msra.mxu0 0
        %1229 = vmatpush.bf16.msra.mxu0 0
        %1230 = vmatpush.bf16.msra.mxu0 %v1218
        %1231 = vmatpush.bf16.msra.mxu0 %v1217
        %1232 = vmatmul.bf16.gmra.mxu0 %v1222
        %v1233 = vpop.f32.mrf.mxu0
        %v1234 = vadd.f32 %v1207, %v1233
        %v1235 = vpop.f32.mrf.mxu0
        %1236 = vdwg.mxu0
        %v1237 = vld [vmem:[%s16] sm:$0x1]
        %v1239 = vperm.slane %v1237, 0
        %v1241 = vmul.f32 %v1239, %v826
        %v1242 = vmul.f32 %v1239, %v827
        %v1243 = vmul.f32 %v1239, %v828
        %v1244 = vmul.f32 %v1239, %v829
        %v1245 = vadd.f32 %v714, %v1241
        %v1246 = vadd.f32 %v715, %v1242
        %v1247 = vadd.f32 %v716, %v1243
        %v1248 = vadd.f32 %v717, %v1244
        %v1249 = vmul.f32 %v1239, %v1234
        %v1250 = vadd.f32 %v929, %v1249
        %v1251 = vld [vmem:[%s10] sm:$0x1]
        %v1252 = vld [vmem:[%s11] sm:$0x1]
        %v1253 = vsel %vm931, %v1250, 0.0
        %1254 = vadd.xlane.f32.xlu0 %v1253
        %v1255 = vpop.xlane.xlu0 %1254
        %v1256 = vmul.f32 %v1255, %v739
        %v1257 = vsub.f32 %v1250, %v1256
        %v1258 = vmul.f32 %v1257, %v1257
        %v1259 = vsel %vm931, %v1258, 0.0
        %1260 = vadd.xlane.f32.xlu0 %v1259
        %v1261 = vpop.xlane.xlu0 %1260
        %v1262 = vmul.f32 %v1261, %v739
        %v1263 = vadd.f32 %v1262, 1e-05
        %v1264 = vrsqrt.pop %v1263
        %v1265 = vmul.f32 %v1264, %v1263
        %v1266 = vmul.f32 %v1265, %v1264
        %v1267 = vmul.f32 0.5, %v1266
        %v1268 = vsub.f32 1.5, %v1267
        %v1269 = vmul.f32 %v1264, %v1268
        %vm1270 = vweird.f32 %v1263
        %vm1271 = vweird.f32 %v1264
        %vm1272 = vmor %vm1270, %vm1271
        %v1273 = vsel %vm1272, %v1264, %v1269
        %v1274 = vmul.f32 %v1257, %v1273
        %v1276 = vperm.slane %v1251, 0
        %v1278 = vmul.f32 %v1274, %v1276
        %v1280 = vperm.slane %v1252, 0
        %v1282 = vadd.f32 %v1278, %v1280
        %v1283 = vpack.c.bf16 %v1282, %v1282
        %v1284 = vld [vmem:[%s12] sm:$0xf]
        %v1285 = vld [vmem:[%s12 + $0x4] sm:$0xf]
        %v1286 = vld [vmem:[%s12 + $0x8] sm:$0xf]
        %v1287 = vld [vmem:[%s12 + $0xc] sm:$0xf]
        %v1288 = vld [vmem:[%s13] sm:$0x1]
        %v1290 = vperm.slane %v1288, 0
        %v1296 = vunpack.c.l.b16 %v1284
        %v1297 = vunpack.c.l.b16 %v1285
        %v1298 = vunpack.c.l.b16 %v1286
        %v1299 = vunpack.c.l.b16 %v1287
        %v1300 = vpack.c.b16 %v1297, %v1296
        %v1301 = vpack.c.b16 %v1299, %v1298
        %v1305 = vsel %vm720, %v1283, 0
        %1307 = vmatpush.bf16.msra.mxu0 0
        %1308 = vmatpush.bf16.msra.mxu0 0
        %1309 = vmatpush.bf16.msra.mxu0 0
        %1310 = vmatpush.bf16.msra.mxu0 0
        %1311 = vmatpush.bf16.msra.mxu0 0
        %1312 = vmatpush.bf16.msra.mxu0 0
        %1313 = vmatpush.bf16.msra.mxu0 %v1301
        %1314 = vmatpush.bf16.msra.mxu0 %v1300
        %1315 = vmatmul.bf16.gmra.mxu0 %v1305
        %v1316 = vpop.f32.mrf.mxu0
        %v1317 = vadd.f32 %v1290, %v1316
        %v1318 = vpop.f32.mrf.mxu0
        %1319 = vdwg.mxu0
        %v1320 = vmul.f32 %v1317, 0.5
        %v1321 = vmul.f32 %v1317, 0.70710677
        %v1322 = vmul.f32 %v1321, %v1321
        %v1323 = vmin.f32 16.0, %v1322
        %v1324 = vmul.f32 %v1323, 2.1237322e-06
        %v1325 = vadd.f32 %v1324, 0.00028619796
        %v1326 = vmul.f32 %v1323, %v1325
        %v1327 = vadd.f32 %v1326, 0.0036580483
        %v1328 = vmul.f32 %v1323, %v1327
        %v1329 = vadd.f32 %v1328, 0.05243302
        %v1330 = vmul.f32 %v1323, %v1329
        %v1331 = vadd.f32 %v1330, 0.18741608
        %v1332 = vmul.f32 %v1323, %v1331
        %v1333 = vadd.f32 %v1332, 1.1283791
        %v1334 = vmul.f32 %v1321, %v1333
        %v1335 = vmul.f32 %v1323, 3.8918573e-05
        %v1336 = vadd.f32 %v1335, 0.001143296
        %v1337 = vmul.f32 %v1323, %v1336
        %v1338 = vadd.f32 %v1337, 0.014752088
        %v1339 = vmul.f32 %v1323, %v1338
        %v1340 = vadd.f32 %v1339, 0.112945676
        %v1341 = vmul.f32 %v1323, %v1340
        %v1342 = vadd.f32 %v1341, 0.4994258
        %v1343 = vmul.f32 %v1323, %v1342
        %v1344 = vadd.f32 %v1343, 1.0
        %v1345 = vrcp.pop %v1344
        %v1346 = vmul.f32 %v1344, %v1345
        %v1347 = vsub.f32 1.0, %v1346
        %v1348 = vmul.f32 %v1345, %v1347
        %v1349 = vadd.f32 %v1345, %v1348
        %vm1350 = vweird.f32 %v1344
        %vm1351 = vweird.f32 %v1345
        %vm1352 = vmor %vm1350, %vm1351
        %v1353 = vsel %vm1352, %v1345, %v1349
        %v1354 = vand.u32 2147483647, %v1344
        %vm1355 = vcmp.eq.f32.partialorder %v1354, 8.507059e+37
        %v1356 = vand.u32 %v1344, 2147483648
        %v1357 = vor.u32 1.1754944e-38, %v1356
        %v1358 = vsel %vm1355, %v1357, %v1353
        %v1359 = vmul.f32 %v1334, %v1358
        %v1360 = vmin.f32 %v1359, 1.0
        %v1361 = vmax.f32 %v1360, -1.0
        %v1362 = vadd.f32 %v1361, 1.0
        %v1363 = vmul.f32 %v1320, %v1362
        %v1364 = vpack.c.bf16 %v1363, %v1363
        %v1365 = vld [vmem:[%s14] sm:$0xf]
        %v1366 = vld [vmem:[%s14 + $0x4] sm:$0xf]
        %v1367 = vld [vmem:[%s14 + $0x8] sm:$0xf]
        %v1368 = vld [vmem:[%s14 + $0xc] sm:$0xf]
        %v1369 = vld [vmem:[%s14 + $0x10] sm:$0xf]
        %v1370 = vld [vmem:[%s14 + $0x14] sm:$0xf]
        %v1371 = vld [vmem:[%s14 + $0x18] sm:$0xf]
        %v1372 = vld [vmem:[%s14 + $0x1c] sm:$0xf]
        %v1373 = vld [vmem:[%s14 + $0x20] sm:$0xf]
        %v1374 = vld [vmem:[%s14 + $0x24] sm:$0xf]
        %v1375 = vld [vmem:[%s14 + $0x28] sm:$0xf]
        %v1376 = vld [vmem:[%s14 + $0x2c] sm:$0xf]
        %v1377 = vld [vmem:[%s14 + $0x30] sm:$0xf]
        %v1378 = vld [vmem:[%s14 + $0x34] sm:$0xf]
        %v1379 = vld [vmem:[%s14 + $0x38] sm:$0xf]
        %v1380 = vld [vmem:[%s14 + $0x3c] sm:$0xf]
        %v1381 = vld [vmem:[%s15] sm:$0x1]
        %v1383 = vperm.slane %v1381, 0
        %v1401 = vunpack.c.l.b16 %v1365
        %v1402 = vunpack.c.l.b16 %v1366
        %v1403 = vunpack.c.l.b16 %v1367
        %v1404 = vunpack.c.l.b16 %v1368
        %v1405 = vunpack.c.l.b16 %v1369
        %v1406 = vunpack.c.l.b16 %v1370
        %v1407 = vunpack.c.l.b16 %v1371
        %v1408 = vunpack.c.l.b16 %v1372
        %v1409 = vunpack.c.l.b16 %v1373
        %v1410 = vunpack.c.l.b16 %v1374
        %v1411 = vunpack.c.l.b16 %v1375
        %v1412 = vunpack.c.l.b16 %v1376
        %v1413 = vunpack.c.l.b16 %v1377
        %v1414 = vunpack.c.l.b16 %v1378
        %v1415 = vunpack.c.l.b16 %v1379
        %v1416 = vunpack.c.l.b16 %v1380
        %v1417 = vpack.c.b16 %v1402, %v1401
        %v1418 = vpack.c.b16 %v1404, %v1403
        %v1419 = vpack.c.b16 %v1406, %v1405
        %v1420 = vpack.c.b16 %v1408, %v1407
        %v1421 = vpack.c.b16 %v1410, %v1409
        %v1422 = vpack.c.b16 %v1412, %v1411
        %v1423 = vpack.c.b16 %v1414, %v1413
        %v1424 = vpack.c.b16 %v1416, %v1415
        %1433 = vmatpush.bf16.msra.mxu0 %v1424
        %1434 = vmatpush.bf16.msra.mxu0 %v1423
        %1435 = vmatpush.bf16.msra.mxu0 %v1422
        %1436 = vmatpush.bf16.msra.mxu0 %v1421
        %1437 = vmatpush.bf16.msra.mxu0 %v1420
        %1438 = vmatpush.bf16.msra.mxu0 %v1419
        %1439 = vmatpush.bf16.msra.mxu0 %v1418
        %1440 = vmatpush.bf16.msra.mxu0 %v1417
        %1441 = vmatmul.bf16.gmra.mxu0 %v1364
        %v1442 = vpop.f32.mrf.mxu0
        %v1443 = vadd.f32 %v1383, %v1442
        %v1444 = vpop.f32.mrf.mxu0
        %1445 = vdwg.mxu0
        %v1446 = vld [vmem:[%s17] sm:$0x1]
        %v1448 = vperm.slane %v1446, 0
        %v1450 = vmul.f32 %v1448, %v1443
        %v1451 = vadd.f32 %v1282, %v1450
        %v1453 = vsel %vm689, %v633, 0
        %v1456 = vsel %vm689, %v634, 0
        %v1459 = vsel %vm689, %v635, 0
        %v1462 = vsel %vm689, %v636, 0
        %v1465 = vsel %vm1001, %v1451, 0
        %1467 = vmatpush.msra.mxu0 0.0
        %1468 = vmatpush.msra.mxu0 0.0
        %1469 = vmatpush.msra.mxu0 0.0
        %1470 = vmatpush.msra.mxu0 0.0
        %1471 = vmatpush.msra.mxu0 0.0
        %1472 = vmatpush.msra.mxu0 0.0
        %1473 = vmatpush.msra.mxu0 0.0
        %1474 = vmatpush.msra.mxu0 0.0
        %1475 = vmatpush.msra.mxu0 0.0
        %1476 = vmatpush.msra.mxu0 0.0
        %1477 = vmatpush.msra.mxu0 0.0
        %1478 = vmatpush.msra.mxu0 0.0
        %1479 = vmatpush.msra.mxu0 0.0
        %1480 = vmatpush.msra.mxu0 0.0
        %1481 = vmatpush.msra.mxu0 0.0
        %1482 = vmatpush.msra.mxu0 %v1465
        %1483 = vmatmul.f32.gmra.mxu0 %v1453
        %v1484 = vpop.f32.mrf.mxu0
        %v1485 = vadd.f32 0.0, %v1484
        %1486 = vmatmul.f32.gmra.mxu0 %v1456
        %v1487 = vpop.f32.mrf.mxu0
        %v1488 = vadd.f32 0.0, %v1487
        %1489 = vmatmul.f32.gmra.mxu0 %v1459
        %v1490 = vpop.f32.mrf.mxu0
        %v1491 = vadd.f32 0.0, %v1490
        %1492 = vmatmul.f32.gmra.mxu0 %v1462
        %v1493 = vpop.f32.mrf.mxu0
        %v1494 = vadd.f32 0.0, %v1493
        %1495 = vdwg.mxu0
        %v1496 = vsel %vm689, %v633, 0.0
        %1497 = vadd.xlane.f32.xlu0 %v1496
        %v1498 = vpop.xlane.xlu0 %1497
        %v1499 = vsel %vm689, %v634, 0.0
        %1500 = vadd.xlane.f32.xlu0 %v1499
        %v1501 = vpop.xlane.xlu0 %1500
        %v1502 = vsel %vm689, %v635, 0.0
        %1503 = vadd.xlane.f32.xlu0 %v1502
        %v1504 = vpop.xlane.xlu0 %1503
        %v1505 = vsel %vm689, %v636, 0.0
        %1506 = vadd.xlane.f32.xlu0 %v1505
        %v1507 = vpop.xlane.xlu0 %1506
        %vm1508 = vcmp.gt.f32.partialorder %v1498, 0.5
        %vm1509 = vcmp.gt.f32.partialorder %v1501, 0.5
        %vm1510 = vcmp.gt.f32.partialorder %v1504, 0.5
        %vm1511 = vcmp.gt.f32.partialorder %v1507, 0.5
        %v1512 = vmul.f32 %v1245, 2.0
        %v1513 = vmul.f32 %v1246, 2.0
        %v1514 = vmul.f32 %v1247, 2.0
        %v1515 = vmul.f32 %v1248, 2.0
        %v1516 = vsel %vm1508, 1, 0
        %v1517 = vsel %vm1509, 1, 0
        %v1518 = vsel %vm1510, 1, 0
        %v1519 = vsel %vm1511, 1, 0
        %vm1520 = vcmp.eq.s32.totalorder %v1516, 1
        %vm1521 = vcmp.eq.s32.totalorder %v1517, 1
        %vm1522 = vcmp.eq.s32.totalorder %v1518, 1
        %vm1523 = vcmp.eq.s32.totalorder %v1519, 1
        %v1524 = vsel %vm1520, %v1485, %v1512
        %v1525 = vsel %vm1521, %v1488, %v1513
        %v1526 = vsel %vm1522, %v1491, %v1514
        %v1527 = vsel %vm1523, %v1494, %v1515
        %1528 = vst.msk [vmem:[%s582] sm:$0xff] %vm720, %v1524
        %1529 = vst.msk [vmem:[%s582 + $0x8] sm:$0xff] %vm720, %v1525
        %1530 = vst.msk [vmem:[%s582 + $0x10] sm:$0xff] %vm720, %v1526
        %1531 = vst.msk [vmem:[%s582 + $0x18] sm:$0xff] %vm720, %v1527
        %s1532 = sand.u32 %s420, 1
        %s1533 = sand.u32 %s420, 1
        %s1534 = smul.addr %s1533, 32
        %s1535 = scalar_lea.vmem [#allocation2], %s1534
        // Predicated region
        $region93: #{tpu_custom_call.1} parent=91 // pred_check
          %p1536 = pneg %p430
        $region94: #{tpu_custom_call.1} parent=91 // pred_check_branch
          %1538 = sbr.rel (%p1536) target = $region96
        $region95: #{tpu_custom_call.1} parent=91 // pred_region
          %s1539 = smul.u32 2, %s29
          %s1540 = ssub.s32 3, %s1539
          %p1541 = scmp.lt.s32.totalorder %s1540, 2
          %s1542 = scalar_select %p1541, %s1540, 2
          %s1543 = smul.u32 8, %s1542
          %s1544 = smul.u32 %s1543, 2
          %p1545 = scmp.ne.s32.totalorder 0, %s1544
          %s1546 = smul.addr %s1539, 2
          %s1547 = smul.addr %s1546, 8
          %s1548 = scalar_lea.vmem %s18, %s1547
          %s1549 = smul.u32 %s1542, 2
          // Predicated region
          $region97: #{tpu_custom_call.1} parent=95 // pred_check
            %p1550 = pneg %p1545
          $region98: #{tpu_custom_call.1} parent=95 // pred_check_branch
            %1552 = sbr.rel (%p1550) target = $region100
          $region99: #{tpu_custom_call.1} parent=95 // pred_region
            // Predicated region
            $region101: #{tpu_custom_call.1} parent=99 // pred_check
              _
            $region102: #{tpu_custom_call.1} parent=99 // pred_check_branch
              %1554 = sbr.rel (0) target = $region104
            $region103: #{tpu_custom_call.1} parent=99 // pred_region
              // Predicated region
              $region123: #{tpu_custom_call.1} parent=103 // pred_check
                _
              $region124: #{tpu_custom_call.1} parent=103 // pred_check_branch
                %1610 = sbr.rel (0) target = $region126
              $region125: #{tpu_custom_call.1} parent=103 // pred_region
                %s1611 = sshrl.u32 %s1549, 2
                // While loop
                $region127: #{tpu_custom_call.1} parent=125 // loop_pre_header
                  _
                $region128: #{tpu_custom_call.1} parent=125 // loop_header
                  %s1613 = sphi 0, %s1615
                  %p1614 = scmp.ge.s32.totalorder %s1613, %s1611
                  %s1618 = sphi 0, %s1631
                  %s1619 = sphi %s1535, %s1634
                  %s1620 = sphi %s1548, %s1635
                $region129: #{tpu_custom_call.1} parent=125 // loop_header_branch
                  %1617 = sbr.rel (%p1614) target = $region133
                $region130: #{tpu_custom_call.1} parent=125 // loop_body
                  %v1621 = vld [vmem:[%s1619] sm:$0xff]
                  %1622 = vst [vmem:[%s1620] sm:$0xff] %v1621
                  %v1623 = vld [vmem:[%s1619 + $0x8] sm:$0xff]
                  %1624 = vst [vmem:[%s1620 + $0x8] sm:$0xff] %v1623
                  %v1625 = vld [vmem:[%s1619 + $0x10] sm:$0xff]
                  %1626 = vst [vmem:[%s1620 + $0x10] sm:$0xff] %v1625
                  %v1627 = vld [vmem:[%s1619 + $0x18] sm:$0xff]
                  %1628 = vst [vmem:[%s1620 + $0x18] sm:$0xff] %v1627
                  %s1629 = sadd.s32 1, %s1618
                  %p1630 = scmp.ge.s32.totalorder %s1629, %s1611
                  %s1631 = scalar_select %p1630, 0, %s1629
                  %s1632 = smul.u32 %s1631, 32
                  %s1633 = smul.u32 %s1631, 32
                  %s1634 = scalar_lea.vmem %s1535, %s1632 [#allocation2]
                  %s1635 = scalar_lea.vmem %s1548, %s1633
                $region131: #{tpu_custom_call.1} parent=125 // loop_footer
                  %s1615 = sadd.s32 %s1613, 1
                $region132: #{tpu_custom_call.1} parent=125 // loop_footer_branch
                  %1612 = sbr.rel target = $region128
                $region133: #{tpu_custom_call.1} parent=125 // loop_exit
                  _
                %s1636 = sshrl.u32 %s1549, 2
                %s1637 = sand.u32 %s1549, 3
                %s1638 = smul.u32 %s1636, 4
                %s1639 = smul.u32 8, %s1638
                %s1640 = scalar_lea.vmem %s1535, %s1639 [#allocation2]
                %s1641 = smul.u32 8, %s1638
                %s1642 = scalar_lea.vmem %s1548, %s1641
                // While loop
                $region134: #{tpu_custom_call.1} parent=125 // loop_pre_header
                  _
                $region135: #{tpu_custom_call.1} parent=125 // loop_header
                  %s1644 = sphi 0, %s1646
                  %p1645 = scmp.ge.s32.totalorder %s1644, %s1637
                  %s1649 = sphi 0, %s1656
                  %s1650 = sphi %s1640, %s1659
                  %s1651 = sphi %s1642, %s1660
                $region136: #{tpu_custom_call.1} parent=125 // loop_header_branch
                  %1648 = sbr.rel (%p1645) target = $region140
                $region137: #{tpu_custom_call.1} parent=125 // loop_body
                  %v1652 = vld [vmem:[%s1650] sm:$0xff]
                  %1653 = vst [vmem:[%s1651] sm:$0xff] %v1652
                  %s1654 = sadd.s32 1, %s1649
                  %p1655 = scmp.ge.s32.totalorder %s1654, %s1637
                  %s1656 = scalar_select %p1655, 0, %s1654
                  %s1657 = smul.u32 %s1656, 8
                  %s1658 = smul.u32 %s1656, 8
                  %s1659 = scalar_lea.vmem %s1640, %s1657 [#allocation2]
                  %s1660 = scalar_lea.vmem %s1642, %s1658
                $region138: #{tpu_custom_call.1} parent=125 // loop_footer
                  %s1646 = sadd.s32 %s1644, 1
                $region139: #{tpu_custom_call.1} parent=125 // loop_footer_branch
                  %1643 = sbr.rel target = $region135
                $region140: #{tpu_custom_call.1} parent=125 // loop_exit
                  _
              $region126: #{tpu_custom_call.1} parent=103 // pred_fallthru
                _
              // Predicated region
              $region141: #{tpu_custom_call.1} parent=103 // pred_check
                _
              $region142: #{tpu_custom_call.1} parent=103 // pred_check_branch
                %1662 = sbr.rel target = $region144
              $region143: #{tpu_custom_call.1} parent=103 // pred_region
                _
              $region144: #{tpu_custom_call.1} parent=103 // pred_fallthru
                _
            $region104: #{tpu_custom_call.1} parent=99 // pred_fallthru
              _
            // Predicated region
            $region105: #{tpu_custom_call.1} parent=99 // pred_check
              _
            $region106: #{tpu_custom_call.1} parent=99 // pred_check_branch
              %1556 = sbr.rel target = $region108
            $region107: #{tpu_custom_call.1} parent=99 // pred_region
              %s1558 = ssub.s32 256, 1
              %s1559 = sshrl.u32 %s1549, 2
              // While loop
              $region109: #{tpu_custom_call.1} parent=107 // loop_pre_header
                _
              $region110: #{tpu_custom_call.1} parent=107 // loop_header
                %s1561 = sphi 0, %s1563
                %p1562 = scmp.ge.s32.totalorder %s1561, %s1559
                %s1566 = sphi 0, %s1579
                %s1567 = sphi %s1535, %s1582
                %s1568 = sphi %s1548, %s1583
              $region111: #{tpu_custom_call.1} parent=107 // loop_header_branch
                %1565 = sbr.rel (%p1562) target = $region115
              $region112: #{tpu_custom_call.1} parent=107 // loop_body
                %v1569 = vld [vmem:[%s1567] sm:%s1558]
                %1570 = vst [vmem:[%s1568] sm:%s1558] %v1569
                %v1571 = vld [vmem:[%s1567 + $0x8] sm:%s1558]
                %1572 = vst [vmem:[%s1568 + $0x8] sm:%s1558] %v1571
                %v1573 = vld [vmem:[%s1567 + $0x10] sm:%s1558]
                %1574 = vst [vmem:[%s1568 + $0x10] sm:%s1558] %v1573
                %v1575 = vld [vmem:[%s1567 + $0x18] sm:%s1558]
                %1576 = vst [vmem:[%s1568 + $0x18] sm:%s1558] %v1575
                %s1577 = sadd.s32 1, %s1566
                %p1578 = scmp.ge.s32.totalorder %s1577, %s1559
                %s1579 = scalar_select %p1578, 0, %s1577
                %s1580 = smul.u32 %s1579, 32
                %s1581 = smul.u32 %s1579, 32
                %s1582 = scalar_lea.vmem %s1535, %s1580 [#allocation2]
                %s1583 = scalar_lea.vmem %s1548, %s1581
              $region113: #{tpu_custom_call.1} parent=107 // loop_footer
                %s1563 = sadd.s32 %s1561, 1
              $region114: #{tpu_custom_call.1} parent=107 // loop_footer_branch
                %1560 = sbr.rel target = $region110
              $region115: #{tpu_custom_call.1} parent=107 // loop_exit
                _
              %s1584 = sshrl.u32 %s1549, 2
              %s1585 = sand.u32 %s1549, 3
              %s1586 = smul.u32 %s1584, 4
              %s1587 = smul.u32 8, %s1586
              %s1588 = scalar_lea.vmem %s1535, %s1587 [#allocation2]
              %s1589 = smul.u32 8, %s1586
              %s1590 = scalar_lea.vmem %s1548, %s1589
              // While loop
              $region116: #{tpu_custom_call.1} parent=107 // loop_pre_header
                _
              $region117: #{tpu_custom_call.1} parent=107 // loop_header
                %s1592 = sphi 0, %s1594
                %p1593 = scmp.ge.s32.totalorder %s1592, %s1585
                %s1597 = sphi 0, %s1604
                %s1598 = sphi %s1588, %s1607
                %s1599 = sphi %s1590, %s1608
              $region118: #{tpu_custom_call.1} parent=107 // loop_header_branch
                %1596 = sbr.rel (%p1593) target = $region122
              $region119: #{tpu_custom_call.1} parent=107 // loop_body
                %v1600 = vld [vmem:[%s1598] sm:%s1558]
                %1601 = vst [vmem:[%s1599] sm:%s1558] %v1600
                %s1602 = sadd.s32 1, %s1597
                %p1603 = scmp.ge.s32.totalorder %s1602, %s1585
                %s1604 = scalar_select %p1603, 0, %s1602
                %s1605 = smul.u32 %s1604, 8
                %s1606 = smul.u32 %s1604, 8
                %s1607 = scalar_lea.vmem %s1588, %s1605 [#allocation2]
                %s1608 = scalar_lea.vmem %s1590, %s1606
              $region120: #{tpu_custom_call.1} parent=107 // loop_footer
                %s1594 = sadd.s32 %s1592, 1
              $region121: #{tpu_custom_call.1} parent=107 // loop_footer_branch
                %1591 = sbr.rel target = $region117
              $region122: #{tpu_custom_call.1} parent=107 // loop_exit
                _
            $region108: #{tpu_custom_call.1} parent=99 // pred_fallthru
              _
          $region100: #{tpu_custom_call.1} parent=95 // pred_fallthru
            _
          %1663 = vnop
        $region96: #{tpu_custom_call.1} parent=91 // pred_fallthru
          _
      $region92: #{tpu_custom_call.1} parent=5 // pred_fallthru
        _
      %p1664 = scmp.le.s32.totalorder 2, %s24
      // Predicated region
      $region145: #{tpu_custom_call.1} parent=5 // pred_check
        %p1665 = pneg %p1664
      $region146: #{tpu_custom_call.1} parent=5 // pred_check_branch
        %1667 = sbr.rel (%p1665) target = $region148
      $region147: #{tpu_custom_call.1} parent=5 // pred_region
        %s1668 = ssub.s32 %s24, 2
        // Predicated region
        $region149: #{tpu_custom_call.1} parent=147 // pred_check
          %p1669 = pneg %p436
        $region150: #{tpu_custom_call.1} parent=147 // pred_check_branch
          %1671 = sbr.rel (%p1669) target = $region152
        $region151: #{tpu_custom_call.1} parent=147 // pred_region
          %s1672 = sand.u32 %s421, 1
          %s1673 = sand.u32 %s421, 1
          %s1674 = smul.addr %s1673, 32
          %s1675 = scalar_lea.vmem [#allocation2], %s1674
        $region152: #{tpu_custom_call.1} parent=147 // pred_fallthru
          _
      $region148: #{tpu_custom_call.1} parent=5 // pred_fallthru
        _
    $region6: #{tpu_custom_call.1} parent=1 // loop_footer
      %s28 = sadd.s32 1, %s24
    $region7: #{tpu_custom_call.1} parent=1 // loop_footer_branch
      %23 = sbr.rel target = $region3
    $region8: #{tpu_custom_call.1} parent=1 // loop_exit
      _

// kernel: tpu_custom_call.1
$region0: #{tpu_custom_call.1}
  #allocation0 [shape = 'u32[]', space=smem, size = 0x4, offset = 0x4, fixed_abs, tag = 'smem constant byte address 0x4 - core index']
  #allocation1 [shape = 'u32[72,128]{1,0:T(1,128)}', space=vmem, size = 0x9000, scoped, tag = 'internal scratch']
  %s0 = inlined_call_operand.vmem [shape: f32[3,10,32], index: 0, kind: input, shape index: {}]
  %s1 = inlined_call_operand.vmem [shape: bf16[32,4], index: 1, kind: input, shape index: {}]
  %s2 = inlined_call_operand.vmem [shape: bf16[4,32], index: 2, kind: input, shape index: {}]
  %s3 = inlined_call_operand.vmem [shape: f32[1,32], index: 3, kind: input, shape index: {}]
  %s4 = inlined_call_operand.vmem [shape: f32[1,32], index: 4, kind: input, shape index: {}]
  %s5 = inlined_call_operand.vmem [shape: bf16[32,32], index: 5, kind: input, shape index: {}]
  %s6 = inlined_call_operand.vmem [shape: bf16[32,32], index: 6, kind: input, shape index: {}]
  %s7 = inlined_call_operand.vmem [shape: bf16[32,32], index: 7, kind: input, shape index: {}]
  %s8 = inlined_call_operand.vmem [shape: bf16[32,32], index: 8, kind: input, shape index: {}]
  %s9 = inlined_call_operand.vmem [shape: f32[1,32], index: 9, kind: input, shape index: {}]
  %s10 = inlined_call_operand.vmem [shape: f32[1,32], index: 10, kind: input, shape index: {}]
  %s11 = inlined_call_operand.vmem [shape: f32[1,32], index: 11, kind: input, shape index: {}]
  %s12 = inlined_call_operand.vmem [shape: bf16[32,128], index: 12, kind: input, shape index: {}]
  %s13 = inlined_call_operand.vmem [shape: f32[1,128], index: 13, kind: input, shape index: {}]
  %s14 = inlined_call_operand.vmem [shape: bf16[128,32], index: 14, kind: input, shape index: {}]
  %s15 = inlined_call_operand.vmem [shape: f32[1,32], index: 15, kind: input, shape index: {}]
  %s16 = inlined_call_operand.vmem [shape: f32[1,32], index: 16, kind: input, shape index: {}]
  %s17 = inlined_call_operand.vmem [shape: f32[1,32], index: 17, kind: input, shape index: {}]
  %s18 = inlined_call_operand.vmem [shape: f32[3,10,32], index: 18, kind: output, shape index: {}]
  %s19 = sld [smem:[#allocation0]]
  $region153: #{tpu_custom_call.1} parent=0
    _
  %s21 = ssub.s32 1, %s19
  %s22 = scalar_select 0, %s21, %s19
  $region1: #{tpu_custom_call.1} parent=0
    #allocation2 [shape = 'u8[32768]{0}', space=vmem, size = 0x8000, scoped, tag = 'output window, operand 0']
    loop: start=0, step=1, limit=4
    $region2: #{tpu_custom_call.1} parent=1 // loop_pre_header
      _
    $region3: #{tpu_custom_call.1} parent=1 // loop_header
      %s24 = sphi 0, %s28
      %p25 = scmp.ge.s32.totalorder %s24, 4
      %s34 = sphi 0, %s36
      %s37 = sphi 0, %s34
      %s38 = sphi 0, %s37
      %s54 = sphi 0, %s38
      %s58 = sphi 0, %s58
      %s60 = sphi 0, %s58
      %s61 = sphi 0, %s60
      %s75 = sphi 0, %s61
      %s79 = sphi 0, %s79
      %s81 = sphi 0, %s79
      %s82 = sphi 0, %s81
      %s96 = sphi 0, %s82
      %s100 = sphi 0, %s100
      %s102 = sphi 0, %s100
      %s103 = sphi 0, %s102
      %s117 = sphi 0, %s103
      %s121 = sphi 0, %s121
      %s123 = sphi 0, %s121
      %s124 = sphi 0, %s123
      %s138 = sphi 0, %s124
      %s142 = sphi 0, %s142
      %s144 = sphi 0, %s142
      %s145 = sphi 0, %s144
      %s159 = sphi 0, %s145
      %s163 = sphi 0, %s163
      %s165 = sphi 0, %s163
      %s166 = sphi 0, %s165
      %s180 = sphi 0, %s166
      %s184 = sphi 0, %s184
      %s186 = sphi 0, %s184
      %s187 = sphi 0, %s186
      %s201 = sphi 0, %s187
      %s205 = sphi 0, %s205
      %s207 = sphi 0, %s205
      %s208 = sphi 0, %s207
      %s222 = sphi 0, %s208
      %s226 = sphi 0, %s226
      %s228 = sphi 0, %s226
      %s229 = sphi 0, %s228
      %s243 = sphi 0, %s229
      %s247 = sphi 0, %s247
      %s249 = sphi 0, %s247
      %s250 = sphi 0, %s249
      %s264 = sphi 0, %s250
      %s268 = sphi 0, %s268
      %s270 = sphi 0, %s268
      %s271 = sphi 0, %s270
      %s285 = sphi 0, %s271
      %s289 = sphi 0, %s289
      %s291 = sphi 0, %s289
      %s292 = sphi 0, %s291
      %s306 = sphi 0, %s292
      %s310 = sphi 0, %s310
      %s312 = sphi 0, %s310
      %s313 = sphi 0, %s312
      %s327 = sphi 0, %s313
      %s331 = sphi 0, %s331
      %s333 = sphi 0, %s331
      %s334 = sphi 0, %s333
      %s348 = sphi 0, %s334
      %s352 = sphi 0, %s352
      %s354 = sphi 0, %s352
      %s355 = sphi 0, %s354
      %s369 = sphi 0, %s355
      %s373 = sphi 0, %s373
      %s375 = sphi 0, %s373
      %s376 = sphi 0, %s375
      %s390 = sphi 0, %s376
      %s394 = sphi 0, %s394
      %s396 = sphi 0, %s394
      %s397 = sphi 0, %s396
      %s411 = sphi 0, %s397
      %s417 = sphi 0, %s419
      %s420 = sphi 0, %s417
      %s421 = sphi 0, %s420
      %s437 = sphi 0, %s421
    $region4: #{tpu_custom_call.1} parent=1 // loop_header_branch
      %27 = sbr.rel (%p25) target = $region8
    $region5: #{tpu_custom_call.1} parent=1 // loop_body
      %s29 = ssub.s32 %s24, 1
      %s30 = ssub.s32 %s24, 2
      %s31 = sadd.s32 %s24, 1
      %s32 = ssub.s32 %s24, %s31
      %p33 = scmp.eq.s32.totalorder %s32, 0
      %s35 = sadd.s32 %s34, 1
      %s36 = scalar_select %p33, %s34, %s35
      %p39 = pneg %p33
      %p40 = scmp.eq.s32.totalorder %s24, 1
      %p41 = por %p39, %p40
      %p42 = scmp.ne.s32.totalorder %s34, %s37
      %p43 = scmp.eq.s32.totalorder %s24, 0
      %p44 = por %p42, %p43
      %p45 = scmp.ne.s32.totalorder %s34, %s37
      %p46 = scmp.eq.s32.totalorder %s29, 1
      %p47 = por %p45, %p46
      %p48 = scmp.ne.s32.totalorder %s37, %s38
      %p49 = scmp.eq.s32.totalorder %s29, 0
      %p50 = por %p48, %p49
      %p51 = scmp.ne.s32.totalorder %s37, %s38
      %p52 = scmp.eq.s32.totalorder %s30, 1
      %p53 = por %p51, %p52
      %p55 = scmp.ne.s32.totalorder %s38, %s54
      %p56 = scmp.eq.s32.totalorder %s30, 0
      %p57 = por %p55, %p56
      %s59 = sadd.s32 %s58, 1
      %p62 = scmp.eq.s32.totalorder %s24, 1
      %p63 = scmp.ne.s32.totalorder %s58, %s60
      %p64 = scmp.eq.s32.totalorder %s24, 0
      %p65 = por %p63, %p64
      %p66 = scmp.ne.s32.totalorder %s58, %s60
      %p67 = scmp.eq.s32.totalorder %s29, 1
      %p68 = por %p66, %p67
      %p69 = scmp.ne.s32.totalorder %s60, %s61
      %p70 = scmp.eq.s32.totalorder %s29, 0
      %p71 = por %p69, %p70
      %p72 = scmp.ne.s32.totalorder %s60, %s61
      %p73 = scmp.eq.s32.totalorder %s30, 1
      %p74 = por %p72, %p73
      %p76 = scmp.ne.s32.totalorder %s61, %s75
      %p77 = scmp.eq.s32.totalorder %s30, 0
      %p78 = por %p76, %p77
      %s80 = sadd.s32 %s79, 1
      %p83 = scmp.eq.s32.totalorder %s24, 1
      %p84 = scmp.ne.s32.totalorder %s79, %s81
      %p85 = scmp.eq.s32.totalorder %s24, 0
      %p86 = por %p84, %p85
      %p87 = scmp.ne.s32.totalorder %s79, %s81
      %p88 = scmp.eq.s32.totalorder %s29, 1
      %p89 = por %p87, %p88
      %p90 = scmp.ne.s32.totalorder %s81, %s82
      %p91 = scmp.eq.s32.totalorder %s29, 0
      %p92 = por %p90, %p91
      %p93 = scmp.ne.s32.totalorder %s81, %s82
      %p94 = scmp.eq.s32.totalorder %s30, 1
      %p95 = por %p93, %p94
      %p97 = scmp.ne.s32.totalorder %s82, %s96
      %p98 = scmp.eq.s32.totalorder %s30, 0
      %p99 = por %p97, %p98
      %s101 = sadd.s32 %s100, 1
      %p104 = scmp.eq.s32.totalorder %s24, 1
      %p105 = scmp.ne.s32.totalorder %s100, %s102
      %p106 = scmp.eq.s32.totalorder %s24, 0
      %p107 = por %p105, %p106
      %p108 = scmp.ne.s32.totalorder %s100, %s102
      %p109 = scmp.eq.s32.totalorder %s29, 1
      %p110 = por %p108, %p109
      %p111 = scmp.ne.s32.totalorder %s102, %s103
      %p112 = scmp.eq.s32.totalorder %s29, 0
      %p113 = por %p111, %p112
      %p114 = scmp.ne.s32.totalorder %s102, %s103
      %p115 = scmp.eq.s32.totalorder %s30, 1
      %p116 = por %p114, %p115
      %p118 = scmp.ne.s32.totalorder %s103, %s117
      %p119 = scmp.eq.s32.totalorder %s30, 0
      %p120 = por %p118, %p119
      %s122 = sadd.s32 %s121, 1
      %p125 = scmp.eq.s32.totalorder %s24, 1
      %p126 = scmp.ne.s32.totalorder %s121, %s123
      %p127 = scmp.eq.s32.totalorder %s24, 0
      %p128 = por %p126, %p127
      %p129 = scmp.ne.s32.totalorder %s121, %s123
      %p130 = scmp.eq.s32.totalorder %s29, 1
      %p131 = por %p129, %p130
      %p132 = scmp.ne.s32.totalorder %s123, %s124
      %p133 = scmp.eq.s32.totalorder %s29, 0
      %p134 = por %p132, %p133
      %p135 = scmp.ne.s32.totalorder %s123, %s124
      %p136 = scmp.eq.s32.totalorder %s30, 1
      %p137 = por %p135, %p136
      %p139 = scmp.ne.s32.totalorder %s124, %s138
      %p140 = scmp.eq.s32.totalorder %s30, 0
      %p141 = por %p139, %p140
      %s143 = sadd.s32 %s142, 1
      %p146 = scmp.eq.s32.totalorder %s24, 1
      %p147 = scmp.ne.s32.totalorder %s142, %s144
      %p148 = scmp.eq.s32.totalorder %s24, 0
      %p149 = por %p147, %p148
      %p150 = scmp.ne.s32.totalorder %s142, %s144
      %p151 = scmp.eq.s32.totalorder %s29, 1
      %p152 = por %p150, %p151
      %p153 = scmp.ne.s32.totalorder %s144, %s145
      %p154 = scmp.eq.s32.totalorder %s29, 0
      %p155 = por %p153, %p154
      %p156 = scmp.ne.s32.totalorder %s144, %s145
      %p157 = scmp.eq.s32.totalorder %s30, 1
      %p158 = por %p156, %p157
      %p160 = scmp.ne.s32.totalorder %s145, %s159
      %p161 = scmp.eq.s32.totalorder %s30, 0
      %p162 = por %p160, %p161
      %s164 = sadd.s32 %s163, 1
      %p167 = scmp.eq.s32.totalorder %s24, 1
      %p168 = scmp.ne.s32.totalorder %s163, %s165
      %p169 = scmp.eq.s32.totalorder %s24, 0
      %p170 = por %p168, %p169
      %p171 = scmp.ne.s32.totalorder %s163, %s165
      %p172 = scmp.eq.s32.totalorder %s29, 1
      %p173 = por %p171, %p172
      %p174 = scmp.ne.s32.totalorder %s165, %s166
      %p175 = scmp.eq.s32.totalorder %s29, 0
      %p176 = por %p174, %p175
      %p177 = scmp.ne.s32.totalorder %s165, %s166
      %p178 = scmp.eq.s32.totalorder %s30, 1
      %p179 = por %p177, %p178
      %p181 = scmp.ne.s32.totalorder %s166, %s180
      %p182 = scmp.eq.s32.totalorder %s30, 0
      %p183 = por %p181, %p182
      %s185 = sadd.s32 %s184, 1
      %p188 = scmp.eq.s32.totalorder %s24, 1
      %p189 = scmp.ne.s32.totalorder %s184, %s186
      %p190 = scmp.eq.s32.totalorder %s24, 0
      %p191 = por %p189, %p190
      %p192 = scmp.ne.s32.totalorder %s184, %s186
      %p193 = scmp.eq.s32.totalorder %s29, 1
      %p194 = por %p192, %p193
      %p195 = scmp.ne.s32.totalorder %s186, %s187
      %p196 = scmp.eq.s32.totalorder %s29, 0
      %p197 = por %p195, %p196
      %p198 = scmp.ne.s32.totalorder %s186, %s187
      %p199 = scmp.eq.s32.totalorder %s30, 1
      %p200 = por %p198, %p199
      %p202 = scmp.ne.s32.totalorder %s187, %s201
      %p203 = scmp.eq.s32.totalorder %s30, 0
      %p204 = por %p202, %p203
      %s206 = sadd.s32 %s205, 1
      %p209 = scmp.eq.s32.totalorder %s24, 1
      %p210 = scmp.ne.s32.totalorder %s205, %s207
      %p211 = scmp.eq.s32.totalorder %s24, 0
      %p212 = por %p210, %p211
      %p213 = scmp.ne.s32.totalorder %s205, %s207
      %p214 = scmp.eq.s32.totalorder %s29, 1
      %p215 = por %p213, %p214
      %p216 = scmp.ne.s32.totalorder %s207, %s208
      %p217 = scmp.eq.s32.totalorder %s29, 0
      %p218 = por %p216, %p217
      %p219 = scmp.ne.s32.totalorder %s207, %s208
      %p220 = scmp.eq.s32.totalorder %s30, 1
      %p221 = por %p219, %p220
      %p223 = scmp.ne.s32.totalorder %s208, %s222
      %p224 = scmp.eq.s32.totalorder %s30, 0
      %p225 = por %p223, %p224
      %s227 = sadd.s32 %s226, 1
      %p230 = scmp.eq.s32.totalorder %s24, 1
      %p231 = scmp.ne.s32.totalorder %s226, %s228
      %p232 = scmp.eq.s32.totalorder %s24, 0
      %p233 = por %p231, %p232
      %p234 = scmp.ne.s32.totalorder %s226, %s228
      %p235 = scmp.eq.s32.totalorder %s29, 1
      %p236 = por %p234, %p235
      %p237 = scmp.ne.s32.totalorder %s228, %s229
      %p238 = scmp.eq.s32.totalorder %s29, 0
      %p239 = por %p237, %p238
      %p240 = scmp.ne.s32.totalorder %s228, %s229
      %p241 = scmp.eq.s32.totalorder %s30, 1
      %p242 = por %p240, %p241
      %p244 = scmp.ne.s32.totalorder %s229, %s243
      %p245 = scmp.eq.s32.totalorder %s30, 0
      %p246 = por %p244, %p245
      %s248 = sadd.s32 %s247, 1
      %p251 = scmp.eq.s32.totalorder %s24, 1
      %p252 = scmp.ne.s32.totalorder %s247, %s249
      %p253 = scmp.eq.s32.totalorder %s24, 0
      %p254 = por %p252, %p253
      %p255 = scmp.ne.s32.totalorder %s247, %s249
      %p256 = scmp.eq.s32.totalorder %s29, 1
      %p257 = por %p255, %p256
      %p258 = scmp.ne.s32.totalorder %s249, %s250
      %p259 = scmp.eq.s32.totalorder %s29, 0
      %p260 = por %p258, %p259
      %p261 = scmp.ne.s32.totalorder %s249, %s250
      %p262 = scmp.eq.s32.totalorder %s30, 1
      %p263 = por %p261, %p262
      %p265 = scmp.ne.s32.totalorder %s250, %s264
      %p266 = scmp.eq.s32.totalorder %s30, 0
      %p267 = por %p265, %p266
      %s269 = sadd.s32 %s268, 1
      %p272 = scmp.eq.s32.totalorder %s24, 1
      %p273 = scmp.ne.s32.totalorder %s268, %s270
      %p274 = scmp.eq.s32.totalorder %s24, 0
      %p275 = por %p273, %p274
      %p276 = scmp.ne.s32.totalorder %s268, %s270
      %p277 = scmp.eq.s32.totalorder %s29, 1
      %p278 = por %p276, %p277
      %p279 = scmp.ne.s32.totalorder %s270, %s271
      %p280 = scmp.eq.s32.totalorder %s29, 0
      %p281 = por %p279, %p280
      %p282 = scmp.ne.s32.totalorder %s270, %s271
      %p283 = scmp.eq.s32.totalorder %s30, 1
      %p284 = por %p282, %p283
      %p286 = scmp.ne.s32.totalorder %s271, %s285
      %p287 = scmp.eq.s32.totalorder %s30, 0
      %p288 = por %p286, %p287
      %s290 = sadd.s32 %s289, 1
      %p293 = scmp.eq.s32.totalorder %s24, 1
      %p294 = scmp.ne.s32.totalorder %s289, %s291
      %p295 = scmp.eq.s32.totalorder %s24, 0
      %p296 = por %p294, %p295
      %p297 = scmp.ne.s32.totalorder %s289, %s291
      %p298 = scmp.eq.s32.totalorder %s29, 1
      %p299 = por %p297, %p298
      %p300 = scmp.ne.s32.totalorder %s291, %s292
      %p301 = scmp.eq.s32.totalorder %s29, 0
      %p302 = por %p300, %p301
      %p303 = scmp.ne.s32.totalorder %s291, %s292
      %p304 = scmp.eq.s32.totalorder %s30, 1
      %p305 = por %p303, %p304
      %p307 = scmp.ne.s32.totalorder %s292, %s306
      %p308 = scmp.eq.s32.totalorder %s30, 0
      %p309 = por %p307, %p308
      %s311 = sadd.s32 %s310, 1
      %p314 = scmp.eq.s32.totalorder %s24, 1
      %p315 = scmp.ne.s32.totalorder %s310, %s312
      %p316 = scmp.eq.s32.totalorder %s24, 0
      %p317 = por %p315, %p316
      %p318 = scmp.ne.s32.totalorder %s310, %s312
      %p319 = scmp.eq.s32.totalorder %s29, 1
      %p320 = por %p318, %p319
      %p321 = scmp.ne.s32.totalorder %s312, %s313
      %p322 = scmp.eq.s32.totalorder %s29, 0
      %p323 = por %p321, %p322
      %p324 = scmp.ne.s32.totalorder %s312, %s313
      %p325 = scmp.eq.s32.totalorder %s30, 1
      %p326 = por %p324, %p325
      %p328 = scmp.ne.s32.totalorder %s313, %s327
      %p329 = scmp.eq.s32.totalorder %s30, 0
      %p330 = por %p328, %p329
      %s332 = sadd.s32 %s331, 1
      %p335 = scmp.eq.s32.totalorder %s24, 1
      %p336 = scmp.ne.s32.totalorder %s331, %s333
      %p337 = scmp.eq.s32.totalorder %s24, 0
      %p338 = por %p336, %p337
      %p339 = scmp.ne.s32.totalorder %s331, %s333
      %p340 = scmp.eq.s32.totalorder %s29, 1
      %p341 = por %p339, %p340
      %p342 = scmp.ne.s32.totalorder %s333, %s334
      %p343 = scmp.eq.s32.totalorder %s29, 0
      %p344 = por %p342, %p343
      %p345 = scmp.ne.s32.totalorder %s333, %s334
      %p346 = scmp.eq.s32.totalorder %s30, 1
      %p347 = por %p345, %p346
      %p349 = scmp.ne.s32.totalorder %s334, %s348
      %p350 = scmp.eq.s32.totalorder %s30, 0
      %p351 = por %p349, %p350
      %s353 = sadd.s32 %s352, 1
      %p356 = scmp.eq.s32.totalorder %s24, 1
      %p357 = scmp.ne.s32.totalorder %s352, %s354
      %p358 = scmp.eq.s32.totalorder %s24, 0
      %p359 = por %p357, %p358
      %p360 = scmp.ne.s32.totalorder %s352, %s354
      %p361 = scmp.eq.s32.totalorder %s29, 1
      %p362 = por %p360, %p361
      %p363 = scmp.ne.s32.totalorder %s354, %s355
      %p364 = scmp.eq.s32.totalorder %s29, 0
      %p365 = por %p363, %p364
      %p366 = scmp.ne.s32.totalorder %s354, %s355
      %p367 = scmp.eq.s32.totalorder %s30, 1
      %p368 = por %p366, %p367
      %p370 = scmp.ne.s32.totalorder %s355, %s369
      %p371 = scmp.eq.s32.totalorder %s30, 0
      %p372 = por %p370, %p371
      %s374 = sadd.s32 %s373, 1
      %p377 = scmp.eq.s32.totalorder %s24, 1
      %p378 = scmp.ne.s32.totalorder %s373, %s375
      %p379 = scmp.eq.s32.totalorder %s24, 0
      %p380 = por %p378, %p379
      %p381 = scmp.ne.s32.totalorder %s373, %s375
      %p382 = scmp.eq.s32.totalorder %s29, 1
      %p383 = por %p381, %p382
      %p384 = scmp.ne.s32.totalorder %s375, %s376
      %p385 = scmp.eq.s32.totalorder %s29, 0
      %p386 = por %p384, %p385
      %p387 = scmp.ne.s32.totalorder %s375, %s376
      %p388 = scmp.eq.s32.totalorder %s30, 1
      %p389 = por %p387, %p388
      %p391 = scmp.ne.s32.totalorder %s376, %s390
      %p392 = scmp.eq.s32.totalorder %s30, 0
      %p393 = por %p391, %p392
      %s395 = sadd.s32 %s394, 1
      %p398 = scmp.eq.s32.totalorder %s24, 1
      %p399 = scmp.ne.s32.totalorder %s394, %s396
      %p400 = scmp.eq.s32.totalorder %s24, 0
      %p401 = por %p399, %p400
      %p402 = scmp.ne.s32.totalorder %s394, %s396
      %p403 = scmp.eq.s32.totalorder %s29, 1
      %p404 = por %p402, %p403
      %p405 = scmp.ne.s32.totalorder %s396, %s397
      %p406 = scmp.eq.s32.totalorder %s29, 0
      %p407 = por %p405, %p406
      %p408 = scmp.ne.s32.totalorder %s396, %s397
      %p409 = scmp.eq.s32.totalorder %s30, 1
      %p410 = por %p408, %p409
      %p412 = scmp.ne.s32.totalorder %s397, %s411
      %p413 = scmp.eq.s32.totalorder %s30, 0
      %p414 = por %p412, %p413
      %s415 = ssub.s32 %s24, %s31
      %p416 = scmp.eq.s32.totalorder %s415, 0
      %s418 = sadd.s32 %s417, 1
      %s419 = scalar_select %p416, %s417, %s418
      %p422 = pneg %p416
      %p423 = scmp.eq.s32.totalorder %s24, 1
      %p424 = por %p422, %p423
      %p425 = scmp.ne.s32.totalorder %s417, %s420
      %p426 = scmp.eq.s32.totalorder %s24, 0
      %p427 = por %p425, %p426
      %p428 = scmp.ne.s32.totalorder %s417, %s420
      %p429 = scmp.eq.s32.totalorder %s29, 1
      %p430 = por %p428, %p429
      %p431 = scmp.ne.s32.totalorder %s420, %s421
      %p432 = scmp.eq.s32.totalorder %s29, 0
      %p433 = por %p431, %p432
      %p434 = scmp.ne.s32.totalorder %s420, %s421
      %p435 = scmp.eq.s32.totalorder %s30, 1
      %p436 = por %p434, %p435
      %p438 = scmp.ne.s32.totalorder %s421, %s437
      %p439 = scmp.eq.s32.totalorder %s30, 0
      %p440 = por %p438, %p439
      %p441 = scmp.le.s32.totalorder 1, %s24
      %p442 = scmp.lt.s32.totalorder %s24, 3
      %p443 = pnand %p441, %p442
      %p444 = pneg %p443
      // Predicated region
      $region9: #{tpu_custom_call.1} parent=5 // pred_check
        _
      $region10: #{tpu_custom_call.1} parent=5 // pred_check_branch
        %446 = sbr.rel (%p443) target = $region12
      $region11: #{tpu_custom_call.1} parent=5 // pred_region
        %s447 = ssub.s32 %s24, 1
        // Predicated region
        $region13: #{tpu_custom_call.1} parent=11 // pred_check
          %p448 = pneg %p71
        $region14: #{tpu_custom_call.1} parent=11 // pred_check_branch
          %450 = sbr.rel (%p448) target = $region16
        $region15: #{tpu_custom_call.1} parent=11 // pred_region
          _
        $region16: #{tpu_custom_call.1} parent=11 // pred_fallthru
          _
        // Predicated region
        $region17: #{tpu_custom_call.1} parent=11 // pred_check
          %p451 = pneg %p92
        $region18: #{tpu_custom_call.1} parent=11 // pred_check_branch
          %453 = sbr.rel (%p451) target = $region20
        $region19: #{tpu_custom_call.1} parent=11 // pred_region
          _
        $region20: #{tpu_custom_call.1} parent=11 // pred_fallthru
          _
        // Predicated region
        $region21: #{tpu_custom_call.1} parent=11 // pred_check
          %p454 = pneg %p113
        $region22: #{tpu_custom_call.1} parent=11 // pred_check_branch
          %456 = sbr.rel (%p454) target = $region24
        $region23: #{tpu_custom_call.1} parent=11 // pred_region
          _
        $region24: #{tpu_custom_call.1} parent=11 // pred_fallthru
          _
        // Predicated region
        $region25: #{tpu_custom_call.1} parent=11 // pred_check
          %p457 = pneg %p134
        $region26: #{tpu_custom_call.1} parent=11 // pred_check_branch
          %459 = sbr.rel (%p457) target = $region28
        $region27: #{tpu_custom_call.1} parent=11 // pred_region
          _
        $region28: #{tpu_custom_call.1} parent=11 // pred_fallthru
          _
        // Predicated region
        $region29: #{tpu_custom_call.1} parent=11 // pred_check
          %p460 = pneg %p155
        $region30: #{tpu_custom_call.1} parent=11 // pred_check_branch
          %462 = sbr.rel (%p460) target = $region32
        $region31: #{tpu_custom_call.1} parent=11 // pred_region
          _
        $region32: #{tpu_custom_call.1} parent=11 // pred_fallthru
          _
        // Predicated region
        $region33: #{tpu_custom_call.1} parent=11 // pred_check
          %p463 = pneg %p176
        $region34: #{tpu_custom_call.1} parent=11 // pred_check_branch
          %465 = sbr.rel (%p463) target = $region36
        $region35: #{tpu_custom_call.1} parent=11 // pred_region
          _
        $region36: #{tpu_custom_call.1} parent=11 // pred_fallthru
          _
        // Predicated region
        $region37: #{tpu_custom_call.1} parent=11 // pred_check
          %p466 = pneg %p197
        $region38: #{tpu_custom_call.1} parent=11 // pred_check_branch
          %468 = sbr.rel (%p466) target = $region40
        $region39: #{tpu_custom_call.1} parent=11 // pred_region
          _
        $region40: #{tpu_custom_call.1} parent=11 // pred_fallthru
          _
        // Predicated region
        $region41: #{tpu_custom_call.1} parent=11 // pred_check
          %p469 = pneg %p218
        $region42: #{tpu_custom_call.1} parent=11 // pred_check_branch
          %471 = sbr.rel (%p469) target = $region44
        $region43: #{tpu_custom_call.1} parent=11 // pred_region
          _
        $region44: #{tpu_custom_call.1} parent=11 // pred_fallthru
          _
        // Predicated region
        $region45: #{tpu_custom_call.1} parent=11 // pred_check
          %p472 = pneg %p239
        $region46: #{tpu_custom_call.1} parent=11 // pred_check_branch
          %474 = sbr.rel (%p472) target = $region48
        $region47: #{tpu_custom_call.1} parent=11 // pred_region
          _
        $region48: #{tpu_custom_call.1} parent=11 // pred_fallthru
          _
        // Predicated region
        $region49: #{tpu_custom_call.1} parent=11 // pred_check
          %p475 = pneg %p260
        $region50: #{tpu_custom_call.1} parent=11 // pred_check_branch
          %477 = sbr.rel (%p475) target = $region52
        $region51: #{tpu_custom_call.1} parent=11 // pred_region
          _
        $region52: #{tpu_custom_call.1} parent=11 // pred_fallthru
          _
        // Predicated region
        $region53: #{tpu_custom_call.1} parent=11 // pred_check
          %p478 = pneg %p281
        $region54: #{tpu_custom_call.1} parent=11 // pred_check_branch
          %480 = sbr.rel (%p478) target = $region56
        $region55: #{tpu_custom_call.1} parent=11 // pred_region
          _
        $region56: #{tpu_custom_call.1} parent=11 // pred_fallthru
          _
        // Predicated region
        $region57: #{tpu_custom_call.1} parent=11 // pred_check
          %p481 = pneg %p302
        $region58: #{tpu_custom_call.1} parent=11 // pred_check_branch
          %483 = sbr.rel (%p481) target = $region60
        $region59: #{tpu_custom_call.1} parent=11 // pred_region
          _
        $region60: #{tpu_custom_call.1} parent=11 // pred_fallthru
          _
        // Predicated region
        $region61: #{tpu_custom_call.1} parent=11 // pred_check
          %p484 = pneg %p323
        $region62: #{tpu_custom_call.1} parent=11 // pred_check_branch
          %486 = sbr.rel (%p484) target = $region64
        $region63: #{tpu_custom_call.1} parent=11 // pred_region
          _
        $region64: #{tpu_custom_call.1} parent=11 // pred_fallthru
          _
        // Predicated region
        $region65: #{tpu_custom_call.1} parent=11 // pred_check
          %p487 = pneg %p344
        $region66: #{tpu_custom_call.1} parent=11 // pred_check_branch
          %489 = sbr.rel (%p487) target = $region68
        $region67: #{tpu_custom_call.1} parent=11 // pred_region
          _
        $region68: #{tpu_custom_call.1} parent=11 // pred_fallthru
          _
        // Predicated region
        $region69: #{tpu_custom_call.1} parent=11 // pred_check
          %p490 = pneg %p365
        $region70: #{tpu_custom_call.1} parent=11 // pred_check_branch
          %492 = sbr.rel (%p490) target = $region72
        $region71: #{tpu_custom_call.1} parent=11 // pred_region
          _
        $region72: #{tpu_custom_call.1} parent=11 // pred_fallthru
          _
        // Predicated region
        $region73: #{tpu_custom_call.1} parent=11 // pred_check
          %p493 = pneg %p386
        $region74: #{tpu_custom_call.1} parent=11 // pred_check_branch
          %495 = sbr.rel (%p493) target = $region76
        $region75: #{tpu_custom_call.1} parent=11 // pred_region
          _
        $region76: #{tpu_custom_call.1} parent=11 // pred_fallthru
          _
        // Predicated region
        $region77: #{tpu_custom_call.1} parent=11 // pred_check
          %p496 = pneg %p407
        $region78: #{tpu_custom_call.1} parent=11 // pred_check_branch
          %498 = sbr.rel (%p496) target = $region80
        $region79: #{tpu_custom_call.1} parent=11 // pred_region
          _
        $region80: #{tpu_custom_call.1} parent=11 // pred_fallthru
          _
      $region12: #{tpu_custom_call.1} parent=5 // pred_fallthru
        _
      %p499 = scmp.lt.s32.totalorder %s24, 2
      // Predicated region
      $region81: #{tpu_custom_call.1} parent=5 // pred_check
        %p500 = pneg %p499
      $region82: #{tpu_custom_call.1} parent=5 // pred_check_branch
        %502 = sbr.rel (%p500) target = $region84
      $region83: #{tpu_custom_call.1} parent=5 // pred_region
        // Predicated region
        $region85: #{tpu_custom_call.1} parent=83 // pred_check
          %p503 = pneg %p44
        $region86: #{tpu_custom_call.1} parent=83 // pred_check_branch
          %505 = sbr.rel (%p503) target = $region88
        $region87: #{tpu_custom_call.1} parent=83 // pred_region
          %s506 = smul.u32 2, %s24
          %s507 = ssub.s32 3, %s506
          %p508 = scmp.lt.s32.totalorder %s507, 2
          %s509 = scalar_select %p508, %s507, 2
          %s510 = smul.u32 8, %s509
          %s511 = smul.u32 %s510, 2
          %p512 = scmp.lt.s32.totalorder %s506, 2
          %s513 = scalar_select %p512, %s506, 2
          %s514 = smul.addr %s513, 2
          %s515 = smul.addr %s514, 8
          %s516 = scalar_lea.vmem %s0, %s515
          %s517 = smul.u32 2, %s24
          %s518 = ssub.s32 3, %s517
          %p519 = scmp.lt.s32.totalorder %s518, 2
          %s520 = scalar_select %p519, %s518, 2
          %s521 = smul.u32 8, %s520
          %s522 = smul.u32 %s521, 2
        $region88: #{tpu_custom_call.1} parent=83 // pred_fallthru
          _
      $region84: #{tpu_custom_call.1} parent=5 // pred_fallthru
        _
      %p523 = scmp.le.s32.totalorder 1, %s24
      %p524 = scmp.lt.s32.totalorder %s24, 3
      %p525 = pnand %p523, %p524
      %p526 = pneg %p525
      // Predicated region
      $region89: #{tpu_custom_call.1} parent=5 // pred_check
        _
      $region90: #{tpu_custom_call.1} parent=5 // pred_check_branch
        %528 = sbr.rel (%p525) target = $region92
      $region91: #{tpu_custom_call.1} parent=5 // pred_region
        %s529 = ssub.s32 %s24, 1
        %s530 = smul.u32 2, %s29
        %s531 = ssub.s32 3, %s530
        %p532 = scmp.lt.s32.totalorder %s531, 2
        %s533 = scalar_select %p532, %s531, 2
        %s534 = smul.u32 8, %s533
        %s535 = smul.u32 %s534, 2
        %p536 = scmp.lt.s32.totalorder %s530, 2
        %s537 = scalar_select %p536, %s530, 2
        %s538 = smul.addr %s537, 2
        %s539 = smul.addr %s538, 8
        %s540 = scalar_lea.vmem %s0, %s539
        %p541 = pneg %p50
        %p542 = pneg %p47
        %p543 = pneg %p71
        %p544 = pneg %p68
        %p545 = pneg %p92
        %p546 = pneg %p89
        %p547 = pneg %p113
        %p548 = pneg %p110
        %p549 = pneg %p134
        %p550 = pneg %p131
        %p551 = pneg %p155
        %p552 = pneg %p152
        %p553 = pneg %p176
        %p554 = pneg %p173
        %p555 = pneg %p197
        %p556 = pneg %p194
        %p557 = pneg %p218
        %p558 = pneg %p215
        %p559 = pneg %p239
        %p560 = pneg %p236
        %p561 = pneg %p260
        %p562 = pneg %p257
        %p563 = pneg %p281
        %p564 = pneg %p278
        %p565 = pneg %p302
        %p566 = pneg %p299
        %p567 = pneg %p323
        %p568 = pneg %p320
        %p569 = pneg %p344
        %p570 = pneg %p341
        %p571 = pneg %p365
        %p572 = pneg %p362
        %p573 = pneg %p386
        %p574 = pneg %p383
        %p575 = pneg %p407
        %p576 = pneg %p404
        %p577 = pneg %p433
        %p578 = pneg %p430
        %s579 = sand.u32 %s420, 1
        %s580 = sand.u32 %s420, 1
        %s581 = smul.addr %s580, 32
        %s582 = scalar_lea.vmem [#allocation2], %s581
        %s583 = smul.u32 2, %s29
        %s584 = ssub.s32 3, %s583
        %p585 = scmp.lt.s32.totalorder %s584, 2
        %s586 = scalar_select %p585, %s584, 2
        %s587 = smul.u32 8, %s586
        %s588 = smul.u32 %s587, 2
        %p589 = scmp.lt.s32.totalorder %s583, 2
        %s590 = scalar_select %p589, %s583, 2
        %s591 = smul.addr %s590, 2
        %s592 = smul.addr %s591, 8
        %s593 = scalar_lea.vmem %s0, %s592
        %s594 = smul.u32 2, %s29
        %s595 = ssub.s32 3, %s594
        %p596 = scmp.lt.s32.totalorder %s595, 2
        %s597 = scalar_select %p596, %s595, 2
        %s598 = smul.u32 8, %s597
        %s599 = smul.u32 %s598, 2
        %s600 = smul.u32 2, %s29
        %s601 = ssub.s32 3, %s600
        %p602 = scmp.lt.s32.totalorder %s601, 2
        %s603 = scalar_select %p602, %s601, 2
        %s604 = smul.u32 8, %s603
        %s605 = smul.u32 %s604, 2
        %v607 = vld [vmem:[%s593] sm:$0xff]
        %v608 = vld [vmem:[%s593 + $0x8] sm:$0xff]
        %v609 = vld [vmem:[%s593 + $0x10] sm:$0xff]
        %v610 = vld [vmem:[%s593 + $0x18] sm:$0xff]
        %v611 = vlaneseq
        %v612 = vshrl.u32 %v611, 7
        %v613 = vadd.s32 %v612, 8
        %v614 = vadd.s32 %v612, 16
        %v615 = vadd.s32 %v612, 24
        %v616 = vlaneseq
        %v617 = vand.u32 %v616, 127
        %v618 = vmul.u32 %v617, 16
        %v619 = vsub.s32 %v612, %v618
        %v620 = vsub.s32 %v613, %v618
        %v621 = vsub.s32 %v614, %v618
        %v622 = vsub.s32 %v615, %v618
        %v623 = vmul.u32 %v612, 16
        %v624 = vsub.s32 %v617, %v623
        %vm625 = vcmp.eq.s32.totalorder %v619, 0
        %vm626 = vcmp.eq.s32.totalorder %v620, 0
        %vm627 = vcmp.eq.s32.totalorder %v621, 0
        %vm628 = vcmp.eq.s32.totalorder %v622, 0
        %v629 = vsel %vm625, 1, 0
        %v630 = vsel %vm626, 1, 0
        %v631 = vsel %vm627, 1, 0
        %v632 = vsel %vm628, 1, 0
        %v633 = vcvt.s32.f32 %v629
        %v634 = vcvt.s32.f32 %v630
        %v635 = vcvt.s32.f32 %v631
        %v636 = vcvt.s32.f32 %v632
        %vm637 = vcmp.ge.s32.totalorder %v619, 0
        %vm638 = vcmp.ge.s32.totalorder %v620, 0
        %vm639 = vcmp.ge.s32.totalorder %v621, 0
        %vm640 = vcmp.ge.s32.totalorder %v622, 0
        %vm641 = vcmp.lt.s32.totalorder %v619, 16
        %vm642 = vcmp.lt.s32.totalorder %v620, 16
        %vm643 = vcmp.lt.s32.totalorder %v621, 16
        %vm644 = vcmp.lt.s32.totalorder %v622, 16
        %vm645 = vmand %vm637, %vm641
        %vm646 = vmand %vm638, %vm642
        %vm647 = vmand %vm639, %vm643
        %vm648 = vmand %vm640, %vm644
        %v649 = vsel %vm645, 1, 0
        %v650 = vsel %vm646, 1, 0
        %v651 = vsel %vm647, 1, 0
        %v652 = vsel %vm648, 1, 0
        %v653 = vcvt.s32.f32 %v649
        %v654 = vcvt.s32.f32 %v650
        %v655 = vcvt.s32.f32 %v651
        %v656 = vcvt.s32.f32 %v652
        %vm657 = vcmp.eq.s32.totalorder %v624, 0
        %v658 = vsel %vm657, 1, 0
        %v659 = vcvt.s32.f32 %v658
        %vm660 = vcmp.ge.s32.totalorder %v624, 0
        %vm661 = vcmp.lt.s32.totalorder %v624, 16
        %vm662 = vmand %vm660, %vm661
        %v663 = vsel %vm662, 1, 0
        %v664 = vcvt.s32.f32 %v663
        %s665 = smul.u32 %s29, 2
        %s666 = ssub.s32 3, %s665
        %vm667 = vcmp.lt.s32.totalorder %v619, 10
        %vm668 = vcmp.lt.s32.totalorder %v620, 10
        %vm669 = vcmp.lt.s32.totalorder %v621, 10
        %vm670 = vcmp.lt.s32.totalorder %v622, 10
        %vm671 = vmand %vm637, %vm667
        %vm672 = vmand %vm638, %vm668
        %vm673 = vmand %vm639, %vm669
        %vm674 = vmand %vm640, %vm670
        %v675 = vstv %s666
        %vm676 = vcmp.lt.s32.totalorder %v617, %v675
        %vm677 = vmand %vm671, %vm676
        %vm678 = vmand %vm672, %vm676
        %vm679 = vmand %vm673, %vm676
        %vm680 = vmand %vm674, %vm676
        %v681 = vsel %vm677, 1, 0
        %v682 = vsel %vm678, 1, 0
        %v683 = vsel %vm679, 1, 0
        %v684 = vsel %vm680, 1, 0
        %v685 = vcvt.s32.f32 %v681
        %v686 = vcvt.s32.f32 %v682
        %v687 = vcvt.s32.f32 %v683
        %v688 = vcvt.s32.f32 %v684
        %vm689 = vcmask 15360
        %v690 = vsel %vm689, %v685, 0.0
        %691 = vadd.xlane.f32.xlu0 %v690
        %v692 = vpop.xlane.xlu0 %691
        %v693 = vsel %vm689, %v686, 0.0
        %694 = vadd.xlane.f32.xlu0 %v693
        %v695 = vpop.xlane.xlu0 %694
        %v696 = vsel %vm689, %v687, 0.0
        %697 = vadd.xlane.f32.xlu0 %v696
        %v698 = vpop.xlane.xlu0 %697
        %v699 = vsel %vm689, %v688, 0.0
        %700 = vadd.xlane.f32.xlu0 %v699
        %v701 = vpop.xlane.xlu0 %700
        %vm702 = vcmp.gt.f32.partialorder %v692, 0.5
        %vm703 = vcmp.gt.f32.partialorder %v695, 0.5
        %vm704 = vcmp.gt.f32.partialorder %v698, 0.5
        %vm705 = vcmp.gt.f32.partialorder %v701, 0.5
        %v706 = vsel %vm702, 1, 0
        %v707 = vsel %vm703, 1, 0
        %v708 = vsel %vm704, 1, 0
        %v709 = vsel %vm705, 1, 0
        %vm710 = vcmp.eq.s32.totalorder %v706, 1
        %vm711 = vcmp.eq.s32.totalorder %v707, 1
        %vm712 = vcmp.eq.s32.totalorder %v708, 1
        %vm713 = vcmp.eq.s32.totalorder %v709, 1
        %v714 = vsel %vm710, %v607, 0.0
        %v715 = vsel %vm711, %v608, 0.0
        %v716 = vsel %vm712, %v609, 0.0
        %v717 = vsel %vm713, %v610, 0.0
        %v718 = vld [vmem:[%s3] sm:$0x1]
        %v719 = vld [vmem:[%s4] sm:$0x1]
        %vm720 = vcmask 261120
        %v721 = vsel %vm720, %v714, 0.0
        %722 = vadd.xlane.f32.xlu0 %v721
        %v723 = vpop.xlane.xlu0 %722
        %v724 = vsel %vm720, %v715, 0.0
        %725 = vadd.xlane.f32.xlu0 %v724
        %v726 = vpop.xlane.xlu0 %725
        %v727 = vsel %vm720, %v716, 0.0
        %728 = vadd.xlane.f32.xlu0 %v727
        %v729 = vpop.xlane.xlu0 %728
        %v730 = vsel %vm720, %v717, 0.0
        %731 = vadd.xlane.f32.xlu0 %v730
        %v732 = vpop.xlane.xlu0 %731
        %v733 = vrcp.pop 32.0
        %v734 = vmul.f32 32.0, %v733
        %v735 = vsub.f32 1.0, %v734
        %v736 = vmul.f32 %v733, %v735
        %v737 = vadd.f32 %v733, %v736
        %vm738 = vweird.f32 %v733
        %v739 = vsel %vm738, %v733, %v737
        %v740 = vmul.f32 %v723, %v739
        %v741 = vmul.f32 %v726, %v739
        %v742 = vmul.f32 %v729, %v739
        %v743 = vmul.f32 %v732, %v739
        %v744 = vsub.f32 %v714, %v740
        %v745 = vsub.f32 %v715, %v741
        %v746 = vsub.f32 %v716, %v742
        %v747 = vsub.f32 %v717, %v743
        %v748 = vmul.f32 %v744, %v744
        %v749 = vmul.f32 %v745, %v745
        %v750 = vmul.f32 %v746, %v746
        %v751 = vmul.f32 %v747, %v747
        %v752 = vsel %vm720, %v748, 0.0
        %753 = vadd.xlane.f32.xlu0 %v752
        %v754 = vpop.xlane.xlu0 %753
        %v755 = vsel %vm720, %v749, 0.0
        %756 = vadd.xlane.f32.xlu0 %v755
        %v757 = vpop.xlane.xlu0 %756
        %v758 = vsel %vm720, %v750, 0.0
        %759 = vadd.xlane.f32.xlu0 %v758
        %v760 = vpop.xlane.xlu0 %759
        %v761 = vsel %vm720, %v751, 0.0
        %762 = vadd.xlane.f32.xlu0 %v761
        %v763 = vpop.xlane.xlu0 %762
        %v764 = vmul.f32 %v754, %v739
        %v765 = vmul.f32 %v757, %v739
        %v766 = vmul.f32 %v760, %v739
        %v767 = vmul.f32 %v763, %v739
        %v768 = vadd.f32 %v764, 1e-05
        %v769 = vadd.f32 %v765, 1e-05
        %v770 = vadd.f32 %v766, 1e-05
        %v771 = vadd.f32 %v767, 1e-05
        %v772 = vrsqrt.pop %v768
        %v773 = vmul.f32 %v772, %v768
        %v774 = vmul.f32 %v773, %v772
        %v775 = vmul.f32 0.5, %v774
        %v776 = vsub.f32 1.5, %v775
        %v777 = vmul.f32 %v772, %v776
        %vm778 = vweird.f32 %v768
        %vm779 = vweird.f32 %v772
        %vm780 = vmor %vm778, %vm779
        %v781 = vsel %vm780, %v772, %v777
        %v782 = vrsqrt.pop %v769
        %v783 = vmul.f32 %v782, %v769
        %v784 = vmul.f32 %v783, %v782
        %v785 = vmul.f32 0.5, %v784
        %v786 = vsub.f32 1.5, %v785
        %v787 = vmul.f32 %v782, %v786
        %vm788 = vweird.f32 %v769
        %vm789 = vweird.f32 %v782
        %vm790 = vmor %vm788, %vm789
        %v791 = vsel %vm790, %v782, %v787
        %v792 = vrsqrt.pop %v770
        %v793 = vmul.f32 %v792, %v770
        %v794 = vmul.f32 %v793, %v792
        %v795 = vmul.f32 0.5, %v794
        %v796 = vsub.f32 1.5, %v795
        %v797 = vmul.f32 %v792, %v796
        %vm798 = vweird.f32 %v770
        %vm799 = vweird.f32 %v792
        %vm800 = vmor %vm798, %vm799
        %v801 = vsel %vm800, %v792, %v797
        %v802 = vrsqrt.pop %v771
        %v803 = vmul.f32 %v802, %v771
        %v804 = vmul.f32 %v803, %v802
        %v805 = vmul.f32 0.5, %v804
        %v806 = vsub.f32 1.5, %v805
        %v807 = vmul.f32 %v802, %v806
        %vm808 = vweird.f32 %v771
        %vm809 = vweird.f32 %v802
        %vm810 = vmor %vm808, %vm809
        %v811 = vsel %vm810, %v802, %v807
        %v812 = vmul.f32 %v744, %v781
        %v813 = vmul.f32 %v745, %v791
        %v814 = vmul.f32 %v746, %v801
        %v815 = vmul.f32 %v747, %v811
        %v817 = vperm.slane %v718, 0
        %v819 = vmul.f32 %v812, %v817
        %v820 = vmul.f32 %v813, %v817
        %v821 = vmul.f32 %v814, %v817
        %v822 = vmul.f32 %v815, %v817
        %v824 = vperm.slane %v719, 0
        %v826 = vadd.f32 %v819, %v824
        %v827 = vadd.f32 %v820, %v824
        %v828 = vadd.f32 %v821, %v824
        %v829 = vadd.f32 %v822, %v824
        %v830 = vpack.c.bf16 %v827, %v826
        %v831 = vpack.c.bf16 %v829, %v828
        %v832 = vld [vmem:[%s6] sm:$0xf]
        %v833 = vld [vmem:[%s6 + $0x4] sm:$0xf]
        %v834 = vld [vmem:[%s6 + $0x8] sm:$0xf]
        %v835 = vld [vmem:[%s6 + $0xc] sm:$0xf]
        %v840 = vunpack.c.l.b16 %v832
        %v841 = vunpack.c.l.b16 %v833
        %v842 = vunpack.c.l.b16 %v834
        %v843 = vunpack.c.l.b16 %v835
        %v844 = vpack.c.b16 %v841, %v840
        %v845 = vpack.c.b16 %v843, %v842
        %v849 = vsel %vm720, %v830, 0
        %v852 = vsel %vm720, %v831, 0
        %854 = vmatpush.bf16.msra.mxu0 0
        %855 = vmatpush.bf16.msra.mxu0 0
        %856 = vmatpush.bf16.msra.mxu0 0
        %857 = vmatpush.bf16.msra.mxu0 0
        %858 = vmatpush.bf16.msra.mxu0 0
        %859 = vmatpush.bf16.msra.mxu0 0
        %860 = vmatpush.bf16.msra.mxu0 %v845
        %861 = vmatpush.bf16.msra.mxu0 %v844
        %862 = vmatmul.bf16.gmra.mxu0 %v849
        %v863 = vpop.f32.mrf.mxu0
        %v864 = vadd.f32 0.0, %v863
        %v865 = vpop.f32.mrf.mxu0
        %v866 = vadd.f32 0.0, %v865
        %867 = vmatmul.bf16.gmra.mxu0 %v852
        %v868 = vpop.f32.mrf.mxu0
        %v869 = vadd.f32 0.0, %v868
        %v870 = vpop.f32.mrf.mxu0
        %v871 = vadd.f32 0.0, %v870
        %872 = vdwg.mxu0
        %v873 = vld [vmem:[%s7] sm:$0xf]
        %v874 = vld [vmem:[%s7 + $0x4] sm:$0xf]
        %v875 = vld [vmem:[%s7 + $0x8] sm:$0xf]
        %v876 = vld [vmem:[%s7 + $0xc] sm:$0xf]
        %v881 = vunpack.c.l.b16 %v873
        %v882 = vunpack.c.l.b16 %v874
        %v883 = vunpack.c.l.b16 %v875
        %v884 = vunpack.c.l.b16 %v876
        %v885 = vpack.c.b16 %v882, %v881
        %v886 = vpack.c.b16 %v884, %v883
        %889 = vmatpush.bf16.msra.mxu0 0
        %890 = vmatpush.bf16.msra.mxu0 0
        %891 = vmatpush.bf16.msra.mxu0 0
        %892 = vmatpush.bf16.msra.mxu0 0
        %893 = vmatpush.bf16.msra.mxu0 0
        %894 = vmatpush.bf16.msra.mxu0 0
        %895 = vmatpush.bf16.msra.mxu0 %v886
        %896 = vmatpush.bf16.msra.mxu0 %v885
        %897 = vmatmul.bf16.gmra.mxu0 %v849
        %v898 = vpop.f32.mrf.mxu0
        %v899 = vadd.f32 0.0, %v898
        %v900 = vpop.f32.mrf.mxu0
        %v901 = vadd.f32 0.0, %v900
        %902 = vmatmul.bf16.gmra.mxu0 %v852
        %v903 = vpop.f32.mrf.mxu0
        %v904 = vadd.f32 0.0, %v903
        %v905 = vpop.f32.mrf.mxu0
        %v906 = vadd.f32 0.0, %v905
        %907 = vdwg.mxu0
        %v909 = vsel %vm720, %v659, 0
        %911 = vmatpush.msra.mxu0 0.0
        %912 = vmatpush.msra.mxu0 0.0
        %913 = vmatpush.msra.mxu0 0.0
        %914 = vmatpush.msra.mxu0 0.0
        %915 = vmatpush.msra.mxu0 0.0
        %916 = vmatpush.msra.mxu0 0.0
        %917 = vmatpush.msra.mxu0 0.0
        %918 = vmatpush.msra.mxu0 0.0
        %919 = vmatpush.msra.mxu0 0.0
        %920 = vmatpush.msra.mxu0 0.0
        %921 = vmatpush.msra.mxu0 0.0
        %922 = vmatpush.msra.mxu0 0.0
        %923 = vmatpush.msra.mxu0 %v717
        %924 = vmatpush.msra.mxu0 %v716
        %925 = vmatpush.msra.mxu0 %v715
        %926 = vmatpush.msra.mxu0 %v714
        %927 = vmatmul.f32.gmra.mxu0 %v909
        %v928 = vpop.f32.mrf.mxu0
        %v929 = vadd.f32 0.0, %v928
        %930 = vdwg.mxu0
        %vm931 = vcmask 254976
        %v932 = vsel %vm931, %v929, 0.0
        %933 = vadd.xlane.f32.xlu0 %v932
        %v934 = vpop.xlane.xlu0 %933
        %v935 = vmul.f32 %v934, %v739
        %v936 = vsub.f32 %v929, %v935
        %v937 = vmul.f32 %v936, %v936
        %v938 = vsel %vm931, %v937, 0.0
        %939 = vadd.xlane.f32.xlu0 %v938
        %v940 = vpop.xlane.xlu0 %939
        %v941 = vmul.f32 %v940, %v739
        %v942 = vadd.f32 %v941, 1e-05
        %v943 = vrsqrt.pop %v942
        %v944 = vmul.f32 %v943, %v942
        %v945 = vmul.f32 %v944, %v943
        %v946 = vmul.f32 0.5, %v945
        %v947 = vsub.f32 1.5, %v946
        %v948 = vmul.f32 %v943, %v947
        %vm949 = vweird.f32 %v942
        %vm950 = vweird.f32 %v943
        %vm951 = vmor %vm949, %vm950
        %v952 = vsel %vm951, %v943, %v948
        %v953 = vmul.f32 %v936, %v952
        %v954 = vmul.f32 %v953, %v817
        %v955 = vadd.f32 %v954, %v824
        %v956 = vpack.c.bf16 %v955, %v955
        %v957 = vld [vmem:[%s5] sm:$0xf]
        %v958 = vld [vmem:[%s5 + $0x4] sm:$0xf]
        %v959 = vld [vmem:[%s5 + $0x8] sm:$0xf]
        %v960 = vld [vmem:[%s5 + $0xc] sm:$0xf]
        %v965 = vunpack.c.l.b16 %v957
        %v966 = vunpack.c.l.b16 %v958
        %v967 = vunpack.c.l.b16 %v959
        %v968 = vunpack.c.l.b16 %v960
        %v969 = vpack.c.b16 %v966, %v965
        %v970 = vpack.c.b16 %v968, %v967
        %v974 = vsel %vm720, %v956, 0
        %976 = vmatpush.bf16.msra.mxu0 0
        %977 = vmatpush.bf16.msra.mxu0 0
        %978 = vmatpush.bf16.msra.mxu0 0
        %979 = vmatpush.bf16.msra.mxu0 0
        %980 = vmatpush.bf16.msra.mxu0 0
        %981 = vmatpush.bf16.msra.mxu0 0
        %982 = vmatpush.bf16.msra.mxu0 %v970
        %983 = vmatpush.bf16.msra.mxu0 %v969
        %984 = vmatmul.bf16.gmra.mxu0 %v974
        %v985 = vpop.f32.mrf.mxu0
        %v986 = vadd.f32 0.0, %v985
        %v987 = vpop.f32.mrf.mxu0
        %988 = vdwg.mxu0
        %v990 = vsel %vm689, %v653, 0
        %v993 = vsel %vm689, %v654, 0
        %v996 = vsel %vm689, %v655, 0
        %v999 = vsel %vm689, %v656, 0
        %vm1001 = vcmask 1041408
        %v1003 = vsel %vm1001, %v986, 0
        %1005 = vmatpush.msra.mxu0 0.0
        %1006 = vmatpush.msra.mxu0 0.0
        %1007 = vmatpush.msra.mxu0 0.0
        %1008 = vmatpush.msra.mxu0 0.0
        %1009 = vmatpush.msra.mxu0 0.0
        %1010 = vmatpush.msra.mxu0 0.0
        %1011 = vmatpush.msra.mxu0 0.0
        %1012 = vmatpush.msra.mxu0 0.0
        %1013 = vmatpush.msra.mxu0 0.0
        %1014 = vmatpush.msra.mxu0 0.0
        %1015 = vmatpush.msra.mxu0 0.0
        %1016 = vmatpush.msra.mxu0 0.0
        %1017 = vmatpush.msra.mxu0 0.0
        %1018 = vmatpush.msra.mxu0 0.0
        %1019 = vmatpush.msra.mxu0 0.0
        %1020 = vmatpush.msra.mxu0 %v1003
        %1021 = vmatmul.f32.gmra.mxu0 %v990
        %v1022 = vpop.f32.mrf.mxu0
        %v1023 = vadd.f32 0.0, %v1022
        %1024 = vmatmul.f32.gmra.mxu0 %v993
        %v1025 = vpop.f32.mrf.mxu0
        %v1026 = vadd.f32 0.0, %v1025
        %1027 = vmatmul.f32.gmra.mxu0 %v996
        %v1028 = vpop.f32.mrf.mxu0
        %v1029 = vadd.f32 0.0, %v1028
        %1030 = vmatmul.f32.gmra.mxu0 %v999
        %v1031 = vpop.f32.mrf.mxu0
        %v1032 = vadd.f32 0.0, %v1031
        %1033 = vdwg.mxu0
        %v1034 = vmul.f32 %v1023, %v864
        %v1035 = vmul.f32 %v1026, %v866
        %v1036 = vmul.f32 %v1029, %v869
        %v1037 = vmul.f32 %v1032, %v871
        %v1038 = vpack.c.bf16 %v1035, %v1034
        %v1039 = vpack.c.bf16 %v1037, %v1036
        %v1040 = vld [vmem:[%s1] sm:$0xf]
        %v1041 = vld [vmem:[%s1 + $0x4] sm:$0xf]
        %v1042 = vld [vmem:[%s1 + $0x8] sm:$0xf]
        %v1043 = vld [vmem:[%s1 + $0xc] sm:$0xf]
        %v1048 = vunpack.c.l.b16 %v1040
        %v1049 = vunpack.c.l.b16 %v1041
        %v1050 = vunpack.c.l.b16 %v1042
        %v1051 = vunpack.c.l.b16 %v1043
        %v1052 = vpack.c.b16 %v1049, %v1048
        %v1053 = vpack.c.b16 %v1051, %v1050
        %v1057 = vsel %vm720, %v1038, 0
        %v1060 = vsel %vm720, %v1039, 0
        %1062 = vmatpush.bf16.msra.mxu0 0
        %1063 = vmatpush.bf16.msra.mxu0 0
        %1064 = vmatpush.bf16.msra.mxu0 0
        %1065 = vmatpush.bf16.msra.mxu0 0
        %1066 = vmatpush.bf16.msra.mxu0 0
        %1067 = vmatpush.bf16.msra.mxu0 0
        %1068 = vmatpush.bf16.msra.mxu0 %v1053
        %1069 = vmatpush.bf16.msra.mxu0 %v1052
        %1070 = vmatmul.bf16.gmra.mxu0 %v1057
        %v1071 = vpop.f32.mrf.mxu0
        %v1072 = vadd.f32 0.0, %v1071
        %v1073 = vpop.f32.mrf.mxu0
        %v1074 = vadd.f32 0.0, %v1073
        %1075 = vmatmul.bf16.gmra.mxu0 %v1060
        %v1076 = vpop.f32.mrf.mxu0
        %v1077 = vadd.f32 0.0, %v1076
        %v1078 = vpop.f32.mrf.mxu0
        %v1079 = vadd.f32 0.0, %v1078
        %1080 = vdwg.mxu0
        %vm1081 = vcmp.lt.s32.totalorder %v612, 10
        %vm1082 = vcmp.lt.s32.totalorder %v613, 10
        %v1083 = vsel %vm1081, %v1072, -1e+30
        %v1084 = vsel %vm1082, %v1074, -1e+30
        %vm1085 = vcmask 31744
        %v1086 = vsel %vm1085, %v1083, -inf
        %v1087 = vsel %vm1085, %v1084, -inf
        %v1088 = vmax.f32 %v1086, %v1087
        %v1089 = vrot.slane %v1088, 4
        %v1090 = vmax.f32 %v1088, %v1089
        %v1091 = vrot.slane %v1090, 2
        %v1092 = vmax.f32 %v1090, %v1091
        %v1093 = vrot.slane %v1092, 1
        %v1094 = vmax.f32 %v1092, %v1093
        %v1095 = vsub.f32 %v1083, %v1094
        %v1096 = vsub.f32 %v1084, %v1094
        %v1097 = vmul.f32 %v1095, 1.442695
        %v1098 = vpow.pop %v1097
        %v1099 = vmul.f32 %v1096, 1.442695
        %v1100 = vpow.pop %v1099
        %v1101 = vsel %vm1085, %v1098, 0.0
        %v1102 = vsel %vm1085, %v1100, 0.0
        %v1103 = vadd.f32 %v1101, %v1102
        %v1104 = vrot.slane %v1103, 4
        %v1105 = vadd.f32 %v1103, %v1104
        %v1106 = vrot.slane %v1105, 2
        %v1107 = vadd.f32 %v1105, %v1106
        %v1108 = vrot.slane %v1107, 1
        %v1109 = vadd.f32 %v1107, %v1108
        %v1110 = vrcp.pop %v1109
        %v1111 = vmul.f32 %v1098, %v1110
        %v1112 = vmul.f32 %v1100, %v1110
        %v1113 = vsel %vm1081, %v1077, -1e+30
        %v1114 = vsel %vm1082, %v1079, -1e+30
        %v1115 = vsel %vm1085, %v1113, -inf
        %v1116 = vsel %vm1085, %v1114, -inf
        %v1117 = vmax.f32 %v1115, %v1116
        %v1118 = vrot.slane %v1117, 4
        %v1119 = vmax.f32 %v1117, %v1118
        %v1120 = vrot.slane %v1119, 2
        %v1121 = vmax.f32 %v1119, %v1120
        %v1122 = vrot.slane %v1121, 1
        %v1123 = vmax.f32 %v1121, %v1122
        %v1124 = vsub.f32 %v1113, %v1123
        %v1125 = vsub.f32 %v1114, %v1123
        %v1126 = vmul.f32 %v1124, 1.442695
        %v1127 = vpow.pop %v1126
        %v1128 = vmul.f32 %v1125, 1.442695
        %v1129 = vpow.pop %v1128
        %v1130 = vsel %vm1085, %v1127, 0.0
        %v1131 = vsel %vm1085, %v1129, 0.0
        %v1132 = vadd.f32 %v1130, %v1131
        %v1133 = vrot.slane %v1132, 4
        %v1134 = vadd.f32 %v1132, %v1133
        %v1135 = vrot.slane %v1134, 2
        %v1136 = vadd.f32 %v1134, %v1135
        %v1137 = vrot.slane %v1136, 1
        %v1138 = vadd.f32 %v1136, %v1137
        %v1139 = vrcp.pop %v1138
        %v1140 = vmul.f32 %v1127, %v1139
        %v1141 = vmul.f32 %v1129, %v1139
        %v1142 = vpack.c.bf16 %v1112, %v1111
        %v1143 = vpack.c.bf16 %v1141, %v1140
        %v1144 = vld [vmem:[%s2] sm:$0x3]
        %v1146 = vsel %vm1085, %v1142, 0
        %v1149 = vsel %vm1085, %v1143, 0
        %v1152 = vsel %vm1001, %v1144, 0
        %1154 = vmatpush.bf16.msra.mxu0 0
        %1155 = vmatpush.bf16.msra.mxu0 0
        %1156 = vmatpush.bf16.msra.mxu0 0
        %1157 = vmatpush.bf16.msra.mxu0 0
        %1158 = vmatpush.bf16.msra.mxu0 0
        %1159 = vmatpush.bf16.msra.mxu0 0
        %1160 = vmatpush.bf16.msra.mxu0 0
        %1161 = vmatpush.bf16.msra.mxu0 %v1152
        %1162 = vmatmul.bf16.gmra.mxu0 %v1146
        %v1163 = vpop.f32.mrf.mxu0
        %v1164 = vadd.f32 0.0, %v1163
        %v1165 = vpop.f32.mrf.mxu0
        %v1166 = vadd.f32 0.0, %v1165
        %1167 = vmatmul.bf16.gmra.mxu0 %v1149
        %v1168 = vpop.f32.mrf.mxu0
        %v1169 = vadd.f32 0.0, %v1168
        %v1170 = vpop.f32.mrf.mxu0
        %v1171 = vadd.f32 0.0, %v1170
        %1172 = vdwg.mxu0
        %v1173 = vmul.f32 %v1164, %v899
        %v1174 = vmul.f32 %v1166, %v901
        %v1175 = vmul.f32 %v1169, %v904
        %v1176 = vmul.f32 %v1171, %v906
        %v1178 = vsel %vm720, %v664, 0
        %1180 = vmatpush.msra.mxu0 0.0
        %1181 = vmatpush.msra.mxu0 0.0
        %1182 = vmatpush.msra.mxu0 0.0
        %1183 = vmatpush.msra.mxu0 0.0
        %1184 = vmatpush.msra.mxu0 0.0
        %1185 = vmatpush.msra.mxu0 0.0
        %1186 = vmatpush.msra.mxu0 0.0
        %1187 = vmatpush.msra.mxu0 0.0
        %1188 = vmatpush.msra.mxu0 0.0
        %1189 = vmatpush.msra.mxu0 0.0
        %1190 = vmatpush.msra.mxu0 0.0
        %1191 = vmatpush.msra.mxu0 0.0
        %1192 = vmatpush.msra.mxu0 %v1176
        %1193 = vmatpush.msra.mxu0 %v1175
        %1194 = vmatpush.msra.mxu0 %v1174
        %1195 = vmatpush.msra.mxu0 %v1173
        %1196 = vmatmul.f32.gmra.mxu0 %v1178
        %v1197 = vpop.f32.mrf.mxu0
        %v1198 = vadd.f32 0.0, %v1197
        %1199 = vdwg.mxu0
        %v1200 = vpack.c.bf16 %v1198, %v1198
        %v1201 = vld [vmem:[%s8] sm:$0xf]
        %v1202 = vld [vmem:[%s8 + $0x4] sm:$0xf]
        %v1203 = vld [vmem:[%s8 + $0x8] sm:$0xf]
        %v1204 = vld [vmem:[%s8 + $0xc] sm:$0xf]
        %v1205 = vld [vmem:[%s9] sm:$0x1]
        %v1207 = vperm.slane %v1205, 0
        %v1213 = vunpack.c.l.b16 %v1201
        %v1214 = vunpack.c.l.b16 %v1202
        %v1215 = vunpack.c.l.b16 %v1203
        %v1216 = vunpack.c.l.b16 %v1204
        %v1217 = vpack.c.b16 %v1214, %v1213
        %v1218 = vpack.c.b16 %v1216, %v1215
        %v1222 = vsel %vm720, %v1200, 0
        %1224 = vmatpush.bf16.msra.mxu0 0
        %1225 = vmatpush.bf16.msra.mxu0 0
        %1226 = vmatpush.bf16.msra.mxu0 0
        %1227 = vmatpush.bf16.msra.mxu0 0
        %1228 = vmatpush.bf16.msra.mxu0 0
        %1229 = vmatpush.bf16.msra.mxu0 0
        %1230 = vmatpush.bf16.msra.mxu0 %v1218
        %1231 = vmatpush.bf16.msra.mxu0 %v1217
        %1232 = vmatmul.bf16.gmra.mxu0 %v1222
        %v1233 = vpop.f32.mrf.mxu0
        %v1234 = vadd.f32 %v1207, %v1233
        %v1235 = vpop.f32.mrf.mxu0
        %1236 = vdwg.mxu0
        %v1237 = vld [vmem:[%s16] sm:$0x1]
        %v1239 = vperm.slane %v1237, 0
        %v1241 = vmul.f32 %v1239, %v826
        %v1242 = vmul.f32 %v1239, %v827
        %v1243 = vmul.f32 %v1239, %v828
        %v1244 = vmul.f32 %v1239, %v829
        %v1245 = vadd.f32 %v714, %v1241
        %v1246 = vadd.f32 %v715, %v1242
        %v1247 = vadd.f32 %v716, %v1243
        %v1248 = vadd.f32 %v717, %v1244
        %v1249 = vmul.f32 %v1239, %v1234
        %v1250 = vadd.f32 %v929, %v1249
        %v1251 = vld [vmem:[%s10] sm:$0x1]
        %v1252 = vld [vmem:[%s11] sm:$0x1]
        %v1253 = vsel %vm931, %v1250, 0.0
        %1254 = vadd.xlane.f32.xlu0 %v1253
        %v1255 = vpop.xlane.xlu0 %1254
        %v1256 = vmul.f32 %v1255, %v739
        %v1257 = vsub.f32 %v1250, %v1256
        %v1258 = vmul.f32 %v1257, %v1257
        %v1259 = vsel %vm931, %v1258, 0.0
        %1260 = vadd.xlane.f32.xlu0 %v1259
        %v1261 = vpop.xlane.xlu0 %1260
        %v1262 = vmul.f32 %v1261, %v739
        %v1263 = vadd.f32 %v1262, 1e-05
        %v1264 = vrsqrt.pop %v1263
        %v1265 = vmul.f32 %v1264, %v1263
        %v1266 = vmul.f32 %v1265, %v1264
        %v1267 = vmul.f32 0.5, %v1266
        %v1268 = vsub.f32 1.5, %v1267
        %v1269 = vmul.f32 %v1264, %v1268
        %vm1270 = vweird.f32 %v1263
        %vm1271 = vweird.f32 %v1264
        %vm1272 = vmor %vm1270, %vm1271
        %v1273 = vsel %vm1272, %v1264, %v1269
        %v1274 = vmul.f32 %v1257, %v1273
        %v1276 = vperm.slane %v1251, 0
        %v1278 = vmul.f32 %v1274, %v1276
        %v1280 = vperm.slane %v1252, 0
        %v1282 = vadd.f32 %v1278, %v1280
        %v1283 = vpack.c.bf16 %v1282, %v1282
        %v1284 = vld [vmem:[%s12] sm:$0xf]
        %v1285 = vld [vmem:[%s12 + $0x4] sm:$0xf]
        %v1286 = vld [vmem:[%s12 + $0x8] sm:$0xf]
        %v1287 = vld [vmem:[%s12 + $0xc] sm:$0xf]
        %v1288 = vld [vmem:[%s13] sm:$0x1]
        %v1290 = vperm.slane %v1288, 0
        %v1296 = vunpack.c.l.b16 %v1284
        %v1297 = vunpack.c.l.b16 %v1285
        %v1298 = vunpack.c.l.b16 %v1286
        %v1299 = vunpack.c.l.b16 %v1287
        %v1300 = vpack.c.b16 %v1297, %v1296
        %v1301 = vpack.c.b16 %v1299, %v1298
        %v1305 = vsel %vm720, %v1283, 0
        %1307 = vmatpush.bf16.msra.mxu0 0
        %1308 = vmatpush.bf16.msra.mxu0 0
        %1309 = vmatpush.bf16.msra.mxu0 0
        %1310 = vmatpush.bf16.msra.mxu0 0
        %1311 = vmatpush.bf16.msra.mxu0 0
        %1312 = vmatpush.bf16.msra.mxu0 0
        %1313 = vmatpush.bf16.msra.mxu0 %v1301
        %1314 = vmatpush.bf16.msra.mxu0 %v1300
        %1315 = vmatmul.bf16.gmra.mxu0 %v1305
        %v1316 = vpop.f32.mrf.mxu0
        %v1317 = vadd.f32 %v1290, %v1316
        %v1318 = vpop.f32.mrf.mxu0
        %1319 = vdwg.mxu0
        %v1320 = vmul.f32 %v1317, 0.5
        %v1321 = vmul.f32 %v1317, 0.70710677
        %v1322 = vmul.f32 %v1321, %v1321
        %v1323 = vmin.f32 16.0, %v1322
        %v1324 = vmul.f32 %v1323, 2.1237322e-06
        %v1325 = vadd.f32 %v1324, 0.00028619796
        %v1326 = vmul.f32 %v1323, %v1325
        %v1327 = vadd.f32 %v1326, 0.0036580483
        %v1328 = vmul.f32 %v1323, %v1327
        %v1329 = vadd.f32 %v1328, 0.05243302
        %v1330 = vmul.f32 %v1323, %v1329
        %v1331 = vadd.f32 %v1330, 0.18741608
        %v1332 = vmul.f32 %v1323, %v1331
        %v1333 = vadd.f32 %v1332, 1.1283791
        %v1334 = vmul.f32 %v1321, %v1333
        %v1335 = vmul.f32 %v1323, 3.8918573e-05
        %v1336 = vadd.f32 %v1335, 0.001143296
        %v1337 = vmul.f32 %v1323, %v1336
        %v1338 = vadd.f32 %v1337, 0.014752088
        %v1339 = vmul.f32 %v1323, %v1338
        %v1340 = vadd.f32 %v1339, 0.112945676
        %v1341 = vmul.f32 %v1323, %v1340
        %v1342 = vadd.f32 %v1341, 0.4994258
        %v1343 = vmul.f32 %v1323, %v1342
        %v1344 = vadd.f32 %v1343, 1.0
        %v1345 = vrcp.pop %v1344
        %v1346 = vmul.f32 %v1344, %v1345
        %v1347 = vsub.f32 1.0, %v1346
        %v1348 = vmul.f32 %v1345, %v1347
        %v1349 = vadd.f32 %v1345, %v1348
        %vm1350 = vweird.f32 %v1344
        %vm1351 = vweird.f32 %v1345
        %vm1352 = vmor %vm1350, %vm1351
        %v1353 = vsel %vm1352, %v1345, %v1349
        %v1354 = vand.u32 2147483647, %v1344
        %vm1355 = vcmp.eq.f32.partialorder %v1354, 8.507059e+37
        %v1356 = vand.u32 %v1344, 2147483648
        %v1357 = vor.u32 1.1754944e-38, %v1356
        %v1358 = vsel %vm1355, %v1357, %v1353
        %v1359 = vmul.f32 %v1334, %v1358
        %v1360 = vmin.f32 %v1359, 1.0
        %v1361 = vmax.f32 %v1360, -1.0
        %v1362 = vadd.f32 %v1361, 1.0
        %v1363 = vmul.f32 %v1320, %v1362
        %v1364 = vpack.c.bf16 %v1363, %v1363
        %v1365 = vld [vmem:[%s14] sm:$0xf]
        %v1366 = vld [vmem:[%s14 + $0x4] sm:$0xf]
        %v1367 = vld [vmem:[%s14 + $0x8] sm:$0xf]
        %v1368 = vld [vmem:[%s14 + $0xc] sm:$0xf]
        %v1369 = vld [vmem:[%s14 + $0x10] sm:$0xf]
        %v1370 = vld [vmem:[%s14 + $0x14] sm:$0xf]
        %v1371 = vld [vmem:[%s14 + $0x18] sm:$0xf]
        %v1372 = vld [vmem:[%s14 + $0x1c] sm:$0xf]
        %v1373 = vld [vmem:[%s14 + $0x20] sm:$0xf]
        %v1374 = vld [vmem:[%s14 + $0x24] sm:$0xf]
        %v1375 = vld [vmem:[%s14 + $0x28] sm:$0xf]
        %v1376 = vld [vmem:[%s14 + $0x2c] sm:$0xf]
        %v1377 = vld [vmem:[%s14 + $0x30] sm:$0xf]
        %v1378 = vld [vmem:[%s14 + $0x34] sm:$0xf]
        %v1379 = vld [vmem:[%s14 + $0x38] sm:$0xf]
        %v1380 = vld [vmem:[%s14 + $0x3c] sm:$0xf]
        %v1381 = vld [vmem:[%s15] sm:$0x1]
        %v1383 = vperm.slane %v1381, 0
        %v1401 = vunpack.c.l.b16 %v1365
        %v1402 = vunpack.c.l.b16 %v1366
        %v1403 = vunpack.c.l.b16 %v1367
        %v1404 = vunpack.c.l.b16 %v1368
        %v1405 = vunpack.c.l.b16 %v1369
        %v1406 = vunpack.c.l.b16 %v1370
        %v1407 = vunpack.c.l.b16 %v1371
        %v1408 = vunpack.c.l.b16 %v1372
        %v1409 = vunpack.c.l.b16 %v1373
        %v1410 = vunpack.c.l.b16 %v1374
        %v1411 = vunpack.c.l.b16 %v1375
        %v1412 = vunpack.c.l.b16 %v1376
        %v1413 = vunpack.c.l.b16 %v1377
        %v1414 = vunpack.c.l.b16 %v1378
        %v1415 = vunpack.c.l.b16 %v1379
        %v1416 = vunpack.c.l.b16 %v1380
        %v1417 = vpack.c.b16 %v1402, %v1401
        %v1418 = vpack.c.b16 %v1404, %v1403
        %v1419 = vpack.c.b16 %v1406, %v1405
        %v1420 = vpack.c.b16 %v1408, %v1407
        %v1421 = vpack.c.b16 %v1410, %v1409
        %v1422 = vpack.c.b16 %v1412, %v1411
        %v1423 = vpack.c.b16 %v1414, %v1413
        %v1424 = vpack.c.b16 %v1416, %v1415
        %1433 = vmatpush.bf16.msra.mxu0 %v1424
        %1434 = vmatpush.bf16.msra.mxu0 %v1423
        %1435 = vmatpush.bf16.msra.mxu0 %v1422
        %1436 = vmatpush.bf16.msra.mxu0 %v1421
        %1437 = vmatpush.bf16.msra.mxu0 %v1420
        %1438 = vmatpush.bf16.msra.mxu0 %v1419
        %1439 = vmatpush.bf16.msra.mxu0 %v1418
        %1440 = vmatpush.bf16.msra.mxu0 %v1417
        %1441 = vmatmul.bf16.gmra.mxu0 %v1364
        %v1442 = vpop.f32.mrf.mxu0
        %v1443 = vadd.f32 %v1383, %v1442
        %v1444 = vpop.f32.mrf.mxu0
        %1445 = vdwg.mxu0
        %v1446 = vld [vmem:[%s17] sm:$0x1]
        %v1448 = vperm.slane %v1446, 0
        %v1450 = vmul.f32 %v1448, %v1443
        %v1451 = vadd.f32 %v1282, %v1450
        %v1453 = vsel %vm689, %v633, 0
        %v1456 = vsel %vm689, %v634, 0
        %v1459 = vsel %vm689, %v635, 0
        %v1462 = vsel %vm689, %v636, 0
        %v1465 = vsel %vm1001, %v1451, 0
        %1467 = vmatpush.msra.mxu0 0.0
        %1468 = vmatpush.msra.mxu0 0.0
        %1469 = vmatpush.msra.mxu0 0.0
        %1470 = vmatpush.msra.mxu0 0.0
        %1471 = vmatpush.msra.mxu0 0.0
        %1472 = vmatpush.msra.mxu0 0.0
        %1473 = vmatpush.msra.mxu0 0.0
        %1474 = vmatpush.msra.mxu0 0.0
        %1475 = vmatpush.msra.mxu0 0.0
        %1476 = vmatpush.msra.mxu0 0.0
        %1477 = vmatpush.msra.mxu0 0.0
        %1478 = vmatpush.msra.mxu0 0.0
        %1479 = vmatpush.msra.mxu0 0.0
        %1480 = vmatpush.msra.mxu0 0.0
        %1481 = vmatpush.msra.mxu0 0.0
        %1482 = vmatpush.msra.mxu0 %v1465
        %1483 = vmatmul.f32.gmra.mxu0 %v1453
        %v1484 = vpop.f32.mrf.mxu0
        %v1485 = vadd.f32 0.0, %v1484
        %1486 = vmatmul.f32.gmra.mxu0 %v1456
        %v1487 = vpop.f32.mrf.mxu0
        %v1488 = vadd.f32 0.0, %v1487
        %1489 = vmatmul.f32.gmra.mxu0 %v1459
        %v1490 = vpop.f32.mrf.mxu0
        %v1491 = vadd.f32 0.0, %v1490
        %1492 = vmatmul.f32.gmra.mxu0 %v1462
        %v1493 = vpop.f32.mrf.mxu0
        %v1494 = vadd.f32 0.0, %v1493
        %1495 = vdwg.mxu0
        %v1496 = vsel %vm689, %v633, 0.0
        %1497 = vadd.xlane.f32.xlu0 %v1496
        %v1498 = vpop.xlane.xlu0 %1497
        %v1499 = vsel %vm689, %v634, 0.0
        %1500 = vadd.xlane.f32.xlu0 %v1499
        %v1501 = vpop.xlane.xlu0 %1500
        %v1502 = vsel %vm689, %v635, 0.0
        %1503 = vadd.xlane.f32.xlu0 %v1502
        %v1504 = vpop.xlane.xlu0 %1503
        %v1505 = vsel %vm689, %v636, 0.0
        %1506 = vadd.xlane.f32.xlu0 %v1505
        %v1507 = vpop.xlane.xlu0 %1506
        %vm1508 = vcmp.gt.f32.partialorder %v1498, 0.5
        %vm1509 = vcmp.gt.f32.partialorder %v1501, 0.5
        %vm1510 = vcmp.gt.f32.partialorder %v1504, 0.5
        %vm1511 = vcmp.gt.f32.partialorder %v1507, 0.5
        %v1512 = vmul.f32 %v1245, 2.0
        %v1513 = vmul.f32 %v1246, 2.0
        %v1514 = vmul.f32 %v1247, 2.0
        %v1515 = vmul.f32 %v1248, 2.0
        %v1516 = vsel %vm1508, 1, 0
        %v1517 = vsel %vm1509, 1, 0
        %v1518 = vsel %vm1510, 1, 0
        %v1519 = vsel %vm1511, 1, 0
        %vm1520 = vcmp.eq.s32.totalorder %v1516, 1
        %vm1521 = vcmp.eq.s32.totalorder %v1517, 1
        %vm1522 = vcmp.eq.s32.totalorder %v1518, 1
        %vm1523 = vcmp.eq.s32.totalorder %v1519, 1
        %v1524 = vsel %vm1520, %v1485, %v1512
        %v1525 = vsel %vm1521, %v1488, %v1513
        %v1526 = vsel %vm1522, %v1491, %v1514
        %v1527 = vsel %vm1523, %v1494, %v1515
        %1528 = vst.msk [vmem:[%s582] sm:$0xff] %vm720, %v1524
        %1529 = vst.msk [vmem:[%s582 + $0x8] sm:$0xff] %vm720, %v1525
        %1530 = vst.msk [vmem:[%s582 + $0x10] sm:$0xff] %vm720, %v1526
        %1531 = vst.msk [vmem:[%s582 + $0x18] sm:$0xff] %vm720, %v1527
        %s1532 = sand.u32 %s420, 1
        %s1533 = sand.u32 %s420, 1
        %s1534 = smul.addr %s1533, 32
        %s1535 = scalar_lea.vmem [#allocation2], %s1534
        // Predicated region
        $region93: #{tpu_custom_call.1} parent=91 // pred_check
          %p1536 = pneg %p430
        $region94: #{tpu_custom_call.1} parent=91 // pred_check_branch
          %1538 = sbr.rel (%p1536) target = $region96
        $region95: #{tpu_custom_call.1} parent=91 // pred_region
          %s1539 = smul.u32 2, %s29
          %s1540 = ssub.s32 3, %s1539
          %p1541 = scmp.lt.s32.totalorder %s1540, 2
          %s1542 = scalar_select %p1541, %s1540, 2
          %s1543 = smul.u32 8, %s1542
          %s1544 = smul.u32 %s1543, 2
          %p1545 = scmp.ne.s32.totalorder 0, %s1544
          %s1546 = smul.addr %s1539, 2
          %s1547 = smul.addr %s1546, 8
          %s1548 = scalar_lea.vmem %s18, %s1547
          %s1549 = smul.u32 %s1542, 2
          // Predicated region
          $region97: #{tpu_custom_call.1} parent=95 // pred_check
            %p1550 = pneg %p1545
          $region98: #{tpu_custom_call.1} parent=95 // pred_check_branch
            %1552 = sbr.rel (%p1550) target = $region100
          $region99: #{tpu_custom_call.1} parent=95 // pred_region
            // Predicated region
            $region101: #{tpu_custom_call.1} parent=99 // pred_check
              _
            $region102: #{tpu_custom_call.1} parent=99 // pred_check_branch
              %1554 = sbr.rel (0) target = $region104
            $region103: #{tpu_custom_call.1} parent=99 // pred_region
              // Predicated region
              $region123: #{tpu_custom_call.1} parent=103 // pred_check
                _
              $region124: #{tpu_custom_call.1} parent=103 // pred_check_branch
                %1610 = sbr.rel (0) target = $region126
              $region125: #{tpu_custom_call.1} parent=103 // pred_region
                %s1611 = sshrl.u32 %s1549, 2
                // While loop
                $region127: #{tpu_custom_call.1} parent=125 // loop_pre_header
                  _
                $region128: #{tpu_custom_call.1} parent=125 // loop_header
                  %s1613 = sphi 0, %s1615
                  %p1614 = scmp.ge.s32.totalorder %s1613, %s1611
                  %s1618 = sphi 0, %s1631
                  %s1619 = sphi %s1535, %s1634
                  %s1620 = sphi %s1548, %s1635
                $region129: #{tpu_custom_call.1} parent=125 // loop_header_branch
                  %1617 = sbr.rel (%p1614) target = $region133
                $region130: #{tpu_custom_call.1} parent=125 // loop_body
                  %v1621 = vld [vmem:[%s1619] sm:$0xff]
                  %1622 = vst [vmem:[%s1620] sm:$0xff] %v1621
                  %v1623 = vld [vmem:[%s1619 + $0x8] sm:$0xff]
                  %1624 = vst [vmem:[%s1620 + $0x8] sm:$0xff] %v1623
                  %v1625 = vld [vmem:[%s1619 + $0x10] sm:$0xff]
                  %1626 = vst [vmem:[%s1620 + $0x10] sm:$0xff] %v1625
                  %v1627 = vld [vmem:[%s1619 + $0x18] sm:$0xff]
                  %1628 = vst [vmem:[%s1620 + $0x18] sm:$0xff] %v1627
                  %s1629 = sadd.s32 1, %s1618
                  %p1630 = scmp.ge.s32.totalorder %s1629, %s1611
                  %s1631 = scalar_select %p1630, 0, %s1629
                  %s1632 = smul.u32 %s1631, 32
                  %s1633 = smul.u32 %s1631, 32
                  %s1634 = scalar_lea.vmem %s1535, %s1632 [#allocation2]
                  %s1635 = scalar_lea.vmem %s1548, %s1633
                $region131: #{tpu_custom_call.1} parent=125 // loop_footer
                  %s1615 = sadd.s32 %s1613, 1
                $region132: #{tpu_custom_call.1} parent=125 // loop_footer_branch
                  %1612 = sbr.rel target = $region128
                $region133: #{tpu_custom_call.1} parent=125 // loop_exit
                  _
                %s1636 = sshrl.u32 %s1549, 2
                %s1637 = sand.u32 %s1549, 3
                %s1638 = smul.u32 %s1636, 4
                %s1639 = smul.u32 8, %s1638
                %s1640 = scalar_lea.vmem %s1535, %s1639 [#allocation2]
                %s1641 = smul.u32 8, %s1638
                %s1642 = scalar_lea.vmem %s1548, %s1641
                // While loop
                $region134: #{tpu_custom_call.1} parent=125 // loop_pre_header
                  _
                $region135: #{tpu_custom_call.1} parent=125 // loop_header
                  %s1644 = sphi 0, %s1646
                  %p1645 = scmp.ge.s32.totalorder %s1644, %s1637
                  %s1649 = sphi 0, %s1656
                  %s1650 = sphi %s1640, %s1659
                  %s1651 = sphi %s1642, %s1660
                $region136: #{tpu_custom_call.1} parent=125 // loop_header_branch
                  %1648 = sbr.rel (%p1645) target = $region140
                $region137: #{tpu_custom_call.1} parent=125 // loop_body
                  %v1652 = vld [vmem:[%s1650] sm:$0xff]
                  %1653 = vst [vmem:[%s1651] sm:$0xff] %v1652
                  %s1654 = sadd.s32 1, %s1649
                  %p1655 = scmp.ge.s32.totalorder %s1654, %s1637
                  %s1656 = scalar_select %p1655, 0, %s1654
                  %s1657 = smul.u32 %s1656, 8
                  %s1658 = smul.u32 %s1656, 8
                  %s1659 = scalar_lea.vmem %s1640, %s1657 [#allocation2]
                  %s1660 = scalar_lea.vmem %s1642, %s1658
                $region138: #{tpu_custom_call.1} parent=125 // loop_footer
                  %s1646 = sadd.s32 %s1644, 1
                $region139: #{tpu_custom_call.1} parent=125 // loop_footer_branch
                  %1643 = sbr.rel target = $region135
                $region140: #{tpu_custom_call.1} parent=125 // loop_exit
                  _
              $region126: #{tpu_custom_call.1} parent=103 // pred_fallthru
                _
              // Predicated region
              $region141: #{tpu_custom_call.1} parent=103 // pred_check
                _
              $region142: #{tpu_custom_call.1} parent=103 // pred_check_branch
                %1662 = sbr.rel target = $region144
              $region143: #{tpu_custom_call.1} parent=103 // pred_region
                _
              $region144: #{tpu_custom_call.1} parent=103 // pred_fallthru
                _
            $region104: #{tpu_custom_call.1} parent=99 // pred_fallthru
              _
            // Predicated region
            $region105: #{tpu_custom_call.1} parent=99 // pred_check
              _
            $region106: #{tpu_custom_call.1} parent=99 // pred_check_branch
              %1556 = sbr.rel target = $region108
            $region107: #{tpu_custom_call.1} parent=99 // pred_region
              %s1558 = ssub.s32 256, 1
              %s1559 = sshrl.u32 %s1549, 2
              // While loop
              $region109: #{tpu_custom_call.1} parent=107 // loop_pre_header
                _
              $region110: #{tpu_custom_call.1} parent=107 // loop_header
                %s1561 = sphi 0, %s1563
                %p1562 = scmp.ge.s32.totalorder %s1561, %s1559
                %s1566 = sphi 0, %s1579
                %s1567 = sphi %s1535, %s1582
                %s1568 = sphi %s1548, %s1583
              $region111: #{tpu_custom_call.1} parent=107 // loop_header_branch
                %1565 = sbr.rel (%p1562) target = $region115
              $region112: #{tpu_custom_call.1} parent=107 // loop_body
                %v1569 = vld [vmem:[%s1567] sm:%s1558]
                %1570 = vst [vmem:[%s1568] sm:%s1558] %v1569
                %v1571 = vld [vmem:[%s1567 + $0x8] sm:%s1558]
                %1572 = vst [vmem:[%s1568 + $0x8] sm:%s1558] %v1571
                %v1573 = vld [vmem:[%s1567 + $0x10] sm:%s1558]
                %1574 = vst [vmem:[%s1568 + $0x10] sm:%s1558] %v1573
                %v1575 = vld [vmem:[%s1567 + $0x18] sm:%s1558]
                %1576 = vst [vmem:[%s1568 + $0x18] sm:%s1558] %v1575
                %s1577 = sadd.s32 1, %s1566
                %p1578 = scmp.ge.s32.totalorder %s1577, %s1559
                %s1579 = scalar_select %p1578, 0, %s1577
                %s1580 = smul.u32 %s1579, 32
                %s1581 = smul.u32 %s1579, 32
                %s1582 = scalar_lea.vmem %s1535, %s1580 [#allocation2]
                %s1583 = scalar_lea.vmem %s1548, %s1581
              $region113: #{tpu_custom_call.1} parent=107 // loop_footer
                %s1563 = sadd.s32 %s1561, 1
              $region114: #{tpu_custom_call.1} parent=107 // loop_footer_branch
                %1560 = sbr.rel target = $region110
              $region115: #{tpu_custom_call.1} parent=107 // loop_exit
                _
              %s1584 = sshrl.u32 %s1549, 2
              %s1585 = sand.u32 %s1549, 3
              %s1586 = smul.u32 %s1584, 4
              %s1587 = smul.u32 8, %s1586
              %s1588 = scalar_lea.vmem %s1535, %s1587 [#allocation2]
              %s1589 = smul.u32 8, %s1586
              %s1590 = scalar_lea.vmem %s1548, %s1589
              // While loop
              $region116: #{tpu_custom_call.1} parent=107 // loop_pre_header
                _
              $region117: #{tpu_custom_call.1} parent=107 // loop_header
                %s1592 = sphi 0, %s1594
                %p1593 = scmp.ge.s32.totalorder %s1592, %s1585
                %s1597 = sphi 0, %s1604
                %s1598 = sphi %s1588, %s1607
                %s1599 = sphi %s1590, %s1608
              $region118: #{tpu_custom_call.1} parent=107 // loop_header_branch
                %1596 = sbr.rel (%p1593) target = $region122
              $region119: #{tpu_custom_call.1} parent=107 // loop_body
                %v1600 = vld [vmem:[%s1598] sm:%s1558]
                %1601 = vst [vmem:[%s1599] sm:%s1558] %v1600
                %s1602 = sadd.s32 1, %s1597
                %p1603 = scmp.ge.s32.totalorder %s1602, %s1585
                %s1604 = scalar_select %p1603, 0, %s1602
                %s1605 = smul.u32 %s1604, 8
                %s1606 = smul.u32 %s1604, 8
                %s1607 = scalar_lea.vmem %s1588, %s1605 [#allocation2]
                %s1608 = scalar_lea.vmem %s1590, %s1606
              $region120: #{tpu_custom_call.1} parent=107 // loop_footer
                %s1594 = sadd.s32 %s1592, 1
              $region121: #{tpu_custom_call.1} parent=107 // loop_footer_branch
                %1591 = sbr.rel target = $region117
              $region122: #{tpu_custom_call.1} parent=107 // loop_exit
                _
            $region108: #{tpu_custom_call.1} parent=99 // pred_fallthru
              _
          $region100: #{tpu_custom_call.1} parent=95 // pred_fallthru
            _
          %1663 = vnop
        $region96: #{tpu_custom_call.1} parent=91 // pred_fallthru
          _
      $region92: #{tpu_custom_call.1} parent=5 // pred_fallthru
        _
      %p1664 = scmp.le.s32.totalorder 2, %s24
      // Predicated region
      $region145: #{tpu_custom_call.1} parent=5 // pred_check
        %p1665 = pneg %p1664
      $region146: #{tpu_custom_call.1} parent=5 // pred_check_branch
        %1667 = sbr.rel (%p1665) target = $region148
      $region147: #{tpu_custom_call.1} parent=5 // pred_region
        %s1668 = ssub.s32 %s24, 2
        // Predicated region
        $region149: #{tpu_custom_call.1} parent=147 // pred_check
          %p1669 = pneg %p436
        $region150: #{tpu_custom_call.1} parent=147 // pred_check_branch
          %1671 = sbr.rel (%p1669) target = $region152
        $region151: #{tpu_custom_call.1} parent=147 // pred_region
          %s1672 = sand.u32 %s421, 1
          %s1673 = sand.u32 %s421, 1
          %s1674 = smul.addr %s1673, 32
          %s1675 = scalar_lea.vmem [#allocation2], %s1674
        $region152: #{tpu_custom_call.1} parent=147 // pred_fallthru
          _
      $region148: #{tpu_custom_call.1} parent=5 // pred_fallthru
        _
    $region6: #{tpu_custom_call.1} parent=1 // loop_footer
      %s28 = sadd.s32 1, %s24
    $region7: #{tpu_custom_call.1} parent=1 // loop_footer_branch
      %23 = sbr.rel target = $region3
    $region8: #{tpu_custom_call.1} parent=1 // loop_exit
      _

// kernel: tpu_custom_call.1
$region0: #{tpu_custom_call.1}
  #allocation0 [shape = 'u32[]', space=smem, size = 0x4, offset = 0x4, fixed_abs, tag = 'smem constant byte address 0x4 - core index']
  #allocation1 [shape = 'u32[72,128]{1,0:T(1,128)}', space=vmem, size = 0x9000, scoped, tag = 'internal scratch']
  %s0 = inlined_call_operand.vmem [shape: f32[4,16,32], index: 0, kind: input, shape index: {}]
  %s1 = inlined_call_operand.vmem [shape: bf16[32,4], index: 1, kind: input, shape index: {}]
  %s2 = inlined_call_operand.vmem [shape: bf16[4,32], index: 2, kind: input, shape index: {}]
  %s3 = inlined_call_operand.vmem [shape: f32[1,32], index: 3, kind: input, shape index: {}]
  %s4 = inlined_call_operand.vmem [shape: f32[1,32], index: 4, kind: input, shape index: {}]
  %s5 = inlined_call_operand.vmem [shape: bf16[32,32], index: 5, kind: input, shape index: {}]
  %s6 = inlined_call_operand.hbm [shape: bf16[32,32], index: 6, kind: input, shape index: {}]
  %s7 = inlined_call_operand.hbm [shape: bf16[32,32], index: 7, kind: input, shape index: {}]
  %s8 = inlined_call_operand.hbm [shape: bf16[32,32], index: 8, kind: input, shape index: {}]
  %s9 = inlined_call_operand.vmem [shape: f32[1,32], index: 9, kind: input, shape index: {}]
  %s10 = inlined_call_operand.vmem [shape: f32[1,32], index: 10, kind: input, shape index: {}]
  %s11 = inlined_call_operand.vmem [shape: f32[1,32], index: 11, kind: input, shape index: {}]
  %s12 = inlined_call_operand.hbm [shape: bf16[32,128], index: 12, kind: input, shape index: {}]
  %s13 = inlined_call_operand.vmem [shape: f32[1,128], index: 13, kind: input, shape index: {}]
  %s14 = inlined_call_operand.vmem [shape: bf16[128,32], index: 14, kind: input, shape index: {}]
  %s15 = inlined_call_operand.vmem [shape: f32[1,32], index: 15, kind: input, shape index: {}]
  %s16 = inlined_call_operand.vmem [shape: f32[1,32], index: 16, kind: input, shape index: {}]
  %s17 = inlined_call_operand.vmem [shape: f32[1,32], index: 17, kind: input, shape index: {}]
  %s18 = inlined_call_operand.hbm [shape: f32[4,16,32], index: 18, kind: output, shape index: {}]
  %s19 = sld [smem:[#allocation0]]
  $region121: #{tpu_custom_call.1} parent=0
    _
  %s21 = ssub.s32 1, %s19
  %s22 = scalar_select 0, %s21, %s19
  $region1: #{tpu_custom_call.1} parent=0
    #allocation2 [shape = 'u8[8192]{0}', space=vmem, size = 0x2000, scoped, tag = 'input window, operand 6, single buffered']
    #allocation3 [shape = 's32[2]{0}', space=sflag, size = 0x8, scoped, tag = 'scoped memory for tpu_custom_call.1']
    #allocation4 [shape = 's32[2]{0}', space=sflag, size = 0x8, scoped, tag = 'scoped memory for tpu_custom_call.1']
    #allocation5 [shape = 'u8[8192]{0}', space=vmem, size = 0x2000, scoped, tag = 'input window, operand 7, single buffered']
    #allocation6 [shape = 's32[1]{0}', space=sflag, size = 0x4, scoped, tag = 'scoped memory for tpu_custom_call.1']
    #allocation7 [shape = 'u8[8192]{0}', space=vmem, size = 0x2000, scoped, tag = 'input window, operand 8, single buffered']
    #allocation8 [shape = 'u8[8192]{0}', space=vmem, size = 0x2000, scoped, tag = 'input window, operand 12, single buffered']
    #allocation9 [shape = 's32[1]{0}', space=sflag, size = 0x4, scoped, tag = 'scoped memory for tpu_custom_call.1']
    #allocation10 [shape = 'u8[32768]{0}', space=vmem, size = 0x8000, scoped, tag = 'output window, operand 0']
    %23 = vsyncpa [#allocation3], 0
    %24 = vsyncpa [#allocation6], 0
    %25 = vsyncpa [#allocation9], 0
    %26 = vsyncpa [#allocation4], 0
    %s27 = scalar_lea.sflag [#allocation4], 1
    %28 = vsyncpa %s27, 0
    loop: start=0, step=1, limit=4
    $region2: #{tpu_custom_call.1} parent=1 // loop_pre_header
      _
    $region3: #{tpu_custom_call.1} parent=1 // loop_header
      %s30 = sphi 0, %s34
      %p31 = scmp.ge.s32.totalorder %s30, 4
      %s40 = sphi 0, %s42
      %s43 = sphi 0, %s40
      %s44 = sphi 0, %s43
      %s60 = sphi 0, %s44
      %s64 = sphi 0, %s64
      %s66 = sphi 0, %s64
      %s67 = sphi 0, %s66
      %s81 = sphi 0, %s67
      %s85 = sphi 0, %s85
      %s87 = sphi 0, %s85
      %s88 = sphi 0, %s87
      %s102 = sphi 0, %s88
      %s106 = sphi 0, %s106
      %s108 = sphi 0, %s106
      %s109 = sphi 0, %s108
      %s123 = sphi 0, %s109
      %s127 = sphi 0, %s127
      %s129 = sphi 0, %s127
      %s130 = sphi 0, %s129
      %s144 = sphi 0, %s130
      %s148 = sphi 0, %s148
      %s150 = sphi 0, %s148
      %s151 = sphi 0, %s150
      %s165 = sphi 0, %s151
      %s169 = sphi 0, %s169
      %s171 = sphi 0, %s169
      %s172 = sphi 0, %s171
      %s186 = sphi 0, %s172
      %s190 = sphi 0, %s190
      %s192 = sphi 0, %s190
      %s193 = sphi 0, %s192
      %s207 = sphi 0, %s193
      %s211 = sphi 0, %s211
      %s213 = sphi 0, %s211
      %s214 = sphi 0, %s213
      %s228 = sphi 0, %s214
      %s232 = sphi 0, %s232
      %s234 = sphi 0, %s232
      %s235 = sphi 0, %s234
      %s249 = sphi 0, %s235
      %s253 = sphi 0, %s253
      %s255 = sphi 0, %s253
      %s256 = sphi 0, %s255
      %s270 = sphi 0, %s256
      %s274 = sphi 0, %s274
      %s276 = sphi 0, %s274
      %s277 = sphi 0, %s276
      %s291 = sphi 0, %s277
      %s295 = sphi 0, %s295
      %s297 = sphi 0, %s295
      %s298 = sphi 0, %s297
      %s312 = sphi 0, %s298
      %s316 = sphi 0, %s316
      %s318 = sphi 0, %s316
      %s319 = sphi 0, %s318
      %s333 = sphi 0, %s319
      %s337 = sphi 0, %s337
      %s339 = sphi 0, %s337
      %s340 = sphi 0, %s339
      %s354 = sphi 0, %s340
      %s358 = sphi 0, %s358
      %s360 = sphi 0, %s358
      %s361 = sphi 0, %s360
      %s375 = sphi 0, %s361
      %s379 = sphi 0, %s379
      %s381 = sphi 0, %s379
      %s382 = sphi 0, %s381
      %s396 = sphi 0, %s382
      %s400 = sphi 0, %s400
      %s402 = sphi 0, %s400
      %s403 = sphi 0, %s402
      %s417 = sphi 0, %s403
      %s423 = sphi 0, %s425
      %s426 = sphi 0, %s423
      %s427 = sphi 0, %s426
      %s443 = sphi 0, %s427
    $region4: #{tpu_custom_call.1} parent=1 // loop_header_branch
      %33 = sbr.rel (%p31) target = $region8
    $region5: #{tpu_custom_call.1} parent=1 // loop_body
      %s35 = ssub.s32 %s30, 1
      %s36 = ssub.s32 %s30, 2
      %s37 = sadd.s32 %s30, 1
      %s38 = ssub.s32 %s30, %s37
      %p39 = scmp.eq.s32.totalorder %s38, 0
      %s41 = sadd.s32 %s40, 1
      %s42 = scalar_select %p39, %s40, %s41
      %p45 = pneg %p39
      %p46 = scmp.eq.s32.totalorder %s30, 1
      %p47 = por %p45, %p46
      %p48 = scmp.ne.s32.totalorder %s40, %s43
      %p49 = scmp.eq.s32.totalorder %s30, 0
      %p50 = por %p48, %p49
      %p51 = scmp.ne.s32.totalorder %s40, %s43
      %p52 = scmp.eq.s32.totalorder %s35, 1
      %p53 = por %p51, %p52
      %p54 = scmp.ne.s32.totalorder %s43, %s44
      %p55 = scmp.eq.s32.totalorder %s35, 0
      %p56 = por %p54, %p55
      %p57 = scmp.ne.s32.totalorder %s43, %s44
      %p58 = scmp.eq.s32.totalorder %s36, 1
      %p59 = por %p57, %p58
      %p61 = scmp.ne.s32.totalorder %s44, %s60
      %p62 = scmp.eq.s32.totalorder %s36, 0
      %p63 = por %p61, %p62
      %s65 = sadd.s32 %s64, 1
      %p68 = scmp.eq.s32.totalorder %s30, 1
      %p69 = scmp.ne.s32.totalorder %s64, %s66
      %p70 = scmp.eq.s32.totalorder %s30, 0
      %p71 = por %p69, %p70
      %p72 = scmp.ne.s32.totalorder %s64, %s66
      %p73 = scmp.eq.s32.totalorder %s35, 1
      %p74 = por %p72, %p73
      %p75 = scmp.ne.s32.totalorder %s66, %s67
      %p76 = scmp.eq.s32.totalorder %s35, 0
      %p77 = por %p75, %p76
      %p78 = scmp.ne.s32.totalorder %s66, %s67
      %p79 = scmp.eq.s32.totalorder %s36, 1
      %p80 = por %p78, %p79
      %p82 = scmp.ne.s32.totalorder %s67, %s81
      %p83 = scmp.eq.s32.totalorder %s36, 0
      %p84 = por %p82, %p83
      %s86 = sadd.s32 %s85, 1
      %p89 = scmp.eq.s32.totalorder %s30, 1
      %p90 = scmp.ne.s32.totalorder %s85, %s87
      %p91 = scmp.eq.s32.totalorder %s30, 0
      %p92 = por %p90, %p91
      %p93 = scmp.ne.s32.totalorder %s85, %s87
      %p94 = scmp.eq.s32.totalorder %s35, 1
      %p95 = por %p93, %p94
      %p96 = scmp.ne.s32.totalorder %s87, %s88
      %p97 = scmp.eq.s32.totalorder %s35, 0
      %p98 = por %p96, %p97
      %p99 = scmp.ne.s32.totalorder %s87, %s88
      %p100 = scmp.eq.s32.totalorder %s36, 1
      %p101 = por %p99, %p100
      %p103 = scmp.ne.s32.totalorder %s88, %s102
      %p104 = scmp.eq.s32.totalorder %s36, 0
      %p105 = por %p103, %p104
      %s107 = sadd.s32 %s106, 1
      %p110 = scmp.eq.s32.totalorder %s30, 1
      %p111 = scmp.ne.s32.totalorder %s106, %s108
      %p112 = scmp.eq.s32.totalorder %s30, 0
      %p113 = por %p111, %p112
      %p114 = scmp.ne.s32.totalorder %s106, %s108
      %p115 = scmp.eq.s32.totalorder %s35, 1
      %p116 = por %p114, %p115
      %p117 = scmp.ne.s32.totalorder %s108, %s109
      %p118 = scmp.eq.s32.totalorder %s35, 0
      %p119 = por %p117, %p118
      %p120 = scmp.ne.s32.totalorder %s108, %s109
      %p121 = scmp.eq.s32.totalorder %s36, 1
      %p122 = por %p120, %p121
      %p124 = scmp.ne.s32.totalorder %s109, %s123
      %p125 = scmp.eq.s32.totalorder %s36, 0
      %p126 = por %p124, %p125
      %s128 = sadd.s32 %s127, 1
      %p131 = scmp.eq.s32.totalorder %s30, 1
      %p132 = scmp.ne.s32.totalorder %s127, %s129
      %p133 = scmp.eq.s32.totalorder %s30, 0
      %p134 = por %p132, %p133
      %p135 = scmp.ne.s32.totalorder %s127, %s129
      %p136 = scmp.eq.s32.totalorder %s35, 1
      %p137 = por %p135, %p136
      %p138 = scmp.ne.s32.totalorder %s129, %s130
      %p139 = scmp.eq.s32.totalorder %s35, 0
      %p140 = por %p138, %p139
      %p141 = scmp.ne.s32.totalorder %s129, %s130
      %p142 = scmp.eq.s32.totalorder %s36, 1
      %p143 = por %p141, %p142
      %p145 = scmp.ne.s32.totalorder %s130, %s144
      %p146 = scmp.eq.s32.totalorder %s36, 0
      %p147 = por %p145, %p146
      %s149 = sadd.s32 %s148, 1
      %p152 = scmp.eq.s32.totalorder %s30, 1
      %p153 = scmp.ne.s32.totalorder %s148, %s150
      %p154 = scmp.eq.s32.totalorder %s30, 0
      %p155 = por %p153, %p154
      %p156 = scmp.ne.s32.totalorder %s148, %s150
      %p157 = scmp.eq.s32.totalorder %s35, 1
      %p158 = por %p156, %p157
      %p159 = scmp.ne.s32.totalorder %s150, %s151
      %p160 = scmp.eq.s32.totalorder %s35, 0
      %p161 = por %p159, %p160
      %p162 = scmp.ne.s32.totalorder %s150, %s151
      %p163 = scmp.eq.s32.totalorder %s36, 1
      %p164 = por %p162, %p163
      %p166 = scmp.ne.s32.totalorder %s151, %s165
      %p167 = scmp.eq.s32.totalorder %s36, 0
      %p168 = por %p166, %p167
      %s170 = sadd.s32 %s169, 1
      %p173 = scmp.eq.s32.totalorder %s30, 1
      %p174 = scmp.ne.s32.totalorder %s169, %s171
      %p175 = scmp.eq.s32.totalorder %s30, 0
      %p176 = por %p174, %p175
      %p177 = scmp.ne.s32.totalorder %s169, %s171
      %p178 = scmp.eq.s32.totalorder %s35, 1
      %p179 = por %p177, %p178
      %p180 = scmp.ne.s32.totalorder %s171, %s172
      %p181 = scmp.eq.s32.totalorder %s35, 0
      %p182 = por %p180, %p181
      %p183 = scmp.ne.s32.totalorder %s171, %s172
      %p184 = scmp.eq.s32.totalorder %s36, 1
      %p185 = por %p183, %p184
      %p187 = scmp.ne.s32.totalorder %s172, %s186
      %p188 = scmp.eq.s32.totalorder %s36, 0
      %p189 = por %p187, %p188
      %s191 = sadd.s32 %s190, 1
      %p194 = scmp.eq.s32.totalorder %s30, 1
      %p195 = scmp.ne.s32.totalorder %s190, %s192
      %p196 = scmp.eq.s32.totalorder %s30, 0
      %p197 = por %p195, %p196
      %p198 = scmp.ne.s32.totalorder %s190, %s192
      %p199 = scmp.eq.s32.totalorder %s35, 1
      %p200 = por %p198, %p199
      %p201 = scmp.ne.s32.totalorder %s192, %s193
      %p202 = scmp.eq.s32.totalorder %s35, 0
      %p203 = por %p201, %p202
      %p204 = scmp.ne.s32.totalorder %s192, %s193
      %p205 = scmp.eq.s32.totalorder %s36, 1
      %p206 = por %p204, %p205
      %p208 = scmp.ne.s32.totalorder %s193, %s207
      %p209 = scmp.eq.s32.totalorder %s36, 0
      %p210 = por %p208, %p209
      %s212 = sadd.s32 %s211, 1
      %p215 = scmp.eq.s32.totalorder %s30, 1
      %p216 = scmp.ne.s32.totalorder %s211, %s213
      %p217 = scmp.eq.s32.totalorder %s30, 0
      %p218 = por %p216, %p217
      %p219 = scmp.ne.s32.totalorder %s211, %s213
      %p220 = scmp.eq.s32.totalorder %s35, 1
      %p221 = por %p219, %p220
      %p222 = scmp.ne.s32.totalorder %s213, %s214
      %p223 = scmp.eq.s32.totalorder %s35, 0
      %p224 = por %p222, %p223
      %p225 = scmp.ne.s32.totalorder %s213, %s214
      %p226 = scmp.eq.s32.totalorder %s36, 1
      %p227 = por %p225, %p226
      %p229 = scmp.ne.s32.totalorder %s214, %s228
      %p230 = scmp.eq.s32.totalorder %s36, 0
      %p231 = por %p229, %p230
      %s233 = sadd.s32 %s232, 1
      %p236 = scmp.eq.s32.totalorder %s30, 1
      %p237 = scmp.ne.s32.totalorder %s232, %s234
      %p238 = scmp.eq.s32.totalorder %s30, 0
      %p239 = por %p237, %p238
      %p240 = scmp.ne.s32.totalorder %s232, %s234
      %p241 = scmp.eq.s32.totalorder %s35, 1
      %p242 = por %p240, %p241
      %p243 = scmp.ne.s32.totalorder %s234, %s235
      %p244 = scmp.eq.s32.totalorder %s35, 0
      %p245 = por %p243, %p244
      %p246 = scmp.ne.s32.totalorder %s234, %s235
      %p247 = scmp.eq.s32.totalorder %s36, 1
      %p248 = por %p246, %p247
      %p250 = scmp.ne.s32.totalorder %s235, %s249
      %p251 = scmp.eq.s32.totalorder %s36, 0
      %p252 = por %p250, %p251
      %s254 = sadd.s32 %s253, 1
      %p257 = scmp.eq.s32.totalorder %s30, 1
      %p258 = scmp.ne.s32.totalorder %s253, %s255
      %p259 = scmp.eq.s32.totalorder %s30, 0
      %p260 = por %p258, %p259
      %p261 = scmp.ne.s32.totalorder %s253, %s255
      %p262 = scmp.eq.s32.totalorder %s35, 1
      %p263 = por %p261, %p262
      %p264 = scmp.ne.s32.totalorder %s255, %s256
      %p265 = scmp.eq.s32.totalorder %s35, 0
      %p266 = por %p264, %p265
      %p267 = scmp.ne.s32.totalorder %s255, %s256
      %p268 = scmp.eq.s32.totalorder %s36, 1
      %p269 = por %p267, %p268
      %p271 = scmp.ne.s32.totalorder %s256, %s270
      %p272 = scmp.eq.s32.totalorder %s36, 0
      %p273 = por %p271, %p272
      %s275 = sadd.s32 %s274, 1
      %p278 = scmp.eq.s32.totalorder %s30, 1
      %p279 = scmp.ne.s32.totalorder %s274, %s276
      %p280 = scmp.eq.s32.totalorder %s30, 0
      %p281 = por %p279, %p280
      %p282 = scmp.ne.s32.totalorder %s274, %s276
      %p283 = scmp.eq.s32.totalorder %s35, 1
      %p284 = por %p282, %p283
      %p285 = scmp.ne.s32.totalorder %s276, %s277
      %p286 = scmp.eq.s32.totalorder %s35, 0
      %p287 = por %p285, %p286
      %p288 = scmp.ne.s32.totalorder %s276, %s277
      %p289 = scmp.eq.s32.totalorder %s36, 1
      %p290 = por %p288, %p289
      %p292 = scmp.ne.s32.totalorder %s277, %s291
      %p293 = scmp.eq.s32.totalorder %s36, 0
      %p294 = por %p292, %p293
      %s296 = sadd.s32 %s295, 1
      %p299 = scmp.eq.s32.totalorder %s30, 1
      %p300 = scmp.ne.s32.totalorder %s295, %s297
      %p301 = scmp.eq.s32.totalorder %s30, 0
      %p302 = por %p300, %p301
      %p303 = scmp.ne.s32.totalorder %s295, %s297
      %p304 = scmp.eq.s32.totalorder %s35, 1
      %p305 = por %p303, %p304
      %p306 = scmp.ne.s32.totalorder %s297, %s298
      %p307 = scmp.eq.s32.totalorder %s35, 0
      %p308 = por %p306, %p307
      %p309 = scmp.ne.s32.totalorder %s297, %s298
      %p310 = scmp.eq.s32.totalorder %s36, 1
      %p311 = por %p309, %p310
      %p313 = scmp.ne.s32.totalorder %s298, %s312
      %p314 = scmp.eq.s32.totalorder %s36, 0
      %p315 = por %p313, %p314
      %s317 = sadd.s32 %s316, 1
      %p320 = scmp.eq.s32.totalorder %s30, 1
      %p321 = scmp.ne.s32.totalorder %s316, %s318
      %p322 = scmp.eq.s32.totalorder %s30, 0
      %p323 = por %p321, %p322
      %p324 = scmp.ne.s32.totalorder %s316, %s318
      %p325 = scmp.eq.s32.totalorder %s35, 1
      %p326 = por %p324, %p325
      %p327 = scmp.ne.s32.totalorder %s318, %s319
      %p328 = scmp.eq.s32.totalorder %s35, 0
      %p329 = por %p327, %p328
      %p330 = scmp.ne.s32.totalorder %s318, %s319
      %p331 = scmp.eq.s32.totalorder %s36, 1
      %p332 = por %p330, %p331
      %p334 = scmp.ne.s32.totalorder %s319, %s333
      %p335 = scmp.eq.s32.totalorder %s36, 0
      %p336 = por %p334, %p335
      %s338 = sadd.s32 %s337, 1
      %p341 = scmp.eq.s32.totalorder %s30, 1
      %p342 = scmp.ne.s32.totalorder %s337, %s339
      %p343 = scmp.eq.s32.totalorder %s30, 0
      %p344 = por %p342, %p343
      %p345 = scmp.ne.s32.totalorder %s337, %s339
      %p346 = scmp.eq.s32.totalorder %s35, 1
      %p347 = por %p345, %p346
      %p348 = scmp.ne.s32.totalorder %s339, %s340
      %p349 = scmp.eq.s32.totalorder %s35, 0
      %p350 = por %p348, %p349
      %p351 = scmp.ne.s32.totalorder %s339, %s340
      %p352 = scmp.eq.s32.totalorder %s36, 1
      %p353 = por %p351, %p352
      %p355 = scmp.ne.s32.totalorder %s340, %s354
      %p356 = scmp.eq.s32.totalorder %s36, 0
      %p357 = por %p355, %p356
      %s359 = sadd.s32 %s358, 1
      %p362 = scmp.eq.s32.totalorder %s30, 1
      %p363 = scmp.ne.s32.totalorder %s358, %s360
      %p364 = scmp.eq.s32.totalorder %s30, 0
      %p365 = por %p363, %p364
      %p366 = scmp.ne.s32.totalorder %s358, %s360
      %p367 = scmp.eq.s32.totalorder %s35, 1
      %p368 = por %p366, %p367
      %p369 = scmp.ne.s32.totalorder %s360, %s361
      %p370 = scmp.eq.s32.totalorder %s35, 0
      %p371 = por %p369, %p370
      %p372 = scmp.ne.s32.totalorder %s360, %s361
      %p373 = scmp.eq.s32.totalorder %s36, 1
      %p374 = por %p372, %p373
      %p376 = scmp.ne.s32.totalorder %s361, %s375
      %p377 = scmp.eq.s32.totalorder %s36, 0
      %p378 = por %p376, %p377
      %s380 = sadd.s32 %s379, 1
      %p383 = scmp.eq.s32.totalorder %s30, 1
      %p384 = scmp.ne.s32.totalorder %s379, %s381
      %p385 = scmp.eq.s32.totalorder %s30, 0
      %p386 = por %p384, %p385
      %p387 = scmp.ne.s32.totalorder %s379, %s381
      %p388 = scmp.eq.s32.totalorder %s35, 1
      %p389 = por %p387, %p388
      %p390 = scmp.ne.s32.totalorder %s381, %s382
      %p391 = scmp.eq.s32.totalorder %s35, 0
      %p392 = por %p390, %p391
      %p393 = scmp.ne.s32.totalorder %s381, %s382
      %p394 = scmp.eq.s32.totalorder %s36, 1
      %p395 = por %p393, %p394
      %p397 = scmp.ne.s32.totalorder %s382, %s396
      %p398 = scmp.eq.s32.totalorder %s36, 0
      %p399 = por %p397, %p398
      %s401 = sadd.s32 %s400, 1
      %p404 = scmp.eq.s32.totalorder %s30, 1
      %p405 = scmp.ne.s32.totalorder %s400, %s402
      %p406 = scmp.eq.s32.totalorder %s30, 0
      %p407 = por %p405, %p406
      %p408 = scmp.ne.s32.totalorder %s400, %s402
      %p409 = scmp.eq.s32.totalorder %s35, 1
      %p410 = por %p408, %p409
      %p411 = scmp.ne.s32.totalorder %s402, %s403
      %p412 = scmp.eq.s32.totalorder %s35, 0
      %p413 = por %p411, %p412
      %p414 = scmp.ne.s32.totalorder %s402, %s403
      %p415 = scmp.eq.s32.totalorder %s36, 1
      %p416 = por %p414, %p415
      %p418 = scmp.ne.s32.totalorder %s403, %s417
      %p419 = scmp.eq.s32.totalorder %s36, 0
      %p420 = por %p418, %p419
      %s421 = ssub.s32 %s30, %s37
      %p422 = scmp.eq.s32.totalorder %s421, 0
      %s424 = sadd.s32 %s423, 1
      %s425 = scalar_select %p422, %s423, %s424
      %p428 = pneg %p422
      %p429 = scmp.eq.s32.totalorder %s30, 1
      %p430 = por %p428, %p429
      %p431 = scmp.ne.s32.totalorder %s423, %s426
      %p432 = scmp.eq.s32.totalorder %s30, 0
      %p433 = por %p431, %p432
      %p434 = scmp.ne.s32.totalorder %s423, %s426
      %p435 = scmp.eq.s32.totalorder %s35, 1
      %p436 = por %p434, %p435
      %p437 = scmp.ne.s32.totalorder %s426, %s427
      %p438 = scmp.eq.s32.totalorder %s35, 0
      %p439 = por %p437, %p438
      %p440 = scmp.ne.s32.totalorder %s426, %s427
      %p441 = scmp.eq.s32.totalorder %s36, 1
      %p442 = por %p440, %p441
      %p444 = scmp.ne.s32.totalorder %s427, %s443
      %p445 = scmp.eq.s32.totalorder %s36, 0
      %p446 = por %p444, %p445
      %p447 = scmp.le.s32.totalorder 1, %s30
      %p448 = scmp.lt.s32.totalorder %s30, 3
      %p449 = pnand %p447, %p448
      %p450 = pneg %p449
      // Predicated region
      $region9: #{tpu_custom_call.1} parent=5 // pred_check
        _
      $region10: #{tpu_custom_call.1} parent=5 // pred_check_branch
        %452 = sbr.rel (%p449) target = $region12
      $region11: #{tpu_custom_call.1} parent=5 // pred_region
        %s453 = ssub.s32 %s30, 1
        // Predicated region
        $region13: #{tpu_custom_call.1} parent=11 // pred_check
          %p454 = pneg %p77
        $region14: #{tpu_custom_call.1} parent=11 // pred_check_branch
          %456 = sbr.rel (%p454) target = $region16
        $region15: #{tpu_custom_call.1} parent=11 // pred_region
          _
        $region16: #{tpu_custom_call.1} parent=11 // pred_fallthru
          _
        // Predicated region
        $region17: #{tpu_custom_call.1} parent=11 // pred_check
          %p457 = pneg %p98
        $region18: #{tpu_custom_call.1} parent=11 // pred_check_branch
          %459 = sbr.rel (%p457) target = $region20
        $region19: #{tpu_custom_call.1} parent=11 // pred_region
          _
        $region20: #{tpu_custom_call.1} parent=11 // pred_fallthru
          _
        // Predicated region
        $region21: #{tpu_custom_call.1} parent=11 // pred_check
          %p460 = pneg %p119
        $region22: #{tpu_custom_call.1} parent=11 // pred_check_branch
          %462 = sbr.rel (%p460) target = $region24
        $region23: #{tpu_custom_call.1} parent=11 // pred_region
          _
        $region24: #{tpu_custom_call.1} parent=11 // pred_fallthru
          _
        // Predicated region
        $region25: #{tpu_custom_call.1} parent=11 // pred_check
          %p463 = pneg %p140
        $region26: #{tpu_custom_call.1} parent=11 // pred_check_branch
          %465 = sbr.rel (%p463) target = $region28
        $region27: #{tpu_custom_call.1} parent=11 // pred_region
          _
        $region28: #{tpu_custom_call.1} parent=11 // pred_fallthru
          _
        // Predicated region
        $region29: #{tpu_custom_call.1} parent=11 // pred_check
          %p466 = pneg %p161
        $region30: #{tpu_custom_call.1} parent=11 // pred_check_branch
          %468 = sbr.rel (%p466) target = $region32
        $region31: #{tpu_custom_call.1} parent=11 // pred_region
          _
        $region32: #{tpu_custom_call.1} parent=11 // pred_fallthru
          _
        // Predicated region
        $region33: #{tpu_custom_call.1} parent=11 // pred_check
          %p469 = pneg %p182
        $region34: #{tpu_custom_call.1} parent=11 // pred_check_branch
          %471 = sbr.rel (%p469) target = $region36
        $region35: #{tpu_custom_call.1} parent=11 // pred_region
          %473 = vsyncadd [#allocation3], 0
          %s474 = sshll.u32 %s6, 4
          %s475 = int_to_ptr.hbm [resolvable:$true] %s474
          %s476 = sshll.u32 [#allocation2], 4
          %s477 = int_to_ptr.vmem [resolvable:$true] %s476
          %482 = dma.hbm_to_vmem [thread:$0]  %s475, 256, %s477, [#allocation3], 64, 64, 4
        $region36: #{tpu_custom_call.1} parent=11 // pred_fallthru
          _
        // Predicated region
        $region37: #{tpu_custom_call.1} parent=11 // pred_check
          %p483 = pneg %p203
        $region38: #{tpu_custom_call.1} parent=11 // pred_check_branch
          %485 = sbr.rel (%p483) target = $region40
        $region39: #{tpu_custom_call.1} parent=11 // pred_region
          %487 = vsyncadd [#allocation6], 0
          %s488 = sshll.u32 %s7, 4
          %s489 = int_to_ptr.hbm [resolvable:$true] %s488
          %s490 = sshll.u32 [#allocation5], 4
          %s491 = int_to_ptr.vmem [resolvable:$true] %s490
          %496 = dma.hbm_to_vmem [thread:$0]  %s489, 256, %s491, [#allocation6], 64, 64, 4
        $region40: #{tpu_custom_call.1} parent=11 // pred_fallthru
          _
        // Predicated region
        $region41: #{tpu_custom_call.1} parent=11 // pred_check
          %p497 = pneg %p224
        $region42: #{tpu_custom_call.1} parent=11 // pred_check_branch
          %499 = sbr.rel (%p497) target = $region44
        $region43: #{tpu_custom_call.1} parent=11 // pred_region
          %501 = vsyncadd [#allocation6], 0
          %s502 = sshll.u32 %s8, 4
          %s503 = int_to_ptr.hbm [resolvable:$true] %s502
          %s504 = sshll.u32 [#allocation7], 4
          %s505 = int_to_ptr.vmem [resolvable:$true] %s504
          %510 = dma.hbm_to_vmem [thread:$0]  %s503, 256, %s505, [#allocation6], 64, 64, 4
        $region44: #{tpu_custom_call.1} parent=11 // pred_fallthru
          _
        // Predicated region
        $region45: #{tpu_custom_call.1} parent=11 // pred_check
          %p511 = pneg %p245
        $region46: #{tpu_custom_call.1} parent=11 // pred_check_branch
          %513 = sbr.rel (%p511) target = $region48
        $region47: #{tpu_custom_call.1} parent=11 // pred_region
          _
        $region48: #{tpu_custom_call.1} parent=11 // pred_fallthru
          _
        // Predicated region
        $region49: #{tpu_custom_call.1} parent=11 // pred_check
          %p514 = pneg %p266
        $region50: #{tpu_custom_call.1} parent=11 // pred_check_branch
          %516 = sbr.rel (%p514) target = $region52
        $region51: #{tpu_custom_call.1} parent=11 // pred_region
          _
        $region52: #{tpu_custom_call.1} parent=11 // pred_fallthru
          _
        // Predicated region
        $region53: #{tpu_custom_call.1} parent=11 // pred_check
          %p517 = pneg %p287
        $region54: #{tpu_custom_call.1} parent=11 // pred_check_branch
          %519 = sbr.rel (%p517) target = $region56
        $region55: #{tpu_custom_call.1} parent=11 // pred_region
          _
        $region56: #{tpu_custom_call.1} parent=11 // pred_fallthru
          _
        // Predicated region
        $region57: #{tpu_custom_call.1} parent=11 // pred_check
          %p520 = pneg %p308
        $region58: #{tpu_custom_call.1} parent=11 // pred_check_branch
          %522 = sbr.rel (%p520) target = $region60
        $region59: #{tpu_custom_call.1} parent=11 // pred_region
          %524 = vsyncadd [#allocation9], 0
          %s525 = sshll.u32 %s12, 4
          %s526 = int_to_ptr.hbm [resolvable:$true] %s525
          %s527 = sshll.u32 [#allocation8], 4
          %s528 = int_to_ptr.vmem [resolvable:$true] %s527
          %533 = dma.hbm_to_vmem [thread:$0]  %s526, 256, %s528, [#allocation9], 64, 64, 4
        $region60: #{tpu_custom_call.1} parent=11 // pred_fallthru
          _
        // Predicated region
        $region61: #{tpu_custom_call.1} parent=11 // pred_check
          %p534 = pneg %p329
        $region62: #{tpu_custom_call.1} parent=11 // pred_check_branch
          %536 = sbr.rel (%p534) target = $region64
        $region63: #{tpu_custom_call.1} parent=11 // pred_region
          _
        $region64: #{tpu_custom_call.1} parent=11 // pred_fallthru
          _
        // Predicated region
        $region65: #{tpu_custom_call.1} parent=11 // pred_check
          %p537 = pneg %p350
        $region66: #{tpu_custom_call.1} parent=11 // pred_check_branch
          %539 = sbr.rel (%p537) target = $region68
        $region67: #{tpu_custom_call.1} parent=11 // pred_region
          _
        $region68: #{tpu_custom_call.1} parent=11 // pred_fallthru
          _
        // Predicated region
        $region69: #{tpu_custom_call.1} parent=11 // pred_check
          %p540 = pneg %p371
        $region70: #{tpu_custom_call.1} parent=11 // pred_check_branch
          %542 = sbr.rel (%p540) target = $region72
        $region71: #{tpu_custom_call.1} parent=11 // pred_region
          _
        $region72: #{tpu_custom_call.1} parent=11 // pred_fallthru
          _
        // Predicated region
        $region73: #{tpu_custom_call.1} parent=11 // pred_check
          %p543 = pneg %p392
        $region74: #{tpu_custom_call.1} parent=11 // pred_check_branch
          %545 = sbr.rel (%p543) target = $region76
        $region75: #{tpu_custom_call.1} parent=11 // pred_region
          _
        $region76: #{tpu_custom_call.1} parent=11 // pred_fallthru
          _
        // Predicated region
        $region77: #{tpu_custom_call.1} parent=11 // pred_check
          %p546 = pneg %p413
        $region78: #{tpu_custom_call.1} parent=11 // pred_check_branch
          %548 = sbr.rel (%p546) target = $region80
        $region79: #{tpu_custom_call.1} parent=11 // pred_region
          _
        $region80: #{tpu_custom_call.1} parent=11 // pred_fallthru
          _
      $region12: #{tpu_custom_call.1} parent=5 // pred_fallthru
        _
      %p549 = scmp.lt.s32.totalorder %s30, 2
      // Predicated region
      $region81: #{tpu_custom_call.1} parent=5 // pred_check
        %p550 = pneg %p549
      $region82: #{tpu_custom_call.1} parent=5 // pred_check_branch
        %552 = sbr.rel (%p550) target = $region84
      $region83: #{tpu_custom_call.1} parent=5 // pred_region
        // Predicated region
        $region85: #{tpu_custom_call.1} parent=83 // pred_check
          %p553 = pneg %p50
        $region86: #{tpu_custom_call.1} parent=83 // pred_check_branch
          %555 = sbr.rel (%p553) target = $region88
        $region87: #{tpu_custom_call.1} parent=83 // pred_region
          %s556 = smul.u32 2, %s30
          %p557 = scmp.lt.s32.totalorder %s556, 3
          %s558 = scalar_select %p557, %s556, 3
          %s559 = smul.addr %s558, 2
          %s560 = smul.addr %s559, 8
          %s561 = scalar_lea.vmem %s0, %s560
          %s562 = smul.u32 2, %s30
        $region88: #{tpu_custom_call.1} parent=83 // pred_fallthru
          _
      $region84: #{tpu_custom_call.1} parent=5 // pred_fallthru
        _
      %p563 = scmp.le.s32.totalorder 1, %s30
      %p564 = scmp.lt.s32.totalorder %s30, 3
      %p565 = pnand %p563, %p564
      %p566 = pneg %p565
      // Predicated region
      $region89: #{tpu_custom_call.1} parent=5 // pred_check
        _
      $region90: #{tpu_custom_call.1} parent=5 // pred_check_branch
        %568 = sbr.rel (%p565) target = $region92
      $region91: #{tpu_custom_call.1} parent=5 // pred_region
        %s569 = ssub.s32 %s30, 1
        // Predicated region
        $region93: #{tpu_custom_call.1} parent=91 // pred_check
          %p570 = pneg %p182
        $region94: #{tpu_custom_call.1} parent=91 // pred_check_branch
          %572 = sbr.rel (%p570) target = $region96
        $region95: #{tpu_custom_call.1} parent=91 // pred_region
          %574 = dma.done [#allocation3], 256
        $region96: #{tpu_custom_call.1} parent=91 // pred_fallthru
          _
        // Predicated region
        $region97: #{tpu_custom_call.1} parent=91 // pred_check
          %p575 = pneg %p203
        $region98: #{tpu_custom_call.1} parent=91 // pred_check_branch
          %577 = sbr.rel (%p575) target = $region100
        $region99: #{tpu_custom_call.1} parent=91 // pred_region
          %579 = dma.done [#allocation6], 256
        $region100: #{tpu_custom_call.1} parent=91 // pred_fallthru
          _
        // Predicated region
        $region101: #{tpu_custom_call.1} parent=91 // pred_check
          %p580 = pneg %p224
        $region102: #{tpu_custom_call.1} parent=91 // pred_check_branch
          %582 = sbr.rel (%p580) target = $region104
        $region103: #{tpu_custom_call.1} parent=91 // pred_region
          %584 = dma.done [#allocation6], 256
        $region104: #{tpu_custom_call.1} parent=91 // pred_fallthru
          _
        // Predicated region
        $region105: #{tpu_custom_call.1} parent=91 // pred_check
          %p585 = pneg %p308
        $region106: #{tpu_custom_call.1} parent=91 // pred_check_branch
          %587 = sbr.rel (%p585) target = $region108
        $region107: #{tpu_custom_call.1} parent=91 // pred_region
          %589 = dma.done [#allocation9], 256
        $region108: #{tpu_custom_call.1} parent=91 // pred_fallthru
          _
        %s590 = smul.u32 2, %s35
        %p591 = scmp.lt.s32.totalorder %s590, 3
        %s592 = scalar_select %p591, %s590, 3
        %s593 = smul.addr %s592, 2
        %s594 = smul.addr %s593, 8
        %s595 = scalar_lea.vmem %s0, %s594
        %p596 = pneg %p56
        %p597 = pneg %p53
        %p598 = pneg %p77
        %p599 = pneg %p74
        %p600 = pneg %p98
        %p601 = pneg %p95
        %p602 = pneg %p119
        %p603 = pneg %p116
        %p604 = pneg %p140
        %p605 = pneg %p137
        %p606 = pneg %p161
        %p607 = pneg %p158
        %p608 = pneg %p182
        %p609 = pneg %p179
        %p610 = pneg %p203
        %p611 = pneg %p200
        %p612 = pneg %p224
        %p613 = pneg %p221
        %p614 = pneg %p245
        %p615 = pneg %p242
        %p616 = pneg %p266
        %p617 = pneg %p263
        %p618 = pneg %p287
        %p619 = pneg %p284
        %p620 = pneg %p308
        %p621 = pneg %p305
        %p622 = pneg %p329
        %p623 = pneg %p326
        %p624 = pneg %p350
        %p625 = pneg %p347
        %p626 = pneg %p371
        %p627 = pneg %p368
        %p628 = pneg %p392
        %p629 = pneg %p389
        %p630 = pneg %p413
        %p631 = pneg %p410
        %p632 = pneg %p439
        %p633 = pneg %p436
        %s634 = sand.u32 %s426, 1
        %s635 = scalar_lea.sflag [#allocation4], %s634
        %s636 = sand.u32 %s426, 1
        %s637 = smul.addr %s636, 32
        %s638 = scalar_lea.vmem [#allocation10], %s637
        %s639 = smul.u32 2, %s35
        %p640 = scmp.lt.s32.totalorder %s639, 3
        %s641 = scalar_select %p640, %s639, 3
        %s642 = smul.addr %s641, 2
        %s643 = smul.addr %s642, 8
        %s644 = scalar_lea.vmem %s0, %s643
        %s645 = smul.u32 2, %s35
        %s646 = smul.u32 2, %s35
        %v648 = vld [vmem:[%s644] sm:$0xff]
        %v649 = vld [vmem:[%s644 + $0x8] sm:$0xff]
        %v650 = vld [vmem:[%s644 + $0x10] sm:$0xff]
        %v651 = vld [vmem:[%s644 + $0x18] sm:$0xff]
        %v652 = vlaneseq
        %v653 = vshrl.u32 %v652, 7
        %v654 = vadd.s32 %v653, 8
        %v655 = vadd.s32 %v653, 16
        %v656 = vadd.s32 %v653, 24
        %v657 = vlaneseq
        %v658 = vand.u32 %v657, 127
        %v659 = vmul.u32 %v658, 16
        %v660 = vsub.s32 %v653, %v659
        %v661 = vsub.s32 %v654, %v659
        %v662 = vsub.s32 %v655, %v659
        %v663 = vsub.s32 %v656, %v659
        %v664 = vmul.u32 %v653, 16
        %v665 = vsub.s32 %v658, %v664
        %vm666 = vcmp.eq.s32.totalorder %v660, 0
        %vm667 = vcmp.eq.s32.totalorder %v661, 0
        %vm668 = vcmp.eq.s32.totalorder %v662, 0
        %vm669 = vcmp.eq.s32.totalorder %v663, 0
        %v670 = vsel %vm666, 1, 0
        %v671 = vsel %vm667, 1, 0
        %v672 = vsel %vm668, 1, 0
        %v673 = vsel %vm669, 1, 0
        %v674 = vcvt.s32.f32 %v670
        %v675 = vcvt.s32.f32 %v671
        %v676 = vcvt.s32.f32 %v672
        %v677 = vcvt.s32.f32 %v673
        %vm678 = vcmp.ge.s32.totalorder %v660, 0
        %vm679 = vcmp.ge.s32.totalorder %v661, 0
        %vm680 = vcmp.ge.s32.totalorder %v662, 0
        %vm681 = vcmp.ge.s32.totalorder %v663, 0
        %vm682 = vcmp.lt.s32.totalorder %v660, 16
        %vm683 = vcmp.lt.s32.totalorder %v661, 16
        %vm684 = vcmp.lt.s32.totalorder %v662, 16
        %vm685 = vcmp.lt.s32.totalorder %v663, 16
        %vm686 = vmand %vm678, %vm682
        %vm687 = vmand %vm679, %vm683
        %vm688 = vmand %vm680, %vm684
        %vm689 = vmand %vm681, %vm685
        %v690 = vsel %vm686, 1, 0
        %v691 = vsel %vm687, 1, 0
        %v692 = vsel %vm688, 1, 0
        %v693 = vsel %vm689, 1, 0
        %v694 = vcvt.s32.f32 %v690
        %v695 = vcvt.s32.f32 %v691
        %v696 = vcvt.s32.f32 %v692
        %v697 = vcvt.s32.f32 %v693
        %vm698 = vcmp.eq.s32.totalorder %v665, 0
        %v699 = vsel %vm698, 1, 0
        %v700 = vcvt.s32.f32 %v699
        %vm701 = vcmp.ge.s32.totalorder %v665, 0
        %vm702 = vcmp.lt.s32.totalorder %v665, 16
        %vm703 = vmand %vm701, %vm702
        %v704 = vsel %vm703, 1, 0
        %v705 = vcvt.s32.f32 %v704
        %s706 = smul.u32 %s35, 2
        %s707 = ssub.s32 3, %s706
        %vm708 = vcmp.lt.s32.totalorder %v660, 10
        %vm709 = vcmp.lt.s32.totalorder %v661, 10
        %vm710 = vcmp.lt.s32.totalorder %v662, 10
        %vm711 = vcmp.lt.s32.totalorder %v663, 10
        %vm712 = vmand %vm678, %vm708
        %vm713 = vmand %vm679, %vm709
        %vm714 = vmand %vm680, %vm710
        %vm715 = vmand %vm681, %vm711
        %v716 = vstv %s707
        %vm717 = vcmp.lt.s32.totalorder %v658, %v716
        %vm718 = vmand %vm712, %vm717
        %vm719 = vmand %vm713, %vm717
        %vm720 = vmand %vm714, %vm717
        %vm721 = vmand %vm715, %vm717
        %v722 = vsel %vm718, 1, 0
        %v723 = vsel %vm719, 1, 0
        %v724 = vsel %vm720, 1, 0
        %v725 = vsel %vm721, 1, 0
        %v726 = vcvt.s32.f32 %v722
        %v727 = vcvt.s32.f32 %v723
        %v728 = vcvt.s32.f32 %v724
        %v729 = vcvt.s32.f32 %v725
        %vm730 = vcmask 15360
        %v731 = vsel %vm730, %v726, 0.0
        %732 = vadd.xlane.f32.xlu0 %v731
        %v733 = vpop.xlane.xlu0 %732
        %v734 = vsel %vm730, %v727, 0.0
        %735 = vadd.xlane.f32.xlu0 %v734
        %v736 = vpop.xlane.xlu0 %735
        %v737 = vsel %vm730, %v728, 0.0
        %738 = vadd.xlane.f32.xlu0 %v737
        %v739 = vpop.xlane.xlu0 %738
        %v740 = vsel %vm730, %v729, 0.0
        %741 = vadd.xlane.f32.xlu0 %v740
        %v742 = vpop.xlane.xlu0 %741
        %vm743 = vcmp.gt.f32.partialorder %v733, 0.5
        %vm744 = vcmp.gt.f32.partialorder %v736, 0.5
        %vm745 = vcmp.gt.f32.partialorder %v739, 0.5
        %vm746 = vcmp.gt.f32.partialorder %v742, 0.5
        %v747 = vsel %vm743, 1, 0
        %v748 = vsel %vm744, 1, 0
        %v749 = vsel %vm745, 1, 0
        %v750 = vsel %vm746, 1, 0
        %vm751 = vcmp.eq.s32.totalorder %v747, 1
        %vm752 = vcmp.eq.s32.totalorder %v748, 1
        %vm753 = vcmp.eq.s32.totalorder %v749, 1
        %vm754 = vcmp.eq.s32.totalorder %v750, 1
        %v755 = vsel %vm751, %v648, 0.0
        %v756 = vsel %vm752, %v649, 0.0
        %v757 = vsel %vm753, %v650, 0.0
        %v758 = vsel %vm754, %v651, 0.0
        %v759 = vld [vmem:[%s3] sm:$0x1]
        %v760 = vld [vmem:[%s4] sm:$0x1]
        %vm761 = vcmask 261120
        %v762 = vsel %vm761, %v755, 0.0
        %763 = vadd.xlane.f32.xlu0 %v762
        %v764 = vpop.xlane.xlu0 %763
        %v765 = vsel %vm761, %v756, 0.0
        %766 = vadd.xlane.f32.xlu0 %v765
        %v767 = vpop.xlane.xlu0 %766
        %v768 = vsel %vm761, %v757, 0.0
        %769 = vadd.xlane.f32.xlu0 %v768
        %v770 = vpop.xlane.xlu0 %769
        %v771 = vsel %vm761, %v758, 0.0
        %772 = vadd.xlane.f32.xlu0 %v771
        %v773 = vpop.xlane.xlu0 %772
        %v774 = vrcp.pop 32.0
        %v775 = vmul.f32 32.0, %v774
        %v776 = vsub.f32 1.0, %v775
        %v777 = vmul.f32 %v774, %v776
        %v778 = vadd.f32 %v774, %v777
        %vm779 = vweird.f32 %v774
        %v780 = vsel %vm779, %v774, %v778
        %v781 = vmul.f32 %v764, %v780
        %v782 = vmul.f32 %v767, %v780
        %v783 = vmul.f32 %v770, %v780
        %v784 = vmul.f32 %v773, %v780
        %v785 = vsub.f32 %v755, %v781
        %v786 = vsub.f32 %v756, %v782
        %v787 = vsub.f32 %v757, %v783
        %v788 = vsub.f32 %v758, %v784
        %v789 = vmul.f32 %v785, %v785
        %v790 = vmul.f32 %v786, %v786
        %v791 = vmul.f32 %v787, %v787
        %v792 = vmul.f32 %v788, %v788
        %v793 = vsel %vm761, %v789, 0.0
        %794 = vadd.xlane.f32.xlu0 %v793
        %v795 = vpop.xlane.xlu0 %794
        %v796 = vsel %vm761, %v790, 0.0
        %797 = vadd.xlane.f32.xlu0 %v796
        %v798 = vpop.xlane.xlu0 %797
        %v799 = vsel %vm761, %v791, 0.0
        %800 = vadd.xlane.f32.xlu0 %v799
        %v801 = vpop.xlane.xlu0 %800
        %v802 = vsel %vm761, %v792, 0.0
        %803 = vadd.xlane.f32.xlu0 %v802
        %v804 = vpop.xlane.xlu0 %803
        %v805 = vmul.f32 %v795, %v780
        %v806 = vmul.f32 %v798, %v780
        %v807 = vmul.f32 %v801, %v780
        %v808 = vmul.f32 %v804, %v780
        %v809 = vadd.f32 %v805, 1e-05
        %v810 = vadd.f32 %v806, 1e-05
        %v811 = vadd.f32 %v807, 1e-05
        %v812 = vadd.f32 %v808, 1e-05
        %v813 = vrsqrt.pop %v809
        %v814 = vmul.f32 %v813, %v809
        %v815 = vmul.f32 %v814, %v813
        %v816 = vmul.f32 0.5, %v815
        %v817 = vsub.f32 1.5, %v816
        %v818 = vmul.f32 %v813, %v817
        %vm819 = vweird.f32 %v809
        %vm820 = vweird.f32 %v813
        %vm821 = vmor %vm819, %vm820
        %v822 = vsel %vm821, %v813, %v818
        %v823 = vrsqrt.pop %v810
        %v824 = vmul.f32 %v823, %v810
        %v825 = vmul.f32 %v824, %v823
        %v826 = vmul.f32 0.5, %v825
        %v827 = vsub.f32 1.5, %v826
        %v828 = vmul.f32 %v823, %v827
        %vm829 = vweird.f32 %v810
        %vm830 = vweird.f32 %v823
        %vm831 = vmor %vm829, %vm830
        %v832 = vsel %vm831, %v823, %v828
        %v833 = vrsqrt.pop %v811
        %v834 = vmul.f32 %v833, %v811
        %v835 = vmul.f32 %v834, %v833
        %v836 = vmul.f32 0.5, %v835
        %v837 = vsub.f32 1.5, %v836
        %v838 = vmul.f32 %v833, %v837
        %vm839 = vweird.f32 %v811
        %vm840 = vweird.f32 %v833
        %vm841 = vmor %vm839, %vm840
        %v842 = vsel %vm841, %v833, %v838
        %v843 = vrsqrt.pop %v812
        %v844 = vmul.f32 %v843, %v812
        %v845 = vmul.f32 %v844, %v843
        %v846 = vmul.f32 0.5, %v845
        %v847 = vsub.f32 1.5, %v846
        %v848 = vmul.f32 %v843, %v847
        %vm849 = vweird.f32 %v812
        %vm850 = vweird.f32 %v843
        %vm851 = vmor %vm849, %vm850
        %v852 = vsel %vm851, %v843, %v848
        %v853 = vmul.f32 %v785, %v822
        %v854 = vmul.f32 %v786, %v832
        %v855 = vmul.f32 %v787, %v842
        %v856 = vmul.f32 %v788, %v852
        %v858 = vperm.slane %v759, 0
        %v860 = vmul.f32 %v853, %v858
        %v861 = vmul.f32 %v854, %v858
        %v862 = vmul.f32 %v855, %v858
        %v863 = vmul.f32 %v856, %v858
        %v865 = vperm.slane %v760, 0
        %v867 = vadd.f32 %v860, %v865
        %v868 = vadd.f32 %v861, %v865
        %v869 = vadd.f32 %v862, %v865
        %v870 = vadd.f32 %v863, %v865
        %v871 = vpack.c.bf16 %v868, %v867
        %v872 = vpack.c.bf16 %v870, %v869
        %v873 = vld [vmem:[#allocation2] sm:$0xf]
        %v874 = vld [vmem:[#allocation2 + $0x4] sm:$0xf]
        %v875 = vld [vmem:[#allocation2 + $0x8] sm:$0xf]
        %v876 = vld [vmem:[#allocation2 + $0xc] sm:$0xf]
        %v881 = vunpack.c.l.b16 %v873
        %v882 = vunpack.c.l.b16 %v874
        %v883 = vunpack.c.l.b16 %v875
        %v884 = vunpack.c.l.b16 %v876
        %v885 = vpack.c.b16 %v882, %v881
        %v886 = vpack.c.b16 %v884, %v883
        %v890 = vsel %vm761, %v871, 0
        %v893 = vsel %vm761, %v872, 0
        %895 = vmatpush.bf16.msra.mxu0 0
        %896 = vmatpush.bf16.msra.mxu0 0
        %897 = vmatpush.bf16.msra.mxu0 0
        %898 = vmatpush.bf16.msra.mxu0 0
        %899 = vmatpush.bf16.msra.mxu0 0
        %900 = vmatpush.bf16.msra.mxu0 0
        %901 = vmatpush.bf16.msra.mxu0 %v886
        %902 = vmatpush.bf16.msra.mxu0 %v885
        %903 = vmatmul.bf16.gmra.mxu0 %v890
        %v904 = vpop.f32.mrf.mxu0
        %v905 = vadd.f32 0.0, %v904
        %v906 = vpop.f32.mrf.mxu0
        %v907 = vadd.f32 0.0, %v906
        %908 = vmatmul.bf16.gmra.mxu0 %v893
        %v909 = vpop.f32.mrf.mxu0
        %v910 = vadd.f32 0.0, %v909
        %v911 = vpop.f32.mrf.mxu0
        %v912 = vadd.f32 0.0, %v911
        %913 = vdwg.mxu0
        %v914 = vld [vmem:[#allocation5] sm:$0xf]
        %v915 = vld [vmem:[#allocation5 + $0x4] sm:$0xf]
        %v916 = vld [vmem:[#allocation5 + $0x8] sm:$0xf]
        %v917 = vld [vmem:[#allocation5 + $0xc] sm:$0xf]
        %v922 = vunpack.c.l.b16 %v914
        %v923 = vunpack.c.l.b16 %v915
        %v924 = vunpack.c.l.b16 %v916
        %v925 = vunpack.c.l.b16 %v917
        %v926 = vpack.c.b16 %v923, %v922
        %v927 = vpack.c.b16 %v925, %v924
        %930 = vmatpush.bf16.msra.mxu0 0
        %931 = vmatpush.bf16.msra.mxu0 0
        %932 = vmatpush.bf16.msra.mxu0 0
        %933 = vmatpush.bf16.msra.mxu0 0
        %934 = vmatpush.bf16.msra.mxu0 0
        %935 = vmatpush.bf16.msra.mxu0 0
        %936 = vmatpush.bf16.msra.mxu0 %v927
        %937 = vmatpush.bf16.msra.mxu0 %v926
        %938 = vmatmul.bf16.gmra.mxu0 %v890
        %v939 = vpop.f32.mrf.mxu0
        %v940 = vadd.f32 0.0, %v939
        %v941 = vpop.f32.mrf.mxu0
        %v942 = vadd.f32 0.0, %v941
        %943 = vmatmul.bf16.gmra.mxu0 %v893
        %v944 = vpop.f32.mrf.mxu0
        %v945 = vadd.f32 0.0, %v944
        %v946 = vpop.f32.mrf.mxu0
        %v947 = vadd.f32 0.0, %v946
        %948 = vdwg.mxu0
        %v950 = vsel %vm761, %v700, 0
        %952 = vmatpush.msra.mxu0 0.0
        %953 = vmatpush.msra.mxu0 0.0
        %954 = vmatpush.msra.mxu0 0.0
        %955 = vmatpush.msra.mxu0 0.0
        %956 = vmatpush.msra.mxu0 0.0
        %957 = vmatpush.msra.mxu0 0.0
        %958 = vmatpush.msra.mxu0 0.0
        %959 = vmatpush.msra.mxu0 0.0
        %960 = vmatpush.msra.mxu0 0.0
        %961 = vmatpush.msra.mxu0 0.0
        %962 = vmatpush.msra.mxu0 0.0
        %963 = vmatpush.msra.mxu0 0.0
        %964 = vmatpush.msra.mxu0 %v758
        %965 = vmatpush.msra.mxu0 %v757
        %966 = vmatpush.msra.mxu0 %v756
        %967 = vmatpush.msra.mxu0 %v755
        %968 = vmatmul.f32.gmra.mxu0 %v950
        %v969 = vpop.f32.mrf.mxu0
        %v970 = vadd.f32 0.0, %v969
        %971 = vdwg.mxu0
        %vm972 = vcmask 254976
        %v973 = vsel %vm972, %v970, 0.0
        %974 = vadd.xlane.f32.xlu0 %v973
        %v975 = vpop.xlane.xlu0 %974
        %v976 = vmul.f32 %v975, %v780
        %v977 = vsub.f32 %v970, %v976
        %v978 = vmul.f32 %v977, %v977
        %v979 = vsel %vm972, %v978, 0.0
        %980 = vadd.xlane.f32.xlu0 %v979
        %v981 = vpop.xlane.xlu0 %980
        %v982 = vmul.f32 %v981, %v780
        %v983 = vadd.f32 %v982, 1e-05
        %v984 = vrsqrt.pop %v983
        %v985 = vmul.f32 %v984, %v983
        %v986 = vmul.f32 %v985, %v984
        %v987 = vmul.f32 0.5, %v986
        %v988 = vsub.f32 1.5, %v987
        %v989 = vmul.f32 %v984, %v988
        %vm990 = vweird.f32 %v983
        %vm991 = vweird.f32 %v984
        %vm992 = vmor %vm990, %vm991
        %v993 = vsel %vm992, %v984, %v989
        %v994 = vmul.f32 %v977, %v993
        %v995 = vmul.f32 %v994, %v858
        %v996 = vadd.f32 %v995, %v865
        %v997 = vpack.c.bf16 %v996, %v996
        %v998 = vld [vmem:[%s5] sm:$0xf]
        %v999 = vld [vmem:[%s5 + $0x4] sm:$0xf]
        %v1000 = vld [vmem:[%s5 + $0x8] sm:$0xf]
        %v1001 = vld [vmem:[%s5 + $0xc] sm:$0xf]
        %v1006 = vunpack.c.l.b16 %v998
        %v1007 = vunpack.c.l.b16 %v999
        %v1008 = vunpack.c.l.b16 %v1000
        %v1009 = vunpack.c.l.b16 %v1001
        %v1010 = vpack.c.b16 %v1007, %v1006
        %v1011 = vpack.c.b16 %v1009, %v1008
        %v1015 = vsel %vm761, %v997, 0
        %1017 = vmatpush.bf16.msra.mxu0 0
        %1018 = vmatpush.bf16.msra.mxu0 0
        %1019 = vmatpush.bf16.msra.mxu0 0
        %1020 = vmatpush.bf16.msra.mxu0 0
        %1021 = vmatpush.bf16.msra.mxu0 0
        %1022 = vmatpush.bf16.msra.mxu0 0
        %1023 = vmatpush.bf16.msra.mxu0 %v1011
        %1024 = vmatpush.bf16.msra.mxu0 %v1010
        %1025 = vmatmul.bf16.gmra.mxu0 %v1015
        %v1026 = vpop.f32.mrf.mxu0
        %v1027 = vadd.f32 0.0, %v1026
        %v1028 = vpop.f32.mrf.mxu0
        %1029 = vdwg.mxu0
        %v1031 = vsel %vm730, %v694, 0
        %v1034 = vsel %vm730, %v695, 0
        %v1037 = vsel %vm730, %v696, 0
        %v1040 = vsel %vm730, %v697, 0
        %vm1042 = vcmask 1041408
        %v1044 = vsel %vm1042, %v1027, 0
        %1046 = vmatpush.msra.mxu0 0.0
        %1047 = vmatpush.msra.mxu0 0.0
        %1048 = vmatpush.msra.mxu0 0.0
        %1049 = vmatpush.msra.mxu0 0.0
        %1050 = vmatpush.msra.mxu0 0.0
        %1051 = vmatpush.msra.mxu0 0.0
        %1052 = vmatpush.msra.mxu0 0.0
        %1053 = vmatpush.msra.mxu0 0.0
        %1054 = vmatpush.msra.mxu0 0.0
        %1055 = vmatpush.msra.mxu0 0.0
        %1056 = vmatpush.msra.mxu0 0.0
        %1057 = vmatpush.msra.mxu0 0.0
        %1058 = vmatpush.msra.mxu0 0.0
        %1059 = vmatpush.msra.mxu0 0.0
        %1060 = vmatpush.msra.mxu0 0.0
        %1061 = vmatpush.msra.mxu0 %v1044
        %1062 = vmatmul.f32.gmra.mxu0 %v1031
        %v1063 = vpop.f32.mrf.mxu0
        %v1064 = vadd.f32 0.0, %v1063
        %1065 = vmatmul.f32.gmra.mxu0 %v1034
        %v1066 = vpop.f32.mrf.mxu0
        %v1067 = vadd.f32 0.0, %v1066
        %1068 = vmatmul.f32.gmra.mxu0 %v1037
        %v1069 = vpop.f32.mrf.mxu0
        %v1070 = vadd.f32 0.0, %v1069
        %1071 = vmatmul.f32.gmra.mxu0 %v1040
        %v1072 = vpop.f32.mrf.mxu0
        %v1073 = vadd.f32 0.0, %v1072
        %1074 = vdwg.mxu0
        %v1075 = vmul.f32 %v1064, %v905
        %v1076 = vmul.f32 %v1067, %v907
        %v1077 = vmul.f32 %v1070, %v910
        %v1078 = vmul.f32 %v1073, %v912
        %v1079 = vpack.c.bf16 %v1076, %v1075
        %v1080 = vpack.c.bf16 %v1078, %v1077
        %v1081 = vld [vmem:[%s1] sm:$0xf]
        %v1082 = vld [vmem:[%s1 + $0x4] sm:$0xf]
        %v1083 = vld [vmem:[%s1 + $0x8] sm:$0xf]
        %v1084 = vld [vmem:[%s1 + $0xc] sm:$0xf]
        %v1089 = vunpack.c.l.b16 %v1081
        %v1090 = vunpack.c.l.b16 %v1082
        %v1091 = vunpack.c.l.b16 %v1083
        %v1092 = vunpack.c.l.b16 %v1084
        %v1093 = vpack.c.b16 %v1090, %v1089
        %v1094 = vpack.c.b16 %v1092, %v1091
        %v1098 = vsel %vm761, %v1079, 0
        %v1101 = vsel %vm761, %v1080, 0
        %1103 = vmatpush.bf16.msra.mxu0 0
        %1104 = vmatpush.bf16.msra.mxu0 0
        %1105 = vmatpush.bf16.msra.mxu0 0
        %1106 = vmatpush.bf16.msra.mxu0 0
        %1107 = vmatpush.bf16.msra.mxu0 0
        %1108 = vmatpush.bf16.msra.mxu0 0
        %1109 = vmatpush.bf16.msra.mxu0 %v1094
        %1110 = vmatpush.bf16.msra.mxu0 %v1093
        %1111 = vmatmul.bf16.gmra.mxu0 %v1098
        %v1112 = vpop.f32.mrf.mxu0
        %v1113 = vadd.f32 0.0, %v1112
        %v1114 = vpop.f32.mrf.mxu0
        %v1115 = vadd.f32 0.0, %v1114
        %1116 = vmatmul.bf16.gmra.mxu0 %v1101
        %v1117 = vpop.f32.mrf.mxu0
        %v1118 = vadd.f32 0.0, %v1117
        %v1119 = vpop.f32.mrf.mxu0
        %v1120 = vadd.f32 0.0, %v1119
        %1121 = vdwg.mxu0
        %vm1122 = vcmp.lt.s32.totalorder %v653, 10
        %vm1123 = vcmp.lt.s32.totalorder %v654, 10
        %v1124 = vsel %vm1122, %v1113, -1e+30
        %v1125 = vsel %vm1123, %v1115, -1e+30
        %vm1126 = vcmask 31744
        %v1127 = vsel %vm1126, %v1124, -inf
        %v1128 = vsel %vm1126, %v1125, -inf
        %v1129 = vmax.f32 %v1127, %v1128
        %v1130 = vrot.slane %v1129, 4
        %v1131 = vmax.f32 %v1129, %v1130
        %v1132 = vrot.slane %v1131, 2
        %v1133 = vmax.f32 %v1131, %v1132
        %v1134 = vrot.slane %v1133, 1
        %v1135 = vmax.f32 %v1133, %v1134
        %v1136 = vsub.f32 %v1124, %v1135
        %v1137 = vsub.f32 %v1125, %v1135
        %v1138 = vmul.f32 %v1136, 1.442695
        %v1139 = vpow.pop %v1138
        %v1140 = vmul.f32 %v1137, 1.442695
        %v1141 = vpow.pop %v1140
        %v1142 = vsel %vm1126, %v1139, 0.0
        %v1143 = vsel %vm1126, %v1141, 0.0
        %v1144 = vadd.f32 %v1142, %v1143
        %v1145 = vrot.slane %v1144, 4
        %v1146 = vadd.f32 %v1144, %v1145
        %v1147 = vrot.slane %v1146, 2
        %v1148 = vadd.f32 %v1146, %v1147
        %v1149 = vrot.slane %v1148, 1
        %v1150 = vadd.f32 %v1148, %v1149
        %v1151 = vrcp.pop %v1150
        %v1152 = vmul.f32 %v1139, %v1151
        %v1153 = vmul.f32 %v1141, %v1151
        %v1154 = vsel %vm1122, %v1118, -1e+30
        %v1155 = vsel %vm1123, %v1120, -1e+30
        %v1156 = vsel %vm1126, %v1154, -inf
        %v1157 = vsel %vm1126, %v1155, -inf
        %v1158 = vmax.f32 %v1156, %v1157
        %v1159 = vrot.slane %v1158, 4
        %v1160 = vmax.f32 %v1158, %v1159
        %v1161 = vrot.slane %v1160, 2
        %v1162 = vmax.f32 %v1160, %v1161
        %v1163 = vrot.slane %v1162, 1
        %v1164 = vmax.f32 %v1162, %v1163
        %v1165 = vsub.f32 %v1154, %v1164
        %v1166 = vsub.f32 %v1155, %v1164
        %v1167 = vmul.f32 %v1165, 1.442695
        %v1168 = vpow.pop %v1167
        %v1169 = vmul.f32 %v1166, 1.442695
        %v1170 = vpow.pop %v1169
        %v1171 = vsel %vm1126, %v1168, 0.0
        %v1172 = vsel %vm1126, %v1170, 0.0
        %v1173 = vadd.f32 %v1171, %v1172
        %v1174 = vrot.slane %v1173, 4
        %v1175 = vadd.f32 %v1173, %v1174
        %v1176 = vrot.slane %v1175, 2
        %v1177 = vadd.f32 %v1175, %v1176
        %v1178 = vrot.slane %v1177, 1
        %v1179 = vadd.f32 %v1177, %v1178
        %v1180 = vrcp.pop %v1179
        %v1181 = vmul.f32 %v1168, %v1180
        %v1182 = vmul.f32 %v1170, %v1180
        %v1183 = vpack.c.bf16 %v1153, %v1152
        %v1184 = vpack.c.bf16 %v1182, %v1181
        %v1185 = vld [vmem:[%s2] sm:$0x3]
        %v1187 = vsel %vm1126, %v1183, 0
        %v1190 = vsel %vm1126, %v1184, 0
        %v1193 = vsel %vm1042, %v1185, 0
        %1195 = vmatpush.bf16.msra.mxu0 0
        %1196 = vmatpush.bf16.msra.mxu0 0
        %1197 = vmatpush.bf16.msra.mxu0 0
        %1198 = vmatpush.bf16.msra.mxu0 0
        %1199 = vmatpush.bf16.msra.mxu0 0
        %1200 = vmatpush.bf16.msra.mxu0 0
        %1201 = vmatpush.bf16.msra.mxu0 0
        %1202 = vmatpush.bf16.msra.mxu0 %v1193
        %1203 = vmatmul.bf16.gmra.mxu0 %v1187
        %v1204 = vpop.f32.mrf.mxu0
        %v1205 = vadd.f32 0.0, %v1204
        %v1206 = vpop.f32.mrf.mxu0
        %v1207 = vadd.f32 0.0, %v1206
        %1208 = vmatmul.bf16.gmra.mxu0 %v1190
        %v1209 = vpop.f32.mrf.mxu0
        %v1210 = vadd.f32 0.0, %v1209
        %v1211 = vpop.f32.mrf.mxu0
        %v1212 = vadd.f32 0.0, %v1211
        %1213 = vdwg.mxu0
        %v1214 = vmul.f32 %v1205, %v940
        %v1215 = vmul.f32 %v1207, %v942
        %v1216 = vmul.f32 %v1210, %v945
        %v1217 = vmul.f32 %v1212, %v947
        %v1219 = vsel %vm761, %v705, 0
        %1221 = vmatpush.msra.mxu0 0.0
        %1222 = vmatpush.msra.mxu0 0.0
        %1223 = vmatpush.msra.mxu0 0.0
        %1224 = vmatpush.msra.mxu0 0.0
        %1225 = vmatpush.msra.mxu0 0.0
        %1226 = vmatpush.msra.mxu0 0.0
        %1227 = vmatpush.msra.mxu0 0.0
        %1228 = vmatpush.msra.mxu0 0.0
        %1229 = vmatpush.msra.mxu0 0.0
        %1230 = vmatpush.msra.mxu0 0.0
        %1231 = vmatpush.msra.mxu0 0.0
        %1232 = vmatpush.msra.mxu0 0.0
        %1233 = vmatpush.msra.mxu0 %v1217
        %1234 = vmatpush.msra.mxu0 %v1216
        %1235 = vmatpush.msra.mxu0 %v1215
        %1236 = vmatpush.msra.mxu0 %v1214
        %1237 = vmatmul.f32.gmra.mxu0 %v1219
        %v1238 = vpop.f32.mrf.mxu0
        %v1239 = vadd.f32 0.0, %v1238
        %1240 = vdwg.mxu0
        %v1241 = vpack.c.bf16 %v1239, %v1239
        %v1242 = vld [vmem:[#allocation7] sm:$0xf]
        %v1243 = vld [vmem:[#allocation7 + $0x4] sm:$0xf]
        %v1244 = vld [vmem:[#allocation7 + $0x8] sm:$0xf]
        %v1245 = vld [vmem:[#allocation7 + $0xc] sm:$0xf]
        %v1246 = vld [vmem:[%s9] sm:$0x1]
        %v1248 = vperm.slane %v1246, 0
        %v1254 = vunpack.c.l.b16 %v1242
        %v1255 = vunpack.c.l.b16 %v1243
        %v1256 = vunpack.c.l.b16 %v1244
        %v1257 = vunpack.c.l.b16 %v1245
        %v1258 = vpack.c.b16 %v1255, %v1254
        %v1259 = vpack.c.b16 %v1257, %v1256
        %v1263 = vsel %vm761, %v1241, 0
        %1265 = vmatpush.bf16.msra.mxu0 0
        %1266 = vmatpush.bf16.msra.mxu0 0
        %1267 = vmatpush.bf16.msra.mxu0 0
        %1268 = vmatpush.bf16.msra.mxu0 0
        %1269 = vmatpush.bf16.msra.mxu0 0
        %1270 = vmatpush.bf16.msra.mxu0 0
        %1271 = vmatpush.bf16.msra.mxu0 %v1259
        %1272 = vmatpush.bf16.msra.mxu0 %v1258
        %1273 = vmatmul.bf16.gmra.mxu0 %v1263
        %v1274 = vpop.f32.mrf.mxu0
        %v1275 = vadd.f32 %v1248, %v1274
        %v1276 = vpop.f32.mrf.mxu0
        %1277 = vdwg.mxu0
        %v1278 = vld [vmem:[%s16] sm:$0x1]
        %v1280 = vperm.slane %v1278, 0
        %v1282 = vmul.f32 %v1280, %v867
        %v1283 = vmul.f32 %v1280, %v868
        %v1284 = vmul.f32 %v1280, %v869
        %v1285 = vmul.f32 %v1280, %v870
        %v1286 = vadd.f32 %v755, %v1282
        %v1287 = vadd.f32 %v756, %v1283
        %v1288 = vadd.f32 %v757, %v1284
        %v1289 = vadd.f32 %v758, %v1285
        %v1290 = vmul.f32 %v1280, %v1275
        %v1291 = vadd.f32 %v970, %v1290
        %v1292 = vld [vmem:[%s10] sm:$0x1]
        %v1293 = vld [vmem:[%s11] sm:$0x1]
        %v1294 = vsel %vm972, %v1291, 0.0
        %1295 = vadd.xlane.f32.xlu0 %v1294
        %v1296 = vpop.xlane.xlu0 %1295
        %v1297 = vmul.f32 %v1296, %v780
        %v1298 = vsub.f32 %v1291, %v1297
        %v1299 = vmul.f32 %v1298, %v1298
        %v1300 = vsel %vm972, %v1299, 0.0
        %1301 = vadd.xlane.f32.xlu0 %v1300
        %v1302 = vpop.xlane.xlu0 %1301
        %v1303 = vmul.f32 %v1302, %v780
        %v1304 = vadd.f32 %v1303, 1e-05
        %v1305 = vrsqrt.pop %v1304
        %v1306 = vmul.f32 %v1305, %v1304
        %v1307 = vmul.f32 %v1306, %v1305
        %v1308 = vmul.f32 0.5, %v1307
        %v1309 = vsub.f32 1.5, %v1308
        %v1310 = vmul.f32 %v1305, %v1309
        %vm1311 = vweird.f32 %v1304
        %vm1312 = vweird.f32 %v1305
        %vm1313 = vmor %vm1311, %vm1312
        %v1314 = vsel %vm1313, %v1305, %v1310
        %v1315 = vmul.f32 %v1298, %v1314
        %v1317 = vperm.slane %v1292, 0
        %v1319 = vmul.f32 %v1315, %v1317
        %v1321 = vperm.slane %v1293, 0
        %v1323 = vadd.f32 %v1319, %v1321
        %v1324 = vpack.c.bf16 %v1323, %v1323
        %v1325 = vld [vmem:[#allocation8] sm:$0xf]
        %v1326 = vld [vmem:[#allocation8 + $0x4] sm:$0xf]
        %v1327 = vld [vmem:[#allocation8 + $0x8] sm:$0xf]
        %v1328 = vld [vmem:[#allocation8 + $0xc] sm:$0xf]
        %v1329 = vld [vmem:[%s13] sm:$0x1]
        %v1331 = vperm.slane %v1329, 0
        %v1337 = vunpack.c.l.b16 %v1325
        %v1338 = vunpack.c.l.b16 %v1326
        %v1339 = vunpack.c.l.b16 %v1327
        %v1340 = vunpack.c.l.b16 %v1328
        %v1341 = vpack.c.b16 %v1338, %v1337
        %v1342 = vpack.c.b16 %v1340, %v1339
        %v1346 = vsel %vm761, %v1324, 0
        %1348 = vmatpush.bf16.msra.mxu0 0
        %1349 = vmatpush.bf16.msra.mxu0 0
        %1350 = vmatpush.bf16.msra.mxu0 0
        %1351 = vmatpush.bf16.msra.mxu0 0
        %1352 = vmatpush.bf16.msra.mxu0 0
        %1353 = vmatpush.bf16.msra.mxu0 0
        %1354 = vmatpush.bf16.msra.mxu0 %v1342
        %1355 = vmatpush.bf16.msra.mxu0 %v1341
        %1356 = vmatmul.bf16.gmra.mxu0 %v1346
        %v1357 = vpop.f32.mrf.mxu0
        %v1358 = vadd.f32 %v1331, %v1357
        %v1359 = vpop.f32.mrf.mxu0
        %1360 = vdwg.mxu0
        %v1361 = vmul.f32 %v1358, 0.5
        %v1362 = vmul.f32 %v1358, 0.70710677
        %v1363 = vmul.f32 %v1362, %v1362
        %v1364 = vmin.f32 16.0, %v1363
        %v1365 = vmul.f32 %v1364, 2.1237322e-06
        %v1366 = vadd.f32 %v1365, 0.00028619796
        %v1367 = vmul.f32 %v1364, %v1366
        %v1368 = vadd.f32 %v1367, 0.0036580483
        %v1369 = vmul.f32 %v1364, %v1368
        %v1370 = vadd.f32 %v1369, 0.05243302
        %v1371 = vmul.f32 %v1364, %v1370
        %v1372 = vadd.f32 %v1371, 0.18741608
        %v1373 = vmul.f32 %v1364, %v1372
        %v1374 = vadd.f32 %v1373, 1.1283791
        %v1375 = vmul.f32 %v1362, %v1374
        %v1376 = vmul.f32 %v1364, 3.8918573e-05
        %v1377 = vadd.f32 %v1376, 0.001143296
        %v1378 = vmul.f32 %v1364, %v1377
        %v1379 = vadd.f32 %v1378, 0.014752088
        %v1380 = vmul.f32 %v1364, %v1379
        %v1381 = vadd.f32 %v1380, 0.112945676
        %v1382 = vmul.f32 %v1364, %v1381
        %v1383 = vadd.f32 %v1382, 0.4994258
        %v1384 = vmul.f32 %v1364, %v1383
        %v1385 = vadd.f32 %v1384, 1.0
        %v1386 = vrcp.pop %v1385
        %v1387 = vmul.f32 %v1385, %v1386
        %v1388 = vsub.f32 1.0, %v1387
        %v1389 = vmul.f32 %v1386, %v1388
        %v1390 = vadd.f32 %v1386, %v1389
        %vm1391 = vweird.f32 %v1385
        %vm1392 = vweird.f32 %v1386
        %vm1393 = vmor %vm1391, %vm1392
        %v1394 = vsel %vm1393, %v1386, %v1390
        %v1395 = vand.u32 2147483647, %v1385
        %vm1396 = vcmp.eq.f32.partialorder %v1395, 8.507059e+37
        %v1397 = vand.u32 %v1385, 2147483648
        %v1398 = vor.u32 1.1754944e-38, %v1397
        %v1399 = vsel %vm1396, %v1398, %v1394
        %v1400 = vmul.f32 %v1375, %v1399
        %v1401 = vmin.f32 %v1400, 1.0
        %v1402 = vmax.f32 %v1401, -1.0
        %v1403 = vadd.f32 %v1402, 1.0
        %v1404 = vmul.f32 %v1361, %v1403
        %v1405 = vpack.c.bf16 %v1404, %v1404
        %v1406 = vld [vmem:[%s14] sm:$0xf]
        %v1407 = vld [vmem:[%s14 + $0x4] sm:$0xf]
        %v1408 = vld [vmem:[%s14 + $0x8] sm:$0xf]
        %v1409 = vld [vmem:[%s14 + $0xc] sm:$0xf]
        %v1410 = vld [vmem:[%s14 + $0x10] sm:$0xf]
        %v1411 = vld [vmem:[%s14 + $0x14] sm:$0xf]
        %v1412 = vld [vmem:[%s14 + $0x18] sm:$0xf]
        %v1413 = vld [vmem:[%s14 + $0x1c] sm:$0xf]
        %v1414 = vld [vmem:[%s14 + $0x20] sm:$0xf]
        %v1415 = vld [vmem:[%s14 + $0x24] sm:$0xf]
        %v1416 = vld [vmem:[%s14 + $0x28] sm:$0xf]
        %v1417 = vld [vmem:[%s14 + $0x2c] sm:$0xf]
        %v1418 = vld [vmem:[%s14 + $0x30] sm:$0xf]
        %v1419 = vld [vmem:[%s14 + $0x34] sm:$0xf]
        %v1420 = vld [vmem:[%s14 + $0x38] sm:$0xf]
        %v1421 = vld [vmem:[%s14 + $0x3c] sm:$0xf]
        %v1422 = vld [vmem:[%s15] sm:$0x1]
        %v1424 = vperm.slane %v1422, 0
        %v1442 = vunpack.c.l.b16 %v1406
        %v1443 = vunpack.c.l.b16 %v1407
        %v1444 = vunpack.c.l.b16 %v1408
        %v1445 = vunpack.c.l.b16 %v1409
        %v1446 = vunpack.c.l.b16 %v1410
        %v1447 = vunpack.c.l.b16 %v1411
        %v1448 = vunpack.c.l.b16 %v1412
        %v1449 = vunpack.c.l.b16 %v1413
        %v1450 = vunpack.c.l.b16 %v1414
        %v1451 = vunpack.c.l.b16 %v1415
        %v1452 = vunpack.c.l.b16 %v1416
        %v1453 = vunpack.c.l.b16 %v1417
        %v1454 = vunpack.c.l.b16 %v1418
        %v1455 = vunpack.c.l.b16 %v1419
        %v1456 = vunpack.c.l.b16 %v1420
        %v1457 = vunpack.c.l.b16 %v1421
        %v1458 = vpack.c.b16 %v1443, %v1442
        %v1459 = vpack.c.b16 %v1445, %v1444
        %v1460 = vpack.c.b16 %v1447, %v1446
        %v1461 = vpack.c.b16 %v1449, %v1448
        %v1462 = vpack.c.b16 %v1451, %v1450
        %v1463 = vpack.c.b16 %v1453, %v1452
        %v1464 = vpack.c.b16 %v1455, %v1454
        %v1465 = vpack.c.b16 %v1457, %v1456
        %1474 = vmatpush.bf16.msra.mxu0 %v1465
        %1475 = vmatpush.bf16.msra.mxu0 %v1464
        %1476 = vmatpush.bf16.msra.mxu0 %v1463
        %1477 = vmatpush.bf16.msra.mxu0 %v1462
        %1478 = vmatpush.bf16.msra.mxu0 %v1461
        %1479 = vmatpush.bf16.msra.mxu0 %v1460
        %1480 = vmatpush.bf16.msra.mxu0 %v1459
        %1481 = vmatpush.bf16.msra.mxu0 %v1458
        %1482 = vmatmul.bf16.gmra.mxu0 %v1405
        %v1483 = vpop.f32.mrf.mxu0
        %v1484 = vadd.f32 %v1424, %v1483
        %v1485 = vpop.f32.mrf.mxu0
        %1486 = vdwg.mxu0
        %v1487 = vld [vmem:[%s17] sm:$0x1]
        %v1489 = vperm.slane %v1487, 0
        %v1491 = vmul.f32 %v1489, %v1484
        %v1492 = vadd.f32 %v1323, %v1491
        %v1494 = vsel %vm730, %v674, 0
        %v1497 = vsel %vm730, %v675, 0
        %v1500 = vsel %vm730, %v676, 0
        %v1503 = vsel %vm730, %v677, 0
        %v1506 = vsel %vm1042, %v1492, 0
        %1508 = vmatpush.msra.mxu0 0.0
        %1509 = vmatpush.msra.mxu0 0.0
        %1510 = vmatpush.msra.mxu0 0.0
        %1511 = vmatpush.msra.mxu0 0.0
        %1512 = vmatpush.msra.mxu0 0.0
        %1513 = vmatpush.msra.mxu0 0.0
        %1514 = vmatpush.msra.mxu0 0.0
        %1515 = vmatpush.msra.mxu0 0.0
        %1516 = vmatpush.msra.mxu0 0.0
        %1517 = vmatpush.msra.mxu0 0.0
        %1518 = vmatpush.msra.mxu0 0.0
        %1519 = vmatpush.msra.mxu0 0.0
        %1520 = vmatpush.msra.mxu0 0.0
        %1521 = vmatpush.msra.mxu0 0.0
        %1522 = vmatpush.msra.mxu0 0.0
        %1523 = vmatpush.msra.mxu0 %v1506
        %1524 = vmatmul.f32.gmra.mxu0 %v1494
        %v1525 = vpop.f32.mrf.mxu0
        %v1526 = vadd.f32 0.0, %v1525
        %1527 = vmatmul.f32.gmra.mxu0 %v1497
        %v1528 = vpop.f32.mrf.mxu0
        %v1529 = vadd.f32 0.0, %v1528
        %1530 = vmatmul.f32.gmra.mxu0 %v1500
        %v1531 = vpop.f32.mrf.mxu0
        %v1532 = vadd.f32 0.0, %v1531
        %1533 = vmatmul.f32.gmra.mxu0 %v1503
        %v1534 = vpop.f32.mrf.mxu0
        %v1535 = vadd.f32 0.0, %v1534
        %1536 = vdwg.mxu0
        %v1537 = vsel %vm730, %v674, 0.0
        %1538 = vadd.xlane.f32.xlu0 %v1537
        %v1539 = vpop.xlane.xlu0 %1538
        %v1540 = vsel %vm730, %v675, 0.0
        %1541 = vadd.xlane.f32.xlu0 %v1540
        %v1542 = vpop.xlane.xlu0 %1541
        %v1543 = vsel %vm730, %v676, 0.0
        %1544 = vadd.xlane.f32.xlu0 %v1543
        %v1545 = vpop.xlane.xlu0 %1544
        %v1546 = vsel %vm730, %v677, 0.0
        %1547 = vadd.xlane.f32.xlu0 %v1546
        %v1548 = vpop.xlane.xlu0 %1547
        %vm1549 = vcmp.gt.f32.partialorder %v1539, 0.5
        %vm1550 = vcmp.gt.f32.partialorder %v1542, 0.5
        %vm1551 = vcmp.gt.f32.partialorder %v1545, 0.5
        %vm1552 = vcmp.gt.f32.partialorder %v1548, 0.5
        %v1553 = vmul.f32 %v1286, 2.0
        %v1554 = vmul.f32 %v1287, 2.0
        %v1555 = vmul.f32 %v1288, 2.0
        %v1556 = vmul.f32 %v1289, 2.0
        %v1557 = vsel %vm1549, 1, 0
        %v1558 = vsel %vm1550, 1, 0
        %v1559 = vsel %vm1551, 1, 0
        %v1560 = vsel %vm1552, 1, 0
        %vm1561 = vcmp.eq.s32.totalorder %v1557, 1
        %vm1562 = vcmp.eq.s32.totalorder %v1558, 1
        %vm1563 = vcmp.eq.s32.totalorder %v1559, 1
        %vm1564 = vcmp.eq.s32.totalorder %v1560, 1
        %v1565 = vsel %vm1561, %v1526, %v1553
        %v1566 = vsel %vm1562, %v1529, %v1554
        %v1567 = vsel %vm1563, %v1532, %v1555
        %v1568 = vsel %vm1564, %v1535, %v1556
        %1569 = vst.msk [vmem:[%s638] sm:$0xff] %vm761, %v1565
        %1570 = vst.msk [vmem:[%s638 + $0x8] sm:$0xff] %vm761, %v1566
        %1571 = vst.msk [vmem:[%s638 + $0x10] sm:$0xff] %vm761, %v1567
        %1572 = vst.msk [vmem:[%s638 + $0x18] sm:$0xff] %vm761, %v1568
        %s1573 = sand.u32 %s426, 1
        %s1574 = scalar_lea.sflag [#allocation4], %s1573
        %s1575 = sand.u32 %s426, 1
        %s1576 = smul.addr %s1575, 32
        %s1577 = scalar_lea.vmem [#allocation10], %s1576
        // Predicated region
        $region109: #{tpu_custom_call.1} parent=91 // pred_check
          %p1578 = pneg %p436
        $region110: #{tpu_custom_call.1} parent=91 // pred_check_branch
          %1580 = sbr.rel (%p1578) target = $region112
        $region111: #{tpu_custom_call.1} parent=91 // pred_region
          %s1581 = smul.u32 2, %s35
          %1583 = vsyncadd %s1574, 0
          %s1584 = smul.addr %s1581, 2
          %s1585 = smul.addr %s1584, 8
          %s1586 = scalar_lea.hbm %s18, %s1585
          %s1587 = sshll.u32 %s1577, 4
          %s1588 = int_to_ptr.vmem [resolvable:$true] %s1587
          %s1589 = sshll.u32 %s1586, 4
          %s1590 = int_to_ptr.hbm [resolvable:$true] %s1589
          %1595 = dma.vmem_to_hbm [thread:$0]  %s1588, 512, %s1590, %s1574, 128, 128, 8
        $region112: #{tpu_custom_call.1} parent=91 // pred_fallthru
          _
      $region92: #{tpu_custom_call.1} parent=5 // pred_fallthru
        _
      %p1596 = scmp.le.s32.totalorder 2, %s30
      // Predicated region
      $region113: #{tpu_custom_call.1} parent=5 // pred_check
        %p1597 = pneg %p1596
      $region114: #{tpu_custom_call.1} parent=5 // pred_check_branch
        %1599 = sbr.rel (%p1597) target = $region116
      $region115: #{tpu_custom_call.1} parent=5 // pred_region
        %s1600 = ssub.s32 %s30, 2
        // Predicated region
        $region117: #{tpu_custom_call.1} parent=115 // pred_check
          %p1601 = pneg %p442
        $region118: #{tpu_custom_call.1} parent=115 // pred_check_branch
          %1603 = sbr.rel (%p1601) target = $region120
        $region119: #{tpu_custom_call.1} parent=115 // pred_region
          %s1604 = sand.u32 %s427, 1
          %s1605 = scalar_lea.sflag [#allocation4], %s1604
          %s1606 = sand.u32 %s427, 1
          %s1607 = smul.addr %s1606, 32
          %s1608 = scalar_lea.vmem [#allocation10], %s1607
          %1610 = dma.done %s1605, 512
        $region120: #{tpu_custom_call.1} parent=115 // pred_fallthru
          _
      $region116: #{tpu_custom_call.1} parent=5 // pred_fallthru
        _
    $region6: #{tpu_custom_call.1} parent=1 // loop_footer
      %s34 = sadd.s32 1, %s30
    $region7: #{tpu_custom_call.1} parent=1 // loop_footer_branch
      %29 = sbr.rel target = $region3
    $region8: #{tpu_custom_call.1} parent=1 // loop_exit
      _
    %1611 = vsyncpa [#allocation3], 1
    %s1612 = scalar_lea.sflag [#allocation3], 1
    %1613 = vsyncpa %s1612, 1
    %1614 = vsyncpa [#allocation6], 1
    %1615 = vsyncpa [#allocation9], 1
    %1616 = vsyncpa [#allocation4], 1
    %s1617 = scalar_lea.sflag [#allocation4], 1
    %1618 = vsyncpa %s1617, 1

</llo_original>
